<compile_context>
chip_gen: v7x
topology: tpu7x:2x2x1
jax: 0.10.0
libtpu: 0.0.40
codegen_flags: <defaults>
</compile_context>

<pallas_src>
import jax
import jax.numpy as jnp
from jax import lax
from jax.experimental import pallas as pl
from jax.experimental.pallas import tpu as pltpu

D_IN = 784
H1 = 512
H2 = 256
D_OUT = 1
OUT_ROWS = 8          # sublane-aligned replication of the 1-wide head


def _round_up(n, m):
    return ((n + m - 1) // m) * m


def _choose_block_b(B, requested):
    """Pick the batch tile.

    As large as requested (multiple of 256 -> full 256-wide MXU occupancy on
    v6e/v7x), but shrunk (in 256 steps, never below 256) until the grid has at
    least 4 steps when the batch allows it, so each v7x TensorCore gets >= 2
    steps and the x-tile DMA pipelines under the MXU work.
    """
    full = _round_up(B, 8)              # whole batch, sublane-aligned
    if full <= 256:
        return full                     # tiny batch: single step
    bb = max(256, (min(requested, full) // 256) * 256)
    while bb > 256 and pl.cdiv(B, bb) < 4:
        bb -= 256
    return min(bb, full)


def dnet_kernel(x_ref, w1_ref, b1_ref, w2_ref, b2_ref, w3t_ref, b3_ref, o_ref):
    """Whole MLP forward for one batch tile, fused in VMEM.

    x arrives f32 and is cast to bf16 in-kernel (cheap VPU work hidden under the
    MXU); weights are resident bf16; all accumulation/bias/activation math is f32.
    """
    x = x_ref[...].astype(jnp.bfloat16)                       # (bb, 784)

    # Linear(784->512) + LeakyReLU(0.01); bf16 x bf16 matmul, f32 accumulate.
    h1 = jnp.dot(x, w1_ref[...], preferred_element_type=jnp.float32) + b1_ref[...]
    h1 = jnp.maximum(h1, 0.01 * h1).astype(jnp.bfloat16)      # (bb, 512) bf16

    # Linear(512->256) + LeakyReLU(0.01)
    h2 = jnp.dot(h1, w2_ref[...], preferred_element_type=jnp.float32) + b2_ref[...]
    h2 = jnp.maximum(h2, 0.01 * h2).astype(jnp.bfloat16)      # (bb, 256) bf16

    # Linear(256->1) + Sigmoid, computed transposed so the store is a compact
    # lane-dense (8, bb) slab: contract w3^T (8,256) with h2 (bb,256) over the
    # feature axis (q@k^T-style matmul).  All 8 rows are identical replicas.
    z = lax.dot_general(
        w3t_ref[...], h2,
        dimension_numbers=(((1,), (1,)), ((), ())),
        preferred_element_type=jnp.float32,
    ) + b3_ref[0, 0]                                          # (8, bb) f32

    sig = pl.reciprocal(1.0 + jnp.exp(-z), approx=False)      # exact sigmoid (EUP)
    o_ref[...] = sig.astype(o_ref.dtype)


def prepare_params(params):
    """One-time layout prep (call only when the discriminator weights change).

    Casts the matmul weights to bf16 (MXU native), reshapes biases to
    broadcastable f32 rows, and pre-transposes/replicates the 256->1 head so the
    kernel writes a lane-dense (8, block_b) output slab.
    """
    w1, b1, w2, b2, w3, b3 = params
    w1_b = w1.astype(jnp.bfloat16)                                   # (784, 512)
    w2_b = w2.astype(jnp.bfloat16)                                   # (512, 256)
    w3t = jnp.tile(w3.reshape(1, H2), (OUT_ROWS, 1)).astype(jnp.bfloat16)  # (8, 256)
    b1_r = b1.reshape(1, H1).astype(jnp.float32)
    b2_r = b2.reshape(1, H2).astype(jnp.float32)
    b3_s = b3.reshape(1, 1).astype(jnp.float32)                      # SMEM scalar
    return (w1_b, b1_r, w2_b, b2_r, w3t, b3_s)


def dnet_forward(x, prep, *, block_b=1024):
    """x: (B, 784) float32, prep: prepare_params(...) -> (B, 1) float32."""
    w1_b, b1_r, w2_b, b2_r, w3t, b3_s = prep
    B, d_in = x.shape
    assert d_in == D_IN

    bb = _choose_block_b(B, block_b)
    grid_n = pl.cdiv(B, bb)
    b_pad = grid_n * bb
    # NOTE: when B % bb != 0 the last x tile reads past B; those garbage rows are
    # independent matmul rows and are sliced off below, valid rows are unaffected.

    in_specs = [
        pl.BlockSpec((bb, D_IN), lambda i: (i, 0)),          # x tile (full 784 lanes)
        pl.BlockSpec((D_IN, H1), lambda i: (0, 0)),          # w1 (resident)
        pl.BlockSpec((1, H1), lambda i: (0, 0)),             # b1
        pl.BlockSpec((H1, H2), lambda i: (0, 0)),            # w2 (resident)
        pl.BlockSpec((1, H2), lambda i: (0, 0)),             # b2
        pl.BlockSpec((OUT_ROWS, H2), lambda i: (0, 0)),      # w3^T replicated (resident)
        pl.BlockSpec(memory_space=pltpu.MemorySpace.SMEM),   # b3 scalar
    ]
    out_spec = pl.BlockSpec((OUT_ROWS, bb), lambda i: (0, i))

    out_rows = pl.pallas_call(
        dnet_kernel,
        out_shape=jax.ShapeDtypeStruct((OUT_ROWS, b_pad), jnp.float32),
        grid_spec=pltpu.PrefetchScalarGridSpec(
            num_scalar_prefetch=0,
            grid=(grid_n,),
            in_specs=in_specs,
            out_specs=out_spec,
        ),
        compiler_params=pltpu.CompilerParams(
            dimension_semantics=("parallel",),
            vmem_limit_bytes=48 * 1024 * 1024,
        ),
    )(x, w1_b, b1_r, w2_b, b2_r, w3t, b3_s)

    # Row 0 holds the outputs (rows are identical replicas of the 256->1 head).
    return out_rows[0, :B].reshape(B, D_OUT)


def init_params(key):
    """Deterministic parameter init (PyTorch-like uniform fan-in bounds), f32."""
    k1, k2, k3, k4, k5, k6 = jax.random.split(key, 6)

    def lin(kw, kb, fan_in, fan_out):
        bound = 1.0 / (fan_in ** 0.5)
        w = jax.random.uniform(kw, (fan_in, fan_out), jnp.float32, -bound, bound)
        b = jax.random.uniform(kb, (fan_out,), jnp.float32, -bound, bound)
        return w, b

    w1, b1 = lin(k1, k2, D_IN, H1)
    w2, b2 = lin(k3, k4, H1, H2)
    w3, b3 = lin(k5, k6, H2, D_OUT)
    return (w1, b1, w2, b2, w3, b3)


def dnet_ref(x, params):
    """Pure-JAX reference mirroring the kernel's bf16-matmul / f32-accumulate path."""
    w1, b1, w2, b2, w3, b3 = params
    h = jnp.dot(x.astype(jnp.bfloat16), w1.astype(jnp.bfloat16),
                preferred_element_type=jnp.float32) + b1.reshape(1, -1)
    h = jnp.where(h > 0, h, 0.01 * h)
    h = jnp.dot(h.astype(jnp.bfloat16), w2.astype(jnp.bfloat16),
                preferred_element_type=jnp.float32) + b2.reshape(1, -1)
    h = jnp.where(h > 0, h, 0.01 * h)
    h = jnp.dot(h.astype(jnp.bfloat16), w3.astype(jnp.bfloat16),
                preferred_element_type=jnp.float32) + b3.reshape(1, -1)
    return jax.nn.sigmoid(h)


if __name__ == "__main__":
    key = jax.random.PRNGKey(0)
    kx, kp = jax.random.split(key)

    # B=2048 -> block_b auto-selects 512 -> 4 grid steps (>= 2 per v7x TensorCore).
    B = 2048
    x = jax.random.normal(kx, (B, D_IN), jnp.float32)
    params = init_params(kp)

    prep = prepare_params(params)        # one-time layout prep, hoisted out of forward
    out = dnet_forward(x, prep)
    out = jax.block_until_ready(out)

    ref = dnet_ref(x, params)
    assert out.shape == (B, D_OUT), out.shape
    # Tolerance covers bf16 matmul accumulation-order differences (sigmoid is exact).
    max_err = float(jnp.max(jnp.abs(out - ref)))
    assert jnp.allclose(out, ref, atol=2e-3, rtol=1e-2), max_err
    print("KERNEL_OK")
</pallas_src>

<mosaic_0001>
module attributes {stable_mosaic.version = 11 : i64} {
  func.func @dnet_kernel(%arg0: i32, %arg1: memref<512x784xf32, #tpu.memory_space<vmem>>, %arg2: memref<784x512xbf16, #tpu.memory_space<vmem>>, %arg3: memref<1x512xf32, #tpu.memory_space<vmem>>, %arg4: memref<512x256xbf16, #tpu.memory_space<vmem>>, %arg5: memref<1x256xf32, #tpu.memory_space<vmem>>, %arg6: memref<8x256xbf16, #tpu.memory_space<vmem>>, %arg7: memref<1x1xf32, #tpu.memory_space<smem>>, %arg8: memref<8x512xf32, #tpu.memory_space<vmem>>) attributes {dimension_semantics = [#tpu.dimension_semantics<parallel>], iteration_bounds = array<i64: 4>, scalar_prefetch = 0 : i64, scratch_operands = 0 : i64, tpu.core_type = #tpu.core_type<tc>, window_params = [{transform_indices = @transform_0, window_bounds = array<i64: 512, 784>}, {pipeline_mode = #tpu.pipeline_mode<synchronous>, transform_indices = @transform_1, window_bounds = array<i64: 784, 512>}, {pipeline_mode = #tpu.pipeline_mode<synchronous>, transform_indices = @transform_2, window_bounds = array<i64: 1, 512>}, {pipeline_mode = #tpu.pipeline_mode<synchronous>, transform_indices = @transform_3, window_bounds = array<i64: 512, 256>}, {pipeline_mode = #tpu.pipeline_mode<synchronous>, transform_indices = @transform_4, window_bounds = array<i64: 1, 256>}, {pipeline_mode = #tpu.pipeline_mode<synchronous>, transform_indices = @transform_5, window_bounds = array<i64: 8, 256>}, {transform_indices = @transform_6, window_bounds = array<i64: 1, 1>}, {transform_indices = @transform_7, window_bounds = array<i64: 8, 512>}]} {
    %c0 = arith.constant 0 : index
    %c0_0 = arith.constant 0 : index
    %0 = vector.load %arg1[%c0, %c0_0] : memref<512x784xf32, #tpu.memory_space<vmem>>, vector<512x784xf32>
    %1 = arith.truncf %0 : vector<512x784xf32> to vector<512x784xbf16>
    %c0_1 = arith.constant 0 : index
    %c0_2 = arith.constant 0 : index
    %2 = vector.load %arg2[%c0_1, %c0_2] : memref<784x512xbf16, #tpu.memory_space<vmem>>, vector<784x512xbf16>
    %cst = arith.constant dense<0.000000e+00> : vector<512x512xf32>
    %3 = tpu.matmul %1, %2, %cst {dimension_numbers = #tpu.dot_dimension_numbers<[1], [0], [0], [1], [0, 0, 1, 1], [], []>} : vector<512x784xbf16>, vector<784x512xbf16>, vector<512x512xf32> -> vector<512x512xf32>
    %c0_3 = arith.constant 0 : index
    %c0_4 = arith.constant 0 : index
    %4 = vector.load %arg3[%c0_3, %c0_4] : memref<1x512xf32, #tpu.memory_space<vmem>>, vector<1x512xf32>
    %5 = vector.broadcast %4 : vector<1x512xf32> to vector<512x512xf32>
    %6 = arith.addf %3, %5 : vector<512x512xf32>
    %cst_5 = arith.constant 0.00999999977 : f32
    %7 = vector.broadcast %cst_5 : f32 to vector<512x512xf32>
    %8 = arith.mulf %7, %6 : vector<512x512xf32>
    %9 = arith.maximumf %6, %8 : vector<512x512xf32>
    %10 = arith.truncf %9 : vector<512x512xf32> to vector<512x512xbf16>
    %c0_6 = arith.constant 0 : index
    %c0_7 = arith.constant 0 : index
    %11 = vector.load %arg4[%c0_6, %c0_7] : memref<512x256xbf16, #tpu.memory_space<vmem>>, vector<512x256xbf16>
    %cst_8 = arith.constant dense<0.000000e+00> : vector<512x256xf32>
    %12 = tpu.matmul %10, %11, %cst_8 {dimension_numbers = #tpu.dot_dimension_numbers<[1], [0], [0], [1], [0, 0, 1, 1], [], []>} : vector<512x512xbf16>, vector<512x256xbf16>, vector<512x256xf32> -> vector<512x256xf32>
    %c0_9 = arith.constant 0 : index
    %c0_10 = arith.constant 0 : index
    %13 = vector.load %arg5[%c0_9, %c0_10] : memref<1x256xf32, #tpu.memory_space<vmem>>, vector<1x256xf32>
    %14 = vector.broadcast %13 : vector<1x256xf32> to vector<512x256xf32>
    %15 = arith.addf %12, %14 : vector<512x256xf32>
    %cst_11 = arith.constant 0.00999999977 : f32
    %16 = vector.broadcast %cst_11 : f32 to vector<512x256xf32>
    %17 = arith.mulf %16, %15 : vector<512x256xf32>
    %18 = arith.maximumf %15, %17 : vector<512x256xf32>
    %19 = arith.truncf %18 : vector<512x256xf32> to vector<512x256xbf16>
    %c0_12 = arith.constant 0 : index
    %c0_13 = arith.constant 0 : index
    %20 = vector.load %arg6[%c0_12, %c0_13] : memref<8x256xbf16, #tpu.memory_space<vmem>>, vector<8x256xbf16>
    %cst_14 = arith.constant dense<0.000000e+00> : vector<8x512xf32>
    %21 = tpu.matmul %20, %19, %cst_14 {dimension_numbers = #tpu.dot_dimension_numbers<[1], [1], [0], [0], [0, 0, 1, 0], [], []>} : vector<8x256xbf16>, vector<512x256xbf16>, vector<8x512xf32> -> vector<8x512xf32>
    %c0_15 = arith.constant 0 : index
    %c0_16 = arith.constant 0 : index
    %22 = memref.load %arg7[%c0_15, %c0_16] : memref<1x1xf32, #tpu.memory_space<smem>>
    %23 = vector.broadcast %22 : f32 to vector<8x512xf32>
    %24 = arith.addf %21, %23 : vector<8x512xf32>
    %cst_17 = arith.constant 0.000000e+00 : f32
    %25 = vector.broadcast %cst_17 : f32 to vector<8x512xf32>
    %26 = arith.subf %25, %24 : vector<8x512xf32>
    %27 = math.exp %26 : vector<8x512xf32>
    %cst_18 = arith.constant 1.000000e+00 : f32
    %28 = vector.broadcast %cst_18 : f32 to vector<8x512xf32>
    %29 = arith.addf %28, %27 : vector<8x512xf32>
    %30 = tpu.reciprocal %29 : vector<8x512xf32> -> vector<8x512xf32>
    %c0_19 = arith.constant 0 : index
    %c0_20 = arith.constant 0 : index
    %31 = vector.load %arg8[%c0_19, %c0_20] : memref<8x512xf32, #tpu.memory_space<vmem>>, vector<8x512xf32>
    tpu.vector_store %arg8[%c0_19, %c0_20], %30 {strides = array<i32>} : memref<8x512xf32, #tpu.memory_space<vmem>>, vector<8x512xf32>,
    return
  }
  func.func @transform_0(%arg0: i32) -> (i32, i32) {
    %c0_i32 = arith.constant 0 : i32
    %c0_i32_0 = arith.constant 0 : i32
    return %arg0, %c0_i32 : i32, i32
  }
  func.func @transform_1(%arg0: i32) -> (i32, i32) {
    %c0_i32 = arith.constant 0 : i32
    %c0_i32_0 = arith.constant 0 : i32
    %c0_i32_1 = arith.constant 0 : i32
    return %c0_i32, %c0_i32_0 : i32, i32
  }
  func.func @transform_2(%arg0: i32) -> (i32, i32) {
    %c0_i32 = arith.constant 0 : i32
    %c0_i32_0 = arith.constant 0 : i32
    %c0_i32_1 = arith.constant 0 : i32
    return %c0_i32, %c0_i32_0 : i32, i32
  }
  func.func @transform_3(%arg0: i32) -> (i32, i32) {
    %c0_i32 = arith.constant 0 : i32
    %c0_i32_0 = arith.constant 0 : i32
    %c0_i32_1 = arith.constant 0 : i32
    return %c0_i32, %c0_i32_0 : i32, i32
  }
  func.func @transform_4(%arg0: i32) -> (i32, i32) {
    %c0_i32 = arith.constant 0 : i32
    %c0_i32_0 = arith.constant 0 : i32
    %c0_i32_1 = arith.constant 0 : i32
    return %c0_i32, %c0_i32_0 : i32, i32
  }
  func.func @transform_5(%arg0: i32) -> (i32, i32) {
    %c0_i32 = arith.constant 0 : i32
    %c0_i32_0 = arith.constant 0 : i32
    %c0_i32_1 = arith.constant 0 : i32
    return %c0_i32, %c0_i32_0 : i32, i32
  }
  func.func @transform_6(%arg0: i32) -> (i32, i32) {
    %c0_i32 = arith.constant 0 : i32
    %c0_i32_0 = arith.constant 0 : i32
    %c0_i32_1 = arith.constant 0 : i32
    return %c0_i32, %c0_i32_0 : i32, i32
  }
  func.func @transform_7(%arg0: i32) -> (i32, i32) {
    %c0_i32 = arith.constant 0 : i32
    %c0_i32_0 = arith.constant 0 : i32
    return %c0_i32, %arg0 : i32, i32
  }
}

</mosaic_0001>

<llo_original>
// kernel: tpu_custom_call.1
$region0: #{tpu_custom_call.1}
  #allocation0 [shape = 'u32[]', space=smem, size = 0x4, offset = 0x4, fixed_abs, tag = 'smem constant byte address 0x4 - core index']
  #allocation1 [shape = 'u32[144,128]{1,0:T(1,128)}', space=vmem, size = 0x12000, scoped, tag = 'internal scratch']
  #allocation2 [shape = 'f32[1,1]{1,0:T(1,128)S(6)}', space=smem, size = 0x200, scoped, tag = 'scoped memory for tpu_custom_call.1']
  %s0 = inlined_call_operand.vmem [shape: f32[2048,784], index: 0, kind: input, shape index: {}]
  %s1 = inlined_call_operand.vmem [shape: bf16[784,512], index: 1, kind: input, shape index: {}]
  %s2 = inlined_call_operand.vmem [shape: f32[1,512], index: 2, kind: input, shape index: {}]
  %s3 = inlined_call_operand.vmem [shape: bf16[512,256], index: 3, kind: input, shape index: {}]
  %s4 = inlined_call_operand.vmem [shape: f32[1,256], index: 4, kind: input, shape index: {}]
  %s5 = inlined_call_operand.vmem [shape: bf16[8,256], index: 5, kind: input, shape index: {}]
  %s6 = inlined_call_operand.<no memory space> [shape: f32[1,1], index: 6, kind: input, shape index: {}]
  %s7 = inlined_call_operand.hbm [shape: f32[8,2048], index: 7, kind: output, shape index: {}]
  %s8 = sld [smem:[#allocation0]]
  $region61: #{tpu_custom_call.1} parent=0
    _
  %s10 = ssub.s32 1, %s8
  %s11 = scalar_select 0, %s10, %s8
  %12 = sst [smem:[#allocation2]] %s6
  $region1: #{tpu_custom_call.1} parent=0
    #allocation3 [shape = 'u8[32768]{0}', space=vmem, size = 0x8000, scoped, tag = 'output window, operand 0']
    #allocation4 [shape = 's32[2]{0}', space=sflag, size = 0x8, scoped, tag = 'scoped memory for tpu_custom_call.1']
    %13 = vsyncpa [#allocation4], 0
    %s14 = scalar_lea.sflag [#allocation4], 1
    %15 = vsyncpa %s14, 0
    loop: start=0, step=1, limit=6
    $region2: #{tpu_custom_call.1} parent=1 // loop_pre_header
      _
    $region3: #{tpu_custom_call.1} parent=1 // loop_header
      %s17 = sphi 0, %s21
      %p18 = scmp.ge.s32.totalorder %s17, 6
      %s27 = sphi 0, %s29
      %s30 = sphi 0, %s27
      %s31 = sphi 0, %s30
      %s47 = sphi 0, %s31
      %s51 = sphi 0, %s51
      %s53 = sphi 0, %s51
      %s54 = sphi 0, %s53
      %s68 = sphi 0, %s54
      %s72 = sphi 0, %s72
      %s74 = sphi 0, %s72
      %s75 = sphi 0, %s74
      %s89 = sphi 0, %s75
      %s93 = sphi 0, %s93
      %s95 = sphi 0, %s93
      %s96 = sphi 0, %s95
      %s110 = sphi 0, %s96
      %s114 = sphi 0, %s114
      %s116 = sphi 0, %s114
      %s117 = sphi 0, %s116
      %s131 = sphi 0, %s117
      %s135 = sphi 0, %s135
      %s137 = sphi 0, %s135
      %s138 = sphi 0, %s137
      %s152 = sphi 0, %s138
      %s156 = sphi 0, %s156
      %s158 = sphi 0, %s156
      %s159 = sphi 0, %s158
      %s173 = sphi 0, %s159
      %s179 = sphi 0, %s181
      %s182 = sphi 0, %s179
      %s183 = sphi 0, %s182
      %s199 = sphi 0, %s183
    $region4: #{tpu_custom_call.1} parent=1 // loop_header_branch
      %20 = sbr.rel (%p18) target = $region8
    $region5: #{tpu_custom_call.1} parent=1 // loop_body
      %s22 = ssub.s32 %s17, 1
      %s23 = ssub.s32 %s17, 2
      %s24 = sadd.s32 %s17, 1
      %s25 = ssub.s32 %s17, %s24
      %p26 = scmp.eq.s32.totalorder %s25, 0
      %s28 = sadd.s32 %s27, 1
      %s29 = scalar_select %p26, %s27, %s28
      %p32 = pneg %p26
      %p33 = scmp.eq.s32.totalorder %s17, 3
      %p34 = por %p32, %p33
      %p35 = scmp.ne.s32.totalorder %s27, %s30
      %p36 = scmp.eq.s32.totalorder %s17, 0
      %p37 = por %p35, %p36
      %p38 = scmp.ne.s32.totalorder %s27, %s30
      %p39 = scmp.eq.s32.totalorder %s22, 3
      %p40 = por %p38, %p39
      %p41 = scmp.ne.s32.totalorder %s30, %s31
      %p42 = scmp.eq.s32.totalorder %s22, 0
      %p43 = por %p41, %p42
      %p44 = scmp.ne.s32.totalorder %s30, %s31
      %p45 = scmp.eq.s32.totalorder %s23, 3
      %p46 = por %p44, %p45
      %p48 = scmp.ne.s32.totalorder %s31, %s47
      %p49 = scmp.eq.s32.totalorder %s23, 0
      %p50 = por %p48, %p49
      %s52 = sadd.s32 %s51, 1
      %p55 = scmp.eq.s32.totalorder %s17, 3
      %p56 = scmp.ne.s32.totalorder %s51, %s53
      %p57 = scmp.eq.s32.totalorder %s17, 0
      %p58 = por %p56, %p57
      %p59 = scmp.ne.s32.totalorder %s51, %s53
      %p60 = scmp.eq.s32.totalorder %s22, 3
      %p61 = por %p59, %p60
      %p62 = scmp.ne.s32.totalorder %s53, %s54
      %p63 = scmp.eq.s32.totalorder %s22, 0
      %p64 = por %p62, %p63
      %p65 = scmp.ne.s32.totalorder %s53, %s54
      %p66 = scmp.eq.s32.totalorder %s23, 3
      %p67 = por %p65, %p66
      %p69 = scmp.ne.s32.totalorder %s54, %s68
      %p70 = scmp.eq.s32.totalorder %s23, 0
      %p71 = por %p69, %p70
      %s73 = sadd.s32 %s72, 1
      %p76 = scmp.eq.s32.totalorder %s17, 3
      %p77 = scmp.ne.s32.totalorder %s72, %s74
      %p78 = scmp.eq.s32.totalorder %s17, 0
      %p79 = por %p77, %p78
      %p80 = scmp.ne.s32.totalorder %s72, %s74
      %p81 = scmp.eq.s32.totalorder %s22, 3
      %p82 = por %p80, %p81
      %p83 = scmp.ne.s32.totalorder %s74, %s75
      %p84 = scmp.eq.s32.totalorder %s22, 0
      %p85 = por %p83, %p84
      %p86 = scmp.ne.s32.totalorder %s74, %s75
      %p87 = scmp.eq.s32.totalorder %s23, 3
      %p88 = por %p86, %p87
      %p90 = scmp.ne.s32.totalorder %s75, %s89
      %p91 = scmp.eq.s32.totalorder %s23, 0
      %p92 = por %p90, %p91
      %s94 = sadd.s32 %s93, 1
      %p97 = scmp.eq.s32.totalorder %s17, 3
      %p98 = scmp.ne.s32.totalorder %s93, %s95
      %p99 = scmp.eq.s32.totalorder %s17, 0
      %p100 = por %p98, %p99
      %p101 = scmp.ne.s32.totalorder %s93, %s95
      %p102 = scmp.eq.s32.totalorder %s22, 3
      %p103 = por %p101, %p102
      %p104 = scmp.ne.s32.totalorder %s95, %s96
      %p105 = scmp.eq.s32.totalorder %s22, 0
      %p106 = por %p104, %p105
      %p107 = scmp.ne.s32.totalorder %s95, %s96
      %p108 = scmp.eq.s32.totalorder %s23, 3
      %p109 = por %p107, %p108
      %p111 = scmp.ne.s32.totalorder %s96, %s110
      %p112 = scmp.eq.s32.totalorder %s23, 0
      %p113 = por %p111, %p112
      %s115 = sadd.s32 %s114, 1
      %p118 = scmp.eq.s32.totalorder %s17, 3
      %p119 = scmp.ne.s32.totalorder %s114, %s116
      %p120 = scmp.eq.s32.totalorder %s17, 0
      %p121 = por %p119, %p120
      %p122 = scmp.ne.s32.totalorder %s114, %s116
      %p123 = scmp.eq.s32.totalorder %s22, 3
      %p124 = por %p122, %p123
      %p125 = scmp.ne.s32.totalorder %s116, %s117
      %p126 = scmp.eq.s32.totalorder %s22, 0
      %p127 = por %p125, %p126
      %p128 = scmp.ne.s32.totalorder %s116, %s117
      %p129 = scmp.eq.s32.totalorder %s23, 3
      %p130 = por %p128, %p129
      %p132 = scmp.ne.s32.totalorder %s117, %s131
      %p133 = scmp.eq.s32.totalorder %s23, 0
      %p134 = por %p132, %p133
      %s136 = sadd.s32 %s135, 1
      %p139 = scmp.eq.s32.totalorder %s17, 3
      %p140 = scmp.ne.s32.totalorder %s135, %s137
      %p141 = scmp.eq.s32.totalorder %s17, 0
      %p142 = por %p140, %p141
      %p143 = scmp.ne.s32.totalorder %s135, %s137
      %p144 = scmp.eq.s32.totalorder %s22, 3
      %p145 = por %p143, %p144
      %p146 = scmp.ne.s32.totalorder %s137, %s138
      %p147 = scmp.eq.s32.totalorder %s22, 0
      %p148 = por %p146, %p147
      %p149 = scmp.ne.s32.totalorder %s137, %s138
      %p150 = scmp.eq.s32.totalorder %s23, 3
      %p151 = por %p149, %p150
      %p153 = scmp.ne.s32.totalorder %s138, %s152
      %p154 = scmp.eq.s32.totalorder %s23, 0
      %p155 = por %p153, %p154
      %s157 = sadd.s32 %s156, 1
      %p160 = scmp.eq.s32.totalorder %s17, 3
      %p161 = scmp.ne.s32.totalorder %s156, %s158
      %p162 = scmp.eq.s32.totalorder %s17, 0
      %p163 = por %p161, %p162
      %p164 = scmp.ne.s32.totalorder %s156, %s158
      %p165 = scmp.eq.s32.totalorder %s22, 3
      %p166 = por %p164, %p165
      %p167 = scmp.ne.s32.totalorder %s158, %s159
      %p168 = scmp.eq.s32.totalorder %s22, 0
      %p169 = por %p167, %p168
      %p170 = scmp.ne.s32.totalorder %s158, %s159
      %p171 = scmp.eq.s32.totalorder %s23, 3
      %p172 = por %p170, %p171
      %p174 = scmp.ne.s32.totalorder %s159, %s173
      %p175 = scmp.eq.s32.totalorder %s23, 0
      %p176 = por %p174, %p175
      %s177 = ssub.s32 %s17, %s24
      %p178 = scmp.eq.s32.totalorder %s177, 0
      %s180 = sadd.s32 %s179, 1
      %s181 = scalar_select %p178, %s179, %s180
      %p184 = pneg %p178
      %p185 = scmp.eq.s32.totalorder %s17, 3
      %p186 = por %p184, %p185
      %p187 = scmp.ne.s32.totalorder %s179, %s182
      %p188 = scmp.eq.s32.totalorder %s17, 0
      %p189 = por %p187, %p188
      %p190 = scmp.ne.s32.totalorder %s179, %s182
      %p191 = scmp.eq.s32.totalorder %s22, 3
      %p192 = por %p190, %p191
      %p193 = scmp.ne.s32.totalorder %s182, %s183
      %p194 = scmp.eq.s32.totalorder %s22, 0
      %p195 = por %p193, %p194
      %p196 = scmp.ne.s32.totalorder %s182, %s183
      %p197 = scmp.eq.s32.totalorder %s23, 3
      %p198 = por %p196, %p197
      %p200 = scmp.ne.s32.totalorder %s183, %s199
      %p201 = scmp.eq.s32.totalorder %s23, 0
      %p202 = por %p200, %p201
      %p203 = scmp.le.s32.totalorder 1, %s17
      %p204 = scmp.lt.s32.totalorder %s17, 5
      %p205 = pnand %p203, %p204
      %p206 = pneg %p205
      // Predicated region
      $region9: #{tpu_custom_call.1} parent=5 // pred_check
        _
      $region10: #{tpu_custom_call.1} parent=5 // pred_check_branch
        %208 = sbr.rel (%p205) target = $region12
      $region11: #{tpu_custom_call.1} parent=5 // pred_region
        %s209 = ssub.s32 %s17, 1
        // Predicated region
        $region13: #{tpu_custom_call.1} parent=11 // pred_check
          %p210 = pneg %p64
        $region14: #{tpu_custom_call.1} parent=11 // pred_check_branch
          %212 = sbr.rel (%p210) target = $region16
        $region15: #{tpu_custom_call.1} parent=11 // pred_region
          _
        $region16: #{tpu_custom_call.1} parent=11 // pred_fallthru
          _
        // Predicated region
        $region17: #{tpu_custom_call.1} parent=11 // pred_check
          %p213 = pneg %p85
        $region18: #{tpu_custom_call.1} parent=11 // pred_check_branch
          %215 = sbr.rel (%p213) target = $region20
        $region19: #{tpu_custom_call.1} parent=11 // pred_region
          _
        $region20: #{tpu_custom_call.1} parent=11 // pred_fallthru
          _
        // Predicated region
        $region21: #{tpu_custom_call.1} parent=11 // pred_check
          %p216 = pneg %p106
        $region22: #{tpu_custom_call.1} parent=11 // pred_check_branch
          %218 = sbr.rel (%p216) target = $region24
        $region23: #{tpu_custom_call.1} parent=11 // pred_region
          _
        $region24: #{tpu_custom_call.1} parent=11 // pred_fallthru
          _
        // Predicated region
        $region25: #{tpu_custom_call.1} parent=11 // pred_check
          %p219 = pneg %p127
        $region26: #{tpu_custom_call.1} parent=11 // pred_check_branch
          %221 = sbr.rel (%p219) target = $region28
        $region27: #{tpu_custom_call.1} parent=11 // pred_region
          _
        $region28: #{tpu_custom_call.1} parent=11 // pred_fallthru
          _
        // Predicated region
        $region29: #{tpu_custom_call.1} parent=11 // pred_check
          %p222 = pneg %p148
        $region30: #{tpu_custom_call.1} parent=11 // pred_check_branch
          %224 = sbr.rel (%p222) target = $region32
        $region31: #{tpu_custom_call.1} parent=11 // pred_region
          _
        $region32: #{tpu_custom_call.1} parent=11 // pred_fallthru
          _
        // Predicated region
        $region33: #{tpu_custom_call.1} parent=11 // pred_check
          %p225 = pneg %p169
        $region34: #{tpu_custom_call.1} parent=11 // pred_check_branch
          %227 = sbr.rel (%p225) target = $region36
        $region35: #{tpu_custom_call.1} parent=11 // pred_region
          _
        $region36: #{tpu_custom_call.1} parent=11 // pred_fallthru
          _
      $region12: #{tpu_custom_call.1} parent=5 // pred_fallthru
        _
      %p228 = scmp.lt.s32.totalorder %s17, 4
      // Predicated region
      $region37: #{tpu_custom_call.1} parent=5 // pred_check
        %p229 = pneg %p228
      $region38: #{tpu_custom_call.1} parent=5 // pred_check_branch
        %231 = sbr.rel (%p229) target = $region40
      $region39: #{tpu_custom_call.1} parent=5 // pred_region
        // Predicated region
        $region41: #{tpu_custom_call.1} parent=39 // pred_check
          %p232 = pneg %p37
        $region42: #{tpu_custom_call.1} parent=39 // pred_check_branch
          %234 = sbr.rel (%p232) target = $region44
        $region43: #{tpu_custom_call.1} parent=39 // pred_region
          %s235 = smul.u32 64, %s17
          %p236 = scmp.lt.s32.totalorder %s235, 255
          %s237 = scalar_select %p236, %s235, 255
          %s238 = smul.addr %s237, 7
          %s239 = smul.addr %s238, 8
          %s240 = scalar_lea.vmem %s0, %s239
          %s241 = smul.u32 64, %s17
        $region44: #{tpu_custom_call.1} parent=39 // pred_fallthru
          _
      $region40: #{tpu_custom_call.1} parent=5 // pred_fallthru
        _
      %p242 = scmp.le.s32.totalorder 1, %s17
      %p243 = scmp.lt.s32.totalorder %s17, 5
      %p244 = pnand %p242, %p243
      %p245 = pneg %p244
      // Predicated region
      $region45: #{tpu_custom_call.1} parent=5 // pred_check
        _
      $region46: #{tpu_custom_call.1} parent=5 // pred_check_branch
        %247 = sbr.rel (%p244) target = $region48
      $region47: #{tpu_custom_call.1} parent=5 // pred_region
        %s248 = ssub.s32 %s17, 1
        %s249 = smul.u32 64, %s22
        %p250 = scmp.lt.s32.totalorder %s249, 255
        %s251 = scalar_select %p250, %s249, 255
        %s252 = smul.addr %s251, 7
        %s253 = smul.addr %s252, 8
        %s254 = scalar_lea.vmem %s0, %s253
        %p255 = pneg %p43
        %p256 = pneg %p40
        %p257 = pneg %p64
        %p258 = pneg %p61
        %p259 = pneg %p85
        %p260 = pneg %p82
        %p261 = pneg %p106
        %p262 = pneg %p103
        %p263 = pneg %p127
        %p264 = pneg %p124
        %p265 = pneg %p148
        %p266 = pneg %p145
        %p267 = pneg %p169
        %p268 = pneg %p166
        %p269 = pneg %p195
        %p270 = pneg %p192
        %s271 = sand.u32 %s182, 1
        %s272 = scalar_lea.sflag [#allocation4], %s271
        %s273 = sand.u32 %s182, 1
        %s274 = smul.addr %s273, 32
        %s275 = scalar_lea.vmem [#allocation3], %s274
        %s276 = smul.u32 64, %s22
        %p277 = scmp.lt.s32.totalorder %s276, 255
        %s278 = scalar_select %p277, %s276, 255
        %s279 = smul.addr %s278, 7
        %s280 = smul.addr %s279, 8
        %s281 = scalar_lea.vmem %s0, %s280
        %s282 = smul.u32 64, %s22
        %s283 = smul.u32 4, %s22
        %v285 = vld [vmem:[%s281] sm:$0xff]
        %v286 = vld [vmem:[%s281 + $0x8] sm:$0xff]
        %v287 = vld [vmem:[%s281 + $0x10] sm:$0xff]
        %v288 = vld [vmem:[%s281 + $0x18] sm:$0xff]
        %v289 = vld [vmem:[%s281 + $0x20] sm:$0xff]
        %v290 = vld [vmem:[%s281 + $0x28] sm:$0xff]
        %v291 = vld [vmem:[%s281 + $0x30] sm:$0xff]
        %v292 = vld [vmem:[%s281 + $0x38] sm:$0xff]
        %v293 = vld [vmem:[%s281 + $0x40] sm:$0xff]
        %v294 = vld [vmem:[%s281 + $0x48] sm:$0xff]
        %v295 = vld [vmem:[%s281 + $0x50] sm:$0xff]
        %v296 = vld [vmem:[%s281 + $0x58] sm:$0xff]
        %v297 = vld [vmem:[%s281 + $0x60] sm:$0xff]
        %v298 = vld [vmem:[%s281 + $0x68] sm:$0xff]
        %v299 = vld [vmem:[%s281 + $0x70] sm:$0xff]
        %v300 = vld [vmem:[%s281 + $0x78] sm:$0xff]
        %v301 = vld [vmem:[%s281 + $0x80] sm:$0xff]
        %v302 = vld [vmem:[%s281 + $0x88] sm:$0xff]
        %v303 = vld [vmem:[%s281 + $0x90] sm:$0xff]
        %v304 = vld [vmem:[%s281 + $0x98] sm:$0xff]
        %v305 = vld [vmem:[%s281 + $0xa0] sm:$0xff]
        %v306 = vld [vmem:[%s281 + $0xa8] sm:$0xff]
        %v307 = vld [vmem:[%s281 + $0xb0] sm:$0xff]
        %v308 = vld [vmem:[%s281 + $0xb8] sm:$0xff]
        %v309 = vld [vmem:[%s281 + $0xc0] sm:$0xff]
        %v310 = vld [vmem:[%s281 + $0xc8] sm:$0xff]
        %v311 = vld [vmem:[%s281 + $0xd0] sm:$0xff]
        %v312 = vld [vmem:[%s281 + $0xd8] sm:$0xff]
        %v313 = vld [vmem:[%s281 + $0xe0] sm:$0xff]
        %v314 = vld [vmem:[%s281 + $0xe8] sm:$0xff]
        %v315 = vld [vmem:[%s281 + $0xf0] sm:$0xff]
        %v316 = vld [vmem:[%s281 + $0xf8] sm:$0xff]
        %v317 = vld [vmem:[%s281 + $0x100] sm:$0xff]
        %v318 = vld [vmem:[%s281 + $0x108] sm:$0xff]
        %v319 = vld [vmem:[%s281 + $0x110] sm:$0xff]
        %v320 = vld [vmem:[%s281 + $0x118] sm:$0xff]
        %v321 = vld [vmem:[%s281 + $0x120] sm:$0xff]
        %v322 = vld [vmem:[%s281 + $0x128] sm:$0xff]
        %v323 = vld [vmem:[%s281 + $0x130] sm:$0xff]
        %v324 = vld [vmem:[%s281 + $0x138] sm:$0xff]
        %v325 = vld [vmem:[%s281 + $0x140] sm:$0xff]
        %v326 = vld [vmem:[%s281 + $0x148] sm:$0xff]
        %v327 = vld [vmem:[%s281 + $0x150] sm:$0xff]
        %v328 = vld [vmem:[%s281 + $0x158] sm:$0xff]
        %v329 = vld [vmem:[%s281 + $0x160] sm:$0xff]
        %v330 = vld [vmem:[%s281 + $0x168] sm:$0xff]
        %v331 = vld [vmem:[%s281 + $0x170] sm:$0xff]
        %v332 = vld [vmem:[%s281 + $0x178] sm:$0xff]
        %v333 = vld [vmem:[%s281 + $0x180] sm:$0xff]
        %v334 = vld [vmem:[%s281 + $0x188] sm:$0xff]
        %v335 = vld [vmem:[%s281 + $0x190] sm:$0xff]
        %v336 = vld [vmem:[%s281 + $0x198] sm:$0xff]
        %v337 = vld [vmem:[%s281 + $0x1a0] sm:$0xff]
        %v338 = vld [vmem:[%s281 + $0x1a8] sm:$0xff]
        %v339 = vld [vmem:[%s281 + $0x1b0] sm:$0xff]
        %v340 = vld [vmem:[%s281 + $0x1b8] sm:$0xff]
        %v341 = vld [vmem:[%s281 + $0x1c0] sm:$0xff]
        %v342 = vld [vmem:[%s281 + $0x1c8] sm:$0xff]
        %v343 = vld [vmem:[%s281 + $0x1d0] sm:$0xff]
        %v344 = vld [vmem:[%s281 + $0x1d8] sm:$0xff]
        %v345 = vld [vmem:[%s281 + $0x1e0] sm:$0xff]
        %v346 = vld [vmem:[%s281 + $0x1e8] sm:$0xff]
        %v347 = vld [vmem:[%s281 + $0x1f0] sm:$0xff]
        %v348 = vld [vmem:[%s281 + $0x1f8] sm:$0xff]
        %v349 = vld [vmem:[%s281 + $0x200] sm:$0xff]
        %v350 = vld [vmem:[%s281 + $0x208] sm:$0xff]
        %v351 = vld [vmem:[%s281 + $0x210] sm:$0xff]
        %v352 = vld [vmem:[%s281 + $0x218] sm:$0xff]
        %v353 = vld [vmem:[%s281 + $0x220] sm:$0xff]
        %v354 = vld [vmem:[%s281 + $0x228] sm:$0xff]
        %v355 = vld [vmem:[%s281 + $0x230] sm:$0xff]
        %v356 = vld [vmem:[%s281 + $0x238] sm:$0xff]
        %v357 = vld [vmem:[%s281 + $0x240] sm:$0xff]
        %v358 = vld [vmem:[%s281 + $0x248] sm:$0xff]
        %v359 = vld [vmem:[%s281 + $0x250] sm:$0xff]
        %v360 = vld [vmem:[%s281 + $0x258] sm:$0xff]
        %v361 = vld [vmem:[%s281 + $0x260] sm:$0xff]
        %v362 = vld [vmem:[%s281 + $0x268] sm:$0xff]
        %v363 = vld [vmem:[%s281 + $0x270] sm:$0xff]
        %v364 = vld [vmem:[%s281 + $0x278] sm:$0xff]
        %v365 = vld [vmem:[%s281 + $0x280] sm:$0xff]
        %v366 = vld [vmem:[%s281 + $0x288] sm:$0xff]
        %v367 = vld [vmem:[%s281 + $0x290] sm:$0xff]
        %v368 = vld [vmem:[%s281 + $0x298] sm:$0xff]
        %v369 = vld [vmem:[%s281 + $0x2a0] sm:$0xff]
        %v370 = vld [vmem:[%s281 + $0x2a8] sm:$0xff]
        %v371 = vld [vmem:[%s281 + $0x2b0] sm:$0xff]
        %v372 = vld [vmem:[%s281 + $0x2b8] sm:$0xff]
        %v373 = vld [vmem:[%s281 + $0x2c0] sm:$0xff]
        %v374 = vld [vmem:[%s281 + $0x2c8] sm:$0xff]
        %v375 = vld [vmem:[%s281 + $0x2d0] sm:$0xff]
        %v376 = vld [vmem:[%s281 + $0x2d8] sm:$0xff]
        %v377 = vld [vmem:[%s281 + $0x2e0] sm:$0xff]
        %v378 = vld [vmem:[%s281 + $0x2e8] sm:$0xff]
        %v379 = vld [vmem:[%s281 + $0x2f0] sm:$0xff]
        %v380 = vld [vmem:[%s281 + $0x2f8] sm:$0xff]
        %v381 = vld [vmem:[%s281 + $0x300] sm:$0xff]
        %v382 = vld [vmem:[%s281 + $0x308] sm:$0xff]
        %v383 = vld [vmem:[%s281 + $0x310] sm:$0xff]
        %v384 = vld [vmem:[%s281 + $0x318] sm:$0xff]
        %v385 = vld [vmem:[%s281 + $0x320] sm:$0xff]
        %v386 = vld [vmem:[%s281 + $0x328] sm:$0xff]
        %v387 = vld [vmem:[%s281 + $0x330] sm:$0xff]
        %v388 = vld [vmem:[%s281 + $0x338] sm:$0xff]
        %v389 = vld [vmem:[%s281 + $0x340] sm:$0xff]
        %v390 = vld [vmem:[%s281 + $0x348] sm:$0xff]
        %v391 = vld [vmem:[%s281 + $0x350] sm:$0xff]
        %v392 = vld [vmem:[%s281 + $0x358] sm:$0xff]
        %v393 = vld [vmem:[%s281 + $0x360] sm:$0xff]
        %v394 = vld [vmem:[%s281 + $0x368] sm:$0xff]
        %v395 = vld [vmem:[%s281 + $0x370] sm:$0xff]
        %v396 = vld [vmem:[%s281 + $0x378] sm:$0xff]
        %v397 = vld [vmem:[%s281 + $0x380] sm:$0xff]
        %v398 = vld [vmem:[%s281 + $0x388] sm:$0xff]
        %v399 = vld [vmem:[%s281 + $0x390] sm:$0xff]
        %v400 = vld [vmem:[%s281 + $0x398] sm:$0xff]
        %v401 = vld [vmem:[%s281 + $0x3a0] sm:$0xff]
        %v402 = vld [vmem:[%s281 + $0x3a8] sm:$0xff]
        %v403 = vld [vmem:[%s281 + $0x3b0] sm:$0xff]
        %v404 = vld [vmem:[%s281 + $0x3b8] sm:$0xff]
        %v405 = vld [vmem:[%s281 + $0x3c0] sm:$0xff]
        %v406 = vld [vmem:[%s281 + $0x3c8] sm:$0xff]
        %v407 = vld [vmem:[%s281 + $0x3d0] sm:$0xff]
        %v408 = vld [vmem:[%s281 + $0x3d8] sm:$0xff]
        %v409 = vld [vmem:[%s281 + $0x3e0] sm:$0xff]
        %v410 = vld [vmem:[%s281 + $0x3e8] sm:$0xff]
        %v411 = vld [vmem:[%s281 + $0x3f0] sm:$0xff]
        %v412 = vld [vmem:[%s281 + $0x3f8] sm:$0xff]
        %v413 = vld [vmem:[%s281 + $0x400] sm:$0xff]
        %v414 = vld [vmem:[%s281 + $0x408] sm:$0xff]
        %v415 = vld [vmem:[%s281 + $0x410] sm:$0xff]
        %v416 = vld [vmem:[%s281 + $0x418] sm:$0xff]
        %v417 = vld [vmem:[%s281 + $0x420] sm:$0xff]
        %v418 = vld [vmem:[%s281 + $0x428] sm:$0xff]
        %v419 = vld [vmem:[%s281 + $0x430] sm:$0xff]
        %v420 = vld [vmem:[%s281 + $0x438] sm:$0xff]
        %v421 = vld [vmem:[%s281 + $0x440] sm:$0xff]
        %v422 = vld [vmem:[%s281 + $0x448] sm:$0xff]
        %v423 = vld [vmem:[%s281 + $0x450] sm:$0xff]
        %v424 = vld [vmem:[%s281 + $0x458] sm:$0xff]
        %v425 = vld [vmem:[%s281 + $0x460] sm:$0xff]
        %v426 = vld [vmem:[%s281 + $0x468] sm:$0xff]
        %v427 = vld [vmem:[%s281 + $0x470] sm:$0xff]
        %v428 = vld [vmem:[%s281 + $0x478] sm:$0xff]
        %v429 = vld [vmem:[%s281 + $0x480] sm:$0xff]
        %v430 = vld [vmem:[%s281 + $0x488] sm:$0xff]
        %v431 = vld [vmem:[%s281 + $0x490] sm:$0xff]
        %v432 = vld [vmem:[%s281 + $0x498] sm:$0xff]
        %v433 = vld [vmem:[%s281 + $0x4a0] sm:$0xff]
        %v434 = vld [vmem:[%s281 + $0x4a8] sm:$0xff]
        %v435 = vld [vmem:[%s281 + $0x4b0] sm:$0xff]
        %v436 = vld [vmem:[%s281 + $0x4b8] sm:$0xff]
        %v437 = vld [vmem:[%s281 + $0x4c0] sm:$0xff]
        %v438 = vld [vmem:[%s281 + $0x4c8] sm:$0xff]
        %v439 = vld [vmem:[%s281 + $0x4d0] sm:$0xff]
        %v440 = vld [vmem:[%s281 + $0x4d8] sm:$0xff]
        %v441 = vld [vmem:[%s281 + $0x4e0] sm:$0xff]
        %v442 = vld [vmem:[%s281 + $0x4e8] sm:$0xff]
        %v443 = vld [vmem:[%s281 + $0x4f0] sm:$0xff]
        %v444 = vld [vmem:[%s281 + $0x4f8] sm:$0xff]
        %v445 = vld [vmem:[%s281 + $0x500] sm:$0xff]
        %v446 = vld [vmem:[%s281 + $0x508] sm:$0xff]
        %v447 = vld [vmem:[%s281 + $0x510] sm:$0xff]
        %v448 = vld [vmem:[%s281 + $0x518] sm:$0xff]
        %v449 = vld [vmem:[%s281 + $0x520] sm:$0xff]
        %v450 = vld [vmem:[%s281 + $0x528] sm:$0xff]
        %v451 = vld [vmem:[%s281 + $0x530] sm:$0xff]
        %v452 = vld [vmem:[%s281 + $0x538] sm:$0xff]
        %v453 = vld [vmem:[%s281 + $0x540] sm:$0xff]
        %v454 = vld [vmem:[%s281 + $0x548] sm:$0xff]
        %v455 = vld [vmem:[%s281 + $0x550] sm:$0xff]
        %v456 = vld [vmem:[%s281 + $0x558] sm:$0xff]
        %v457 = vld [vmem:[%s281 + $0x560] sm:$0xff]
        %v458 = vld [vmem:[%s281 + $0x568] sm:$0xff]
        %v459 = vld [vmem:[%s281 + $0x570] sm:$0xff]
        %v460 = vld [vmem:[%s281 + $0x578] sm:$0xff]
        %v461 = vld [vmem:[%s281 + $0x580] sm:$0xff]
        %v462 = vld [vmem:[%s281 + $0x588] sm:$0xff]
        %v463 = vld [vmem:[%s281 + $0x590] sm:$0xff]
        %v464 = vld [vmem:[%s281 + $0x598] sm:$0xff]
        %v465 = vld [vmem:[%s281 + $0x5a0] sm:$0xff]
        %v466 = vld [vmem:[%s281 + $0x5a8] sm:$0xff]
        %v467 = vld [vmem:[%s281 + $0x5b0] sm:$0xff]
        %v468 = vld [vmem:[%s281 + $0x5b8] sm:$0xff]
        %v469 = vld [vmem:[%s281 + $0x5c0] sm:$0xff]
        %v470 = vld [vmem:[%s281 + $0x5c8] sm:$0xff]
        %v471 = vld [vmem:[%s281 + $0x5d0] sm:$0xff]
        %v472 = vld [vmem:[%s281 + $0x5d8] sm:$0xff]
        %v473 = vld [vmem:[%s281 + $0x5e0] sm:$0xff]
        %v474 = vld [vmem:[%s281 + $0x5e8] sm:$0xff]
        %v475 = vld [vmem:[%s281 + $0x5f0] sm:$0xff]
        %v476 = vld [vmem:[%s281 + $0x5f8] sm:$0xff]
        %v477 = vld [vmem:[%s281 + $0x600] sm:$0xff]
        %v478 = vld [vmem:[%s281 + $0x608] sm:$0xff]
        %v479 = vld [vmem:[%s281 + $0x610] sm:$0xff]
        %v480 = vld [vmem:[%s281 + $0x618] sm:$0xff]
        %v481 = vld [vmem:[%s281 + $0x620] sm:$0xff]
        %v482 = vld [vmem:[%s281 + $0x628] sm:$0xff]
        %v483 = vld [vmem:[%s281 + $0x630] sm:$0xff]
        %v484 = vld [vmem:[%s281 + $0x638] sm:$0xff]
        %v485 = vld [vmem:[%s281 + $0x640] sm:$0xff]
        %v486 = vld [vmem:[%s281 + $0x648] sm:$0xff]
        %v487 = vld [vmem:[%s281 + $0x650] sm:$0xff]
        %v488 = vld [vmem:[%s281 + $0x658] sm:$0xff]
        %v489 = vld [vmem:[%s281 + $0x660] sm:$0xff]
        %v490 = vld [vmem:[%s281 + $0x668] sm:$0xff]
        %v491 = vld [vmem:[%s281 + $0x670] sm:$0xff]
        %v492 = vld [vmem:[%s281 + $0x678] sm:$0xff]
        %v493 = vld [vmem:[%s281 + $0x680] sm:$0xff]
        %v494 = vld [vmem:[%s281 + $0x688] sm:$0xff]
        %v495 = vld [vmem:[%s281 + $0x690] sm:$0xff]
        %v496 = vld [vmem:[%s281 + $0x698] sm:$0xff]
        %v497 = vld [vmem:[%s281 + $0x6a0] sm:$0xff]
        %v498 = vld [vmem:[%s281 + $0x6a8] sm:$0xff]
        %v499 = vld [vmem:[%s281 + $0x6b0] sm:$0xff]
        %v500 = vld [vmem:[%s281 + $0x6b8] sm:$0xff]
        %v501 = vld [vmem:[%s281 + $0x6c0] sm:$0xff]
        %v502 = vld [vmem:[%s281 + $0x6c8] sm:$0xff]
        %v503 = vld [vmem:[%s281 + $0x6d0] sm:$0xff]
        %v504 = vld [vmem:[%s281 + $0x6d8] sm:$0xff]
        %v505 = vld [vmem:[%s281 + $0x6e0] sm:$0xff]
        %v506 = vld [vmem:[%s281 + $0x6e8] sm:$0xff]
        %v507 = vld [vmem:[%s281 + $0x6f0] sm:$0xff]
        %v508 = vld [vmem:[%s281 + $0x6f8] sm:$0xff]
        %v509 = vld [vmem:[%s281 + $0x700] sm:$0xff]
        %v510 = vld [vmem:[%s281 + $0x708] sm:$0xff]
        %v511 = vld [vmem:[%s281 + $0x710] sm:$0xff]
        %v512 = vld [vmem:[%s281 + $0x718] sm:$0xff]
        %v513 = vld [vmem:[%s281 + $0x720] sm:$0xff]
        %v514 = vld [vmem:[%s281 + $0x728] sm:$0xff]
        %v515 = vld [vmem:[%s281 + $0x730] sm:$0xff]
        %v516 = vld [vmem:[%s281 + $0x738] sm:$0xff]
        %v517 = vld [vmem:[%s281 + $0x740] sm:$0xff]
        %v518 = vld [vmem:[%s281 + $0x748] sm:$0xff]
        %v519 = vld [vmem:[%s281 + $0x750] sm:$0xff]
        %v520 = vld [vmem:[%s281 + $0x758] sm:$0xff]
        %v521 = vld [vmem:[%s281 + $0x760] sm:$0xff]
        %v522 = vld [vmem:[%s281 + $0x768] sm:$0xff]
        %v523 = vld [vmem:[%s281 + $0x770] sm:$0xff]
        %v524 = vld [vmem:[%s281 + $0x778] sm:$0xff]
        %v525 = vld [vmem:[%s281 + $0x780] sm:$0xff]
        %v526 = vld [vmem:[%s281 + $0x788] sm:$0xff]
        %v527 = vld [vmem:[%s281 + $0x790] sm:$0xff]
        %v528 = vld [vmem:[%s281 + $0x798] sm:$0xff]
        %v529 = vld [vmem:[%s281 + $0x7a0] sm:$0xff]
        %v530 = vld [vmem:[%s281 + $0x7a8] sm:$0xff]
        %v531 = vld [vmem:[%s281 + $0x7b0] sm:$0xff]
        %v532 = vld [vmem:[%s281 + $0x7b8] sm:$0xff]
        %v533 = vld [vmem:[%s281 + $0x7c0] sm:$0xff]
        %v534 = vld [vmem:[%s281 + $0x7c8] sm:$0xff]
        %v535 = vld [vmem:[%s281 + $0x7d0] sm:$0xff]
        %v536 = vld [vmem:[%s281 + $0x7d8] sm:$0xff]
        %v537 = vld [vmem:[%s281 + $0x7e0] sm:$0xff]
        %v538 = vld [vmem:[%s281 + $0x7e8] sm:$0xff]
        %v539 = vld [vmem:[%s281 + $0x7f0] sm:$0xff]
        %v540 = vld [vmem:[%s281 + $0x7f8] sm:$0xff]
        %v541 = vld [vmem:[%s281 + $0x800] sm:$0xff]
        %v542 = vld [vmem:[%s281 + $0x808] sm:$0xff]
        %v543 = vld [vmem:[%s281 + $0x810] sm:$0xff]
        %v544 = vld [vmem:[%s281 + $0x818] sm:$0xff]
        %v545 = vld [vmem:[%s281 + $0x820] sm:$0xff]
        %v546 = vld [vmem:[%s281 + $0x828] sm:$0xff]
        %v547 = vld [vmem:[%s281 + $0x830] sm:$0xff]
        %v548 = vld [vmem:[%s281 + $0x838] sm:$0xff]
        %v549 = vld [vmem:[%s281 + $0x840] sm:$0xff]
        %v550 = vld [vmem:[%s281 + $0x848] sm:$0xff]
        %v551 = vld [vmem:[%s281 + $0x850] sm:$0xff]
        %v552 = vld [vmem:[%s281 + $0x858] sm:$0xff]
        %v553 = vld [vmem:[%s281 + $0x860] sm:$0xff]
        %v554 = vld [vmem:[%s281 + $0x868] sm:$0xff]
        %v555 = vld [vmem:[%s281 + $0x870] sm:$0xff]
        %v556 = vld [vmem:[%s281 + $0x878] sm:$0xff]
        %v557 = vld [vmem:[%s281 + $0x880] sm:$0xff]
        %v558 = vld [vmem:[%s281 + $0x888] sm:$0xff]
        %v559 = vld [vmem:[%s281 + $0x890] sm:$0xff]
        %v560 = vld [vmem:[%s281 + $0x898] sm:$0xff]
        %v561 = vld [vmem:[%s281 + $0x8a0] sm:$0xff]
        %v562 = vld [vmem:[%s281 + $0x8a8] sm:$0xff]
        %v563 = vld [vmem:[%s281 + $0x8b0] sm:$0xff]
        %v564 = vld [vmem:[%s281 + $0x8b8] sm:$0xff]
        %v565 = vld [vmem:[%s281 + $0x8c0] sm:$0xff]
        %v566 = vld [vmem:[%s281 + $0x8c8] sm:$0xff]
        %v567 = vld [vmem:[%s281 + $0x8d0] sm:$0xff]
        %v568 = vld [vmem:[%s281 + $0x8d8] sm:$0xff]
        %v569 = vld [vmem:[%s281 + $0x8e0] sm:$0xff]
        %v570 = vld [vmem:[%s281 + $0x8e8] sm:$0xff]
        %v571 = vld [vmem:[%s281 + $0x8f0] sm:$0xff]
        %v572 = vld [vmem:[%s281 + $0x8f8] sm:$0xff]
        %v573 = vld [vmem:[%s281 + $0x900] sm:$0xff]
        %v574 = vld [vmem:[%s281 + $0x908] sm:$0xff]
        %v575 = vld [vmem:[%s281 + $0x910] sm:$0xff]
        %v576 = vld [vmem:[%s281 + $0x918] sm:$0xff]
        %v577 = vld [vmem:[%s281 + $0x920] sm:$0xff]
        %v578 = vld [vmem:[%s281 + $0x928] sm:$0xff]
        %v579 = vld [vmem:[%s281 + $0x930] sm:$0xff]
        %v580 = vld [vmem:[%s281 + $0x938] sm:$0xff]
        %v581 = vld [vmem:[%s281 + $0x940] sm:$0xff]
        %v582 = vld [vmem:[%s281 + $0x948] sm:$0xff]
        %v583 = vld [vmem:[%s281 + $0x950] sm:$0xff]
        %v584 = vld [vmem:[%s281 + $0x958] sm:$0xff]
        %v585 = vld [vmem:[%s281 + $0x960] sm:$0xff]
        %v586 = vld [vmem:[%s281 + $0x968] sm:$0xff]
        %v587 = vld [vmem:[%s281 + $0x970] sm:$0xff]
        %v588 = vld [vmem:[%s281 + $0x978] sm:$0xff]
        %v589 = vld [vmem:[%s281 + $0x980] sm:$0xff]
        %v590 = vld [vmem:[%s281 + $0x988] sm:$0xff]
        %v591 = vld [vmem:[%s281 + $0x990] sm:$0xff]
        %v592 = vld [vmem:[%s281 + $0x998] sm:$0xff]
        %v593 = vld [vmem:[%s281 + $0x9a0] sm:$0xff]
        %v594 = vld [vmem:[%s281 + $0x9a8] sm:$0xff]
        %v595 = vld [vmem:[%s281 + $0x9b0] sm:$0xff]
        %v596 = vld [vmem:[%s281 + $0x9b8] sm:$0xff]
        %v597 = vld [vmem:[%s281 + $0x9c0] sm:$0xff]
        %v598 = vld [vmem:[%s281 + $0x9c8] sm:$0xff]
        %v599 = vld [vmem:[%s281 + $0x9d0] sm:$0xff]
        %v600 = vld [vmem:[%s281 + $0x9d8] sm:$0xff]
        %v601 = vld [vmem:[%s281 + $0x9e0] sm:$0xff]
        %v602 = vld [vmem:[%s281 + $0x9e8] sm:$0xff]
        %v603 = vld [vmem:[%s281 + $0x9f0] sm:$0xff]
        %v604 = vld [vmem:[%s281 + $0x9f8] sm:$0xff]
        %v605 = vld [vmem:[%s281 + $0xa00] sm:$0xff]
        %v606 = vld [vmem:[%s281 + $0xa08] sm:$0xff]
        %v607 = vld [vmem:[%s281 + $0xa10] sm:$0xff]
        %v608 = vld [vmem:[%s281 + $0xa18] sm:$0xff]
        %v609 = vld [vmem:[%s281 + $0xa20] sm:$0xff]
        %v610 = vld [vmem:[%s281 + $0xa28] sm:$0xff]
        %v611 = vld [vmem:[%s281 + $0xa30] sm:$0xff]
        %v612 = vld [vmem:[%s281 + $0xa38] sm:$0xff]
        %v613 = vld [vmem:[%s281 + $0xa40] sm:$0xff]
        %v614 = vld [vmem:[%s281 + $0xa48] sm:$0xff]
        %v615 = vld [vmem:[%s281 + $0xa50] sm:$0xff]
        %v616 = vld [vmem:[%s281 + $0xa58] sm:$0xff]
        %v617 = vld [vmem:[%s281 + $0xa60] sm:$0xff]
        %v618 = vld [vmem:[%s281 + $0xa68] sm:$0xff]
        %v619 = vld [vmem:[%s281 + $0xa70] sm:$0xff]
        %v620 = vld [vmem:[%s281 + $0xa78] sm:$0xff]
        %v621 = vld [vmem:[%s281 + $0xa80] sm:$0xff]
        %v622 = vld [vmem:[%s281 + $0xa88] sm:$0xff]
        %v623 = vld [vmem:[%s281 + $0xa90] sm:$0xff]
        %v624 = vld [vmem:[%s281 + $0xa98] sm:$0xff]
        %v625 = vld [vmem:[%s281 + $0xaa0] sm:$0xff]
        %v626 = vld [vmem:[%s281 + $0xaa8] sm:$0xff]
        %v627 = vld [vmem:[%s281 + $0xab0] sm:$0xff]
        %v628 = vld [vmem:[%s281 + $0xab8] sm:$0xff]
        %v629 = vld [vmem:[%s281 + $0xac0] sm:$0xff]
        %v630 = vld [vmem:[%s281 + $0xac8] sm:$0xff]
        %v631 = vld [vmem:[%s281 + $0xad0] sm:$0xff]
        %v632 = vld [vmem:[%s281 + $0xad8] sm:$0xff]
        %v633 = vld [vmem:[%s281 + $0xae0] sm:$0xff]
        %v634 = vld [vmem:[%s281 + $0xae8] sm:$0xff]
        %v635 = vld [vmem:[%s281 + $0xaf0] sm:$0xff]
        %v636 = vld [vmem:[%s281 + $0xaf8] sm:$0xff]
        %v637 = vld [vmem:[%s281 + $0xb00] sm:$0xff]
        %v638 = vld [vmem:[%s281 + $0xb08] sm:$0xff]
        %v639 = vld [vmem:[%s281 + $0xb10] sm:$0xff]
        %v640 = vld [vmem:[%s281 + $0xb18] sm:$0xff]
        %v641 = vld [vmem:[%s281 + $0xb20] sm:$0xff]
        %v642 = vld [vmem:[%s281 + $0xb28] sm:$0xff]
        %v643 = vld [vmem:[%s281 + $0xb30] sm:$0xff]
        %v644 = vld [vmem:[%s281 + $0xb38] sm:$0xff]
        %v645 = vld [vmem:[%s281 + $0xb40] sm:$0xff]
        %v646 = vld [vmem:[%s281 + $0xb48] sm:$0xff]
        %v647 = vld [vmem:[%s281 + $0xb50] sm:$0xff]
        %v648 = vld [vmem:[%s281 + $0xb58] sm:$0xff]
        %v649 = vld [vmem:[%s281 + $0xb60] sm:$0xff]
        %v650 = vld [vmem:[%s281 + $0xb68] sm:$0xff]
        %v651 = vld [vmem:[%s281 + $0xb70] sm:$0xff]
        %v652 = vld [vmem:[%s281 + $0xb78] sm:$0xff]
        %v653 = vld [vmem:[%s281 + $0xb80] sm:$0xff]
        %v654 = vld [vmem:[%s281 + $0xb88] sm:$0xff]
        %v655 = vld [vmem:[%s281 + $0xb90] sm:$0xff]
        %v656 = vld [vmem:[%s281 + $0xb98] sm:$0xff]
        %v657 = vld [vmem:[%s281 + $0xba0] sm:$0xff]
        %v658 = vld [vmem:[%s281 + $0xba8] sm:$0xff]
        %v659 = vld [vmem:[%s281 + $0xbb0] sm:$0xff]
        %v660 = vld [vmem:[%s281 + $0xbb8] sm:$0xff]
        %v661 = vld [vmem:[%s281 + $0xbc0] sm:$0xff]
        %v662 = vld [vmem:[%s281 + $0xbc8] sm:$0xff]
        %v663 = vld [vmem:[%s281 + $0xbd0] sm:$0xff]
        %v664 = vld [vmem:[%s281 + $0xbd8] sm:$0xff]
        %v665 = vld [vmem:[%s281 + $0xbe0] sm:$0xff]
        %v666 = vld [vmem:[%s281 + $0xbe8] sm:$0xff]
        %v667 = vld [vmem:[%s281 + $0xbf0] sm:$0xff]
        %v668 = vld [vmem:[%s281 + $0xbf8] sm:$0xff]
        %v669 = vld [vmem:[%s281 + $0xc00] sm:$0xff]
        %v670 = vld [vmem:[%s281 + $0xc08] sm:$0xff]
        %v671 = vld [vmem:[%s281 + $0xc10] sm:$0xff]
        %v672 = vld [vmem:[%s281 + $0xc18] sm:$0xff]
        %v673 = vld [vmem:[%s281 + $0xc20] sm:$0xff]
        %v674 = vld [vmem:[%s281 + $0xc28] sm:$0xff]
        %v675 = vld [vmem:[%s281 + $0xc30] sm:$0xff]
        %v676 = vld [vmem:[%s281 + $0xc38] sm:$0xff]
        %v677 = vld [vmem:[%s281 + $0xc40] sm:$0xff]
        %v678 = vld [vmem:[%s281 + $0xc48] sm:$0xff]
        %v679 = vld [vmem:[%s281 + $0xc50] sm:$0xff]
        %v680 = vld [vmem:[%s281 + $0xc58] sm:$0xff]
        %v681 = vld [vmem:[%s281 + $0xc60] sm:$0xff]
        %v682 = vld [vmem:[%s281 + $0xc68] sm:$0xff]
        %v683 = vld [vmem:[%s281 + $0xc70] sm:$0xff]
        %v684 = vld [vmem:[%s281 + $0xc78] sm:$0xff]
        %v685 = vld [vmem:[%s281 + $0xc80] sm:$0xff]
        %v686 = vld [vmem:[%s281 + $0xc88] sm:$0xff]
        %v687 = vld [vmem:[%s281 + $0xc90] sm:$0xff]
        %v688 = vld [vmem:[%s281 + $0xc98] sm:$0xff]
        %v689 = vld [vmem:[%s281 + $0xca0] sm:$0xff]
        %v690 = vld [vmem:[%s281 + $0xca8] sm:$0xff]
        %v691 = vld [vmem:[%s281 + $0xcb0] sm:$0xff]
        %v692 = vld [vmem:[%s281 + $0xcb8] sm:$0xff]
        %v693 = vld [vmem:[%s281 + $0xcc0] sm:$0xff]
        %v694 = vld [vmem:[%s281 + $0xcc8] sm:$0xff]
        %v695 = vld [vmem:[%s281 + $0xcd0] sm:$0xff]
        %v696 = vld [vmem:[%s281 + $0xcd8] sm:$0xff]
        %v697 = vld [vmem:[%s281 + $0xce0] sm:$0xff]
        %v698 = vld [vmem:[%s281 + $0xce8] sm:$0xff]
        %v699 = vld [vmem:[%s281 + $0xcf0] sm:$0xff]
        %v700 = vld [vmem:[%s281 + $0xcf8] sm:$0xff]
        %v701 = vld [vmem:[%s281 + $0xd00] sm:$0xff]
        %v702 = vld [vmem:[%s281 + $0xd08] sm:$0xff]
        %v703 = vld [vmem:[%s281 + $0xd10] sm:$0xff]
        %v704 = vld [vmem:[%s281 + $0xd18] sm:$0xff]
        %v705 = vld [vmem:[%s281 + $0xd20] sm:$0xff]
        %v706 = vld [vmem:[%s281 + $0xd28] sm:$0xff]
        %v707 = vld [vmem:[%s281 + $0xd30] sm:$0xff]
        %v708 = vld [vmem:[%s281 + $0xd38] sm:$0xff]
        %v709 = vld [vmem:[%s281 + $0xd40] sm:$0xff]
        %v710 = vld [vmem:[%s281 + $0xd48] sm:$0xff]
        %v711 = vld [vmem:[%s281 + $0xd50] sm:$0xff]
        %v712 = vld [vmem:[%s281 + $0xd58] sm:$0xff]
        %v713 = vld [vmem:[%s281 + $0xd60] sm:$0xff]
        %v714 = vld [vmem:[%s281 + $0xd68] sm:$0xff]
        %v715 = vld [vmem:[%s281 + $0xd70] sm:$0xff]
        %v716 = vld [vmem:[%s281 + $0xd78] sm:$0xff]
        %v717 = vld [vmem:[%s281 + $0xd80] sm:$0xff]
        %v718 = vld [vmem:[%s281 + $0xd88] sm:$0xff]
        %v719 = vld [vmem:[%s281 + $0xd90] sm:$0xff]
        %v720 = vld [vmem:[%s281 + $0xd98] sm:$0xff]
        %v721 = vld [vmem:[%s281 + $0xda0] sm:$0xff]
        %v722 = vld [vmem:[%s281 + $0xda8] sm:$0xff]
        %v723 = vld [vmem:[%s281 + $0xdb0] sm:$0xff]
        %v724 = vld [vmem:[%s281 + $0xdb8] sm:$0xff]
        %v725 = vld [vmem:[%s281 + $0xdc0] sm:$0xff]
        %v726 = vld [vmem:[%s281 + $0xdc8] sm:$0xff]
        %v727 = vld [vmem:[%s281 + $0xdd0] sm:$0xff]
        %v728 = vld [vmem:[%s281 + $0xdd8] sm:$0xff]
        %v729 = vld [vmem:[%s281 + $0xde0] sm:$0xff]
        %v730 = vld [vmem:[%s281 + $0xde8] sm:$0xff]
        %v731 = vld [vmem:[%s281 + $0xdf0] sm:$0xff]
        %v732 = vld [vmem:[%s281 + $0xdf8] sm:$0xff]
        %v733 = vpack.c.bf16 %v292, %v285
        %v734 = vpack.c.bf16 %v293, %v286
        %v735 = vpack.c.bf16 %v294, %v287
        %v736 = vpack.c.bf16 %v295, %v288
        %v737 = vpack.c.bf16 %v296, %v289
        %v738 = vpack.c.bf16 %v297, %v290
        %v739 = vpack.c.bf16 %v298, %v291
        %v740 = vpack.c.bf16 %v306, %v299
        %v741 = vpack.c.bf16 %v307, %v300
        %v742 = vpack.c.bf16 %v308, %v301
        %v743 = vpack.c.bf16 %v309, %v302
        %v744 = vpack.c.bf16 %v310, %v303
        %v745 = vpack.c.bf16 %v311, %v304
        %v746 = vpack.c.bf16 %v312, %v305
        %v747 = vpack.c.bf16 %v320, %v313
        %v748 = vpack.c.bf16 %v321, %v314
        %v749 = vpack.c.bf16 %v322, %v315
        %v750 = vpack.c.bf16 %v323, %v316
        %v751 = vpack.c.bf16 %v324, %v317
        %v752 = vpack.c.bf16 %v325, %v318
        %v753 = vpack.c.bf16 %v326, %v319
        %v754 = vpack.c.bf16 %v334, %v327
        %v755 = vpack.c.bf16 %v335, %v328
        %v756 = vpack.c.bf16 %v336, %v329
        %v757 = vpack.c.bf16 %v337, %v330
        %v758 = vpack.c.bf16 %v338, %v331
        %v759 = vpack.c.bf16 %v339, %v332
        %v760 = vpack.c.bf16 %v340, %v333
        %v761 = vpack.c.bf16 %v348, %v341
        %v762 = vpack.c.bf16 %v349, %v342
        %v763 = vpack.c.bf16 %v350, %v343
        %v764 = vpack.c.bf16 %v351, %v344
        %v765 = vpack.c.bf16 %v352, %v345
        %v766 = vpack.c.bf16 %v353, %v346
        %v767 = vpack.c.bf16 %v354, %v347
        %v768 = vpack.c.bf16 %v362, %v355
        %v769 = vpack.c.bf16 %v363, %v356
        %v770 = vpack.c.bf16 %v364, %v357
        %v771 = vpack.c.bf16 %v365, %v358
        %v772 = vpack.c.bf16 %v366, %v359
        %v773 = vpack.c.bf16 %v367, %v360
        %v774 = vpack.c.bf16 %v368, %v361
        %v775 = vpack.c.bf16 %v376, %v369
        %v776 = vpack.c.bf16 %v377, %v370
        %v777 = vpack.c.bf16 %v378, %v371
        %v778 = vpack.c.bf16 %v379, %v372
        %v779 = vpack.c.bf16 %v380, %v373
        %v780 = vpack.c.bf16 %v381, %v374
        %v781 = vpack.c.bf16 %v382, %v375
        %v782 = vpack.c.bf16 %v390, %v383
        %v783 = vpack.c.bf16 %v391, %v384
        %v784 = vpack.c.bf16 %v392, %v385
        %v785 = vpack.c.bf16 %v393, %v386
        %v786 = vpack.c.bf16 %v394, %v387
        %v787 = vpack.c.bf16 %v395, %v388
        %v788 = vpack.c.bf16 %v396, %v389
        %v789 = vpack.c.bf16 %v404, %v397
        %v790 = vpack.c.bf16 %v405, %v398
        %v791 = vpack.c.bf16 %v406, %v399
        %v792 = vpack.c.bf16 %v407, %v400
        %v793 = vpack.c.bf16 %v408, %v401
        %v794 = vpack.c.bf16 %v409, %v402
        %v795 = vpack.c.bf16 %v410, %v403
        %v796 = vpack.c.bf16 %v418, %v411
        %v797 = vpack.c.bf16 %v419, %v412
        %v798 = vpack.c.bf16 %v420, %v413
        %v799 = vpack.c.bf16 %v421, %v414
        %v800 = vpack.c.bf16 %v422, %v415
        %v801 = vpack.c.bf16 %v423, %v416
        %v802 = vpack.c.bf16 %v424, %v417
        %v803 = vpack.c.bf16 %v432, %v425
        %v804 = vpack.c.bf16 %v433, %v426
        %v805 = vpack.c.bf16 %v434, %v427
        %v806 = vpack.c.bf16 %v435, %v428
        %v807 = vpack.c.bf16 %v436, %v429
        %v808 = vpack.c.bf16 %v437, %v430
        %v809 = vpack.c.bf16 %v438, %v431
        %v810 = vpack.c.bf16 %v446, %v439
        %v811 = vpack.c.bf16 %v447, %v440
        %v812 = vpack.c.bf16 %v448, %v441
        %v813 = vpack.c.bf16 %v449, %v442
        %v814 = vpack.c.bf16 %v450, %v443
        %v815 = vpack.c.bf16 %v451, %v444
        %v816 = vpack.c.bf16 %v452, %v445
        %v817 = vpack.c.bf16 %v460, %v453
        %v818 = vpack.c.bf16 %v461, %v454
        %v819 = vpack.c.bf16 %v462, %v455
        %v820 = vpack.c.bf16 %v463, %v456
        %v821 = vpack.c.bf16 %v464, %v457
        %v822 = vpack.c.bf16 %v465, %v458
        %v823 = vpack.c.bf16 %v466, %v459
        %v824 = vpack.c.bf16 %v474, %v467
        %v825 = vpack.c.bf16 %v475, %v468
        %v826 = vpack.c.bf16 %v476, %v469
        %v827 = vpack.c.bf16 %v477, %v470
        %v828 = vpack.c.bf16 %v478, %v471
        %v829 = vpack.c.bf16 %v479, %v472
        %v830 = vpack.c.bf16 %v480, %v473
        %v831 = vpack.c.bf16 %v488, %v481
        %v832 = vpack.c.bf16 %v489, %v482
        %v833 = vpack.c.bf16 %v490, %v483
        %v834 = vpack.c.bf16 %v491, %v484
        %v835 = vpack.c.bf16 %v492, %v485
        %v836 = vpack.c.bf16 %v493, %v486
        %v837 = vpack.c.bf16 %v494, %v487
        %v838 = vpack.c.bf16 %v502, %v495
        %v839 = vpack.c.bf16 %v503, %v496
        %v840 = vpack.c.bf16 %v504, %v497
        %v841 = vpack.c.bf16 %v505, %v498
        %v842 = vpack.c.bf16 %v506, %v499
        %v843 = vpack.c.bf16 %v507, %v500
        %v844 = vpack.c.bf16 %v508, %v501
        %v845 = vpack.c.bf16 %v516, %v509
        %v846 = vpack.c.bf16 %v517, %v510
        %v847 = vpack.c.bf16 %v518, %v511
        %v848 = vpack.c.bf16 %v519, %v512
        %v849 = vpack.c.bf16 %v520, %v513
        %v850 = vpack.c.bf16 %v521, %v514
        %v851 = vpack.c.bf16 %v522, %v515
        %v852 = vpack.c.bf16 %v530, %v523
        %v853 = vpack.c.bf16 %v531, %v524
        %v854 = vpack.c.bf16 %v532, %v525
        %v855 = vpack.c.bf16 %v533, %v526
        %v856 = vpack.c.bf16 %v534, %v527
        %v857 = vpack.c.bf16 %v535, %v528
        %v858 = vpack.c.bf16 %v536, %v529
        %v859 = vpack.c.bf16 %v544, %v537
        %v860 = vpack.c.bf16 %v545, %v538
        %v861 = vpack.c.bf16 %v546, %v539
        %v862 = vpack.c.bf16 %v547, %v540
        %v863 = vpack.c.bf16 %v548, %v541
        %v864 = vpack.c.bf16 %v549, %v542
        %v865 = vpack.c.bf16 %v550, %v543
        %v866 = vpack.c.bf16 %v558, %v551
        %v867 = vpack.c.bf16 %v559, %v552
        %v868 = vpack.c.bf16 %v560, %v553
        %v869 = vpack.c.bf16 %v561, %v554
        %v870 = vpack.c.bf16 %v562, %v555
        %v871 = vpack.c.bf16 %v563, %v556
        %v872 = vpack.c.bf16 %v564, %v557
        %v873 = vpack.c.bf16 %v572, %v565
        %v874 = vpack.c.bf16 %v573, %v566
        %v875 = vpack.c.bf16 %v574, %v567
        %v876 = vpack.c.bf16 %v575, %v568
        %v877 = vpack.c.bf16 %v576, %v569
        %v878 = vpack.c.bf16 %v577, %v570
        %v879 = vpack.c.bf16 %v578, %v571
        %v880 = vpack.c.bf16 %v586, %v579
        %v881 = vpack.c.bf16 %v587, %v580
        %v882 = vpack.c.bf16 %v588, %v581
        %v883 = vpack.c.bf16 %v589, %v582
        %v884 = vpack.c.bf16 %v590, %v583
        %v885 = vpack.c.bf16 %v591, %v584
        %v886 = vpack.c.bf16 %v592, %v585
        %v887 = vpack.c.bf16 %v600, %v593
        %v888 = vpack.c.bf16 %v601, %v594
        %v889 = vpack.c.bf16 %v602, %v595
        %v890 = vpack.c.bf16 %v603, %v596
        %v891 = vpack.c.bf16 %v604, %v597
        %v892 = vpack.c.bf16 %v605, %v598
        %v893 = vpack.c.bf16 %v606, %v599
        %v894 = vpack.c.bf16 %v614, %v607
        %v895 = vpack.c.bf16 %v615, %v608
        %v896 = vpack.c.bf16 %v616, %v609
        %v897 = vpack.c.bf16 %v617, %v610
        %v898 = vpack.c.bf16 %v618, %v611
        %v899 = vpack.c.bf16 %v619, %v612
        %v900 = vpack.c.bf16 %v620, %v613
        %v901 = vpack.c.bf16 %v628, %v621
        %v902 = vpack.c.bf16 %v629, %v622
        %v903 = vpack.c.bf16 %v630, %v623
        %v904 = vpack.c.bf16 %v631, %v624
        %v905 = vpack.c.bf16 %v632, %v625
        %v906 = vpack.c.bf16 %v633, %v626
        %v907 = vpack.c.bf16 %v634, %v627
        %v908 = vpack.c.bf16 %v642, %v635
        %v909 = vpack.c.bf16 %v643, %v636
        %v910 = vpack.c.bf16 %v644, %v637
        %v911 = vpack.c.bf16 %v645, %v638
        %v912 = vpack.c.bf16 %v646, %v639
        %v913 = vpack.c.bf16 %v647, %v640
        %v914 = vpack.c.bf16 %v648, %v641
        %v915 = vpack.c.bf16 %v656, %v649
        %v916 = vpack.c.bf16 %v657, %v650
        %v917 = vpack.c.bf16 %v658, %v651
        %v918 = vpack.c.bf16 %v659, %v652
        %v919 = vpack.c.bf16 %v660, %v653
        %v920 = vpack.c.bf16 %v661, %v654
        %v921 = vpack.c.bf16 %v662, %v655
        %v922 = vpack.c.bf16 %v670, %v663
        %v923 = vpack.c.bf16 %v671, %v664
        %v924 = vpack.c.bf16 %v672, %v665
        %v925 = vpack.c.bf16 %v673, %v666
        %v926 = vpack.c.bf16 %v674, %v667
        %v927 = vpack.c.bf16 %v675, %v668
        %v928 = vpack.c.bf16 %v676, %v669
        %v929 = vpack.c.bf16 %v684, %v677
        %v930 = vpack.c.bf16 %v685, %v678
        %v931 = vpack.c.bf16 %v686, %v679
        %v932 = vpack.c.bf16 %v687, %v680
        %v933 = vpack.c.bf16 %v688, %v681
        %v934 = vpack.c.bf16 %v689, %v682
        %v935 = vpack.c.bf16 %v690, %v683
        %v936 = vpack.c.bf16 %v698, %v691
        %v937 = vpack.c.bf16 %v699, %v692
        %v938 = vpack.c.bf16 %v700, %v693
        %v939 = vpack.c.bf16 %v701, %v694
        %v940 = vpack.c.bf16 %v702, %v695
        %v941 = vpack.c.bf16 %v703, %v696
        %v942 = vpack.c.bf16 %v704, %v697
        %v943 = vpack.c.bf16 %v712, %v705
        %v944 = vpack.c.bf16 %v713, %v706
        %v945 = vpack.c.bf16 %v714, %v707
        %v946 = vpack.c.bf16 %v715, %v708
        %v947 = vpack.c.bf16 %v716, %v709
        %v948 = vpack.c.bf16 %v717, %v710
        %v949 = vpack.c.bf16 %v718, %v711
        %v950 = vpack.c.bf16 %v726, %v719
        %v951 = vpack.c.bf16 %v727, %v720
        %v952 = vpack.c.bf16 %v728, %v721
        %v953 = vpack.c.bf16 %v729, %v722
        %v954 = vpack.c.bf16 %v730, %v723
        %v955 = vpack.c.bf16 %v731, %v724
        %v956 = vpack.c.bf16 %v732, %v725
        %v957 = vld [vmem:[%s1] sm:$0xff]
        %v958 = vld [vmem:[%s1 + $0x8] sm:$0xff]
        %v959 = vld [vmem:[%s1 + $0x10] sm:$0xff]
        %v960 = vld [vmem:[%s1 + $0x18] sm:$0xff]
        %v961 = vld [vmem:[%s1 + $0x20] sm:$0xff]
        %v962 = vld [vmem:[%s1 + $0x28] sm:$0xff]
        %v963 = vld [vmem:[%s1 + $0x30] sm:$0xff]
        %v964 = vld [vmem:[%s1 + $0x38] sm:$0xff]
        %v965 = vld [vmem:[%s1 + $0x40] sm:$0xff]
        %v966 = vld [vmem:[%s1 + $0x48] sm:$0xff]
        %v967 = vld [vmem:[%s1 + $0x50] sm:$0xff]
        %v968 = vld [vmem:[%s1 + $0x58] sm:$0xff]
        %v969 = vld [vmem:[%s1 + $0x60] sm:$0xff]
        %v970 = vld [vmem:[%s1 + $0x68] sm:$0xff]
        %v971 = vld [vmem:[%s1 + $0x70] sm:$0xff]
        %v972 = vld [vmem:[%s1 + $0x78] sm:$0xff]
        %v973 = vld [vmem:[%s1 + $0x80] sm:$0xff]
        %v974 = vld [vmem:[%s1 + $0x88] sm:$0xff]
        %v975 = vld [vmem:[%s1 + $0x90] sm:$0xff]
        %v976 = vld [vmem:[%s1 + $0x98] sm:$0xff]
        %v977 = vld [vmem:[%s1 + $0xa0] sm:$0xff]
        %v978 = vld [vmem:[%s1 + $0xa8] sm:$0xff]
        %v979 = vld [vmem:[%s1 + $0xb0] sm:$0xff]
        %v980 = vld [vmem:[%s1 + $0xb8] sm:$0xff]
        %v981 = vld [vmem:[%s1 + $0xc0] sm:$0xff]
        %v982 = vld [vmem:[%s1 + $0xc8] sm:$0xff]
        %v983 = vld [vmem:[%s1 + $0xd0] sm:$0xff]
        %v984 = vld [vmem:[%s1 + $0xd8] sm:$0xff]
        %v985 = vld [vmem:[%s1 + $0xe0] sm:$0xff]
        %v986 = vld [vmem:[%s1 + $0xe8] sm:$0xff]
        %v987 = vld [vmem:[%s1 + $0xf0] sm:$0xff]
        %v988 = vld [vmem:[%s1 + $0xf8] sm:$0xff]
        %v989 = vld [vmem:[%s1 + $0x100] sm:$0xff]
        %v990 = vld [vmem:[%s1 + $0x108] sm:$0xff]
        %v991 = vld [vmem:[%s1 + $0x110] sm:$0xff]
        %v992 = vld [vmem:[%s1 + $0x118] sm:$0xff]
        %v993 = vld [vmem:[%s1 + $0x120] sm:$0xff]
        %v994 = vld [vmem:[%s1 + $0x128] sm:$0xff]
        %v995 = vld [vmem:[%s1 + $0x130] sm:$0xff]
        %v996 = vld [vmem:[%s1 + $0x138] sm:$0xff]
        %v997 = vld [vmem:[%s1 + $0x140] sm:$0xff]
        %v998 = vld [vmem:[%s1 + $0x148] sm:$0xff]
        %v999 = vld [vmem:[%s1 + $0x150] sm:$0xff]
        %v1000 = vld [vmem:[%s1 + $0x158] sm:$0xff]
        %v1001 = vld [vmem:[%s1 + $0x160] sm:$0xff]
        %v1002 = vld [vmem:[%s1 + $0x168] sm:$0xff]
        %v1003 = vld [vmem:[%s1 + $0x170] sm:$0xff]
        %v1004 = vld [vmem:[%s1 + $0x178] sm:$0xff]
        %v1005 = vld [vmem:[%s1 + $0x180] sm:$0xff]
        %v1006 = vld [vmem:[%s1 + $0x188] sm:$0xff]
        %v1007 = vld [vmem:[%s1 + $0x190] sm:$0xff]
        %v1008 = vld [vmem:[%s1 + $0x198] sm:$0xff]
        %v1009 = vld [vmem:[%s1 + $0x1a0] sm:$0xff]
        %v1010 = vld [vmem:[%s1 + $0x1a8] sm:$0xff]
        %v1011 = vld [vmem:[%s1 + $0x1b0] sm:$0xff]
        %v1012 = vld [vmem:[%s1 + $0x1b8] sm:$0xff]
        %v1013 = vld [vmem:[%s1 + $0x1c0] sm:$0xff]
        %v1014 = vld [vmem:[%s1 + $0x1c8] sm:$0xff]
        %v1015 = vld [vmem:[%s1 + $0x1d0] sm:$0xff]
        %v1016 = vld [vmem:[%s1 + $0x1d8] sm:$0xff]
        %v1017 = vld [vmem:[%s1 + $0x1e0] sm:$0xff]
        %v1018 = vld [vmem:[%s1 + $0x1e8] sm:$0xff]
        %v1019 = vld [vmem:[%s1 + $0x1f0] sm:$0xff]
        %v1020 = vld [vmem:[%s1 + $0x1f8] sm:$0xff]
        %v1021 = vld [vmem:[%s1 + $0x200] sm:$0xff]
        %v1022 = vld [vmem:[%s1 + $0x208] sm:$0xff]
        %v1023 = vld [vmem:[%s1 + $0x210] sm:$0xff]
        %v1024 = vld [vmem:[%s1 + $0x218] sm:$0xff]
        %v1025 = vld [vmem:[%s1 + $0x220] sm:$0xff]
        %v1026 = vld [vmem:[%s1 + $0x228] sm:$0xff]
        %v1027 = vld [vmem:[%s1 + $0x230] sm:$0xff]
        %v1028 = vld [vmem:[%s1 + $0x238] sm:$0xff]
        %v1029 = vld [vmem:[%s1 + $0x240] sm:$0xff]
        %v1030 = vld [vmem:[%s1 + $0x248] sm:$0xff]
        %v1031 = vld [vmem:[%s1 + $0x250] sm:$0xff]
        %v1032 = vld [vmem:[%s1 + $0x258] sm:$0xff]
        %v1033 = vld [vmem:[%s1 + $0x260] sm:$0xff]
        %v1034 = vld [vmem:[%s1 + $0x268] sm:$0xff]
        %v1035 = vld [vmem:[%s1 + $0x270] sm:$0xff]
        %v1036 = vld [vmem:[%s1 + $0x278] sm:$0xff]
        %v1037 = vld [vmem:[%s1 + $0x280] sm:$0xff]
        %v1038 = vld [vmem:[%s1 + $0x288] sm:$0xff]
        %v1039 = vld [vmem:[%s1 + $0x290] sm:$0xff]
        %v1040 = vld [vmem:[%s1 + $0x298] sm:$0xff]
        %v1041 = vld [vmem:[%s1 + $0x2a0] sm:$0xff]
        %v1042 = vld [vmem:[%s1 + $0x2a8] sm:$0xff]
        %v1043 = vld [vmem:[%s1 + $0x2b0] sm:$0xff]
        %v1044 = vld [vmem:[%s1 + $0x2b8] sm:$0xff]
        %v1045 = vld [vmem:[%s1 + $0x2c0] sm:$0xff]
        %v1046 = vld [vmem:[%s1 + $0x2c8] sm:$0xff]
        %v1047 = vld [vmem:[%s1 + $0x2d0] sm:$0xff]
        %v1048 = vld [vmem:[%s1 + $0x2d8] sm:$0xff]
        %v1049 = vld [vmem:[%s1 + $0x2e0] sm:$0xff]
        %v1050 = vld [vmem:[%s1 + $0x2e8] sm:$0xff]
        %v1051 = vld [vmem:[%s1 + $0x2f0] sm:$0xff]
        %v1052 = vld [vmem:[%s1 + $0x2f8] sm:$0xff]
        %v1053 = vld [vmem:[%s1 + $0x300] sm:$0xff]
        %v1054 = vld [vmem:[%s1 + $0x308] sm:$0xff]
        %v1055 = vld [vmem:[%s1 + $0x310] sm:$0xff]
        %v1056 = vld [vmem:[%s1 + $0x318] sm:$0xff]
        %v1057 = vld [vmem:[%s1 + $0x320] sm:$0xff]
        %v1058 = vld [vmem:[%s1 + $0x328] sm:$0xff]
        %v1059 = vld [vmem:[%s1 + $0x330] sm:$0xff]
        %v1060 = vld [vmem:[%s1 + $0x338] sm:$0xff]
        %v1061 = vld [vmem:[%s1 + $0x340] sm:$0xff]
        %v1062 = vld [vmem:[%s1 + $0x348] sm:$0xff]
        %v1063 = vld [vmem:[%s1 + $0x350] sm:$0xff]
        %v1064 = vld [vmem:[%s1 + $0x358] sm:$0xff]
        %v1065 = vld [vmem:[%s1 + $0x360] sm:$0xff]
        %v1066 = vld [vmem:[%s1 + $0x368] sm:$0xff]
        %v1067 = vld [vmem:[%s1 + $0x370] sm:$0xff]
        %v1068 = vld [vmem:[%s1 + $0x378] sm:$0xff]
        %v1069 = vld [vmem:[%s1 + $0x380] sm:$0xff]
        %v1070 = vld [vmem:[%s1 + $0x388] sm:$0xff]
        %v1071 = vld [vmem:[%s1 + $0x390] sm:$0xff]
        %v1072 = vld [vmem:[%s1 + $0x398] sm:$0xff]
        %v1073 = vld [vmem:[%s1 + $0x3a0] sm:$0xff]
        %v1074 = vld [vmem:[%s1 + $0x3a8] sm:$0xff]
        %v1075 = vld [vmem:[%s1 + $0x3b0] sm:$0xff]
        %v1076 = vld [vmem:[%s1 + $0x3b8] sm:$0xff]
        %v1077 = vld [vmem:[%s1 + $0x3c0] sm:$0xff]
        %v1078 = vld [vmem:[%s1 + $0x3c8] sm:$0xff]
        %v1079 = vld [vmem:[%s1 + $0x3d0] sm:$0xff]
        %v1080 = vld [vmem:[%s1 + $0x3d8] sm:$0xff]
        %v1081 = vld [vmem:[%s1 + $0x3e0] sm:$0xff]
        %v1082 = vld [vmem:[%s1 + $0x3e8] sm:$0xff]
        %v1083 = vld [vmem:[%s1 + $0x3f0] sm:$0xff]
        %v1084 = vld [vmem:[%s1 + $0x3f8] sm:$0xff]
        %v1085 = vld [vmem:[%s1 + $0x400] sm:$0xff]
        %v1086 = vld [vmem:[%s1 + $0x408] sm:$0xff]
        %v1087 = vld [vmem:[%s1 + $0x410] sm:$0xff]
        %v1088 = vld [vmem:[%s1 + $0x418] sm:$0xff]
        %v1089 = vld [vmem:[%s1 + $0x420] sm:$0xff]
        %v1090 = vld [vmem:[%s1 + $0x428] sm:$0xff]
        %v1091 = vld [vmem:[%s1 + $0x430] sm:$0xff]
        %v1092 = vld [vmem:[%s1 + $0x438] sm:$0xff]
        %v1093 = vld [vmem:[%s1 + $0x440] sm:$0xff]
        %v1094 = vld [vmem:[%s1 + $0x448] sm:$0xff]
        %v1095 = vld [vmem:[%s1 + $0x450] sm:$0xff]
        %v1096 = vld [vmem:[%s1 + $0x458] sm:$0xff]
        %v1097 = vld [vmem:[%s1 + $0x460] sm:$0xff]
        %v1098 = vld [vmem:[%s1 + $0x468] sm:$0xff]
        %v1099 = vld [vmem:[%s1 + $0x470] sm:$0xff]
        %v1100 = vld [vmem:[%s1 + $0x478] sm:$0xff]
        %v1101 = vld [vmem:[%s1 + $0x480] sm:$0xff]
        %v1102 = vld [vmem:[%s1 + $0x488] sm:$0xff]
        %v1103 = vld [vmem:[%s1 + $0x490] sm:$0xff]
        %v1104 = vld [vmem:[%s1 + $0x498] sm:$0xff]
        %v1105 = vld [vmem:[%s1 + $0x4a0] sm:$0xff]
        %v1106 = vld [vmem:[%s1 + $0x4a8] sm:$0xff]
        %v1107 = vld [vmem:[%s1 + $0x4b0] sm:$0xff]
        %v1108 = vld [vmem:[%s1 + $0x4b8] sm:$0xff]
        %v1109 = vld [vmem:[%s1 + $0x4c0] sm:$0xff]
        %v1110 = vld [vmem:[%s1 + $0x4c8] sm:$0xff]
        %v1111 = vld [vmem:[%s1 + $0x4d0] sm:$0xff]
        %v1112 = vld [vmem:[%s1 + $0x4d8] sm:$0xff]
        %v1113 = vld [vmem:[%s1 + $0x4e0] sm:$0xff]
        %v1114 = vld [vmem:[%s1 + $0x4e8] sm:$0xff]
        %v1115 = vld [vmem:[%s1 + $0x4f0] sm:$0xff]
        %v1116 = vld [vmem:[%s1 + $0x4f8] sm:$0xff]
        %v1117 = vld [vmem:[%s1 + $0x500] sm:$0xff]
        %v1118 = vld [vmem:[%s1 + $0x508] sm:$0xff]
        %v1119 = vld [vmem:[%s1 + $0x510] sm:$0xff]
        %v1120 = vld [vmem:[%s1 + $0x518] sm:$0xff]
        %v1121 = vld [vmem:[%s1 + $0x520] sm:$0xff]
        %v1122 = vld [vmem:[%s1 + $0x528] sm:$0xff]
        %v1123 = vld [vmem:[%s1 + $0x530] sm:$0xff]
        %v1124 = vld [vmem:[%s1 + $0x538] sm:$0xff]
        %v1125 = vld [vmem:[%s1 + $0x540] sm:$0xff]
        %v1126 = vld [vmem:[%s1 + $0x548] sm:$0xff]
        %v1127 = vld [vmem:[%s1 + $0x550] sm:$0xff]
        %v1128 = vld [vmem:[%s1 + $0x558] sm:$0xff]
        %v1129 = vld [vmem:[%s1 + $0x560] sm:$0xff]
        %v1130 = vld [vmem:[%s1 + $0x568] sm:$0xff]
        %v1131 = vld [vmem:[%s1 + $0x570] sm:$0xff]
        %v1132 = vld [vmem:[%s1 + $0x578] sm:$0xff]
        %v1133 = vld [vmem:[%s1 + $0x580] sm:$0xff]
        %v1134 = vld [vmem:[%s1 + $0x588] sm:$0xff]
        %v1135 = vld [vmem:[%s1 + $0x590] sm:$0xff]
        %v1136 = vld [vmem:[%s1 + $0x598] sm:$0xff]
        %v1137 = vld [vmem:[%s1 + $0x5a0] sm:$0xff]
        %v1138 = vld [vmem:[%s1 + $0x5a8] sm:$0xff]
        %v1139 = vld [vmem:[%s1 + $0x5b0] sm:$0xff]
        %v1140 = vld [vmem:[%s1 + $0x5b8] sm:$0xff]
        %v1141 = vld [vmem:[%s1 + $0x5c0] sm:$0xff]
        %v1142 = vld [vmem:[%s1 + $0x5c8] sm:$0xff]
        %v1143 = vld [vmem:[%s1 + $0x5d0] sm:$0xff]
        %v1144 = vld [vmem:[%s1 + $0x5d8] sm:$0xff]
        %v1145 = vld [vmem:[%s1 + $0x5e0] sm:$0xff]
        %v1146 = vld [vmem:[%s1 + $0x5e8] sm:$0xff]
        %v1147 = vld [vmem:[%s1 + $0x5f0] sm:$0xff]
        %v1148 = vld [vmem:[%s1 + $0x5f8] sm:$0xff]
        %v1149 = vld [vmem:[%s1 + $0x600] sm:$0xff]
        %v1150 = vld [vmem:[%s1 + $0x608] sm:$0xff]
        %v1151 = vld [vmem:[%s1 + $0x610] sm:$0xff]
        %v1152 = vld [vmem:[%s1 + $0x618] sm:$0xff]
        %v1153 = vld [vmem:[%s2] sm:$0xf]
        %v1155 = vlaneseq
        %v1156 = vshrl.u32 %v1155, 7
        %v1157 = vsub.s32 0, %v1156
        %v1158 = vrot.slane %v1153, %v1157
        %v1159 = vlaneseq
        %v1160 = vshrl.u32 %v1159, 7
        %v1161 = vsub.s32 1, %v1160
        %v1162 = vrot.slane %v1153, %v1161
        %v1163 = vlaneseq
        %v1164 = vshrl.u32 %v1163, 7
        %v1165 = vsub.s32 2, %v1164
        %v1166 = vrot.slane %v1153, %v1165
        %v1167 = vlaneseq
        %v1168 = vshrl.u32 %v1167, 7
        %v1169 = vsub.s32 3, %v1168
        %v1170 = vrot.slane %v1153, %v1169
        %v1371 = vunpack.c.l.b16 %v957
        %v1372 = vunpack.c.h.b16 %v957
        %v1373 = vunpack.c.l.b16 %v958
        %v1374 = vunpack.c.h.b16 %v958
        %v1375 = vunpack.c.l.b16 %v959
        %v1376 = vunpack.c.h.b16 %v959
        %v1377 = vunpack.c.l.b16 %v960
        %v1378 = vunpack.c.h.b16 %v960
        %v1379 = vunpack.c.l.b16 %v961
        %v1380 = vunpack.c.h.b16 %v961
        %v1381 = vunpack.c.l.b16 %v962
        %v1382 = vunpack.c.h.b16 %v962
        %v1383 = vunpack.c.l.b16 %v963
        %v1384 = vunpack.c.h.b16 %v963
        %v1385 = vunpack.c.l.b16 %v964
        %v1386 = vunpack.c.h.b16 %v964
        %v1387 = vunpack.c.l.b16 %v965
        %v1388 = vunpack.c.h.b16 %v965
        %v1389 = vunpack.c.l.b16 %v966
        %v1390 = vunpack.c.h.b16 %v966
        %v1391 = vunpack.c.l.b16 %v967
        %v1392 = vunpack.c.h.b16 %v967
        %v1393 = vunpack.c.l.b16 %v968
        %v1394 = vunpack.c.h.b16 %v968
        %v1395 = vunpack.c.l.b16 %v969
        %v1396 = vunpack.c.h.b16 %v969
        %v1397 = vunpack.c.l.b16 %v970
        %v1398 = vunpack.c.h.b16 %v970
        %v1399 = vunpack.c.l.b16 %v971
        %v1400 = vunpack.c.h.b16 %v971
        %v1401 = vunpack.c.l.b16 %v972
        %v1402 = vunpack.c.h.b16 %v972
        %v1403 = vunpack.c.l.b16 %v973
        %v1404 = vunpack.c.h.b16 %v973
        %v1405 = vunpack.c.l.b16 %v974
        %v1406 = vunpack.c.h.b16 %v974
        %v1407 = vunpack.c.l.b16 %v975
        %v1408 = vunpack.c.h.b16 %v975
        %v1409 = vunpack.c.l.b16 %v976
        %v1410 = vunpack.c.h.b16 %v976
        %v1411 = vunpack.c.l.b16 %v977
        %v1412 = vunpack.c.h.b16 %v977
        %v1413 = vunpack.c.l.b16 %v978
        %v1414 = vunpack.c.h.b16 %v978
        %v1415 = vunpack.c.l.b16 %v979
        %v1416 = vunpack.c.h.b16 %v979
        %v1417 = vunpack.c.l.b16 %v980
        %v1418 = vunpack.c.h.b16 %v980
        %v1419 = vunpack.c.l.b16 %v981
        %v1420 = vunpack.c.h.b16 %v981
        %v1421 = vunpack.c.l.b16 %v982
        %v1422 = vunpack.c.h.b16 %v982
        %v1423 = vunpack.c.l.b16 %v983
        %v1424 = vunpack.c.h.b16 %v983
        %v1425 = vunpack.c.l.b16 %v984
        %v1426 = vunpack.c.h.b16 %v984
        %v1427 = vunpack.c.l.b16 %v985
        %v1428 = vunpack.c.h.b16 %v985
        %v1429 = vunpack.c.l.b16 %v986
        %v1430 = vunpack.c.h.b16 %v986
        %v1431 = vunpack.c.l.b16 %v987
        %v1432 = vunpack.c.h.b16 %v987
        %v1433 = vunpack.c.l.b16 %v988
        %v1434 = vunpack.c.h.b16 %v988
        %v1435 = vunpack.c.l.b16 %v989
        %v1436 = vunpack.c.h.b16 %v989
        %v1437 = vunpack.c.l.b16 %v990
        %v1438 = vunpack.c.h.b16 %v990
        %v1439 = vunpack.c.l.b16 %v991
        %v1440 = vunpack.c.h.b16 %v991
        %v1441 = vunpack.c.l.b16 %v992
        %v1442 = vunpack.c.h.b16 %v992
        %v1443 = vunpack.c.l.b16 %v993
        %v1444 = vunpack.c.h.b16 %v993
        %v1445 = vunpack.c.l.b16 %v994
        %v1446 = vunpack.c.h.b16 %v994
        %v1447 = vunpack.c.l.b16 %v995
        %v1448 = vunpack.c.h.b16 %v995
        %v1449 = vunpack.c.l.b16 %v996
        %v1450 = vunpack.c.h.b16 %v996
        %v1451 = vunpack.c.l.b16 %v997
        %v1452 = vunpack.c.h.b16 %v997
        %v1453 = vunpack.c.l.b16 %v998
        %v1454 = vunpack.c.h.b16 %v998
        %v1455 = vunpack.c.l.b16 %v999
        %v1456 = vunpack.c.h.b16 %v999
        %v1457 = vunpack.c.l.b16 %v1000
        %v1458 = vunpack.c.h.b16 %v1000
        %v1459 = vunpack.c.l.b16 %v1001
        %v1460 = vunpack.c.h.b16 %v1001
        %v1461 = vunpack.c.l.b16 %v1002
        %v1462 = vunpack.c.h.b16 %v1002
        %v1463 = vunpack.c.l.b16 %v1003
        %v1464 = vunpack.c.h.b16 %v1003
        %v1465 = vunpack.c.l.b16 %v1004
        %v1466 = vunpack.c.h.b16 %v1004
        %v1467 = vunpack.c.l.b16 %v1005
        %v1468 = vunpack.c.h.b16 %v1005
        %v1469 = vunpack.c.l.b16 %v1006
        %v1470 = vunpack.c.h.b16 %v1006
        %v1471 = vunpack.c.l.b16 %v1007
        %v1472 = vunpack.c.h.b16 %v1007
        %v1473 = vunpack.c.l.b16 %v1008
        %v1474 = vunpack.c.h.b16 %v1008
        %v1475 = vunpack.c.l.b16 %v1009
        %v1476 = vunpack.c.h.b16 %v1009
        %v1477 = vunpack.c.l.b16 %v1010
        %v1478 = vunpack.c.h.b16 %v1010
        %v1479 = vunpack.c.l.b16 %v1011
        %v1480 = vunpack.c.h.b16 %v1011
        %v1481 = vunpack.c.l.b16 %v1012
        %v1482 = vunpack.c.h.b16 %v1012
        %v1483 = vunpack.c.l.b16 %v1013
        %v1484 = vunpack.c.h.b16 %v1013
        %v1485 = vunpack.c.l.b16 %v1014
        %v1486 = vunpack.c.h.b16 %v1014
        %v1487 = vunpack.c.l.b16 %v1015
        %v1488 = vunpack.c.h.b16 %v1015
        %v1489 = vunpack.c.l.b16 %v1016
        %v1490 = vunpack.c.h.b16 %v1016
        %v1491 = vunpack.c.l.b16 %v1017
        %v1492 = vunpack.c.h.b16 %v1017
        %v1493 = vunpack.c.l.b16 %v1018
        %v1494 = vunpack.c.h.b16 %v1018
        %v1495 = vunpack.c.l.b16 %v1019
        %v1496 = vunpack.c.h.b16 %v1019
        %v1497 = vunpack.c.l.b16 %v1020
        %v1498 = vunpack.c.h.b16 %v1020
        %v1499 = vunpack.c.l.b16 %v1021
        %v1500 = vunpack.c.h.b16 %v1021
        %v1501 = vunpack.c.l.b16 %v1022
        %v1502 = vunpack.c.h.b16 %v1022
        %v1503 = vunpack.c.l.b16 %v1023
        %v1504 = vunpack.c.h.b16 %v1023
        %v1505 = vunpack.c.l.b16 %v1024
        %v1506 = vunpack.c.h.b16 %v1024
        %v1507 = vunpack.c.l.b16 %v1025
        %v1508 = vunpack.c.h.b16 %v1025
        %v1509 = vunpack.c.l.b16 %v1026
        %v1510 = vunpack.c.h.b16 %v1026
        %v1511 = vunpack.c.l.b16 %v1027
        %v1512 = vunpack.c.h.b16 %v1027
        %v1513 = vunpack.c.l.b16 %v1028
        %v1514 = vunpack.c.h.b16 %v1028
        %v1515 = vunpack.c.l.b16 %v1029
        %v1516 = vunpack.c.h.b16 %v1029
        %v1517 = vunpack.c.l.b16 %v1030
        %v1518 = vunpack.c.h.b16 %v1030
        %v1519 = vunpack.c.l.b16 %v1031
        %v1520 = vunpack.c.h.b16 %v1031
        %v1521 = vunpack.c.l.b16 %v1032
        %v1522 = vunpack.c.h.b16 %v1032
        %v1523 = vunpack.c.l.b16 %v1033
        %v1524 = vunpack.c.h.b16 %v1033
        %v1525 = vunpack.c.l.b16 %v1034
        %v1526 = vunpack.c.h.b16 %v1034
        %v1527 = vunpack.c.l.b16 %v1035
        %v1528 = vunpack.c.h.b16 %v1035
        %v1529 = vunpack.c.l.b16 %v1036
        %v1530 = vunpack.c.h.b16 %v1036
        %v1531 = vunpack.c.l.b16 %v1037
        %v1532 = vunpack.c.h.b16 %v1037
        %v1533 = vunpack.c.l.b16 %v1038
        %v1534 = vunpack.c.h.b16 %v1038
        %v1535 = vunpack.c.l.b16 %v1039
        %v1536 = vunpack.c.h.b16 %v1039
        %v1537 = vunpack.c.l.b16 %v1040
        %v1538 = vunpack.c.h.b16 %v1040
        %v1539 = vunpack.c.l.b16 %v1041
        %v1540 = vunpack.c.h.b16 %v1041
        %v1541 = vunpack.c.l.b16 %v1042
        %v1542 = vunpack.c.h.b16 %v1042
        %v1543 = vunpack.c.l.b16 %v1043
        %v1544 = vunpack.c.h.b16 %v1043
        %v1545 = vunpack.c.l.b16 %v1044
        %v1546 = vunpack.c.h.b16 %v1044
        %v1547 = vunpack.c.l.b16 %v1045
        %v1548 = vunpack.c.h.b16 %v1045
        %v1549 = vunpack.c.l.b16 %v1046
        %v1550 = vunpack.c.h.b16 %v1046
        %v1551 = vunpack.c.l.b16 %v1047
        %v1552 = vunpack.c.h.b16 %v1047
        %v1553 = vunpack.c.l.b16 %v1048
        %v1554 = vunpack.c.h.b16 %v1048
        %v1555 = vunpack.c.l.b16 %v1049
        %v1556 = vunpack.c.h.b16 %v1049
        %v1557 = vunpack.c.l.b16 %v1050
        %v1558 = vunpack.c.h.b16 %v1050
        %v1559 = vunpack.c.l.b16 %v1051
        %v1560 = vunpack.c.h.b16 %v1051
        %v1561 = vunpack.c.l.b16 %v1052
        %v1562 = vunpack.c.h.b16 %v1052
        %v1563 = vunpack.c.l.b16 %v1053
        %v1564 = vunpack.c.h.b16 %v1053
        %v1565 = vunpack.c.l.b16 %v1054
        %v1566 = vunpack.c.h.b16 %v1054
        %v1567 = vunpack.c.l.b16 %v1055
        %v1568 = vunpack.c.h.b16 %v1055
        %v1569 = vunpack.c.l.b16 %v1056
        %v1570 = vunpack.c.h.b16 %v1056
        %v1571 = vunpack.c.l.b16 %v1057
        %v1572 = vunpack.c.h.b16 %v1057
        %v1573 = vunpack.c.l.b16 %v1058
        %v1574 = vunpack.c.h.b16 %v1058
        %v1575 = vunpack.c.l.b16 %v1059
        %v1576 = vunpack.c.h.b16 %v1059
        %v1577 = vunpack.c.l.b16 %v1060
        %v1578 = vunpack.c.h.b16 %v1060
        %v1579 = vunpack.c.l.b16 %v1061
        %v1580 = vunpack.c.h.b16 %v1061
        %v1581 = vunpack.c.l.b16 %v1062
        %v1582 = vunpack.c.h.b16 %v1062
        %v1583 = vunpack.c.l.b16 %v1063
        %v1584 = vunpack.c.h.b16 %v1063
        %v1585 = vunpack.c.l.b16 %v1064
        %v1586 = vunpack.c.h.b16 %v1064
        %v1587 = vunpack.c.l.b16 %v1065
        %v1588 = vunpack.c.h.b16 %v1065
        %v1589 = vunpack.c.l.b16 %v1066
        %v1590 = vunpack.c.h.b16 %v1066
        %v1591 = vunpack.c.l.b16 %v1067
        %v1592 = vunpack.c.h.b16 %v1067
        %v1593 = vunpack.c.l.b16 %v1068
        %v1594 = vunpack.c.h.b16 %v1068
        %v1595 = vunpack.c.l.b16 %v1069
        %v1596 = vunpack.c.h.b16 %v1069
        %v1597 = vunpack.c.l.b16 %v1070
        %v1598 = vunpack.c.h.b16 %v1070
        %v1599 = vunpack.c.l.b16 %v1071
        %v1600 = vunpack.c.h.b16 %v1071
        %v1601 = vunpack.c.l.b16 %v1072
        %v1602 = vunpack.c.h.b16 %v1072
        %v1603 = vunpack.c.l.b16 %v1073
        %v1604 = vunpack.c.h.b16 %v1073
        %v1605 = vunpack.c.l.b16 %v1074
        %v1606 = vunpack.c.h.b16 %v1074
        %v1607 = vunpack.c.l.b16 %v1075
        %v1608 = vunpack.c.h.b16 %v1075
        %v1609 = vunpack.c.l.b16 %v1076
        %v1610 = vunpack.c.h.b16 %v1076
        %v1611 = vunpack.c.l.b16 %v1077
        %v1612 = vunpack.c.h.b16 %v1077
        %v1613 = vunpack.c.l.b16 %v1078
        %v1614 = vunpack.c.h.b16 %v1078
        %v1615 = vunpack.c.l.b16 %v1079
        %v1616 = vunpack.c.h.b16 %v1079
        %v1617 = vunpack.c.l.b16 %v1080
        %v1618 = vunpack.c.h.b16 %v1080
        %v1619 = vunpack.c.l.b16 %v1081
        %v1620 = vunpack.c.h.b16 %v1081
        %v1621 = vunpack.c.l.b16 %v1082
        %v1622 = vunpack.c.h.b16 %v1082
        %v1623 = vunpack.c.l.b16 %v1083
        %v1624 = vunpack.c.h.b16 %v1083
        %v1625 = vunpack.c.l.b16 %v1084
        %v1626 = vunpack.c.h.b16 %v1084
        %v1627 = vunpack.c.l.b16 %v1085
        %v1628 = vunpack.c.h.b16 %v1085
        %v1629 = vunpack.c.l.b16 %v1086
        %v1630 = vunpack.c.h.b16 %v1086
        %v1631 = vunpack.c.l.b16 %v1087
        %v1632 = vunpack.c.h.b16 %v1087
        %v1633 = vunpack.c.l.b16 %v1088
        %v1634 = vunpack.c.h.b16 %v1088
        %v1635 = vunpack.c.l.b16 %v1089
        %v1636 = vunpack.c.h.b16 %v1089
        %v1637 = vunpack.c.l.b16 %v1090
        %v1638 = vunpack.c.h.b16 %v1090
        %v1639 = vunpack.c.l.b16 %v1091
        %v1640 = vunpack.c.h.b16 %v1091
        %v1641 = vunpack.c.l.b16 %v1092
        %v1642 = vunpack.c.h.b16 %v1092
        %v1643 = vunpack.c.l.b16 %v1093
        %v1644 = vunpack.c.h.b16 %v1093
        %v1645 = vunpack.c.l.b16 %v1094
        %v1646 = vunpack.c.h.b16 %v1094
        %v1647 = vunpack.c.l.b16 %v1095
        %v1648 = vunpack.c.h.b16 %v1095
        %v1649 = vunpack.c.l.b16 %v1096
        %v1650 = vunpack.c.h.b16 %v1096
        %v1651 = vunpack.c.l.b16 %v1097
        %v1652 = vunpack.c.h.b16 %v1097
        %v1653 = vunpack.c.l.b16 %v1098
        %v1654 = vunpack.c.h.b16 %v1098
        %v1655 = vunpack.c.l.b16 %v1099
        %v1656 = vunpack.c.h.b16 %v1099
        %v1657 = vunpack.c.l.b16 %v1100
        %v1658 = vunpack.c.h.b16 %v1100
        %v1659 = vunpack.c.l.b16 %v1101
        %v1660 = vunpack.c.h.b16 %v1101
        %v1661 = vunpack.c.l.b16 %v1102
        %v1662 = vunpack.c.h.b16 %v1102
        %v1663 = vunpack.c.l.b16 %v1103
        %v1664 = vunpack.c.h.b16 %v1103
        %v1665 = vunpack.c.l.b16 %v1104
        %v1666 = vunpack.c.h.b16 %v1104
        %v1667 = vunpack.c.l.b16 %v1105
        %v1668 = vunpack.c.h.b16 %v1105
        %v1669 = vunpack.c.l.b16 %v1106
        %v1670 = vunpack.c.h.b16 %v1106
        %v1671 = vunpack.c.l.b16 %v1107
        %v1672 = vunpack.c.h.b16 %v1107
        %v1673 = vunpack.c.l.b16 %v1108
        %v1674 = vunpack.c.h.b16 %v1108
        %v1675 = vunpack.c.l.b16 %v1109
        %v1676 = vunpack.c.h.b16 %v1109
        %v1677 = vunpack.c.l.b16 %v1110
        %v1678 = vunpack.c.h.b16 %v1110
        %v1679 = vunpack.c.l.b16 %v1111
        %v1680 = vunpack.c.h.b16 %v1111
        %v1681 = vunpack.c.l.b16 %v1112
        %v1682 = vunpack.c.h.b16 %v1112
        %v1683 = vunpack.c.l.b16 %v1113
        %v1684 = vunpack.c.h.b16 %v1113
        %v1685 = vunpack.c.l.b16 %v1114
        %v1686 = vunpack.c.h.b16 %v1114
        %v1687 = vunpack.c.l.b16 %v1115
        %v1688 = vunpack.c.h.b16 %v1115
        %v1689 = vunpack.c.l.b16 %v1116
        %v1690 = vunpack.c.h.b16 %v1116
        %v1691 = vunpack.c.l.b16 %v1117
        %v1692 = vunpack.c.h.b16 %v1117
        %v1693 = vunpack.c.l.b16 %v1118
        %v1694 = vunpack.c.h.b16 %v1118
        %v1695 = vunpack.c.l.b16 %v1119
        %v1696 = vunpack.c.h.b16 %v1119
        %v1697 = vunpack.c.l.b16 %v1120
        %v1698 = vunpack.c.h.b16 %v1120
        %v1699 = vunpack.c.l.b16 %v1121
        %v1700 = vunpack.c.h.b16 %v1121
        %v1701 = vunpack.c.l.b16 %v1122
        %v1702 = vunpack.c.h.b16 %v1122
        %v1703 = vunpack.c.l.b16 %v1123
        %v1704 = vunpack.c.h.b16 %v1123
        %v1705 = vunpack.c.l.b16 %v1124
        %v1706 = vunpack.c.h.b16 %v1124
        %v1707 = vunpack.c.l.b16 %v1125
        %v1708 = vunpack.c.h.b16 %v1125
        %v1709 = vunpack.c.l.b16 %v1126
        %v1710 = vunpack.c.h.b16 %v1126
        %v1711 = vunpack.c.l.b16 %v1127
        %v1712 = vunpack.c.h.b16 %v1127
        %v1713 = vunpack.c.l.b16 %v1128
        %v1714 = vunpack.c.h.b16 %v1128
        %v1715 = vunpack.c.l.b16 %v1129
        %v1716 = vunpack.c.h.b16 %v1129
        %v1717 = vunpack.c.l.b16 %v1130
        %v1718 = vunpack.c.h.b16 %v1130
        %v1719 = vunpack.c.l.b16 %v1131
        %v1720 = vunpack.c.h.b16 %v1131
        %v1721 = vunpack.c.l.b16 %v1132
        %v1722 = vunpack.c.h.b16 %v1132
        %v1723 = vunpack.c.l.b16 %v1133
        %v1724 = vunpack.c.h.b16 %v1133
        %v1725 = vunpack.c.l.b16 %v1134
        %v1726 = vunpack.c.h.b16 %v1134
        %v1727 = vunpack.c.l.b16 %v1135
        %v1728 = vunpack.c.h.b16 %v1135
        %v1729 = vunpack.c.l.b16 %v1136
        %v1730 = vunpack.c.h.b16 %v1136
        %v1731 = vunpack.c.l.b16 %v1137
        %v1732 = vunpack.c.h.b16 %v1137
        %v1733 = vunpack.c.l.b16 %v1138
        %v1734 = vunpack.c.h.b16 %v1138
        %v1735 = vunpack.c.l.b16 %v1139
        %v1736 = vunpack.c.h.b16 %v1139
        %v1737 = vunpack.c.l.b16 %v1140
        %v1738 = vunpack.c.h.b16 %v1140
        %v1739 = vunpack.c.l.b16 %v1141
        %v1740 = vunpack.c.h.b16 %v1141
        %v1741 = vunpack.c.l.b16 %v1142
        %v1742 = vunpack.c.h.b16 %v1142
        %v1743 = vunpack.c.l.b16 %v1143
        %v1744 = vunpack.c.h.b16 %v1143
        %v1745 = vunpack.c.l.b16 %v1144
        %v1746 = vunpack.c.h.b16 %v1144
        %v1747 = vunpack.c.l.b16 %v1145
        %v1748 = vunpack.c.h.b16 %v1145
        %v1749 = vunpack.c.l.b16 %v1146
        %v1750 = vunpack.c.h.b16 %v1146
        %v1751 = vunpack.c.l.b16 %v1147
        %v1752 = vunpack.c.h.b16 %v1147
        %v1753 = vunpack.c.l.b16 %v1148
        %v1754 = vunpack.c.h.b16 %v1148
        %v1755 = vunpack.c.l.b16 %v1149
        %v1756 = vunpack.c.h.b16 %v1149
        %v1757 = vunpack.c.l.b16 %v1150
        %v1758 = vunpack.c.h.b16 %v1150
        %v1759 = vunpack.c.l.b16 %v1151
        %v1760 = vunpack.c.h.b16 %v1151
        %v1761 = vunpack.c.l.b16 %v1152
        %v1762 = vunpack.c.h.b16 %v1152
        %v1763 = vpack.c.b16 %v1375, %v1371
        %v1764 = vpack.c.b16 %v1376, %v1372
        %v1765 = vpack.c.b16 %v1377, %v1373
        %v1766 = vpack.c.b16 %v1378, %v1374
        %v1767 = vpack.c.b16 %v1383, %v1379
        %v1768 = vpack.c.b16 %v1384, %v1380
        %v1769 = vpack.c.b16 %v1385, %v1381
        %v1770 = vpack.c.b16 %v1386, %v1382
        %v1771 = vpack.c.b16 %v1391, %v1387
        %v1772 = vpack.c.b16 %v1392, %v1388
        %v1773 = vpack.c.b16 %v1393, %v1389
        %v1774 = vpack.c.b16 %v1394, %v1390
        %v1775 = vpack.c.b16 %v1399, %v1395
        %v1776 = vpack.c.b16 %v1400, %v1396
        %v1777 = vpack.c.b16 %v1401, %v1397
        %v1778 = vpack.c.b16 %v1402, %v1398
        %v1779 = vpack.c.b16 %v1407, %v1403
        %v1780 = vpack.c.b16 %v1408, %v1404
        %v1781 = vpack.c.b16 %v1409, %v1405
        %v1782 = vpack.c.b16 %v1410, %v1406
        %v1783 = vpack.c.b16 %v1415, %v1411
        %v1784 = vpack.c.b16 %v1416, %v1412
        %v1785 = vpack.c.b16 %v1417, %v1413
        %v1786 = vpack.c.b16 %v1418, %v1414
        %v1787 = vpack.c.b16 %v1423, %v1419
        %v1788 = vpack.c.b16 %v1424, %v1420
        %v1789 = vpack.c.b16 %v1425, %v1421
        %v1790 = vpack.c.b16 %v1426, %v1422
        %v1791 = vpack.c.b16 %v1431, %v1427
        %v1792 = vpack.c.b16 %v1432, %v1428
        %v1793 = vpack.c.b16 %v1433, %v1429
        %v1794 = vpack.c.b16 %v1434, %v1430
        %v1795 = vpack.c.b16 %v1439, %v1435
        %v1796 = vpack.c.b16 %v1440, %v1436
        %v1797 = vpack.c.b16 %v1441, %v1437
        %v1798 = vpack.c.b16 %v1442, %v1438
        %v1799 = vpack.c.b16 %v1447, %v1443
        %v1800 = vpack.c.b16 %v1448, %v1444
        %v1801 = vpack.c.b16 %v1449, %v1445
        %v1802 = vpack.c.b16 %v1450, %v1446
        %v1803 = vpack.c.b16 %v1455, %v1451
        %v1804 = vpack.c.b16 %v1456, %v1452
        %v1805 = vpack.c.b16 %v1457, %v1453
        %v1806 = vpack.c.b16 %v1458, %v1454
        %v1807 = vpack.c.b16 %v1463, %v1459
        %v1808 = vpack.c.b16 %v1464, %v1460
        %v1809 = vpack.c.b16 %v1465, %v1461
        %v1810 = vpack.c.b16 %v1466, %v1462
        %v1811 = vpack.c.b16 %v1471, %v1467
        %v1812 = vpack.c.b16 %v1472, %v1468
        %v1813 = vpack.c.b16 %v1473, %v1469
        %v1814 = vpack.c.b16 %v1474, %v1470
        %v1815 = vpack.c.b16 %v1479, %v1475
        %v1816 = vpack.c.b16 %v1480, %v1476
        %v1817 = vpack.c.b16 %v1481, %v1477
        %v1818 = vpack.c.b16 %v1482, %v1478
        %v1819 = vpack.c.b16 %v1487, %v1483
        %v1820 = vpack.c.b16 %v1488, %v1484
        %v1821 = vpack.c.b16 %v1489, %v1485
        %v1822 = vpack.c.b16 %v1490, %v1486
        %v1823 = vpack.c.b16 %v1495, %v1491
        %v1824 = vpack.c.b16 %v1496, %v1492
        %v1825 = vpack.c.b16 %v1497, %v1493
        %v1826 = vpack.c.b16 %v1498, %v1494
        %v1827 = vpack.c.b16 %v1503, %v1499
        %v1828 = vpack.c.b16 %v1504, %v1500
        %v1829 = vpack.c.b16 %v1505, %v1501
        %v1830 = vpack.c.b16 %v1506, %v1502
        %v1831 = vpack.c.b16 %v1511, %v1507
        %v1832 = vpack.c.b16 %v1512, %v1508
        %v1833 = vpack.c.b16 %v1513, %v1509
        %v1834 = vpack.c.b16 %v1514, %v1510
        %v1835 = vpack.c.b16 %v1519, %v1515
        %v1836 = vpack.c.b16 %v1520, %v1516
        %v1837 = vpack.c.b16 %v1521, %v1517
        %v1838 = vpack.c.b16 %v1522, %v1518
        %v1839 = vpack.c.b16 %v1527, %v1523
        %v1840 = vpack.c.b16 %v1528, %v1524
        %v1841 = vpack.c.b16 %v1529, %v1525
        %v1842 = vpack.c.b16 %v1530, %v1526
        %v1843 = vpack.c.b16 %v1535, %v1531
        %v1844 = vpack.c.b16 %v1536, %v1532
        %v1845 = vpack.c.b16 %v1537, %v1533
        %v1846 = vpack.c.b16 %v1538, %v1534
        %v1847 = vpack.c.b16 %v1543, %v1539
        %v1848 = vpack.c.b16 %v1544, %v1540
        %v1849 = vpack.c.b16 %v1545, %v1541
        %v1850 = vpack.c.b16 %v1546, %v1542
        %v1851 = vpack.c.b16 %v1551, %v1547
        %v1852 = vpack.c.b16 %v1552, %v1548
        %v1853 = vpack.c.b16 %v1553, %v1549
        %v1854 = vpack.c.b16 %v1554, %v1550
        %v1855 = vpack.c.b16 %v1559, %v1555
        %v1856 = vpack.c.b16 %v1560, %v1556
        %v1857 = vpack.c.b16 %v1561, %v1557
        %v1858 = vpack.c.b16 %v1562, %v1558
        %v1859 = vpack.c.b16 %v1567, %v1563
        %v1860 = vpack.c.b16 %v1568, %v1564
        %v1861 = vpack.c.b16 %v1569, %v1565
        %v1862 = vpack.c.b16 %v1570, %v1566
        %v1863 = vpack.c.b16 %v1575, %v1571
        %v1864 = vpack.c.b16 %v1576, %v1572
        %v1865 = vpack.c.b16 %v1577, %v1573
        %v1866 = vpack.c.b16 %v1578, %v1574
        %v1867 = vpack.c.b16 %v1583, %v1579
        %v1868 = vpack.c.b16 %v1584, %v1580
        %v1869 = vpack.c.b16 %v1585, %v1581
        %v1870 = vpack.c.b16 %v1586, %v1582
        %v1871 = vpack.c.b16 %v1591, %v1587
        %v1872 = vpack.c.b16 %v1592, %v1588
        %v1873 = vpack.c.b16 %v1593, %v1589
        %v1874 = vpack.c.b16 %v1594, %v1590
        %v1875 = vpack.c.b16 %v1599, %v1595
        %v1876 = vpack.c.b16 %v1600, %v1596
        %v1877 = vpack.c.b16 %v1601, %v1597
        %v1878 = vpack.c.b16 %v1602, %v1598
        %v1879 = vpack.c.b16 %v1607, %v1603
        %v1880 = vpack.c.b16 %v1608, %v1604
        %v1881 = vpack.c.b16 %v1609, %v1605
        %v1882 = vpack.c.b16 %v1610, %v1606
        %v1883 = vpack.c.b16 %v1615, %v1611
        %v1884 = vpack.c.b16 %v1616, %v1612
        %v1885 = vpack.c.b16 %v1617, %v1613
        %v1886 = vpack.c.b16 %v1618, %v1614
        %v1887 = vpack.c.b16 %v1623, %v1619
        %v1888 = vpack.c.b16 %v1624, %v1620
        %v1889 = vpack.c.b16 %v1625, %v1621
        %v1890 = vpack.c.b16 %v1626, %v1622
        %v1891 = vpack.c.b16 %v1631, %v1627
        %v1892 = vpack.c.b16 %v1632, %v1628
        %v1893 = vpack.c.b16 %v1633, %v1629
        %v1894 = vpack.c.b16 %v1634, %v1630
        %v1895 = vpack.c.b16 %v1639, %v1635
        %v1896 = vpack.c.b16 %v1640, %v1636
        %v1897 = vpack.c.b16 %v1641, %v1637
        %v1898 = vpack.c.b16 %v1642, %v1638
        %v1899 = vpack.c.b16 %v1647, %v1643
        %v1900 = vpack.c.b16 %v1648, %v1644
        %v1901 = vpack.c.b16 %v1649, %v1645
        %v1902 = vpack.c.b16 %v1650, %v1646
        %v1903 = vpack.c.b16 %v1655, %v1651
        %v1904 = vpack.c.b16 %v1656, %v1652
        %v1905 = vpack.c.b16 %v1657, %v1653
        %v1906 = vpack.c.b16 %v1658, %v1654
        %v1907 = vpack.c.b16 %v1663, %v1659
        %v1908 = vpack.c.b16 %v1664, %v1660
        %v1909 = vpack.c.b16 %v1665, %v1661
        %v1910 = vpack.c.b16 %v1666, %v1662
        %v1911 = vpack.c.b16 %v1671, %v1667
        %v1912 = vpack.c.b16 %v1672, %v1668
        %v1913 = vpack.c.b16 %v1673, %v1669
        %v1914 = vpack.c.b16 %v1674, %v1670
        %v1915 = vpack.c.b16 %v1679, %v1675
        %v1916 = vpack.c.b16 %v1680, %v1676
        %v1917 = vpack.c.b16 %v1681, %v1677
        %v1918 = vpack.c.b16 %v1682, %v1678
        %v1919 = vpack.c.b16 %v1687, %v1683
        %v1920 = vpack.c.b16 %v1688, %v1684
        %v1921 = vpack.c.b16 %v1689, %v1685
        %v1922 = vpack.c.b16 %v1690, %v1686
        %v1923 = vpack.c.b16 %v1695, %v1691
        %v1924 = vpack.c.b16 %v1696, %v1692
        %v1925 = vpack.c.b16 %v1697, %v1693
        %v1926 = vpack.c.b16 %v1698, %v1694
        %v1927 = vpack.c.b16 %v1703, %v1699
        %v1928 = vpack.c.b16 %v1704, %v1700
        %v1929 = vpack.c.b16 %v1705, %v1701
        %v1930 = vpack.c.b16 %v1706, %v1702
        %v1931 = vpack.c.b16 %v1711, %v1707
        %v1932 = vpack.c.b16 %v1712, %v1708
        %v1933 = vpack.c.b16 %v1713, %v1709
        %v1934 = vpack.c.b16 %v1714, %v1710
        %v1935 = vpack.c.b16 %v1719, %v1715
        %v1936 = vpack.c.b16 %v1720, %v1716
        %v1937 = vpack.c.b16 %v1721, %v1717
        %v1938 = vpack.c.b16 %v1722, %v1718
        %v1939 = vpack.c.b16 %v1727, %v1723
        %v1940 = vpack.c.b16 %v1728, %v1724
        %v1941 = vpack.c.b16 %v1729, %v1725
        %v1942 = vpack.c.b16 %v1730, %v1726
        %v1943 = vpack.c.b16 %v1735, %v1731
        %v1944 = vpack.c.b16 %v1736, %v1732
        %v1945 = vpack.c.b16 %v1737, %v1733
        %v1946 = vpack.c.b16 %v1738, %v1734
        %v1947 = vpack.c.b16 %v1743, %v1739
        %v1948 = vpack.c.b16 %v1744, %v1740
        %v1949 = vpack.c.b16 %v1745, %v1741
        %v1950 = vpack.c.b16 %v1746, %v1742
        %v1951 = vpack.c.b16 %v1751, %v1747
        %v1952 = vpack.c.b16 %v1752, %v1748
        %v1953 = vpack.c.b16 %v1753, %v1749
        %v1954 = vpack.c.b16 %v1754, %v1750
        %v1955 = vpack.c.b16 %v1759, %v1755
        %v1956 = vpack.c.b16 %v1760, %v1756
        %v1957 = vpack.c.b16 %v1761, %v1757
        %v1958 = vpack.c.b16 %v1762, %v1758
        %vm2155 = vcmask 130048
        %v2157 = vsel %vm2155, %v739, 0
        %v2160 = vsel %vm2155, %v746, 0
        %v2163 = vsel %vm2155, %v753, 0
        %v2166 = vsel %vm2155, %v760, 0
        %v2169 = vsel %vm2155, %v767, 0
        %v2172 = vsel %vm2155, %v774, 0
        %v2175 = vsel %vm2155, %v781, 0
        %v2178 = vsel %vm2155, %v788, 0
        %v2181 = vsel %vm2155, %v795, 0
        %v2184 = vsel %vm2155, %v802, 0
        %v2187 = vsel %vm2155, %v809, 0
        %v2190 = vsel %vm2155, %v816, 0
        %v2193 = vsel %vm2155, %v823, 0
        %v2196 = vsel %vm2155, %v830, 0
        %v2199 = vsel %vm2155, %v837, 0
        %v2202 = vsel %vm2155, %v844, 0
        %v2205 = vsel %vm2155, %v851, 0
        %v2208 = vsel %vm2155, %v858, 0
        %v2211 = vsel %vm2155, %v865, 0
        %v2214 = vsel %vm2155, %v872, 0
        %v2217 = vsel %vm2155, %v879, 0
        %v2220 = vsel %vm2155, %v886, 0
        %v2223 = vsel %vm2155, %v893, 0
        %v2226 = vsel %vm2155, %v900, 0
        %v2229 = vsel %vm2155, %v907, 0
        %v2232 = vsel %vm2155, %v914, 0
        %v2235 = vsel %vm2155, %v921, 0
        %v2238 = vsel %vm2155, %v928, 0
        %v2241 = vsel %vm2155, %v935, 0
        %v2244 = vsel %vm2155, %v942, 0
        %v2247 = vsel %vm2155, %v949, 0
        %v2250 = vsel %vm2155, %v956, 0
        %2252 = vmatprep.subr.bf16.mxu0 %v1764
        %2253 = vmatpush1.bf16.msra.mxu0 %v1763
        %2254 = vmatprep.subr.bf16.mxu0 %v1768
        %2255 = vmatpush1.bf16.msra.mxu0 %v1767
        %2256 = vmatprep.subr.bf16.mxu0 %v1772
        %2257 = vmatpush1.bf16.msra.mxu0 %v1771
        %2258 = vmatprep.subr.bf16.mxu0 %v1776
        %2259 = vmatpush1.bf16.msra.mxu0 %v1775
        %2260 = vmatprep.subr.bf16.mxu0 %v1780
        %2261 = vmatpush1.bf16.msra.mxu0 %v1779
        %2262 = vmatprep.subr.bf16.mxu0 %v1784
        %2263 = vmatpush1.bf16.msra.mxu0 %v1783
        %2264 = vmatprep.subr.bf16.mxu0 %v1788
        %2265 = vmatpush1.bf16.msra.mxu0 %v1787
        %2266 = vmatprep.subr.bf16.mxu0 %v1792
        %2267 = vmatpush1.bf16.msra.mxu0 %v1791
        %2268 = vmatprep.subr.bf16.mxu0 %v1796
        %2269 = vmatpush1.bf16.msra.mxu0 %v1795
        %2270 = vmatprep.subr.bf16.mxu0 %v1800
        %2271 = vmatpush1.bf16.msra.mxu0 %v1799
        %2272 = vmatprep.subr.bf16.mxu0 %v1804
        %2273 = vmatpush1.bf16.msra.mxu0 %v1803
        %2274 = vmatprep.subr.bf16.mxu0 %v1808
        %2275 = vmatpush1.bf16.msra.mxu0 %v1807
        %2276 = vmatprep.subr.bf16.mxu0 %v1812
        %2277 = vmatpush1.bf16.msra.mxu0 %v1811
        %2278 = vmatprep.subr.bf16.mxu0 %v1816
        %2279 = vmatpush1.bf16.msra.mxu0 %v1815
        %2280 = vmatprep.subr.bf16.mxu0 %v1820
        %2281 = vmatpush1.bf16.msra.mxu0 %v1819
        %2282 = vmatprep.subr.bf16.mxu0 %v1824
        %2283 = vmatpush1.bf16.msra.mxu0 %v1823
        %2284 = vmatprep.mubr.bf16.mxu0 %v734
        %2285 = vmatmul.mubr.bf16.gmra.mrb[0].mxu0 %v733
        %v2286 = vpop.f32.mrb[0].mxu0
        %v2287 = vadd.f32 %v1158, %v2286
        %v2288 = vpop.f32.mrb[0].mxu0
        %v2289 = vadd.f32 %v1162, %v2288
        %v2290 = vpop.f32.mrb[0].mxu0
        %v2291 = vadd.f32 %v1158, %v2290
        %v2292 = vpop.f32.mrb[0].mxu0
        %v2293 = vadd.f32 %v1162, %v2292
        %2294 = vmatprep.mubr.bf16.mxu0 %v741
        %2295 = vmatmul.mubr.bf16.gmra.mrb[0].mxu0 %v740
        %v2296 = vpop.f32.mrb[0].mxu0
        %v2297 = vadd.f32 %v1158, %v2296
        %v2298 = vpop.f32.mrb[0].mxu0
        %v2299 = vadd.f32 %v1162, %v2298
        %v2300 = vpop.f32.mrb[0].mxu0
        %v2301 = vadd.f32 %v1158, %v2300
        %v2302 = vpop.f32.mrb[0].mxu0
        %v2303 = vadd.f32 %v1162, %v2302
        %2304 = vmatprep.mubr.bf16.mxu0 %v748
        %2305 = vmatmul.mubr.bf16.gmra.mrb[0].mxu0 %v747
        %v2306 = vpop.f32.mrb[0].mxu0
        %v2307 = vadd.f32 %v1158, %v2306
        %v2308 = vpop.f32.mrb[0].mxu0
        %v2309 = vadd.f32 %v1162, %v2308
        %v2310 = vpop.f32.mrb[0].mxu0
        %v2311 = vadd.f32 %v1158, %v2310
        %v2312 = vpop.f32.mrb[0].mxu0
        %v2313 = vadd.f32 %v1162, %v2312
        %2314 = vmatprep.mubr.bf16.mxu0 %v755
        %2315 = vmatmul.mubr.bf16.gmra.mrb[0].mxu0 %v754
        %v2316 = vpop.f32.mrb[0].mxu0
        %v2317 = vadd.f32 %v1158, %v2316
        %v2318 = vpop.f32.mrb[0].mxu0
        %v2319 = vadd.f32 %v1162, %v2318
        %v2320 = vpop.f32.mrb[0].mxu0
        %v2321 = vadd.f32 %v1158, %v2320
        %v2322 = vpop.f32.mrb[0].mxu0
        %v2323 = vadd.f32 %v1162, %v2322
        %2324 = vmatprep.mubr.bf16.mxu0 %v762
        %2325 = vmatmul.mubr.bf16.gmra.mrb[0].mxu0 %v761
        %v2326 = vpop.f32.mrb[0].mxu0
        %v2327 = vadd.f32 %v1158, %v2326
        %v2328 = vpop.f32.mrb[0].mxu0
        %v2329 = vadd.f32 %v1162, %v2328
        %v2330 = vpop.f32.mrb[0].mxu0
        %v2331 = vadd.f32 %v1158, %v2330
        %v2332 = vpop.f32.mrb[0].mxu0
        %v2333 = vadd.f32 %v1162, %v2332
        %2334 = vmatprep.mubr.bf16.mxu0 %v769
        %2335 = vmatmul.mubr.bf16.gmra.mrb[0].mxu0 %v768
        %v2336 = vpop.f32.mrb[0].mxu0
        %v2337 = vadd.f32 %v1158, %v2336
        %v2338 = vpop.f32.mrb[0].mxu0
        %v2339 = vadd.f32 %v1162, %v2338
        %v2340 = vpop.f32.mrb[0].mxu0
        %v2341 = vadd.f32 %v1158, %v2340
        %v2342 = vpop.f32.mrb[0].mxu0
        %v2343 = vadd.f32 %v1162, %v2342
        %2344 = vmatprep.mubr.bf16.mxu0 %v776
        %2345 = vmatmul.mubr.bf16.gmra.mrb[0].mxu0 %v775
        %v2346 = vpop.f32.mrb[0].mxu0
        %v2347 = vadd.f32 %v1158, %v2346
        %v2348 = vpop.f32.mrb[0].mxu0
        %v2349 = vadd.f32 %v1162, %v2348
        %v2350 = vpop.f32.mrb[0].mxu0
        %v2351 = vadd.f32 %v1158, %v2350
        %v2352 = vpop.f32.mrb[0].mxu0
        %v2353 = vadd.f32 %v1162, %v2352
        %2354 = vmatprep.mubr.bf16.mxu0 %v783
        %2355 = vmatmul.mubr.bf16.gmra.mrb[0].mxu0 %v782
        %v2356 = vpop.f32.mrb[0].mxu0
        %v2357 = vadd.f32 %v1158, %v2356
        %v2358 = vpop.f32.mrb[0].mxu0
        %v2359 = vadd.f32 %v1162, %v2358
        %v2360 = vpop.f32.mrb[0].mxu0
        %v2361 = vadd.f32 %v1158, %v2360
        %v2362 = vpop.f32.mrb[0].mxu0
        %v2363 = vadd.f32 %v1162, %v2362
        %2364 = vmatprep.mubr.bf16.mxu0 %v790
        %2365 = vmatmul.mubr.bf16.gmra.mrb[0].mxu0 %v789
        %v2366 = vpop.f32.mrb[0].mxu0
        %v2367 = vadd.f32 %v1158, %v2366
        %v2368 = vpop.f32.mrb[0].mxu0
        %v2369 = vadd.f32 %v1162, %v2368
        %v2370 = vpop.f32.mrb[0].mxu0
        %v2371 = vadd.f32 %v1158, %v2370
        %v2372 = vpop.f32.mrb[0].mxu0
        %v2373 = vadd.f32 %v1162, %v2372
        %2374 = vmatprep.mubr.bf16.mxu0 %v797
        %2375 = vmatmul.mubr.bf16.gmra.mrb[0].mxu0 %v796
        %v2376 = vpop.f32.mrb[0].mxu0
        %v2377 = vadd.f32 %v1158, %v2376
        %v2378 = vpop.f32.mrb[0].mxu0
        %v2379 = vadd.f32 %v1162, %v2378
        %v2380 = vpop.f32.mrb[0].mxu0
        %v2381 = vadd.f32 %v1158, %v2380
        %v2382 = vpop.f32.mrb[0].mxu0
        %v2383 = vadd.f32 %v1162, %v2382
        %2384 = vmatprep.mubr.bf16.mxu0 %v804
        %2385 = vmatmul.mubr.bf16.gmra.mrb[0].mxu0 %v803
        %v2386 = vpop.f32.mrb[0].mxu0
        %v2387 = vadd.f32 %v1158, %v2386
        %v2388 = vpop.f32.mrb[0].mxu0
        %v2389 = vadd.f32 %v1162, %v2388
        %v2390 = vpop.f32.mrb[0].mxu0
        %v2391 = vadd.f32 %v1158, %v2390
        %v2392 = vpop.f32.mrb[0].mxu0
        %v2393 = vadd.f32 %v1162, %v2392
        %2394 = vmatprep.mubr.bf16.mxu0 %v811
        %2395 = vmatmul.mubr.bf16.gmra.mrb[0].mxu0 %v810
        %v2396 = vpop.f32.mrb[0].mxu0
        %v2397 = vadd.f32 %v1158, %v2396
        %v2398 = vpop.f32.mrb[0].mxu0
        %v2399 = vadd.f32 %v1162, %v2398
        %v2400 = vpop.f32.mrb[0].mxu0
        %v2401 = vadd.f32 %v1158, %v2400
        %v2402 = vpop.f32.mrb[0].mxu0
        %v2403 = vadd.f32 %v1162, %v2402
        %2404 = vmatprep.mubr.bf16.mxu0 %v818
        %2405 = vmatmul.mubr.bf16.gmra.mrb[0].mxu0 %v817
        %v2406 = vpop.f32.mrb[0].mxu0
        %v2407 = vadd.f32 %v1158, %v2406
        %v2408 = vpop.f32.mrb[0].mxu0
        %v2409 = vadd.f32 %v1162, %v2408
        %v2410 = vpop.f32.mrb[0].mxu0
        %v2411 = vadd.f32 %v1158, %v2410
        %v2412 = vpop.f32.mrb[0].mxu0
        %v2413 = vadd.f32 %v1162, %v2412
        %2414 = vmatprep.mubr.bf16.mxu0 %v825
        %2415 = vmatmul.mubr.bf16.gmra.mrb[0].mxu0 %v824
        %v2416 = vpop.f32.mrb[0].mxu0
        %v2417 = vadd.f32 %v1158, %v2416
        %v2418 = vpop.f32.mrb[0].mxu0
        %v2419 = vadd.f32 %v1162, %v2418
        %v2420 = vpop.f32.mrb[0].mxu0
        %v2421 = vadd.f32 %v1158, %v2420
        %v2422 = vpop.f32.mrb[0].mxu0
        %v2423 = vadd.f32 %v1162, %v2422
        %2424 = vmatprep.mubr.bf16.mxu0 %v832
        %2425 = vmatmul.mubr.bf16.gmra.mrb[0].mxu0 %v831
        %v2426 = vpop.f32.mrb[0].mxu0
        %v2427 = vadd.f32 %v1158, %v2426
        %v2428 = vpop.f32.mrb[0].mxu0
        %v2429 = vadd.f32 %v1162, %v2428
        %v2430 = vpop.f32.mrb[0].mxu0
        %v2431 = vadd.f32 %v1158, %v2430
        %v2432 = vpop.f32.mrb[0].mxu0
        %v2433 = vadd.f32 %v1162, %v2432
        %2434 = vmatprep.mubr.bf16.mxu0 %v839
        %2435 = vmatmul.mubr.bf16.gmra.mrb[0].mxu0 %v838
        %v2436 = vpop.f32.mrb[0].mxu0
        %v2437 = vadd.f32 %v1158, %v2436
        %v2438 = vpop.f32.mrb[0].mxu0
        %v2439 = vadd.f32 %v1162, %v2438
        %v2440 = vpop.f32.mrb[0].mxu0
        %v2441 = vadd.f32 %v1158, %v2440
        %v2442 = vpop.f32.mrb[0].mxu0
        %v2443 = vadd.f32 %v1162, %v2442
        %2444 = vmatprep.mubr.bf16.mxu0 %v846
        %2445 = vmatmul.mubr.bf16.gmra.mrb[0].mxu0 %v845
        %v2446 = vpop.f32.mrb[0].mxu0
        %v2447 = vadd.f32 %v1158, %v2446
        %v2448 = vpop.f32.mrb[0].mxu0
        %v2449 = vadd.f32 %v1162, %v2448
        %v2450 = vpop.f32.mrb[0].mxu0
        %v2451 = vadd.f32 %v1158, %v2450
        %v2452 = vpop.f32.mrb[0].mxu0
        %v2453 = vadd.f32 %v1162, %v2452
        %2454 = vmatprep.mubr.bf16.mxu0 %v853
        %2455 = vmatmul.mubr.bf16.gmra.mrb[0].mxu0 %v852
        %v2456 = vpop.f32.mrb[0].mxu0
        %v2457 = vadd.f32 %v1158, %v2456
        %v2458 = vpop.f32.mrb[0].mxu0
        %v2459 = vadd.f32 %v1162, %v2458
        %v2460 = vpop.f32.mrb[0].mxu0
        %v2461 = vadd.f32 %v1158, %v2460
        %v2462 = vpop.f32.mrb[0].mxu0
        %v2463 = vadd.f32 %v1162, %v2462
        %2464 = vmatprep.mubr.bf16.mxu0 %v860
        %2465 = vmatmul.mubr.bf16.gmra.mrb[0].mxu0 %v859
        %v2466 = vpop.f32.mrb[0].mxu0
        %v2467 = vadd.f32 %v1158, %v2466
        %v2468 = vpop.f32.mrb[0].mxu0
        %v2469 = vadd.f32 %v1162, %v2468
        %v2470 = vpop.f32.mrb[0].mxu0
        %v2471 = vadd.f32 %v1158, %v2470
        %v2472 = vpop.f32.mrb[0].mxu0
        %v2473 = vadd.f32 %v1162, %v2472
        %2474 = vmatprep.mubr.bf16.mxu0 %v867
        %2475 = vmatmul.mubr.bf16.gmra.mrb[0].mxu0 %v866
        %v2476 = vpop.f32.mrb[0].mxu0
        %v2477 = vadd.f32 %v1158, %v2476
        %v2478 = vpop.f32.mrb[0].mxu0
        %v2479 = vadd.f32 %v1162, %v2478
        %v2480 = vpop.f32.mrb[0].mxu0
        %v2481 = vadd.f32 %v1158, %v2480
        %v2482 = vpop.f32.mrb[0].mxu0
        %v2483 = vadd.f32 %v1162, %v2482
        %2484 = vmatprep.mubr.bf16.mxu0 %v874
        %2485 = vmatmul.mubr.bf16.gmra.mrb[0].mxu0 %v873
        %v2486 = vpop.f32.mrb[0].mxu0
        %v2487 = vadd.f32 %v1158, %v2486
        %v2488 = vpop.f32.mrb[0].mxu0
        %v2489 = vadd.f32 %v1162, %v2488
        %v2490 = vpop.f32.mrb[0].mxu0
        %v2491 = vadd.f32 %v1158, %v2490
        %v2492 = vpop.f32.mrb[0].mxu0
        %v2493 = vadd.f32 %v1162, %v2492
        %2494 = vmatprep.mubr.bf16.mxu0 %v881
        %2495 = vmatmul.mubr.bf16.gmra.mrb[0].mxu0 %v880
        %v2496 = vpop.f32.mrb[0].mxu0
        %v2497 = vadd.f32 %v1158, %v2496
        %v2498 = vpop.f32.mrb[0].mxu0
        %v2499 = vadd.f32 %v1162, %v2498
        %v2500 = vpop.f32.mrb[0].mxu0
        %v2501 = vadd.f32 %v1158, %v2500
        %v2502 = vpop.f32.mrb[0].mxu0
        %v2503 = vadd.f32 %v1162, %v2502
        %2504 = vmatprep.mubr.bf16.mxu0 %v888
        %2505 = vmatmul.mubr.bf16.gmra.mrb[0].mxu0 %v887
        %v2506 = vpop.f32.mrb[0].mxu0
        %v2507 = vadd.f32 %v1158, %v2506
        %v2508 = vpop.f32.mrb[0].mxu0
        %v2509 = vadd.f32 %v1162, %v2508
        %v2510 = vpop.f32.mrb[0].mxu0
        %v2511 = vadd.f32 %v1158, %v2510
        %v2512 = vpop.f32.mrb[0].mxu0
        %v2513 = vadd.f32 %v1162, %v2512
        %2514 = vmatprep.mubr.bf16.mxu0 %v895
        %2515 = vmatmul.mubr.bf16.gmra.mrb[0].mxu0 %v894
        %v2516 = vpop.f32.mrb[0].mxu0
        %v2517 = vadd.f32 %v1158, %v2516
        %v2518 = vpop.f32.mrb[0].mxu0
        %v2519 = vadd.f32 %v1162, %v2518
        %v2520 = vpop.f32.mrb[0].mxu0
        %v2521 = vadd.f32 %v1158, %v2520
        %v2522 = vpop.f32.mrb[0].mxu0
        %v2523 = vadd.f32 %v1162, %v2522
        %2524 = vmatprep.mubr.bf16.mxu0 %v902
        %2525 = vmatmul.mubr.bf16.gmra.mrb[0].mxu0 %v901
        %v2526 = vpop.f32.mrb[0].mxu0
        %v2527 = vadd.f32 %v1158, %v2526
        %v2528 = vpop.f32.mrb[0].mxu0
        %v2529 = vadd.f32 %v1162, %v2528
        %v2530 = vpop.f32.mrb[0].mxu0
        %v2531 = vadd.f32 %v1158, %v2530
        %v2532 = vpop.f32.mrb[0].mxu0
        %v2533 = vadd.f32 %v1162, %v2532
        %2534 = vmatprep.mubr.bf16.mxu0 %v909
        %2535 = vmatmul.mubr.bf16.gmra.mrb[0].mxu0 %v908
        %v2536 = vpop.f32.mrb[0].mxu0
        %v2537 = vadd.f32 %v1158, %v2536
        %v2538 = vpop.f32.mrb[0].mxu0
        %v2539 = vadd.f32 %v1162, %v2538
        %v2540 = vpop.f32.mrb[0].mxu0
        %v2541 = vadd.f32 %v1158, %v2540
        %v2542 = vpop.f32.mrb[0].mxu0
        %v2543 = vadd.f32 %v1162, %v2542
        %2544 = vmatprep.mubr.bf16.mxu0 %v916
        %2545 = vmatmul.mubr.bf16.gmra.mrb[0].mxu0 %v915
        %v2546 = vpop.f32.mrb[0].mxu0
        %v2547 = vadd.f32 %v1158, %v2546
        %v2548 = vpop.f32.mrb[0].mxu0
        %v2549 = vadd.f32 %v1162, %v2548
        %v2550 = vpop.f32.mrb[0].mxu0
        %v2551 = vadd.f32 %v1158, %v2550
        %v2552 = vpop.f32.mrb[0].mxu0
        %v2553 = vadd.f32 %v1162, %v2552
        %2554 = vmatprep.mubr.bf16.mxu0 %v923
        %2555 = vmatmul.mubr.bf16.gmra.mrb[0].mxu0 %v922
        %v2556 = vpop.f32.mrb[0].mxu0
        %v2557 = vadd.f32 %v1158, %v2556
        %v2558 = vpop.f32.mrb[0].mxu0
        %v2559 = vadd.f32 %v1162, %v2558
        %v2560 = vpop.f32.mrb[0].mxu0
        %v2561 = vadd.f32 %v1158, %v2560
        %v2562 = vpop.f32.mrb[0].mxu0
        %v2563 = vadd.f32 %v1162, %v2562
        %2564 = vmatprep.mubr.bf16.mxu0 %v930
        %2565 = vmatmul.mubr.bf16.gmra.mrb[0].mxu0 %v929
        %v2566 = vpop.f32.mrb[0].mxu0
        %v2567 = vadd.f32 %v1158, %v2566
        %v2568 = vpop.f32.mrb[0].mxu0
        %v2569 = vadd.f32 %v1162, %v2568
        %v2570 = vpop.f32.mrb[0].mxu0
        %v2571 = vadd.f32 %v1158, %v2570
        %v2572 = vpop.f32.mrb[0].mxu0
        %v2573 = vadd.f32 %v1162, %v2572
        %2574 = vmatprep.mubr.bf16.mxu0 %v937
        %2575 = vmatmul.mubr.bf16.gmra.mrb[0].mxu0 %v936
        %v2576 = vpop.f32.mrb[0].mxu0
        %v2577 = vadd.f32 %v1158, %v2576
        %v2578 = vpop.f32.mrb[0].mxu0
        %v2579 = vadd.f32 %v1162, %v2578
        %v2580 = vpop.f32.mrb[0].mxu0
        %v2581 = vadd.f32 %v1158, %v2580
        %v2582 = vpop.f32.mrb[0].mxu0
        %v2583 = vadd.f32 %v1162, %v2582
        %2584 = vmatprep.mubr.bf16.mxu0 %v944
        %2585 = vmatmul.mubr.bf16.gmra.mrb[0].mxu0 %v943
        %v2586 = vpop.f32.mrb[0].mxu0
        %v2587 = vadd.f32 %v1158, %v2586
        %v2588 = vpop.f32.mrb[0].mxu0
        %v2589 = vadd.f32 %v1162, %v2588
        %v2590 = vpop.f32.mrb[0].mxu0
        %v2591 = vadd.f32 %v1158, %v2590
        %v2592 = vpop.f32.mrb[0].mxu0
        %v2593 = vadd.f32 %v1162, %v2592
        %2594 = vmatprep.mubr.bf16.mxu0 %v951
        %2595 = vmatmul.mubr.bf16.gmra.mrb[0].mxu0 %v950
        %v2596 = vpop.f32.mrb[0].mxu0
        %v2597 = vadd.f32 %v1158, %v2596
        %v2598 = vpop.f32.mrb[0].mxu0
        %v2599 = vadd.f32 %v1162, %v2598
        %v2600 = vpop.f32.mrb[0].mxu0
        %v2601 = vadd.f32 %v1158, %v2600
        %v2602 = vpop.f32.mrb[0].mxu0
        %v2603 = vadd.f32 %v1162, %v2602
        %2604 = vdwg.mxu0
        %2605 = vmatprep.subr.bf16.mxu0 %v1828
        %2606 = vmatpush1.bf16.msra.mxu0 %v1827
        %2607 = vmatprep.subr.bf16.mxu0 %v1832
        %2608 = vmatpush1.bf16.msra.mxu0 %v1831
        %2609 = vmatprep.subr.bf16.mxu0 %v1836
        %2610 = vmatpush1.bf16.msra.mxu0 %v1835
        %2611 = vmatprep.subr.bf16.mxu0 %v1840
        %2612 = vmatpush1.bf16.msra.mxu0 %v1839
        %2613 = vmatprep.subr.bf16.mxu0 %v1844
        %2614 = vmatpush1.bf16.msra.mxu0 %v1843
        %2615 = vmatprep.subr.bf16.mxu0 %v1848
        %2616 = vmatpush1.bf16.msra.mxu0 %v1847
        %2617 = vmatprep.subr.bf16.mxu0 %v1852
        %2618 = vmatpush1.bf16.msra.mxu0 %v1851
        %2619 = vmatprep.subr.bf16.mxu0 %v1856
        %2620 = vmatpush1.bf16.msra.mxu0 %v1855
        %2621 = vmatprep.subr.bf16.mxu0 %v1860
        %2622 = vmatpush1.bf16.msra.mxu0 %v1859
        %2623 = vmatprep.subr.bf16.mxu0 %v1864
        %2624 = vmatpush1.bf16.msra.mxu0 %v1863
        %2625 = vmatprep.subr.bf16.mxu0 %v1868
        %2626 = vmatpush1.bf16.msra.mxu0 %v1867
        %2627 = vmatprep.subr.bf16.mxu0 %v1872
        %2628 = vmatpush1.bf16.msra.mxu0 %v1871
        %2629 = vmatprep.subr.bf16.mxu0 %v1876
        %2630 = vmatpush1.bf16.msra.mxu0 %v1875
        %2631 = vmatprep.subr.bf16.mxu0 %v1880
        %2632 = vmatpush1.bf16.msra.mxu0 %v1879
        %2633 = vmatprep.subr.bf16.mxu0 %v1884
        %2634 = vmatpush1.bf16.msra.mxu0 %v1883
        %2635 = vmatprep.subr.bf16.mxu0 %v1888
        %2636 = vmatpush1.bf16.msra.mxu0 %v1887
        %2637 = vmatprep.mubr.bf16.mxu0 %v736
        %2638 = vmatmul.mubr.bf16.gmra.mrb[0].mxu0 %v735
        %v2639 = vpop.f32.mrb[0].mxu0
        %v2640 = vadd.f32 %v2287, %v2639
        %v2641 = vpop.f32.mrb[0].mxu0
        %v2642 = vadd.f32 %v2289, %v2641
        %v2643 = vpop.f32.mrb[0].mxu0
        %v2644 = vadd.f32 %v2291, %v2643
        %v2645 = vpop.f32.mrb[0].mxu0
        %v2646 = vadd.f32 %v2293, %v2645
        %2647 = vmatprep.mubr.bf16.mxu0 %v743
        %2648 = vmatmul.mubr.bf16.gmra.mrb[0].mxu0 %v742
        %v2649 = vpop.f32.mrb[0].mxu0
        %v2650 = vadd.f32 %v2297, %v2649
        %v2651 = vpop.f32.mrb[0].mxu0
        %v2652 = vadd.f32 %v2299, %v2651
        %v2653 = vpop.f32.mrb[0].mxu0
        %v2654 = vadd.f32 %v2301, %v2653
        %v2655 = vpop.f32.mrb[0].mxu0
        %v2656 = vadd.f32 %v2303, %v2655
        %2657 = vmatprep.mubr.bf16.mxu0 %v750
        %2658 = vmatmul.mubr.bf16.gmra.mrb[0].mxu0 %v749
        %v2659 = vpop.f32.mrb[0].mxu0
        %v2660 = vadd.f32 %v2307, %v2659
        %v2661 = vpop.f32.mrb[0].mxu0
        %v2662 = vadd.f32 %v2309, %v2661
        %v2663 = vpop.f32.mrb[0].mxu0
        %v2664 = vadd.f32 %v2311, %v2663
        %v2665 = vpop.f32.mrb[0].mxu0
        %v2666 = vadd.f32 %v2313, %v2665
        %2667 = vmatprep.mubr.bf16.mxu0 %v757
        %2668 = vmatmul.mubr.bf16.gmra.mrb[0].mxu0 %v756
        %v2669 = vpop.f32.mrb[0].mxu0
        %v2670 = vadd.f32 %v2317, %v2669
        %v2671 = vpop.f32.mrb[0].mxu0
        %v2672 = vadd.f32 %v2319, %v2671
        %v2673 = vpop.f32.mrb[0].mxu0
        %v2674 = vadd.f32 %v2321, %v2673
        %v2675 = vpop.f32.mrb[0].mxu0
        %v2676 = vadd.f32 %v2323, %v2675
        %2677 = vmatprep.mubr.bf16.mxu0 %v764
        %2678 = vmatmul.mubr.bf16.gmra.mrb[0].mxu0 %v763
        %v2679 = vpop.f32.mrb[0].mxu0
        %v2680 = vadd.f32 %v2327, %v2679
        %v2681 = vpop.f32.mrb[0].mxu0
        %v2682 = vadd.f32 %v2329, %v2681
        %v2683 = vpop.f32.mrb[0].mxu0
        %v2684 = vadd.f32 %v2331, %v2683
        %v2685 = vpop.f32.mrb[0].mxu0
        %v2686 = vadd.f32 %v2333, %v2685
        %2687 = vmatprep.mubr.bf16.mxu0 %v771
        %2688 = vmatmul.mubr.bf16.gmra.mrb[0].mxu0 %v770
        %v2689 = vpop.f32.mrb[0].mxu0
        %v2690 = vadd.f32 %v2337, %v2689
        %v2691 = vpop.f32.mrb[0].mxu0
        %v2692 = vadd.f32 %v2339, %v2691
        %v2693 = vpop.f32.mrb[0].mxu0
        %v2694 = vadd.f32 %v2341, %v2693
        %v2695 = vpop.f32.mrb[0].mxu0
        %v2696 = vadd.f32 %v2343, %v2695
        %2697 = vmatprep.mubr.bf16.mxu0 %v778
        %2698 = vmatmul.mubr.bf16.gmra.mrb[0].mxu0 %v777
        %v2699 = vpop.f32.mrb[0].mxu0
        %v2700 = vadd.f32 %v2347, %v2699
        %v2701 = vpop.f32.mrb[0].mxu0
        %v2702 = vadd.f32 %v2349, %v2701
        %v2703 = vpop.f32.mrb[0].mxu0
        %v2704 = vadd.f32 %v2351, %v2703
        %v2705 = vpop.f32.mrb[0].mxu0
        %v2706 = vadd.f32 %v2353, %v2705
        %2707 = vmatprep.mubr.bf16.mxu0 %v785
        %2708 = vmatmul.mubr.bf16.gmra.mrb[0].mxu0 %v784
        %v2709 = vpop.f32.mrb[0].mxu0
        %v2710 = vadd.f32 %v2357, %v2709
        %v2711 = vpop.f32.mrb[0].mxu0
        %v2712 = vadd.f32 %v2359, %v2711
        %v2713 = vpop.f32.mrb[0].mxu0
        %v2714 = vadd.f32 %v2361, %v2713
        %v2715 = vpop.f32.mrb[0].mxu0
        %v2716 = vadd.f32 %v2363, %v2715
        %2717 = vmatprep.mubr.bf16.mxu0 %v792
        %2718 = vmatmul.mubr.bf16.gmra.mrb[0].mxu0 %v791
        %v2719 = vpop.f32.mrb[0].mxu0
        %v2720 = vadd.f32 %v2367, %v2719
        %v2721 = vpop.f32.mrb[0].mxu0
        %v2722 = vadd.f32 %v2369, %v2721
        %v2723 = vpop.f32.mrb[0].mxu0
        %v2724 = vadd.f32 %v2371, %v2723
        %v2725 = vpop.f32.mrb[0].mxu0
        %v2726 = vadd.f32 %v2373, %v2725
        %2727 = vmatprep.mubr.bf16.mxu0 %v799
        %2728 = vmatmul.mubr.bf16.gmra.mrb[0].mxu0 %v798
        %v2729 = vpop.f32.mrb[0].mxu0
        %v2730 = vadd.f32 %v2377, %v2729
        %v2731 = vpop.f32.mrb[0].mxu0
        %v2732 = vadd.f32 %v2379, %v2731
        %v2733 = vpop.f32.mrb[0].mxu0
        %v2734 = vadd.f32 %v2381, %v2733
        %v2735 = vpop.f32.mrb[0].mxu0
        %v2736 = vadd.f32 %v2383, %v2735
        %2737 = vmatprep.mubr.bf16.mxu0 %v806
        %2738 = vmatmul.mubr.bf16.gmra.mrb[0].mxu0 %v805
        %v2739 = vpop.f32.mrb[0].mxu0
        %v2740 = vadd.f32 %v2387, %v2739
        %v2741 = vpop.f32.mrb[0].mxu0
        %v2742 = vadd.f32 %v2389, %v2741
        %v2743 = vpop.f32.mrb[0].mxu0
        %v2744 = vadd.f32 %v2391, %v2743
        %v2745 = vpop.f32.mrb[0].mxu0
        %v2746 = vadd.f32 %v2393, %v2745
        %2747 = vmatprep.mubr.bf16.mxu0 %v813
        %2748 = vmatmul.mubr.bf16.gmra.mrb[0].mxu0 %v812
        %v2749 = vpop.f32.mrb[0].mxu0
        %v2750 = vadd.f32 %v2397, %v2749
        %v2751 = vpop.f32.mrb[0].mxu0
        %v2752 = vadd.f32 %v2399, %v2751
        %v2753 = vpop.f32.mrb[0].mxu0
        %v2754 = vadd.f32 %v2401, %v2753
        %v2755 = vpop.f32.mrb[0].mxu0
        %v2756 = vadd.f32 %v2403, %v2755
        %2757 = vmatprep.mubr.bf16.mxu0 %v820
        %2758 = vmatmul.mubr.bf16.gmra.mrb[0].mxu0 %v819
        %v2759 = vpop.f32.mrb[0].mxu0
        %v2760 = vadd.f32 %v2407, %v2759
        %v2761 = vpop.f32.mrb[0].mxu0
        %v2762 = vadd.f32 %v2409, %v2761
        %v2763 = vpop.f32.mrb[0].mxu0
        %v2764 = vadd.f32 %v2411, %v2763
        %v2765 = vpop.f32.mrb[0].mxu0
        %v2766 = vadd.f32 %v2413, %v2765
        %2767 = vmatprep.mubr.bf16.mxu0 %v827
        %2768 = vmatmul.mubr.bf16.gmra.mrb[0].mxu0 %v826
        %v2769 = vpop.f32.mrb[0].mxu0
        %v2770 = vadd.f32 %v2417, %v2769
        %v2771 = vpop.f32.mrb[0].mxu0
        %v2772 = vadd.f32 %v2419, %v2771
        %v2773 = vpop.f32.mrb[0].mxu0
        %v2774 = vadd.f32 %v2421, %v2773
        %v2775 = vpop.f32.mrb[0].mxu0
        %v2776 = vadd.f32 %v2423, %v2775
        %2777 = vmatprep.mubr.bf16.mxu0 %v834
        %2778 = vmatmul.mubr.bf16.gmra.mrb[0].mxu0 %v833
        %v2779 = vpop.f32.mrb[0].mxu0
        %v2780 = vadd.f32 %v2427, %v2779
        %v2781 = vpop.f32.mrb[0].mxu0
        %v2782 = vadd.f32 %v2429, %v2781
        %v2783 = vpop.f32.mrb[0].mxu0
        %v2784 = vadd.f32 %v2431, %v2783
        %v2785 = vpop.f32.mrb[0].mxu0
        %v2786 = vadd.f32 %v2433, %v2785
        %2787 = vmatprep.mubr.bf16.mxu0 %v841
        %2788 = vmatmul.mubr.bf16.gmra.mrb[0].mxu0 %v840
        %v2789 = vpop.f32.mrb[0].mxu0
        %v2790 = vadd.f32 %v2437, %v2789
        %v2791 = vpop.f32.mrb[0].mxu0
        %v2792 = vadd.f32 %v2439, %v2791
        %v2793 = vpop.f32.mrb[0].mxu0
        %v2794 = vadd.f32 %v2441, %v2793
        %v2795 = vpop.f32.mrb[0].mxu0
        %v2796 = vadd.f32 %v2443, %v2795
        %2797 = vmatprep.mubr.bf16.mxu0 %v848
        %2798 = vmatmul.mubr.bf16.gmra.mrb[0].mxu0 %v847
        %v2799 = vpop.f32.mrb[0].mxu0
        %v2800 = vadd.f32 %v2447, %v2799
        %v2801 = vpop.f32.mrb[0].mxu0
        %v2802 = vadd.f32 %v2449, %v2801
        %v2803 = vpop.f32.mrb[0].mxu0
        %v2804 = vadd.f32 %v2451, %v2803
        %v2805 = vpop.f32.mrb[0].mxu0
        %v2806 = vadd.f32 %v2453, %v2805
        %2807 = vmatprep.mubr.bf16.mxu0 %v855
        %2808 = vmatmul.mubr.bf16.gmra.mrb[0].mxu0 %v854
        %v2809 = vpop.f32.mrb[0].mxu0
        %v2810 = vadd.f32 %v2457, %v2809
        %v2811 = vpop.f32.mrb[0].mxu0
        %v2812 = vadd.f32 %v2459, %v2811
        %v2813 = vpop.f32.mrb[0].mxu0
        %v2814 = vadd.f32 %v2461, %v2813
        %v2815 = vpop.f32.mrb[0].mxu0
        %v2816 = vadd.f32 %v2463, %v2815
        %2817 = vmatprep.mubr.bf16.mxu0 %v862
        %2818 = vmatmul.mubr.bf16.gmra.mrb[0].mxu0 %v861
        %v2819 = vpop.f32.mrb[0].mxu0
        %v2820 = vadd.f32 %v2467, %v2819
        %v2821 = vpop.f32.mrb[0].mxu0
        %v2822 = vadd.f32 %v2469, %v2821
        %v2823 = vpop.f32.mrb[0].mxu0
        %v2824 = vadd.f32 %v2471, %v2823
        %v2825 = vpop.f32.mrb[0].mxu0
        %v2826 = vadd.f32 %v2473, %v2825
        %2827 = vmatprep.mubr.bf16.mxu0 %v869
        %2828 = vmatmul.mubr.bf16.gmra.mrb[0].mxu0 %v868
        %v2829 = vpop.f32.mrb[0].mxu0
        %v2830 = vadd.f32 %v2477, %v2829
        %v2831 = vpop.f32.mrb[0].mxu0
        %v2832 = vadd.f32 %v2479, %v2831
        %v2833 = vpop.f32.mrb[0].mxu0
        %v2834 = vadd.f32 %v2481, %v2833
        %v2835 = vpop.f32.mrb[0].mxu0
        %v2836 = vadd.f32 %v2483, %v2835
        %2837 = vmatprep.mubr.bf16.mxu0 %v876
        %2838 = vmatmul.mubr.bf16.gmra.mrb[0].mxu0 %v875
        %v2839 = vpop.f32.mrb[0].mxu0
        %v2840 = vadd.f32 %v2487, %v2839
        %v2841 = vpop.f32.mrb[0].mxu0
        %v2842 = vadd.f32 %v2489, %v2841
        %v2843 = vpop.f32.mrb[0].mxu0
        %v2844 = vadd.f32 %v2491, %v2843
        %v2845 = vpop.f32.mrb[0].mxu0
        %v2846 = vadd.f32 %v2493, %v2845
        %2847 = vmatprep.mubr.bf16.mxu0 %v883
        %2848 = vmatmul.mubr.bf16.gmra.mrb[0].mxu0 %v882
        %v2849 = vpop.f32.mrb[0].mxu0
        %v2850 = vadd.f32 %v2497, %v2849
        %v2851 = vpop.f32.mrb[0].mxu0
        %v2852 = vadd.f32 %v2499, %v2851
        %v2853 = vpop.f32.mrb[0].mxu0
        %v2854 = vadd.f32 %v2501, %v2853
        %v2855 = vpop.f32.mrb[0].mxu0
        %v2856 = vadd.f32 %v2503, %v2855
        %2857 = vmatprep.mubr.bf16.mxu0 %v890
        %2858 = vmatmul.mubr.bf16.gmra.mrb[0].mxu0 %v889
        %v2859 = vpop.f32.mrb[0].mxu0
        %v2860 = vadd.f32 %v2507, %v2859
        %v2861 = vpop.f32.mrb[0].mxu0
        %v2862 = vadd.f32 %v2509, %v2861
        %v2863 = vpop.f32.mrb[0].mxu0
        %v2864 = vadd.f32 %v2511, %v2863
        %v2865 = vpop.f32.mrb[0].mxu0
        %v2866 = vadd.f32 %v2513, %v2865
        %2867 = vmatprep.mubr.bf16.mxu0 %v897
        %2868 = vmatmul.mubr.bf16.gmra.mrb[0].mxu0 %v896
        %v2869 = vpop.f32.mrb[0].mxu0
        %v2870 = vadd.f32 %v2517, %v2869
        %v2871 = vpop.f32.mrb[0].mxu0
        %v2872 = vadd.f32 %v2519, %v2871
        %v2873 = vpop.f32.mrb[0].mxu0
        %v2874 = vadd.f32 %v2521, %v2873
        %v2875 = vpop.f32.mrb[0].mxu0
        %v2876 = vadd.f32 %v2523, %v2875
        %2877 = vmatprep.mubr.bf16.mxu0 %v904
        %2878 = vmatmul.mubr.bf16.gmra.mrb[0].mxu0 %v903
        %v2879 = vpop.f32.mrb[0].mxu0
        %v2880 = vadd.f32 %v2527, %v2879
        %v2881 = vpop.f32.mrb[0].mxu0
        %v2882 = vadd.f32 %v2529, %v2881
        %v2883 = vpop.f32.mrb[0].mxu0
        %v2884 = vadd.f32 %v2531, %v2883
        %v2885 = vpop.f32.mrb[0].mxu0
        %v2886 = vadd.f32 %v2533, %v2885
        %2887 = vmatprep.mubr.bf16.mxu0 %v911
        %2888 = vmatmul.mubr.bf16.gmra.mrb[0].mxu0 %v910
        %v2889 = vpop.f32.mrb[0].mxu0
        %v2890 = vadd.f32 %v2537, %v2889
        %v2891 = vpop.f32.mrb[0].mxu0
        %v2892 = vadd.f32 %v2539, %v2891
        %v2893 = vpop.f32.mrb[0].mxu0
        %v2894 = vadd.f32 %v2541, %v2893
        %v2895 = vpop.f32.mrb[0].mxu0
        %v2896 = vadd.f32 %v2543, %v2895
        %2897 = vmatprep.mubr.bf16.mxu0 %v918
        %2898 = vmatmul.mubr.bf16.gmra.mrb[0].mxu0 %v917
        %v2899 = vpop.f32.mrb[0].mxu0
        %v2900 = vadd.f32 %v2547, %v2899
        %v2901 = vpop.f32.mrb[0].mxu0
        %v2902 = vadd.f32 %v2549, %v2901
        %v2903 = vpop.f32.mrb[0].mxu0
        %v2904 = vadd.f32 %v2551, %v2903
        %v2905 = vpop.f32.mrb[0].mxu0
        %v2906 = vadd.f32 %v2553, %v2905
        %2907 = vmatprep.mubr.bf16.mxu0 %v925
        %2908 = vmatmul.mubr.bf16.gmra.mrb[0].mxu0 %v924
        %v2909 = vpop.f32.mrb[0].mxu0
        %v2910 = vadd.f32 %v2557, %v2909
        %v2911 = vpop.f32.mrb[0].mxu0
        %v2912 = vadd.f32 %v2559, %v2911
        %v2913 = vpop.f32.mrb[0].mxu0
        %v2914 = vadd.f32 %v2561, %v2913
        %v2915 = vpop.f32.mrb[0].mxu0
        %v2916 = vadd.f32 %v2563, %v2915
        %2917 = vmatprep.mubr.bf16.mxu0 %v932
        %2918 = vmatmul.mubr.bf16.gmra.mrb[0].mxu0 %v931
        %v2919 = vpop.f32.mrb[0].mxu0
        %v2920 = vadd.f32 %v2567, %v2919
        %v2921 = vpop.f32.mrb[0].mxu0
        %v2922 = vadd.f32 %v2569, %v2921
        %v2923 = vpop.f32.mrb[0].mxu0
        %v2924 = vadd.f32 %v2571, %v2923
        %v2925 = vpop.f32.mrb[0].mxu0
        %v2926 = vadd.f32 %v2573, %v2925
        %2927 = vmatprep.mubr.bf16.mxu0 %v939
        %2928 = vmatmul.mubr.bf16.gmra.mrb[0].mxu0 %v938
        %v2929 = vpop.f32.mrb[0].mxu0
        %v2930 = vadd.f32 %v2577, %v2929
        %v2931 = vpop.f32.mrb[0].mxu0
        %v2932 = vadd.f32 %v2579, %v2931
        %v2933 = vpop.f32.mrb[0].mxu0
        %v2934 = vadd.f32 %v2581, %v2933
        %v2935 = vpop.f32.mrb[0].mxu0
        %v2936 = vadd.f32 %v2583, %v2935
        %2937 = vmatprep.mubr.bf16.mxu0 %v946
        %2938 = vmatmul.mubr.bf16.gmra.mrb[0].mxu0 %v945
        %v2939 = vpop.f32.mrb[0].mxu0
        %v2940 = vadd.f32 %v2587, %v2939
        %v2941 = vpop.f32.mrb[0].mxu0
        %v2942 = vadd.f32 %v2589, %v2941
        %v2943 = vpop.f32.mrb[0].mxu0
        %v2944 = vadd.f32 %v2591, %v2943
        %v2945 = vpop.f32.mrb[0].mxu0
        %v2946 = vadd.f32 %v2593, %v2945
        %2947 = vmatprep.mubr.bf16.mxu0 %v953
        %2948 = vmatmul.mubr.bf16.gmra.mrb[0].mxu0 %v952
        %v2949 = vpop.f32.mrb[0].mxu0
        %v2950 = vadd.f32 %v2597, %v2949
        %v2951 = vpop.f32.mrb[0].mxu0
        %v2952 = vadd.f32 %v2599, %v2951
        %v2953 = vpop.f32.mrb[0].mxu0
        %v2954 = vadd.f32 %v2601, %v2953
        %v2955 = vpop.f32.mrb[0].mxu0
        %v2956 = vadd.f32 %v2603, %v2955
        %2957 = vdwg.mxu0
        %2958 = vmatprep.subr.bf16.mxu0 %v1892
        %2959 = vmatpush1.bf16.msra.mxu0 %v1891
        %2960 = vmatprep.subr.bf16.mxu0 %v1896
        %2961 = vmatpush1.bf16.msra.mxu0 %v1895
        %2962 = vmatprep.subr.bf16.mxu0 %v1900
        %2963 = vmatpush1.bf16.msra.mxu0 %v1899
        %2964 = vmatprep.subr.bf16.mxu0 %v1904
        %2965 = vmatpush1.bf16.msra.mxu0 %v1903
        %2966 = vmatprep.subr.bf16.mxu0 %v1908
        %2967 = vmatpush1.bf16.msra.mxu0 %v1907
        %2968 = vmatprep.subr.bf16.mxu0 %v1912
        %2969 = vmatpush1.bf16.msra.mxu0 %v1911
        %2970 = vmatprep.subr.bf16.mxu0 %v1916
        %2971 = vmatpush1.bf16.msra.mxu0 %v1915
        %2972 = vmatprep.subr.bf16.mxu0 %v1920
        %2973 = vmatpush1.bf16.msra.mxu0 %v1919
        %2974 = vmatprep.subr.bf16.mxu0 %v1924
        %2975 = vmatpush1.bf16.msra.mxu0 %v1923
        %2976 = vmatprep.subr.bf16.mxu0 %v1928
        %2977 = vmatpush1.bf16.msra.mxu0 %v1927
        %2978 = vmatprep.subr.bf16.mxu0 %v1932
        %2979 = vmatpush1.bf16.msra.mxu0 %v1931
        %2980 = vmatprep.subr.bf16.mxu0 %v1936
        %2981 = vmatpush1.bf16.msra.mxu0 %v1935
        %2982 = vmatprep.subr.bf16.mxu0 %v1940
        %2983 = vmatpush1.bf16.msra.mxu0 %v1939
        %2984 = vmatprep.subr.bf16.mxu0 %v1944
        %2985 = vmatpush1.bf16.msra.mxu0 %v1943
        %2986 = vmatprep.subr.bf16.mxu0 %v1948
        %2987 = vmatpush1.bf16.msra.mxu0 %v1947
        %2988 = vmatprep.subr.bf16.mxu0 %v1952
        %2989 = vmatpush1.bf16.msra.mxu0 %v1951
        %2990 = vmatprep.mubr.bf16.mxu0 %v738
        %2991 = vmatmul.mubr.bf16.gmra.mrb[0].mxu0 %v737
        %v2992 = vpop.f32.mrb[0].mxu0
        %v2993 = vadd.f32 %v2640, %v2992
        %v2994 = vpop.f32.mrb[0].mxu0
        %v2995 = vadd.f32 %v2642, %v2994
        %v2996 = vpop.f32.mrb[0].mxu0
        %v2997 = vadd.f32 %v2644, %v2996
        %v2998 = vpop.f32.mrb[0].mxu0
        %v2999 = vadd.f32 %v2646, %v2998
        %3000 = vmatprep.mubr.bf16.mxu0 %v745
        %3001 = vmatmul.mubr.bf16.gmra.mrb[0].mxu0 %v744
        %v3002 = vpop.f32.mrb[0].mxu0
        %v3003 = vadd.f32 %v2650, %v3002
        %v3004 = vpop.f32.mrb[0].mxu0
        %v3005 = vadd.f32 %v2652, %v3004
        %v3006 = vpop.f32.mrb[0].mxu0
        %v3007 = vadd.f32 %v2654, %v3006
        %v3008 = vpop.f32.mrb[0].mxu0
        %v3009 = vadd.f32 %v2656, %v3008
        %3010 = vmatprep.mubr.bf16.mxu0 %v752
        %3011 = vmatmul.mubr.bf16.gmra.mrb[0].mxu0 %v751
        %v3012 = vpop.f32.mrb[0].mxu0
        %v3013 = vadd.f32 %v2660, %v3012
        %v3014 = vpop.f32.mrb[0].mxu0
        %v3015 = vadd.f32 %v2662, %v3014
        %v3016 = vpop.f32.mrb[0].mxu0
        %v3017 = vadd.f32 %v2664, %v3016
        %v3018 = vpop.f32.mrb[0].mxu0
        %v3019 = vadd.f32 %v2666, %v3018
        %3020 = vmatprep.mubr.bf16.mxu0 %v759
        %3021 = vmatmul.mubr.bf16.gmra.mrb[0].mxu0 %v758
        %v3022 = vpop.f32.mrb[0].mxu0
        %v3023 = vadd.f32 %v2670, %v3022
        %v3024 = vpop.f32.mrb[0].mxu0
        %v3025 = vadd.f32 %v2672, %v3024
        %v3026 = vpop.f32.mrb[0].mxu0
        %v3027 = vadd.f32 %v2674, %v3026
        %v3028 = vpop.f32.mrb[0].mxu0
        %v3029 = vadd.f32 %v2676, %v3028
        %3030 = vmatprep.mubr.bf16.mxu0 %v766
        %3031 = vmatmul.mubr.bf16.gmra.mrb[0].mxu0 %v765
        %v3032 = vpop.f32.mrb[0].mxu0
        %v3033 = vadd.f32 %v2680, %v3032
        %v3034 = vpop.f32.mrb[0].mxu0
        %v3035 = vadd.f32 %v2682, %v3034
        %v3036 = vpop.f32.mrb[0].mxu0
        %v3037 = vadd.f32 %v2684, %v3036
        %v3038 = vpop.f32.mrb[0].mxu0
        %v3039 = vadd.f32 %v2686, %v3038
        %3040 = vmatprep.mubr.bf16.mxu0 %v773
        %3041 = vmatmul.mubr.bf16.gmra.mrb[0].mxu0 %v772
        %v3042 = vpop.f32.mrb[0].mxu0
        %v3043 = vadd.f32 %v2690, %v3042
        %v3044 = vpop.f32.mrb[0].mxu0
        %v3045 = vadd.f32 %v2692, %v3044
        %v3046 = vpop.f32.mrb[0].mxu0
        %v3047 = vadd.f32 %v2694, %v3046
        %v3048 = vpop.f32.mrb[0].mxu0
        %v3049 = vadd.f32 %v2696, %v3048
        %3050 = vmatprep.mubr.bf16.mxu0 %v780
        %3051 = vmatmul.mubr.bf16.gmra.mrb[0].mxu0 %v779
        %v3052 = vpop.f32.mrb[0].mxu0
        %v3053 = vadd.f32 %v2700, %v3052
        %v3054 = vpop.f32.mrb[0].mxu0
        %v3055 = vadd.f32 %v2702, %v3054
        %v3056 = vpop.f32.mrb[0].mxu0
        %v3057 = vadd.f32 %v2704, %v3056
        %v3058 = vpop.f32.mrb[0].mxu0
        %v3059 = vadd.f32 %v2706, %v3058
        %3060 = vmatprep.mubr.bf16.mxu0 %v787
        %3061 = vmatmul.mubr.bf16.gmra.mrb[0].mxu0 %v786
        %v3062 = vpop.f32.mrb[0].mxu0
        %v3063 = vadd.f32 %v2710, %v3062
        %v3064 = vpop.f32.mrb[0].mxu0
        %v3065 = vadd.f32 %v2712, %v3064
        %v3066 = vpop.f32.mrb[0].mxu0
        %v3067 = vadd.f32 %v2714, %v3066
        %v3068 = vpop.f32.mrb[0].mxu0
        %v3069 = vadd.f32 %v2716, %v3068
        %3070 = vmatprep.mubr.bf16.mxu0 %v794
        %3071 = vmatmul.mubr.bf16.gmra.mrb[0].mxu0 %v793
        %v3072 = vpop.f32.mrb[0].mxu0
        %v3073 = vadd.f32 %v2720, %v3072
        %v3074 = vpop.f32.mrb[0].mxu0
        %v3075 = vadd.f32 %v2722, %v3074
        %v3076 = vpop.f32.mrb[0].mxu0
        %v3077 = vadd.f32 %v2724, %v3076
        %v3078 = vpop.f32.mrb[0].mxu0
        %v3079 = vadd.f32 %v2726, %v3078
        %3080 = vmatprep.mubr.bf16.mxu0 %v801
        %3081 = vmatmul.mubr.bf16.gmra.mrb[0].mxu0 %v800
        %v3082 = vpop.f32.mrb[0].mxu0
        %v3083 = vadd.f32 %v2730, %v3082
        %v3084 = vpop.f32.mrb[0].mxu0
        %v3085 = vadd.f32 %v2732, %v3084
        %v3086 = vpop.f32.mrb[0].mxu0
        %v3087 = vadd.f32 %v2734, %v3086
        %v3088 = vpop.f32.mrb[0].mxu0
        %v3089 = vadd.f32 %v2736, %v3088
        %3090 = vmatprep.mubr.bf16.mxu0 %v808
        %3091 = vmatmul.mubr.bf16.gmra.mrb[0].mxu0 %v807
        %v3092 = vpop.f32.mrb[0].mxu0
        %v3093 = vadd.f32 %v2740, %v3092
        %v3094 = vpop.f32.mrb[0].mxu0
        %v3095 = vadd.f32 %v2742, %v3094
        %v3096 = vpop.f32.mrb[0].mxu0
        %v3097 = vadd.f32 %v2744, %v3096
        %v3098 = vpop.f32.mrb[0].mxu0
        %v3099 = vadd.f32 %v2746, %v3098
        %3100 = vmatprep.mubr.bf16.mxu0 %v815
        %3101 = vmatmul.mubr.bf16.gmra.mrb[0].mxu0 %v814
        %v3102 = vpop.f32.mrb[0].mxu0
        %v3103 = vadd.f32 %v2750, %v3102
        %v3104 = vpop.f32.mrb[0].mxu0
        %v3105 = vadd.f32 %v2752, %v3104
        %v3106 = vpop.f32.mrb[0].mxu0
        %v3107 = vadd.f32 %v2754, %v3106
        %v3108 = vpop.f32.mrb[0].mxu0
        %v3109 = vadd.f32 %v2756, %v3108
        %3110 = vmatprep.mubr.bf16.mxu0 %v822
        %3111 = vmatmul.mubr.bf16.gmra.mrb[0].mxu0 %v821
        %v3112 = vpop.f32.mrb[0].mxu0
        %v3113 = vadd.f32 %v2760, %v3112
        %v3114 = vpop.f32.mrb[0].mxu0
        %v3115 = vadd.f32 %v2762, %v3114
        %v3116 = vpop.f32.mrb[0].mxu0
        %v3117 = vadd.f32 %v2764, %v3116
        %v3118 = vpop.f32.mrb[0].mxu0
        %v3119 = vadd.f32 %v2766, %v3118
        %3120 = vmatprep.mubr.bf16.mxu0 %v829
        %3121 = vmatmul.mubr.bf16.gmra.mrb[0].mxu0 %v828
        %v3122 = vpop.f32.mrb[0].mxu0
        %v3123 = vadd.f32 %v2770, %v3122
        %v3124 = vpop.f32.mrb[0].mxu0
        %v3125 = vadd.f32 %v2772, %v3124
        %v3126 = vpop.f32.mrb[0].mxu0
        %v3127 = vadd.f32 %v2774, %v3126
        %v3128 = vpop.f32.mrb[0].mxu0
        %v3129 = vadd.f32 %v2776, %v3128
        %3130 = vmatprep.mubr.bf16.mxu0 %v836
        %3131 = vmatmul.mubr.bf16.gmra.mrb[0].mxu0 %v835
        %v3132 = vpop.f32.mrb[0].mxu0
        %v3133 = vadd.f32 %v2780, %v3132
        %v3134 = vpop.f32.mrb[0].mxu0
        %v3135 = vadd.f32 %v2782, %v3134
        %v3136 = vpop.f32.mrb[0].mxu0
        %v3137 = vadd.f32 %v2784, %v3136
        %v3138 = vpop.f32.mrb[0].mxu0
        %v3139 = vadd.f32 %v2786, %v3138
        %3140 = vmatprep.mubr.bf16.mxu0 %v843
        %3141 = vmatmul.mubr.bf16.gmra.mrb[0].mxu0 %v842
        %v3142 = vpop.f32.mrb[0].mxu0
        %v3143 = vadd.f32 %v2790, %v3142
        %v3144 = vpop.f32.mrb[0].mxu0
        %v3145 = vadd.f32 %v2792, %v3144
        %v3146 = vpop.f32.mrb[0].mxu0
        %v3147 = vadd.f32 %v2794, %v3146
        %v3148 = vpop.f32.mrb[0].mxu0
        %v3149 = vadd.f32 %v2796, %v3148
        %3150 = vmatprep.mubr.bf16.mxu0 %v850
        %3151 = vmatmul.mubr.bf16.gmra.mrb[0].mxu0 %v849
        %v3152 = vpop.f32.mrb[0].mxu0
        %v3153 = vadd.f32 %v2800, %v3152
        %v3154 = vpop.f32.mrb[0].mxu0
        %v3155 = vadd.f32 %v2802, %v3154
        %v3156 = vpop.f32.mrb[0].mxu0
        %v3157 = vadd.f32 %v2804, %v3156
        %v3158 = vpop.f32.mrb[0].mxu0
        %v3159 = vadd.f32 %v2806, %v3158
        %3160 = vmatprep.mubr.bf16.mxu0 %v857
        %3161 = vmatmul.mubr.bf16.gmra.mrb[0].mxu0 %v856
        %v3162 = vpop.f32.mrb[0].mxu0
        %v3163 = vadd.f32 %v2810, %v3162
        %v3164 = vpop.f32.mrb[0].mxu0
        %v3165 = vadd.f32 %v2812, %v3164
        %v3166 = vpop.f32.mrb[0].mxu0
        %v3167 = vadd.f32 %v2814, %v3166
        %v3168 = vpop.f32.mrb[0].mxu0
        %v3169 = vadd.f32 %v2816, %v3168
        %3170 = vmatprep.mubr.bf16.mxu0 %v864
        %3171 = vmatmul.mubr.bf16.gmra.mrb[0].mxu0 %v863
        %v3172 = vpop.f32.mrb[0].mxu0
        %v3173 = vadd.f32 %v2820, %v3172
        %v3174 = vpop.f32.mrb[0].mxu0
        %v3175 = vadd.f32 %v2822, %v3174
        %v3176 = vpop.f32.mrb[0].mxu0
        %v3177 = vadd.f32 %v2824, %v3176
        %v3178 = vpop.f32.mrb[0].mxu0
        %v3179 = vadd.f32 %v2826, %v3178
        %3180 = vmatprep.mubr.bf16.mxu0 %v871
        %3181 = vmatmul.mubr.bf16.gmra.mrb[0].mxu0 %v870
        %v3182 = vpop.f32.mrb[0].mxu0
        %v3183 = vadd.f32 %v2830, %v3182
        %v3184 = vpop.f32.mrb[0].mxu0
        %v3185 = vadd.f32 %v2832, %v3184
        %v3186 = vpop.f32.mrb[0].mxu0
        %v3187 = vadd.f32 %v2834, %v3186
        %v3188 = vpop.f32.mrb[0].mxu0
        %v3189 = vadd.f32 %v2836, %v3188
        %3190 = vmatprep.mubr.bf16.mxu0 %v878
        %3191 = vmatmul.mubr.bf16.gmra.mrb[0].mxu0 %v877
        %v3192 = vpop.f32.mrb[0].mxu0
        %v3193 = vadd.f32 %v2840, %v3192
        %v3194 = vpop.f32.mrb[0].mxu0
        %v3195 = vadd.f32 %v2842, %v3194
        %v3196 = vpop.f32.mrb[0].mxu0
        %v3197 = vadd.f32 %v2844, %v3196
        %v3198 = vpop.f32.mrb[0].mxu0
        %v3199 = vadd.f32 %v2846, %v3198
        %3200 = vmatprep.mubr.bf16.mxu0 %v885
        %3201 = vmatmul.mubr.bf16.gmra.mrb[0].mxu0 %v884
        %v3202 = vpop.f32.mrb[0].mxu0
        %v3203 = vadd.f32 %v2850, %v3202
        %v3204 = vpop.f32.mrb[0].mxu0
        %v3205 = vadd.f32 %v2852, %v3204
        %v3206 = vpop.f32.mrb[0].mxu0
        %v3207 = vadd.f32 %v2854, %v3206
        %v3208 = vpop.f32.mrb[0].mxu0
        %v3209 = vadd.f32 %v2856, %v3208
        %3210 = vmatprep.mubr.bf16.mxu0 %v892
        %3211 = vmatmul.mubr.bf16.gmra.mrb[0].mxu0 %v891
        %v3212 = vpop.f32.mrb[0].mxu0
        %v3213 = vadd.f32 %v2860, %v3212
        %v3214 = vpop.f32.mrb[0].mxu0
        %v3215 = vadd.f32 %v2862, %v3214
        %v3216 = vpop.f32.mrb[0].mxu0
        %v3217 = vadd.f32 %v2864, %v3216
        %v3218 = vpop.f32.mrb[0].mxu0
        %v3219 = vadd.f32 %v2866, %v3218
        %3220 = vmatprep.mubr.bf16.mxu0 %v899
        %3221 = vmatmul.mubr.bf16.gmra.mrb[0].mxu0 %v898
        %v3222 = vpop.f32.mrb[0].mxu0
        %v3223 = vadd.f32 %v2870, %v3222
        %v3224 = vpop.f32.mrb[0].mxu0
        %v3225 = vadd.f32 %v2872, %v3224
        %v3226 = vpop.f32.mrb[0].mxu0
        %v3227 = vadd.f32 %v2874, %v3226
        %v3228 = vpop.f32.mrb[0].mxu0
        %v3229 = vadd.f32 %v2876, %v3228
        %3230 = vmatprep.mubr.bf16.mxu0 %v906
        %3231 = vmatmul.mubr.bf16.gmra.mrb[0].mxu0 %v905
        %v3232 = vpop.f32.mrb[0].mxu0
        %v3233 = vadd.f32 %v2880, %v3232
        %v3234 = vpop.f32.mrb[0].mxu0
        %v3235 = vadd.f32 %v2882, %v3234
        %v3236 = vpop.f32.mrb[0].mxu0
        %v3237 = vadd.f32 %v2884, %v3236
        %v3238 = vpop.f32.mrb[0].mxu0
        %v3239 = vadd.f32 %v2886, %v3238
        %3240 = vmatprep.mubr.bf16.mxu0 %v913
        %3241 = vmatmul.mubr.bf16.gmra.mrb[0].mxu0 %v912
        %v3242 = vpop.f32.mrb[0].mxu0
        %v3243 = vadd.f32 %v2890, %v3242
        %v3244 = vpop.f32.mrb[0].mxu0
        %v3245 = vadd.f32 %v2892, %v3244
        %v3246 = vpop.f32.mrb[0].mxu0
        %v3247 = vadd.f32 %v2894, %v3246
        %v3248 = vpop.f32.mrb[0].mxu0
        %v3249 = vadd.f32 %v2896, %v3248
        %3250 = vmatprep.mubr.bf16.mxu0 %v920
        %3251 = vmatmul.mubr.bf16.gmra.mrb[0].mxu0 %v919
        %v3252 = vpop.f32.mrb[0].mxu0
        %v3253 = vadd.f32 %v2900, %v3252
        %v3254 = vpop.f32.mrb[0].mxu0
        %v3255 = vadd.f32 %v2902, %v3254
        %v3256 = vpop.f32.mrb[0].mxu0
        %v3257 = vadd.f32 %v2904, %v3256
        %v3258 = vpop.f32.mrb[0].mxu0
        %v3259 = vadd.f32 %v2906, %v3258
        %3260 = vmatprep.mubr.bf16.mxu0 %v927
        %3261 = vmatmul.mubr.bf16.gmra.mrb[0].mxu0 %v926
        %v3262 = vpop.f32.mrb[0].mxu0
        %v3263 = vadd.f32 %v2910, %v3262
        %v3264 = vpop.f32.mrb[0].mxu0
        %v3265 = vadd.f32 %v2912, %v3264
        %v3266 = vpop.f32.mrb[0].mxu0
        %v3267 = vadd.f32 %v2914, %v3266
        %v3268 = vpop.f32.mrb[0].mxu0
        %v3269 = vadd.f32 %v2916, %v3268
        %3270 = vmatprep.mubr.bf16.mxu0 %v934
        %3271 = vmatmul.mubr.bf16.gmra.mrb[0].mxu0 %v933
        %v3272 = vpop.f32.mrb[0].mxu0
        %v3273 = vadd.f32 %v2920, %v3272
        %v3274 = vpop.f32.mrb[0].mxu0
        %v3275 = vadd.f32 %v2922, %v3274
        %v3276 = vpop.f32.mrb[0].mxu0
        %v3277 = vadd.f32 %v2924, %v3276
        %v3278 = vpop.f32.mrb[0].mxu0
        %v3279 = vadd.f32 %v2926, %v3278
        %3280 = vmatprep.mubr.bf16.mxu0 %v941
        %3281 = vmatmul.mubr.bf16.gmra.mrb[0].mxu0 %v940
        %v3282 = vpop.f32.mrb[0].mxu0
        %v3283 = vadd.f32 %v2930, %v3282
        %v3284 = vpop.f32.mrb[0].mxu0
        %v3285 = vadd.f32 %v2932, %v3284
        %v3286 = vpop.f32.mrb[0].mxu0
        %v3287 = vadd.f32 %v2934, %v3286
        %v3288 = vpop.f32.mrb[0].mxu0
        %v3289 = vadd.f32 %v2936, %v3288
        %3290 = vmatprep.mubr.bf16.mxu0 %v948
        %3291 = vmatmul.mubr.bf16.gmra.mrb[0].mxu0 %v947
        %v3292 = vpop.f32.mrb[0].mxu0
        %v3293 = vadd.f32 %v2940, %v3292
        %v3294 = vpop.f32.mrb[0].mxu0
        %v3295 = vadd.f32 %v2942, %v3294
        %v3296 = vpop.f32.mrb[0].mxu0
        %v3297 = vadd.f32 %v2944, %v3296
        %v3298 = vpop.f32.mrb[0].mxu0
        %v3299 = vadd.f32 %v2946, %v3298
        %3300 = vmatprep.mubr.bf16.mxu0 %v955
        %3301 = vmatmul.mubr.bf16.gmra.mrb[0].mxu0 %v954
        %v3302 = vpop.f32.mrb[0].mxu0
        %v3303 = vadd.f32 %v2950, %v3302
        %v3304 = vpop.f32.mrb[0].mxu0
        %v3305 = vadd.f32 %v2952, %v3304
        %v3306 = vpop.f32.mrb[0].mxu0
        %v3307 = vadd.f32 %v2954, %v3306
        %v3308 = vpop.f32.mrb[0].mxu0
        %v3309 = vadd.f32 %v2956, %v3308
        %3310 = vdwg.mxu0
        %3311 = vmatprep.subr.bf16.mxu0 %v1956
        %3312 = vmatpush1.bf16.msra.mxu0 %v1955
        %3313 = vmatprep.subr.bf16.mxu0 0
        %3314 = vmatpush1.bf16.msra.mxu0 0
        %3315 = vmatprep.subr.bf16.mxu0 0
        %3316 = vmatpush1.bf16.msra.mxu0 0
        %3317 = vmatprep.subr.bf16.mxu0 0
        %3318 = vmatpush1.bf16.msra.mxu0 0
        %3319 = vmatprep.subr.bf16.mxu0 0
        %3320 = vmatpush1.bf16.msra.mxu0 0
        %3321 = vmatprep.subr.bf16.mxu0 0
        %3322 = vmatpush1.bf16.msra.mxu0 0
        %3323 = vmatprep.subr.bf16.mxu0 0
        %3324 = vmatpush1.bf16.msra.mxu0 0
        %3325 = vmatprep.subr.bf16.mxu0 0
        %3326 = vmatpush1.bf16.msra.mxu0 0
        %3327 = vmatprep.subr.bf16.mxu0 0
        %3328 = vmatpush1.bf16.msra.mxu0 0
        %3329 = vmatprep.subr.bf16.mxu0 0
        %3330 = vmatpush1.bf16.msra.mxu0 0
        %3331 = vmatprep.subr.bf16.mxu0 0
        %3332 = vmatpush1.bf16.msra.mxu0 0
        %3333 = vmatprep.subr.bf16.mxu0 0
        %3334 = vmatpush1.bf16.msra.mxu0 0
        %3335 = vmatprep.subr.bf16.mxu0 0
        %3336 = vmatpush1.bf16.msra.mxu0 0
        %3337 = vmatprep.subr.bf16.mxu0 0
        %3338 = vmatpush1.bf16.msra.mxu0 0
        %3339 = vmatprep.subr.bf16.mxu0 0
        %3340 = vmatpush1.bf16.msra.mxu0 0
        %3341 = vmatprep.subr.bf16.mxu0 0
        %3342 = vmatpush1.bf16.msra.mxu0 0
        %3343 = vmatprep.mubr.bf16.mxu0 0
        %3344 = vmatmul.mubr.bf16.gmra.mrb[0].mxu0 %v2157
        %v3345 = vpop.f32.mrb[0].mxu0
        %v3346 = vadd.f32 %v2993, %v3345
        %v3347 = vpop.f32.mrb[0].mxu0
        %v3348 = vadd.f32 %v2995, %v3347
        %v3349 = vpop.f32.mrb[0].mxu0
        %v3350 = vadd.f32 %v2997, %v3349
        %v3351 = vpop.f32.mrb[0].mxu0
        %v3352 = vadd.f32 %v2999, %v3351
        %3353 = vmatprep.mubr.bf16.mxu0 0
        %3354 = vmatmul.mubr.bf16.gmra.mrb[0].mxu0 %v2160
        %v3355 = vpop.f32.mrb[0].mxu0
        %v3356 = vadd.f32 %v3003, %v3355
        %v3357 = vpop.f32.mrb[0].mxu0
        %v3358 = vadd.f32 %v3005, %v3357
        %v3359 = vpop.f32.mrb[0].mxu0
        %v3360 = vadd.f32 %v3007, %v3359
        %v3361 = vpop.f32.mrb[0].mxu0
        %v3362 = vadd.f32 %v3009, %v3361
        %3363 = vmatprep.mubr.bf16.mxu0 0
        %3364 = vmatmul.mubr.bf16.gmra.mrb[0].mxu0 %v2163
        %v3365 = vpop.f32.mrb[0].mxu0
        %v3366 = vadd.f32 %v3013, %v3365
        %v3367 = vpop.f32.mrb[0].mxu0
        %v3368 = vadd.f32 %v3015, %v3367
        %v3369 = vpop.f32.mrb[0].mxu0
        %v3370 = vadd.f32 %v3017, %v3369
        %v3371 = vpop.f32.mrb[0].mxu0
        %v3372 = vadd.f32 %v3019, %v3371
        %3373 = vmatprep.mubr.bf16.mxu0 0
        %3374 = vmatmul.mubr.bf16.gmra.mrb[0].mxu0 %v2166
        %v3375 = vpop.f32.mrb[0].mxu0
        %v3376 = vadd.f32 %v3023, %v3375
        %v3377 = vpop.f32.mrb[0].mxu0
        %v3378 = vadd.f32 %v3025, %v3377
        %v3379 = vpop.f32.mrb[0].mxu0
        %v3380 = vadd.f32 %v3027, %v3379
        %v3381 = vpop.f32.mrb[0].mxu0
        %v3382 = vadd.f32 %v3029, %v3381
        %3383 = vmatprep.mubr.bf16.mxu0 0
        %3384 = vmatmul.mubr.bf16.gmra.mrb[0].mxu0 %v2169
        %v3385 = vpop.f32.mrb[0].mxu0
        %v3386 = vadd.f32 %v3033, %v3385
        %v3387 = vpop.f32.mrb[0].mxu0
        %v3388 = vadd.f32 %v3035, %v3387
        %v3389 = vpop.f32.mrb[0].mxu0
        %v3390 = vadd.f32 %v3037, %v3389
        %v3391 = vpop.f32.mrb[0].mxu0
        %v3392 = vadd.f32 %v3039, %v3391
        %3393 = vmatprep.mubr.bf16.mxu0 0
        %3394 = vmatmul.mubr.bf16.gmra.mrb[0].mxu0 %v2172
        %v3395 = vpop.f32.mrb[0].mxu0
        %v3396 = vadd.f32 %v3043, %v3395
        %v3397 = vpop.f32.mrb[0].mxu0
        %v3398 = vadd.f32 %v3045, %v3397
        %v3399 = vpop.f32.mrb[0].mxu0
        %v3400 = vadd.f32 %v3047, %v3399
        %v3401 = vpop.f32.mrb[0].mxu0
        %v3402 = vadd.f32 %v3049, %v3401
        %3403 = vmatprep.mubr.bf16.mxu0 0
        %3404 = vmatmul.mubr.bf16.gmra.mrb[0].mxu0 %v2175
        %v3405 = vpop.f32.mrb[0].mxu0
        %v3406 = vadd.f32 %v3053, %v3405
        %v3407 = vpop.f32.mrb[0].mxu0
        %v3408 = vadd.f32 %v3055, %v3407
        %v3409 = vpop.f32.mrb[0].mxu0
        %v3410 = vadd.f32 %v3057, %v3409
        %v3411 = vpop.f32.mrb[0].mxu0
        %v3412 = vadd.f32 %v3059, %v3411
        %3413 = vmatprep.mubr.bf16.mxu0 0
        %3414 = vmatmul.mubr.bf16.gmra.mrb[0].mxu0 %v2178
        %v3415 = vpop.f32.mrb[0].mxu0
        %v3416 = vadd.f32 %v3063, %v3415
        %v3417 = vpop.f32.mrb[0].mxu0
        %v3418 = vadd.f32 %v3065, %v3417
        %v3419 = vpop.f32.mrb[0].mxu0
        %v3420 = vadd.f32 %v3067, %v3419
        %v3421 = vpop.f32.mrb[0].mxu0
        %v3422 = vadd.f32 %v3069, %v3421
        %3423 = vmatprep.mubr.bf16.mxu0 0
        %3424 = vmatmul.mubr.bf16.gmra.mrb[0].mxu0 %v2181
        %v3425 = vpop.f32.mrb[0].mxu0
        %v3426 = vadd.f32 %v3073, %v3425
        %v3427 = vpop.f32.mrb[0].mxu0
        %v3428 = vadd.f32 %v3075, %v3427
        %v3429 = vpop.f32.mrb[0].mxu0
        %v3430 = vadd.f32 %v3077, %v3429
        %v3431 = vpop.f32.mrb[0].mxu0
        %v3432 = vadd.f32 %v3079, %v3431
        %3433 = vmatprep.mubr.bf16.mxu0 0
        %3434 = vmatmul.mubr.bf16.gmra.mrb[0].mxu0 %v2184
        %v3435 = vpop.f32.mrb[0].mxu0
        %v3436 = vadd.f32 %v3083, %v3435
        %v3437 = vpop.f32.mrb[0].mxu0
        %v3438 = vadd.f32 %v3085, %v3437
        %v3439 = vpop.f32.mrb[0].mxu0
        %v3440 = vadd.f32 %v3087, %v3439
        %v3441 = vpop.f32.mrb[0].mxu0
        %v3442 = vadd.f32 %v3089, %v3441
        %3443 = vmatprep.mubr.bf16.mxu0 0
        %3444 = vmatmul.mubr.bf16.gmra.mrb[0].mxu0 %v2187
        %v3445 = vpop.f32.mrb[0].mxu0
        %v3446 = vadd.f32 %v3093, %v3445
        %v3447 = vpop.f32.mrb[0].mxu0
        %v3448 = vadd.f32 %v3095, %v3447
        %v3449 = vpop.f32.mrb[0].mxu0
        %v3450 = vadd.f32 %v3097, %v3449
        %v3451 = vpop.f32.mrb[0].mxu0
        %v3452 = vadd.f32 %v3099, %v3451
        %3453 = vmatprep.mubr.bf16.mxu0 0
        %3454 = vmatmul.mubr.bf16.gmra.mrb[0].mxu0 %v2190
        %v3455 = vpop.f32.mrb[0].mxu0
        %v3456 = vadd.f32 %v3103, %v3455
        %v3457 = vpop.f32.mrb[0].mxu0
        %v3458 = vadd.f32 %v3105, %v3457
        %v3459 = vpop.f32.mrb[0].mxu0
        %v3460 = vadd.f32 %v3107, %v3459
        %v3461 = vpop.f32.mrb[0].mxu0
        %v3462 = vadd.f32 %v3109, %v3461
        %3463 = vmatprep.mubr.bf16.mxu0 0
        %3464 = vmatmul.mubr.bf16.gmra.mrb[0].mxu0 %v2193
        %v3465 = vpop.f32.mrb[0].mxu0
        %v3466 = vadd.f32 %v3113, %v3465
        %v3467 = vpop.f32.mrb[0].mxu0
        %v3468 = vadd.f32 %v3115, %v3467
        %v3469 = vpop.f32.mrb[0].mxu0
        %v3470 = vadd.f32 %v3117, %v3469
        %v3471 = vpop.f32.mrb[0].mxu0
        %v3472 = vadd.f32 %v3119, %v3471
        %3473 = vmatprep.mubr.bf16.mxu0 0
        %3474 = vmatmul.mubr.bf16.gmra.mrb[0].mxu0 %v2196
        %v3475 = vpop.f32.mrb[0].mxu0
        %v3476 = vadd.f32 %v3123, %v3475
        %v3477 = vpop.f32.mrb[0].mxu0
        %v3478 = vadd.f32 %v3125, %v3477
        %v3479 = vpop.f32.mrb[0].mxu0
        %v3480 = vadd.f32 %v3127, %v3479
        %v3481 = vpop.f32.mrb[0].mxu0
        %v3482 = vadd.f32 %v3129, %v3481
        %3483 = vmatprep.mubr.bf16.mxu0 0
        %3484 = vmatmul.mubr.bf16.gmra.mrb[0].mxu0 %v2199
        %v3485 = vpop.f32.mrb[0].mxu0
        %v3486 = vadd.f32 %v3133, %v3485
        %v3487 = vpop.f32.mrb[0].mxu0
        %v3488 = vadd.f32 %v3135, %v3487
        %v3489 = vpop.f32.mrb[0].mxu0
        %v3490 = vadd.f32 %v3137, %v3489
        %v3491 = vpop.f32.mrb[0].mxu0
        %v3492 = vadd.f32 %v3139, %v3491
        %3493 = vmatprep.mubr.bf16.mxu0 0
        %3494 = vmatmul.mubr.bf16.gmra.mrb[0].mxu0 %v2202
        %v3495 = vpop.f32.mrb[0].mxu0
        %v3496 = vadd.f32 %v3143, %v3495
        %v3497 = vpop.f32.mrb[0].mxu0
        %v3498 = vadd.f32 %v3145, %v3497
        %v3499 = vpop.f32.mrb[0].mxu0
        %v3500 = vadd.f32 %v3147, %v3499
        %v3501 = vpop.f32.mrb[0].mxu0
        %v3502 = vadd.f32 %v3149, %v3501
        %3503 = vmatprep.mubr.bf16.mxu0 0
        %3504 = vmatmul.mubr.bf16.gmra.mrb[0].mxu0 %v2205
        %v3505 = vpop.f32.mrb[0].mxu0
        %v3506 = vadd.f32 %v3153, %v3505
        %v3507 = vpop.f32.mrb[0].mxu0
        %v3508 = vadd.f32 %v3155, %v3507
        %v3509 = vpop.f32.mrb[0].mxu0
        %v3510 = vadd.f32 %v3157, %v3509
        %v3511 = vpop.f32.mrb[0].mxu0
        %v3512 = vadd.f32 %v3159, %v3511
        %3513 = vmatprep.mubr.bf16.mxu0 0
        %3514 = vmatmul.mubr.bf16.gmra.mrb[0].mxu0 %v2208
        %v3515 = vpop.f32.mrb[0].mxu0
        %v3516 = vadd.f32 %v3163, %v3515
        %v3517 = vpop.f32.mrb[0].mxu0
        %v3518 = vadd.f32 %v3165, %v3517
        %v3519 = vpop.f32.mrb[0].mxu0
        %v3520 = vadd.f32 %v3167, %v3519
        %v3521 = vpop.f32.mrb[0].mxu0
        %v3522 = vadd.f32 %v3169, %v3521
        %3523 = vmatprep.mubr.bf16.mxu0 0
        %3524 = vmatmul.mubr.bf16.gmra.mrb[0].mxu0 %v2211
        %v3525 = vpop.f32.mrb[0].mxu0
        %v3526 = vadd.f32 %v3173, %v3525
        %v3527 = vpop.f32.mrb[0].mxu0
        %v3528 = vadd.f32 %v3175, %v3527
        %v3529 = vpop.f32.mrb[0].mxu0
        %v3530 = vadd.f32 %v3177, %v3529
        %v3531 = vpop.f32.mrb[0].mxu0
        %v3532 = vadd.f32 %v3179, %v3531
        %3533 = vmatprep.mubr.bf16.mxu0 0
        %3534 = vmatmul.mubr.bf16.gmra.mrb[0].mxu0 %v2214
        %v3535 = vpop.f32.mrb[0].mxu0
        %v3536 = vadd.f32 %v3183, %v3535
        %v3537 = vpop.f32.mrb[0].mxu0
        %v3538 = vadd.f32 %v3185, %v3537
        %v3539 = vpop.f32.mrb[0].mxu0
        %v3540 = vadd.f32 %v3187, %v3539
        %v3541 = vpop.f32.mrb[0].mxu0
        %v3542 = vadd.f32 %v3189, %v3541
        %3543 = vmatprep.mubr.bf16.mxu0 0
        %3544 = vmatmul.mubr.bf16.gmra.mrb[0].mxu0 %v2217
        %v3545 = vpop.f32.mrb[0].mxu0
        %v3546 = vadd.f32 %v3193, %v3545
        %v3547 = vpop.f32.mrb[0].mxu0
        %v3548 = vadd.f32 %v3195, %v3547
        %v3549 = vpop.f32.mrb[0].mxu0
        %v3550 = vadd.f32 %v3197, %v3549
        %v3551 = vpop.f32.mrb[0].mxu0
        %v3552 = vadd.f32 %v3199, %v3551
        %3553 = vmatprep.mubr.bf16.mxu0 0
        %3554 = vmatmul.mubr.bf16.gmra.mrb[0].mxu0 %v2220
        %v3555 = vpop.f32.mrb[0].mxu0
        %v3556 = vadd.f32 %v3203, %v3555
        %v3557 = vpop.f32.mrb[0].mxu0
        %v3558 = vadd.f32 %v3205, %v3557
        %v3559 = vpop.f32.mrb[0].mxu0
        %v3560 = vadd.f32 %v3207, %v3559
        %v3561 = vpop.f32.mrb[0].mxu0
        %v3562 = vadd.f32 %v3209, %v3561
        %3563 = vmatprep.mubr.bf16.mxu0 0
        %3564 = vmatmul.mubr.bf16.gmra.mrb[0].mxu0 %v2223
        %v3565 = vpop.f32.mrb[0].mxu0
        %v3566 = vadd.f32 %v3213, %v3565
        %v3567 = vpop.f32.mrb[0].mxu0
        %v3568 = vadd.f32 %v3215, %v3567
        %v3569 = vpop.f32.mrb[0].mxu0
        %v3570 = vadd.f32 %v3217, %v3569
        %v3571 = vpop.f32.mrb[0].mxu0
        %v3572 = vadd.f32 %v3219, %v3571
        %3573 = vmatprep.mubr.bf16.mxu0 0
        %3574 = vmatmul.mubr.bf16.gmra.mrb[0].mxu0 %v2226
        %v3575 = vpop.f32.mrb[0].mxu0
        %v3576 = vadd.f32 %v3223, %v3575
        %v3577 = vpop.f32.mrb[0].mxu0
        %v3578 = vadd.f32 %v3225, %v3577
        %v3579 = vpop.f32.mrb[0].mxu0
        %v3580 = vadd.f32 %v3227, %v3579
        %v3581 = vpop.f32.mrb[0].mxu0
        %v3582 = vadd.f32 %v3229, %v3581
        %3583 = vmatprep.mubr.bf16.mxu0 0
        %3584 = vmatmul.mubr.bf16.gmra.mrb[0].mxu0 %v2229
        %v3585 = vpop.f32.mrb[0].mxu0
        %v3586 = vadd.f32 %v3233, %v3585
        %v3587 = vpop.f32.mrb[0].mxu0
        %v3588 = vadd.f32 %v3235, %v3587
        %v3589 = vpop.f32.mrb[0].mxu0
        %v3590 = vadd.f32 %v3237, %v3589
        %v3591 = vpop.f32.mrb[0].mxu0
        %v3592 = vadd.f32 %v3239, %v3591
        %3593 = vmatprep.mubr.bf16.mxu0 0
        %3594 = vmatmul.mubr.bf16.gmra.mrb[0].mxu0 %v2232
        %v3595 = vpop.f32.mrb[0].mxu0
        %v3596 = vadd.f32 %v3243, %v3595
        %v3597 = vpop.f32.mrb[0].mxu0
        %v3598 = vadd.f32 %v3245, %v3597
        %v3599 = vpop.f32.mrb[0].mxu0
        %v3600 = vadd.f32 %v3247, %v3599
        %v3601 = vpop.f32.mrb[0].mxu0
        %v3602 = vadd.f32 %v3249, %v3601
        %3603 = vmatprep.mubr.bf16.mxu0 0
        %3604 = vmatmul.mubr.bf16.gmra.mrb[0].mxu0 %v2235
        %v3605 = vpop.f32.mrb[0].mxu0
        %v3606 = vadd.f32 %v3253, %v3605
        %v3607 = vpop.f32.mrb[0].mxu0
        %v3608 = vadd.f32 %v3255, %v3607
        %v3609 = vpop.f32.mrb[0].mxu0
        %v3610 = vadd.f32 %v3257, %v3609
        %v3611 = vpop.f32.mrb[0].mxu0
        %v3612 = vadd.f32 %v3259, %v3611
        %3613 = vmatprep.mubr.bf16.mxu0 0
        %3614 = vmatmul.mubr.bf16.gmra.mrb[0].mxu0 %v2238
        %v3615 = vpop.f32.mrb[0].mxu0
        %v3616 = vadd.f32 %v3263, %v3615
        %v3617 = vpop.f32.mrb[0].mxu0
        %v3618 = vadd.f32 %v3265, %v3617
        %v3619 = vpop.f32.mrb[0].mxu0
        %v3620 = vadd.f32 %v3267, %v3619
        %v3621 = vpop.f32.mrb[0].mxu0
        %v3622 = vadd.f32 %v3269, %v3621
        %3623 = vmatprep.mubr.bf16.mxu0 0
        %3624 = vmatmul.mubr.bf16.gmra.mrb[0].mxu0 %v2241
        %v3625 = vpop.f32.mrb[0].mxu0
        %v3626 = vadd.f32 %v3273, %v3625
        %v3627 = vpop.f32.mrb[0].mxu0
        %v3628 = vadd.f32 %v3275, %v3627
        %v3629 = vpop.f32.mrb[0].mxu0
        %v3630 = vadd.f32 %v3277, %v3629
        %v3631 = vpop.f32.mrb[0].mxu0
        %v3632 = vadd.f32 %v3279, %v3631
        %3633 = vmatprep.mubr.bf16.mxu0 0
        %3634 = vmatmul.mubr.bf16.gmra.mrb[0].mxu0 %v2244
        %v3635 = vpop.f32.mrb[0].mxu0
        %v3636 = vadd.f32 %v3283, %v3635
        %v3637 = vpop.f32.mrb[0].mxu0
        %v3638 = vadd.f32 %v3285, %v3637
        %v3639 = vpop.f32.mrb[0].mxu0
        %v3640 = vadd.f32 %v3287, %v3639
        %v3641 = vpop.f32.mrb[0].mxu0
        %v3642 = vadd.f32 %v3289, %v3641
        %3643 = vmatprep.mubr.bf16.mxu0 0
        %3644 = vmatmul.mubr.bf16.gmra.mrb[0].mxu0 %v2247
        %v3645 = vpop.f32.mrb[0].mxu0
        %v3646 = vadd.f32 %v3293, %v3645
        %v3647 = vpop.f32.mrb[0].mxu0
        %v3648 = vadd.f32 %v3295, %v3647
        %v3649 = vpop.f32.mrb[0].mxu0
        %v3650 = vadd.f32 %v3297, %v3649
        %v3651 = vpop.f32.mrb[0].mxu0
        %v3652 = vadd.f32 %v3299, %v3651
        %3653 = vmatprep.mubr.bf16.mxu0 0
        %3654 = vmatmul.mubr.bf16.gmra.mrb[0].mxu0 %v2250
        %v3655 = vpop.f32.mrb[0].mxu0
        %v3656 = vadd.f32 %v3303, %v3655
        %v3657 = vpop.f32.mrb[0].mxu0
        %v3658 = vadd.f32 %v3305, %v3657
        %v3659 = vpop.f32.mrb[0].mxu0
        %v3660 = vadd.f32 %v3307, %v3659
        %v3661 = vpop.f32.mrb[0].mxu0
        %v3662 = vadd.f32 %v3309, %v3661
        %3663 = vdwg.mxu0
        %3664 = vmatprep.subr.bf16.mxu0 %v1766
        %3665 = vmatpush1.bf16.msra.mxu0 %v1765
        %3666 = vmatprep.subr.bf16.mxu0 %v1770
        %3667 = vmatpush1.bf16.msra.mxu0 %v1769
        %3668 = vmatprep.subr.bf16.mxu0 %v1774
        %3669 = vmatpush1.bf16.msra.mxu0 %v1773
        %3670 = vmatprep.subr.bf16.mxu0 %v1778
        %3671 = vmatpush1.bf16.msra.mxu0 %v1777
        %3672 = vmatprep.subr.bf16.mxu0 %v1782
        %3673 = vmatpush1.bf16.msra.mxu0 %v1781
        %3674 = vmatprep.subr.bf16.mxu0 %v1786
        %3675 = vmatpush1.bf16.msra.mxu0 %v1785
        %3676 = vmatprep.subr.bf16.mxu0 %v1790
        %3677 = vmatpush1.bf16.msra.mxu0 %v1789
        %3678 = vmatprep.subr.bf16.mxu0 %v1794
        %3679 = vmatpush1.bf16.msra.mxu0 %v1793
        %3680 = vmatprep.subr.bf16.mxu0 %v1798
        %3681 = vmatpush1.bf16.msra.mxu0 %v1797
        %3682 = vmatprep.subr.bf16.mxu0 %v1802
        %3683 = vmatpush1.bf16.msra.mxu0 %v1801
        %3684 = vmatprep.subr.bf16.mxu0 %v1806
        %3685 = vmatpush1.bf16.msra.mxu0 %v1805
        %3686 = vmatprep.subr.bf16.mxu0 %v1810
        %3687 = vmatpush1.bf16.msra.mxu0 %v1809
        %3688 = vmatprep.subr.bf16.mxu0 %v1814
        %3689 = vmatpush1.bf16.msra.mxu0 %v1813
        %3690 = vmatprep.subr.bf16.mxu0 %v1818
        %3691 = vmatpush1.bf16.msra.mxu0 %v1817
        %3692 = vmatprep.subr.bf16.mxu0 %v1822
        %3693 = vmatpush1.bf16.msra.mxu0 %v1821
        %3694 = vmatprep.subr.bf16.mxu0 %v1826
        %3695 = vmatpush1.bf16.msra.mxu0 %v1825
        %3696 = vmatprep.mubr.bf16.mxu0 %v734
        %3697 = vmatmul.mubr.bf16.gmra.mrb[0].mxu0 %v733
        %v3698 = vpop.f32.mrb[0].mxu0
        %v3699 = vadd.f32 %v1166, %v3698
        %v3700 = vpop.f32.mrb[0].mxu0
        %v3701 = vadd.f32 %v1170, %v3700
        %v3702 = vpop.f32.mrb[0].mxu0
        %v3703 = vadd.f32 %v1166, %v3702
        %v3704 = vpop.f32.mrb[0].mxu0
        %v3705 = vadd.f32 %v1170, %v3704
        %3706 = vmatprep.mubr.bf16.mxu0 %v741
        %3707 = vmatmul.mubr.bf16.gmra.mrb[0].mxu0 %v740
        %v3708 = vpop.f32.mrb[0].mxu0
        %v3709 = vadd.f32 %v1166, %v3708
        %v3710 = vpop.f32.mrb[0].mxu0
        %v3711 = vadd.f32 %v1170, %v3710
        %v3712 = vpop.f32.mrb[0].mxu0
        %v3713 = vadd.f32 %v1166, %v3712
        %v3714 = vpop.f32.mrb[0].mxu0
        %v3715 = vadd.f32 %v1170, %v3714
        %3716 = vmatprep.mubr.bf16.mxu0 %v748
        %3717 = vmatmul.mubr.bf16.gmra.mrb[0].mxu0 %v747
        %v3718 = vpop.f32.mrb[0].mxu0
        %v3719 = vadd.f32 %v1166, %v3718
        %v3720 = vpop.f32.mrb[0].mxu0
        %v3721 = vadd.f32 %v1170, %v3720
        %v3722 = vpop.f32.mrb[0].mxu0
        %v3723 = vadd.f32 %v1166, %v3722
        %v3724 = vpop.f32.mrb[0].mxu0
        %v3725 = vadd.f32 %v1170, %v3724
        %3726 = vmatprep.mubr.bf16.mxu0 %v755
        %3727 = vmatmul.mubr.bf16.gmra.mrb[0].mxu0 %v754
        %v3728 = vpop.f32.mrb[0].mxu0
        %v3729 = vadd.f32 %v1166, %v3728
        %v3730 = vpop.f32.mrb[0].mxu0
        %v3731 = vadd.f32 %v1170, %v3730
        %v3732 = vpop.f32.mrb[0].mxu0
        %v3733 = vadd.f32 %v1166, %v3732
        %v3734 = vpop.f32.mrb[0].mxu0
        %v3735 = vadd.f32 %v1170, %v3734
        %3736 = vmatprep.mubr.bf16.mxu0 %v762
        %3737 = vmatmul.mubr.bf16.gmra.mrb[0].mxu0 %v761
        %v3738 = vpop.f32.mrb[0].mxu0
        %v3739 = vadd.f32 %v1166, %v3738
        %v3740 = vpop.f32.mrb[0].mxu0
        %v3741 = vadd.f32 %v1170, %v3740
        %v3742 = vpop.f32.mrb[0].mxu0
        %v3743 = vadd.f32 %v1166, %v3742
        %v3744 = vpop.f32.mrb[0].mxu0
        %v3745 = vadd.f32 %v1170, %v3744
        %3746 = vmatprep.mubr.bf16.mxu0 %v769
        %3747 = vmatmul.mubr.bf16.gmra.mrb[0].mxu0 %v768
        %v3748 = vpop.f32.mrb[0].mxu0
        %v3749 = vadd.f32 %v1166, %v3748
        %v3750 = vpop.f32.mrb[0].mxu0
        %v3751 = vadd.f32 %v1170, %v3750
        %v3752 = vpop.f32.mrb[0].mxu0
        %v3753 = vadd.f32 %v1166, %v3752
        %v3754 = vpop.f32.mrb[0].mxu0
        %v3755 = vadd.f32 %v1170, %v3754
        %3756 = vmatprep.mubr.bf16.mxu0 %v776
        %3757 = vmatmul.mubr.bf16.gmra.mrb[0].mxu0 %v775
        %v3758 = vpop.f32.mrb[0].mxu0
        %v3759 = vadd.f32 %v1166, %v3758
        %v3760 = vpop.f32.mrb[0].mxu0
        %v3761 = vadd.f32 %v1170, %v3760
        %v3762 = vpop.f32.mrb[0].mxu0
        %v3763 = vadd.f32 %v1166, %v3762
        %v3764 = vpop.f32.mrb[0].mxu0
        %v3765 = vadd.f32 %v1170, %v3764
        %3766 = vmatprep.mubr.bf16.mxu0 %v783
        %3767 = vmatmul.mubr.bf16.gmra.mrb[0].mxu0 %v782
        %v3768 = vpop.f32.mrb[0].mxu0
        %v3769 = vadd.f32 %v1166, %v3768
        %v3770 = vpop.f32.mrb[0].mxu0
        %v3771 = vadd.f32 %v1170, %v3770
        %v3772 = vpop.f32.mrb[0].mxu0
        %v3773 = vadd.f32 %v1166, %v3772
        %v3774 = vpop.f32.mrb[0].mxu0
        %v3775 = vadd.f32 %v1170, %v3774
        %3776 = vmatprep.mubr.bf16.mxu0 %v790
        %3777 = vmatmul.mubr.bf16.gmra.mrb[0].mxu0 %v789
        %v3778 = vpop.f32.mrb[0].mxu0
        %v3779 = vadd.f32 %v1166, %v3778
        %v3780 = vpop.f32.mrb[0].mxu0
        %v3781 = vadd.f32 %v1170, %v3780
        %v3782 = vpop.f32.mrb[0].mxu0
        %v3783 = vadd.f32 %v1166, %v3782
        %v3784 = vpop.f32.mrb[0].mxu0
        %v3785 = vadd.f32 %v1170, %v3784
        %3786 = vmatprep.mubr.bf16.mxu0 %v797
        %3787 = vmatmul.mubr.bf16.gmra.mrb[0].mxu0 %v796
        %v3788 = vpop.f32.mrb[0].mxu0
        %v3789 = vadd.f32 %v1166, %v3788
        %v3790 = vpop.f32.mrb[0].mxu0
        %v3791 = vadd.f32 %v1170, %v3790
        %v3792 = vpop.f32.mrb[0].mxu0
        %v3793 = vadd.f32 %v1166, %v3792
        %v3794 = vpop.f32.mrb[0].mxu0
        %v3795 = vadd.f32 %v1170, %v3794
        %3796 = vmatprep.mubr.bf16.mxu0 %v804
        %3797 = vmatmul.mubr.bf16.gmra.mrb[0].mxu0 %v803
        %v3798 = vpop.f32.mrb[0].mxu0
        %v3799 = vadd.f32 %v1166, %v3798
        %v3800 = vpop.f32.mrb[0].mxu0
        %v3801 = vadd.f32 %v1170, %v3800
        %v3802 = vpop.f32.mrb[0].mxu0
        %v3803 = vadd.f32 %v1166, %v3802
        %v3804 = vpop.f32.mrb[0].mxu0
        %v3805 = vadd.f32 %v1170, %v3804
        %3806 = vmatprep.mubr.bf16.mxu0 %v811
        %3807 = vmatmul.mubr.bf16.gmra.mrb[0].mxu0 %v810
        %v3808 = vpop.f32.mrb[0].mxu0
        %v3809 = vadd.f32 %v1166, %v3808
        %v3810 = vpop.f32.mrb[0].mxu0
        %v3811 = vadd.f32 %v1170, %v3810
        %v3812 = vpop.f32.mrb[0].mxu0
        %v3813 = vadd.f32 %v1166, %v3812
        %v3814 = vpop.f32.mrb[0].mxu0
        %v3815 = vadd.f32 %v1170, %v3814
        %3816 = vmatprep.mubr.bf16.mxu0 %v818
        %3817 = vmatmul.mubr.bf16.gmra.mrb[0].mxu0 %v817
        %v3818 = vpop.f32.mrb[0].mxu0
        %v3819 = vadd.f32 %v1166, %v3818
        %v3820 = vpop.f32.mrb[0].mxu0
        %v3821 = vadd.f32 %v1170, %v3820
        %v3822 = vpop.f32.mrb[0].mxu0
        %v3823 = vadd.f32 %v1166, %v3822
        %v3824 = vpop.f32.mrb[0].mxu0
        %v3825 = vadd.f32 %v1170, %v3824
        %3826 = vmatprep.mubr.bf16.mxu0 %v825
        %3827 = vmatmul.mubr.bf16.gmra.mrb[0].mxu0 %v824
        %v3828 = vpop.f32.mrb[0].mxu0
        %v3829 = vadd.f32 %v1166, %v3828
        %v3830 = vpop.f32.mrb[0].mxu0
        %v3831 = vadd.f32 %v1170, %v3830
        %v3832 = vpop.f32.mrb[0].mxu0
        %v3833 = vadd.f32 %v1166, %v3832
        %v3834 = vpop.f32.mrb[0].mxu0
        %v3835 = vadd.f32 %v1170, %v3834
        %3836 = vmatprep.mubr.bf16.mxu0 %v832
        %3837 = vmatmul.mubr.bf16.gmra.mrb[0].mxu0 %v831
        %v3838 = vpop.f32.mrb[0].mxu0
        %v3839 = vadd.f32 %v1166, %v3838
        %v3840 = vpop.f32.mrb[0].mxu0
        %v3841 = vadd.f32 %v1170, %v3840
        %v3842 = vpop.f32.mrb[0].mxu0
        %v3843 = vadd.f32 %v1166, %v3842
        %v3844 = vpop.f32.mrb[0].mxu0
        %v3845 = vadd.f32 %v1170, %v3844
        %3846 = vmatprep.mubr.bf16.mxu0 %v839
        %3847 = vmatmul.mubr.bf16.gmra.mrb[0].mxu0 %v838
        %v3848 = vpop.f32.mrb[0].mxu0
        %v3849 = vadd.f32 %v1166, %v3848
        %v3850 = vpop.f32.mrb[0].mxu0
        %v3851 = vadd.f32 %v1170, %v3850
        %v3852 = vpop.f32.mrb[0].mxu0
        %v3853 = vadd.f32 %v1166, %v3852
        %v3854 = vpop.f32.mrb[0].mxu0
        %v3855 = vadd.f32 %v1170, %v3854
        %3856 = vmatprep.mubr.bf16.mxu0 %v846
        %3857 = vmatmul.mubr.bf16.gmra.mrb[0].mxu0 %v845
        %v3858 = vpop.f32.mrb[0].mxu0
        %v3859 = vadd.f32 %v1166, %v3858
        %v3860 = vpop.f32.mrb[0].mxu0
        %v3861 = vadd.f32 %v1170, %v3860
        %v3862 = vpop.f32.mrb[0].mxu0
        %v3863 = vadd.f32 %v1166, %v3862
        %v3864 = vpop.f32.mrb[0].mxu0
        %v3865 = vadd.f32 %v1170, %v3864
        %3866 = vmatprep.mubr.bf16.mxu0 %v853
        %3867 = vmatmul.mubr.bf16.gmra.mrb[0].mxu0 %v852
        %v3868 = vpop.f32.mrb[0].mxu0
        %v3869 = vadd.f32 %v1166, %v3868
        %v3870 = vpop.f32.mrb[0].mxu0
        %v3871 = vadd.f32 %v1170, %v3870
        %v3872 = vpop.f32.mrb[0].mxu0
        %v3873 = vadd.f32 %v1166, %v3872
        %v3874 = vpop.f32.mrb[0].mxu0
        %v3875 = vadd.f32 %v1170, %v3874
        %3876 = vmatprep.mubr.bf16.mxu0 %v860
        %3877 = vmatmul.mubr.bf16.gmra.mrb[0].mxu0 %v859
        %v3878 = vpop.f32.mrb[0].mxu0
        %v3879 = vadd.f32 %v1166, %v3878
        %v3880 = vpop.f32.mrb[0].mxu0
        %v3881 = vadd.f32 %v1170, %v3880
        %v3882 = vpop.f32.mrb[0].mxu0
        %v3883 = vadd.f32 %v1166, %v3882
        %v3884 = vpop.f32.mrb[0].mxu0
        %v3885 = vadd.f32 %v1170, %v3884
        %3886 = vmatprep.mubr.bf16.mxu0 %v867
        %3887 = vmatmul.mubr.bf16.gmra.mrb[0].mxu0 %v866
        %v3888 = vpop.f32.mrb[0].mxu0
        %v3889 = vadd.f32 %v1166, %v3888
        %v3890 = vpop.f32.mrb[0].mxu0
        %v3891 = vadd.f32 %v1170, %v3890
        %v3892 = vpop.f32.mrb[0].mxu0
        %v3893 = vadd.f32 %v1166, %v3892
        %v3894 = vpop.f32.mrb[0].mxu0
        %v3895 = vadd.f32 %v1170, %v3894
        %3896 = vmatprep.mubr.bf16.mxu0 %v874
        %3897 = vmatmul.mubr.bf16.gmra.mrb[0].mxu0 %v873
        %v3898 = vpop.f32.mrb[0].mxu0
        %v3899 = vadd.f32 %v1166, %v3898
        %v3900 = vpop.f32.mrb[0].mxu0
        %v3901 = vadd.f32 %v1170, %v3900
        %v3902 = vpop.f32.mrb[0].mxu0
        %v3903 = vadd.f32 %v1166, %v3902
        %v3904 = vpop.f32.mrb[0].mxu0
        %v3905 = vadd.f32 %v1170, %v3904
        %3906 = vmatprep.mubr.bf16.mxu0 %v881
        %3907 = vmatmul.mubr.bf16.gmra.mrb[0].mxu0 %v880
        %v3908 = vpop.f32.mrb[0].mxu0
        %v3909 = vadd.f32 %v1166, %v3908
        %v3910 = vpop.f32.mrb[0].mxu0
        %v3911 = vadd.f32 %v1170, %v3910
        %v3912 = vpop.f32.mrb[0].mxu0
        %v3913 = vadd.f32 %v1166, %v3912
        %v3914 = vpop.f32.mrb[0].mxu0
        %v3915 = vadd.f32 %v1170, %v3914
        %3916 = vmatprep.mubr.bf16.mxu0 %v888
        %3917 = vmatmul.mubr.bf16.gmra.mrb[0].mxu0 %v887
        %v3918 = vpop.f32.mrb[0].mxu0
        %v3919 = vadd.f32 %v1166, %v3918
        %v3920 = vpop.f32.mrb[0].mxu0
        %v3921 = vadd.f32 %v1170, %v3920
        %v3922 = vpop.f32.mrb[0].mxu0
        %v3923 = vadd.f32 %v1166, %v3922
        %v3924 = vpop.f32.mrb[0].mxu0
        %v3925 = vadd.f32 %v1170, %v3924
        %3926 = vmatprep.mubr.bf16.mxu0 %v895
        %3927 = vmatmul.mubr.bf16.gmra.mrb[0].mxu0 %v894
        %v3928 = vpop.f32.mrb[0].mxu0
        %v3929 = vadd.f32 %v1166, %v3928
        %v3930 = vpop.f32.mrb[0].mxu0
        %v3931 = vadd.f32 %v1170, %v3930
        %v3932 = vpop.f32.mrb[0].mxu0
        %v3933 = vadd.f32 %v1166, %v3932
        %v3934 = vpop.f32.mrb[0].mxu0
        %v3935 = vadd.f32 %v1170, %v3934
        %3936 = vmatprep.mubr.bf16.mxu0 %v902
        %3937 = vmatmul.mubr.bf16.gmra.mrb[0].mxu0 %v901
        %v3938 = vpop.f32.mrb[0].mxu0
        %v3939 = vadd.f32 %v1166, %v3938
        %v3940 = vpop.f32.mrb[0].mxu0
        %v3941 = vadd.f32 %v1170, %v3940
        %v3942 = vpop.f32.mrb[0].mxu0
        %v3943 = vadd.f32 %v1166, %v3942
        %v3944 = vpop.f32.mrb[0].mxu0
        %v3945 = vadd.f32 %v1170, %v3944
        %3946 = vmatprep.mubr.bf16.mxu0 %v909
        %3947 = vmatmul.mubr.bf16.gmra.mrb[0].mxu0 %v908
        %v3948 = vpop.f32.mrb[0].mxu0
        %v3949 = vadd.f32 %v1166, %v3948
        %v3950 = vpop.f32.mrb[0].mxu0
        %v3951 = vadd.f32 %v1170, %v3950
        %v3952 = vpop.f32.mrb[0].mxu0
        %v3953 = vadd.f32 %v1166, %v3952
        %v3954 = vpop.f32.mrb[0].mxu0
        %v3955 = vadd.f32 %v1170, %v3954
        %3956 = vmatprep.mubr.bf16.mxu0 %v916
        %3957 = vmatmul.mubr.bf16.gmra.mrb[0].mxu0 %v915
        %v3958 = vpop.f32.mrb[0].mxu0
        %v3959 = vadd.f32 %v1166, %v3958
        %v3960 = vpop.f32.mrb[0].mxu0
        %v3961 = vadd.f32 %v1170, %v3960
        %v3962 = vpop.f32.mrb[0].mxu0
        %v3963 = vadd.f32 %v1166, %v3962
        %v3964 = vpop.f32.mrb[0].mxu0
        %v3965 = vadd.f32 %v1170, %v3964
        %3966 = vmatprep.mubr.bf16.mxu0 %v923
        %3967 = vmatmul.mubr.bf16.gmra.mrb[0].mxu0 %v922
        %v3968 = vpop.f32.mrb[0].mxu0
        %v3969 = vadd.f32 %v1166, %v3968
        %v3970 = vpop.f32.mrb[0].mxu0
        %v3971 = vadd.f32 %v1170, %v3970
        %v3972 = vpop.f32.mrb[0].mxu0
        %v3973 = vadd.f32 %v1166, %v3972
        %v3974 = vpop.f32.mrb[0].mxu0
        %v3975 = vadd.f32 %v1170, %v3974
        %3976 = vmatprep.mubr.bf16.mxu0 %v930
        %3977 = vmatmul.mubr.bf16.gmra.mrb[0].mxu0 %v929
        %v3978 = vpop.f32.mrb[0].mxu0
        %v3979 = vadd.f32 %v1166, %v3978
        %v3980 = vpop.f32.mrb[0].mxu0
        %v3981 = vadd.f32 %v1170, %v3980
        %v3982 = vpop.f32.mrb[0].mxu0
        %v3983 = vadd.f32 %v1166, %v3982
        %v3984 = vpop.f32.mrb[0].mxu0
        %v3985 = vadd.f32 %v1170, %v3984
        %3986 = vmatprep.mubr.bf16.mxu0 %v937
        %3987 = vmatmul.mubr.bf16.gmra.mrb[0].mxu0 %v936
        %v3988 = vpop.f32.mrb[0].mxu0
        %v3989 = vadd.f32 %v1166, %v3988
        %v3990 = vpop.f32.mrb[0].mxu0
        %v3991 = vadd.f32 %v1170, %v3990
        %v3992 = vpop.f32.mrb[0].mxu0
        %v3993 = vadd.f32 %v1166, %v3992
        %v3994 = vpop.f32.mrb[0].mxu0
        %v3995 = vadd.f32 %v1170, %v3994
        %3996 = vmatprep.mubr.bf16.mxu0 %v944
        %3997 = vmatmul.mubr.bf16.gmra.mrb[0].mxu0 %v943
        %v3998 = vpop.f32.mrb[0].mxu0
        %v3999 = vadd.f32 %v1166, %v3998
        %v4000 = vpop.f32.mrb[0].mxu0
        %v4001 = vadd.f32 %v1170, %v4000
        %v4002 = vpop.f32.mrb[0].mxu0
        %v4003 = vadd.f32 %v1166, %v4002
        %v4004 = vpop.f32.mrb[0].mxu0
        %v4005 = vadd.f32 %v1170, %v4004
        %4006 = vmatprep.mubr.bf16.mxu0 %v951
        %4007 = vmatmul.mubr.bf16.gmra.mrb[0].mxu0 %v950
        %v4008 = vpop.f32.mrb[0].mxu0
        %v4009 = vadd.f32 %v1166, %v4008
        %v4010 = vpop.f32.mrb[0].mxu0
        %v4011 = vadd.f32 %v1170, %v4010
        %v4012 = vpop.f32.mrb[0].mxu0
        %v4013 = vadd.f32 %v1166, %v4012
        %v4014 = vpop.f32.mrb[0].mxu0
        %v4015 = vadd.f32 %v1170, %v4014
        %4016 = vdwg.mxu0
        %4017 = vmatprep.subr.bf16.mxu0 %v1830
        %4018 = vmatpush1.bf16.msra.mxu0 %v1829
        %4019 = vmatprep.subr.bf16.mxu0 %v1834
        %4020 = vmatpush1.bf16.msra.mxu0 %v1833
        %4021 = vmatprep.subr.bf16.mxu0 %v1838
        %4022 = vmatpush1.bf16.msra.mxu0 %v1837
        %4023 = vmatprep.subr.bf16.mxu0 %v1842
        %4024 = vmatpush1.bf16.msra.mxu0 %v1841
        %4025 = vmatprep.subr.bf16.mxu0 %v1846
        %4026 = vmatpush1.bf16.msra.mxu0 %v1845
        %4027 = vmatprep.subr.bf16.mxu0 %v1850
        %4028 = vmatpush1.bf16.msra.mxu0 %v1849
        %4029 = vmatprep.subr.bf16.mxu0 %v1854
        %4030 = vmatpush1.bf16.msra.mxu0 %v1853
        %4031 = vmatprep.subr.bf16.mxu0 %v1858
        %4032 = vmatpush1.bf16.msra.mxu0 %v1857
        %4033 = vmatprep.subr.bf16.mxu0 %v1862
        %4034 = vmatpush1.bf16.msra.mxu0 %v1861
        %4035 = vmatprep.subr.bf16.mxu0 %v1866
        %4036 = vmatpush1.bf16.msra.mxu0 %v1865
        %4037 = vmatprep.subr.bf16.mxu0 %v1870
        %4038 = vmatpush1.bf16.msra.mxu0 %v1869
        %4039 = vmatprep.subr.bf16.mxu0 %v1874
        %4040 = vmatpush1.bf16.msra.mxu0 %v1873
        %4041 = vmatprep.subr.bf16.mxu0 %v1878
        %4042 = vmatpush1.bf16.msra.mxu0 %v1877
        %4043 = vmatprep.subr.bf16.mxu0 %v1882
        %4044 = vmatpush1.bf16.msra.mxu0 %v1881
        %4045 = vmatprep.subr.bf16.mxu0 %v1886
        %4046 = vmatpush1.bf16.msra.mxu0 %v1885
        %4047 = vmatprep.subr.bf16.mxu0 %v1890
        %4048 = vmatpush1.bf16.msra.mxu0 %v1889
        %4049 = vmatprep.mubr.bf16.mxu0 %v736
        %4050 = vmatmul.mubr.bf16.gmra.mrb[0].mxu0 %v735
        %v4051 = vpop.f32.mrb[0].mxu0
        %v4052 = vadd.f32 %v3699, %v4051
        %v4053 = vpop.f32.mrb[0].mxu0
        %v4054 = vadd.f32 %v3701, %v4053
        %v4055 = vpop.f32.mrb[0].mxu0
        %v4056 = vadd.f32 %v3703, %v4055
        %v4057 = vpop.f32.mrb[0].mxu0
        %v4058 = vadd.f32 %v3705, %v4057
        %4059 = vmatprep.mubr.bf16.mxu0 %v743
        %4060 = vmatmul.mubr.bf16.gmra.mrb[0].mxu0 %v742
        %v4061 = vpop.f32.mrb[0].mxu0
        %v4062 = vadd.f32 %v3709, %v4061
        %v4063 = vpop.f32.mrb[0].mxu0
        %v4064 = vadd.f32 %v3711, %v4063
        %v4065 = vpop.f32.mrb[0].mxu0
        %v4066 = vadd.f32 %v3713, %v4065
        %v4067 = vpop.f32.mrb[0].mxu0
        %v4068 = vadd.f32 %v3715, %v4067
        %4069 = vmatprep.mubr.bf16.mxu0 %v750
        %4070 = vmatmul.mubr.bf16.gmra.mrb[0].mxu0 %v749
        %v4071 = vpop.f32.mrb[0].mxu0
        %v4072 = vadd.f32 %v3719, %v4071
        %v4073 = vpop.f32.mrb[0].mxu0
        %v4074 = vadd.f32 %v3721, %v4073
        %v4075 = vpop.f32.mrb[0].mxu0
        %v4076 = vadd.f32 %v3723, %v4075
        %v4077 = vpop.f32.mrb[0].mxu0
        %v4078 = vadd.f32 %v3725, %v4077
        %4079 = vmatprep.mubr.bf16.mxu0 %v757
        %4080 = vmatmul.mubr.bf16.gmra.mrb[0].mxu0 %v756
        %v4081 = vpop.f32.mrb[0].mxu0
        %v4082 = vadd.f32 %v3729, %v4081
        %v4083 = vpop.f32.mrb[0].mxu0
        %v4084 = vadd.f32 %v3731, %v4083
        %v4085 = vpop.f32.mrb[0].mxu0
        %v4086 = vadd.f32 %v3733, %v4085
        %v4087 = vpop.f32.mrb[0].mxu0
        %v4088 = vadd.f32 %v3735, %v4087
        %4089 = vmatprep.mubr.bf16.mxu0 %v764
        %4090 = vmatmul.mubr.bf16.gmra.mrb[0].mxu0 %v763
        %v4091 = vpop.f32.mrb[0].mxu0
        %v4092 = vadd.f32 %v3739, %v4091
        %v4093 = vpop.f32.mrb[0].mxu0
        %v4094 = vadd.f32 %v3741, %v4093
        %v4095 = vpop.f32.mrb[0].mxu0
        %v4096 = vadd.f32 %v3743, %v4095
        %v4097 = vpop.f32.mrb[0].mxu0
        %v4098 = vadd.f32 %v3745, %v4097
        %4099 = vmatprep.mubr.bf16.mxu0 %v771
        %4100 = vmatmul.mubr.bf16.gmra.mrb[0].mxu0 %v770
        %v4101 = vpop.f32.mrb[0].mxu0
        %v4102 = vadd.f32 %v3749, %v4101
        %v4103 = vpop.f32.mrb[0].mxu0
        %v4104 = vadd.f32 %v3751, %v4103
        %v4105 = vpop.f32.mrb[0].mxu0
        %v4106 = vadd.f32 %v3753, %v4105
        %v4107 = vpop.f32.mrb[0].mxu0
        %v4108 = vadd.f32 %v3755, %v4107
        %4109 = vmatprep.mubr.bf16.mxu0 %v778
        %4110 = vmatmul.mubr.bf16.gmra.mrb[0].mxu0 %v777
        %v4111 = vpop.f32.mrb[0].mxu0
        %v4112 = vadd.f32 %v3759, %v4111
        %v4113 = vpop.f32.mrb[0].mxu0
        %v4114 = vadd.f32 %v3761, %v4113
        %v4115 = vpop.f32.mrb[0].mxu0
        %v4116 = vadd.f32 %v3763, %v4115
        %v4117 = vpop.f32.mrb[0].mxu0
        %v4118 = vadd.f32 %v3765, %v4117
        %4119 = vmatprep.mubr.bf16.mxu0 %v785
        %4120 = vmatmul.mubr.bf16.gmra.mrb[0].mxu0 %v784
        %v4121 = vpop.f32.mrb[0].mxu0
        %v4122 = vadd.f32 %v3769, %v4121
        %v4123 = vpop.f32.mrb[0].mxu0
        %v4124 = vadd.f32 %v3771, %v4123
        %v4125 = vpop.f32.mrb[0].mxu0
        %v4126 = vadd.f32 %v3773, %v4125
        %v4127 = vpop.f32.mrb[0].mxu0
        %v4128 = vadd.f32 %v3775, %v4127
        %4129 = vmatprep.mubr.bf16.mxu0 %v792
        %4130 = vmatmul.mubr.bf16.gmra.mrb[0].mxu0 %v791
        %v4131 = vpop.f32.mrb[0].mxu0
        %v4132 = vadd.f32 %v3779, %v4131
        %v4133 = vpop.f32.mrb[0].mxu0
        %v4134 = vadd.f32 %v3781, %v4133
        %v4135 = vpop.f32.mrb[0].mxu0
        %v4136 = vadd.f32 %v3783, %v4135
        %v4137 = vpop.f32.mrb[0].mxu0
        %v4138 = vadd.f32 %v3785, %v4137
        %4139 = vmatprep.mubr.bf16.mxu0 %v799
        %4140 = vmatmul.mubr.bf16.gmra.mrb[0].mxu0 %v798
        %v4141 = vpop.f32.mrb[0].mxu0
        %v4142 = vadd.f32 %v3789, %v4141
        %v4143 = vpop.f32.mrb[0].mxu0
        %v4144 = vadd.f32 %v3791, %v4143
        %v4145 = vpop.f32.mrb[0].mxu0
        %v4146 = vadd.f32 %v3793, %v4145
        %v4147 = vpop.f32.mrb[0].mxu0
        %v4148 = vadd.f32 %v3795, %v4147
        %4149 = vmatprep.mubr.bf16.mxu0 %v806
        %4150 = vmatmul.mubr.bf16.gmra.mrb[0].mxu0 %v805
        %v4151 = vpop.f32.mrb[0].mxu0
        %v4152 = vadd.f32 %v3799, %v4151
        %v4153 = vpop.f32.mrb[0].mxu0
        %v4154 = vadd.f32 %v3801, %v4153
        %v4155 = vpop.f32.mrb[0].mxu0
        %v4156 = vadd.f32 %v3803, %v4155
        %v4157 = vpop.f32.mrb[0].mxu0
        %v4158 = vadd.f32 %v3805, %v4157
        %4159 = vmatprep.mubr.bf16.mxu0 %v813
        %4160 = vmatmul.mubr.bf16.gmra.mrb[0].mxu0 %v812
        %v4161 = vpop.f32.mrb[0].mxu0
        %v4162 = vadd.f32 %v3809, %v4161
        %v4163 = vpop.f32.mrb[0].mxu0
        %v4164 = vadd.f32 %v3811, %v4163
        %v4165 = vpop.f32.mrb[0].mxu0
        %v4166 = vadd.f32 %v3813, %v4165
        %v4167 = vpop.f32.mrb[0].mxu0
        %v4168 = vadd.f32 %v3815, %v4167
        %4169 = vmatprep.mubr.bf16.mxu0 %v820
        %4170 = vmatmul.mubr.bf16.gmra.mrb[0].mxu0 %v819
        %v4171 = vpop.f32.mrb[0].mxu0
        %v4172 = vadd.f32 %v3819, %v4171
        %v4173 = vpop.f32.mrb[0].mxu0
        %v4174 = vadd.f32 %v3821, %v4173
        %v4175 = vpop.f32.mrb[0].mxu0
        %v4176 = vadd.f32 %v3823, %v4175
        %v4177 = vpop.f32.mrb[0].mxu0
        %v4178 = vadd.f32 %v3825, %v4177
        %4179 = vmatprep.mubr.bf16.mxu0 %v827
        %4180 = vmatmul.mubr.bf16.gmra.mrb[0].mxu0 %v826
        %v4181 = vpop.f32.mrb[0].mxu0
        %v4182 = vadd.f32 %v3829, %v4181
        %v4183 = vpop.f32.mrb[0].mxu0
        %v4184 = vadd.f32 %v3831, %v4183
        %v4185 = vpop.f32.mrb[0].mxu0
        %v4186 = vadd.f32 %v3833, %v4185
        %v4187 = vpop.f32.mrb[0].mxu0
        %v4188 = vadd.f32 %v3835, %v4187
        %4189 = vmatprep.mubr.bf16.mxu0 %v834
        %4190 = vmatmul.mubr.bf16.gmra.mrb[0].mxu0 %v833
        %v4191 = vpop.f32.mrb[0].mxu0
        %v4192 = vadd.f32 %v3839, %v4191
        %v4193 = vpop.f32.mrb[0].mxu0
        %v4194 = vadd.f32 %v3841, %v4193
        %v4195 = vpop.f32.mrb[0].mxu0
        %v4196 = vadd.f32 %v3843, %v4195
        %v4197 = vpop.f32.mrb[0].mxu0
        %v4198 = vadd.f32 %v3845, %v4197
        %4199 = vmatprep.mubr.bf16.mxu0 %v841
        %4200 = vmatmul.mubr.bf16.gmra.mrb[0].mxu0 %v840
        %v4201 = vpop.f32.mrb[0].mxu0
        %v4202 = vadd.f32 %v3849, %v4201
        %v4203 = vpop.f32.mrb[0].mxu0
        %v4204 = vadd.f32 %v3851, %v4203
        %v4205 = vpop.f32.mrb[0].mxu0
        %v4206 = vadd.f32 %v3853, %v4205
        %v4207 = vpop.f32.mrb[0].mxu0
        %v4208 = vadd.f32 %v3855, %v4207
        %4209 = vmatprep.mubr.bf16.mxu0 %v848
        %4210 = vmatmul.mubr.bf16.gmra.mrb[0].mxu0 %v847
        %v4211 = vpop.f32.mrb[0].mxu0
        %v4212 = vadd.f32 %v3859, %v4211
        %v4213 = vpop.f32.mrb[0].mxu0
        %v4214 = vadd.f32 %v3861, %v4213
        %v4215 = vpop.f32.mrb[0].mxu0
        %v4216 = vadd.f32 %v3863, %v4215
        %v4217 = vpop.f32.mrb[0].mxu0
        %v4218 = vadd.f32 %v3865, %v4217
        %4219 = vmatprep.mubr.bf16.mxu0 %v855
        %4220 = vmatmul.mubr.bf16.gmra.mrb[0].mxu0 %v854
        %v4221 = vpop.f32.mrb[0].mxu0
        %v4222 = vadd.f32 %v3869, %v4221
        %v4223 = vpop.f32.mrb[0].mxu0
        %v4224 = vadd.f32 %v3871, %v4223
        %v4225 = vpop.f32.mrb[0].mxu0
        %v4226 = vadd.f32 %v3873, %v4225
        %v4227 = vpop.f32.mrb[0].mxu0
        %v4228 = vadd.f32 %v3875, %v4227
        %4229 = vmatprep.mubr.bf16.mxu0 %v862
        %4230 = vmatmul.mubr.bf16.gmra.mrb[0].mxu0 %v861
        %v4231 = vpop.f32.mrb[0].mxu0
        %v4232 = vadd.f32 %v3879, %v4231
        %v4233 = vpop.f32.mrb[0].mxu0
        %v4234 = vadd.f32 %v3881, %v4233
        %v4235 = vpop.f32.mrb[0].mxu0
        %v4236 = vadd.f32 %v3883, %v4235
        %v4237 = vpop.f32.mrb[0].mxu0
        %v4238 = vadd.f32 %v3885, %v4237
        %4239 = vmatprep.mubr.bf16.mxu0 %v869
        %4240 = vmatmul.mubr.bf16.gmra.mrb[0].mxu0 %v868
        %v4241 = vpop.f32.mrb[0].mxu0
        %v4242 = vadd.f32 %v3889, %v4241
        %v4243 = vpop.f32.mrb[0].mxu0
        %v4244 = vadd.f32 %v3891, %v4243
        %v4245 = vpop.f32.mrb[0].mxu0
        %v4246 = vadd.f32 %v3893, %v4245
        %v4247 = vpop.f32.mrb[0].mxu0
        %v4248 = vadd.f32 %v3895, %v4247
        %4249 = vmatprep.mubr.bf16.mxu0 %v876
        %4250 = vmatmul.mubr.bf16.gmra.mrb[0].mxu0 %v875
        %v4251 = vpop.f32.mrb[0].mxu0
        %v4252 = vadd.f32 %v3899, %v4251
        %v4253 = vpop.f32.mrb[0].mxu0
        %v4254 = vadd.f32 %v3901, %v4253
        %v4255 = vpop.f32.mrb[0].mxu0
        %v4256 = vadd.f32 %v3903, %v4255
        %v4257 = vpop.f32.mrb[0].mxu0
        %v4258 = vadd.f32 %v3905, %v4257
        %4259 = vmatprep.mubr.bf16.mxu0 %v883
        %4260 = vmatmul.mubr.bf16.gmra.mrb[0].mxu0 %v882
        %v4261 = vpop.f32.mrb[0].mxu0
        %v4262 = vadd.f32 %v3909, %v4261
        %v4263 = vpop.f32.mrb[0].mxu0
        %v4264 = vadd.f32 %v3911, %v4263
        %v4265 = vpop.f32.mrb[0].mxu0
        %v4266 = vadd.f32 %v3913, %v4265
        %v4267 = vpop.f32.mrb[0].mxu0
        %v4268 = vadd.f32 %v3915, %v4267
        %4269 = vmatprep.mubr.bf16.mxu0 %v890
        %4270 = vmatmul.mubr.bf16.gmra.mrb[0].mxu0 %v889
        %v4271 = vpop.f32.mrb[0].mxu0
        %v4272 = vadd.f32 %v3919, %v4271
        %v4273 = vpop.f32.mrb[0].mxu0
        %v4274 = vadd.f32 %v3921, %v4273
        %v4275 = vpop.f32.mrb[0].mxu0
        %v4276 = vadd.f32 %v3923, %v4275
        %v4277 = vpop.f32.mrb[0].mxu0
        %v4278 = vadd.f32 %v3925, %v4277
        %4279 = vmatprep.mubr.bf16.mxu0 %v897
        %4280 = vmatmul.mubr.bf16.gmra.mrb[0].mxu0 %v896
        %v4281 = vpop.f32.mrb[0].mxu0
        %v4282 = vadd.f32 %v3929, %v4281
        %v4283 = vpop.f32.mrb[0].mxu0
        %v4284 = vadd.f32 %v3931, %v4283
        %v4285 = vpop.f32.mrb[0].mxu0
        %v4286 = vadd.f32 %v3933, %v4285
        %v4287 = vpop.f32.mrb[0].mxu0
        %v4288 = vadd.f32 %v3935, %v4287
        %4289 = vmatprep.mubr.bf16.mxu0 %v904
        %4290 = vmatmul.mubr.bf16.gmra.mrb[0].mxu0 %v903
        %v4291 = vpop.f32.mrb[0].mxu0
        %v4292 = vadd.f32 %v3939, %v4291
        %v4293 = vpop.f32.mrb[0].mxu0
        %v4294 = vadd.f32 %v3941, %v4293
        %v4295 = vpop.f32.mrb[0].mxu0
        %v4296 = vadd.f32 %v3943, %v4295
        %v4297 = vpop.f32.mrb[0].mxu0
        %v4298 = vadd.f32 %v3945, %v4297
        %4299 = vmatprep.mubr.bf16.mxu0 %v911
        %4300 = vmatmul.mubr.bf16.gmra.mrb[0].mxu0 %v910
        %v4301 = vpop.f32.mrb[0].mxu0
        %v4302 = vadd.f32 %v3949, %v4301
        %v4303 = vpop.f32.mrb[0].mxu0
        %v4304 = vadd.f32 %v3951, %v4303
        %v4305 = vpop.f32.mrb[0].mxu0
        %v4306 = vadd.f32 %v3953, %v4305
        %v4307 = vpop.f32.mrb[0].mxu0
        %v4308 = vadd.f32 %v3955, %v4307
        %4309 = vmatprep.mubr.bf16.mxu0 %v918
        %4310 = vmatmul.mubr.bf16.gmra.mrb[0].mxu0 %v917
        %v4311 = vpop.f32.mrb[0].mxu0
        %v4312 = vadd.f32 %v3959, %v4311
        %v4313 = vpop.f32.mrb[0].mxu0
        %v4314 = vadd.f32 %v3961, %v4313
        %v4315 = vpop.f32.mrb[0].mxu0
        %v4316 = vadd.f32 %v3963, %v4315
        %v4317 = vpop.f32.mrb[0].mxu0
        %v4318 = vadd.f32 %v3965, %v4317
        %4319 = vmatprep.mubr.bf16.mxu0 %v925
        %4320 = vmatmul.mubr.bf16.gmra.mrb[0].mxu0 %v924
        %v4321 = vpop.f32.mrb[0].mxu0
        %v4322 = vadd.f32 %v3969, %v4321
        %v4323 = vpop.f32.mrb[0].mxu0
        %v4324 = vadd.f32 %v3971, %v4323
        %v4325 = vpop.f32.mrb[0].mxu0
        %v4326 = vadd.f32 %v3973, %v4325
        %v4327 = vpop.f32.mrb[0].mxu0
        %v4328 = vadd.f32 %v3975, %v4327
        %4329 = vmatprep.mubr.bf16.mxu0 %v932
        %4330 = vmatmul.mubr.bf16.gmra.mrb[0].mxu0 %v931
        %v4331 = vpop.f32.mrb[0].mxu0
        %v4332 = vadd.f32 %v3979, %v4331
        %v4333 = vpop.f32.mrb[0].mxu0
        %v4334 = vadd.f32 %v3981, %v4333
        %v4335 = vpop.f32.mrb[0].mxu0
        %v4336 = vadd.f32 %v3983, %v4335
        %v4337 = vpop.f32.mrb[0].mxu0
        %v4338 = vadd.f32 %v3985, %v4337
        %4339 = vmatprep.mubr.bf16.mxu0 %v939
        %4340 = vmatmul.mubr.bf16.gmra.mrb[0].mxu0 %v938
        %v4341 = vpop.f32.mrb[0].mxu0
        %v4342 = vadd.f32 %v3989, %v4341
        %v4343 = vpop.f32.mrb[0].mxu0
        %v4344 = vadd.f32 %v3991, %v4343
        %v4345 = vpop.f32.mrb[0].mxu0
        %v4346 = vadd.f32 %v3993, %v4345
        %v4347 = vpop.f32.mrb[0].mxu0
        %v4348 = vadd.f32 %v3995, %v4347
        %4349 = vmatprep.mubr.bf16.mxu0 %v946
        %4350 = vmatmul.mubr.bf16.gmra.mrb[0].mxu0 %v945
        %v4351 = vpop.f32.mrb[0].mxu0
        %v4352 = vadd.f32 %v3999, %v4351
        %v4353 = vpop.f32.mrb[0].mxu0
        %v4354 = vadd.f32 %v4001, %v4353
        %v4355 = vpop.f32.mrb[0].mxu0
        %v4356 = vadd.f32 %v4003, %v4355
        %v4357 = vpop.f32.mrb[0].mxu0
        %v4358 = vadd.f32 %v4005, %v4357
        %4359 = vmatprep.mubr.bf16.mxu0 %v953
        %4360 = vmatmul.mubr.bf16.gmra.mrb[0].mxu0 %v952
        %v4361 = vpop.f32.mrb[0].mxu0
        %v4362 = vadd.f32 %v4009, %v4361
        %v4363 = vpop.f32.mrb[0].mxu0
        %v4364 = vadd.f32 %v4011, %v4363
        %v4365 = vpop.f32.mrb[0].mxu0
        %v4366 = vadd.f32 %v4013, %v4365
        %v4367 = vpop.f32.mrb[0].mxu0
        %v4368 = vadd.f32 %v4015, %v4367
        %4369 = vdwg.mxu0
        %4370 = vmatprep.subr.bf16.mxu0 %v1894
        %4371 = vmatpush1.bf16.msra.mxu0 %v1893
        %4372 = vmatprep.subr.bf16.mxu0 %v1898
        %4373 = vmatpush1.bf16.msra.mxu0 %v1897
        %4374 = vmatprep.subr.bf16.mxu0 %v1902
        %4375 = vmatpush1.bf16.msra.mxu0 %v1901
        %4376 = vmatprep.subr.bf16.mxu0 %v1906
        %4377 = vmatpush1.bf16.msra.mxu0 %v1905
        %4378 = vmatprep.subr.bf16.mxu0 %v1910
        %4379 = vmatpush1.bf16.msra.mxu0 %v1909
        %4380 = vmatprep.subr.bf16.mxu0 %v1914
        %4381 = vmatpush1.bf16.msra.mxu0 %v1913
        %4382 = vmatprep.subr.bf16.mxu0 %v1918
        %4383 = vmatpush1.bf16.msra.mxu0 %v1917
        %4384 = vmatprep.subr.bf16.mxu0 %v1922
        %4385 = vmatpush1.bf16.msra.mxu0 %v1921
        %4386 = vmatprep.subr.bf16.mxu0 %v1926
        %4387 = vmatpush1.bf16.msra.mxu0 %v1925
        %4388 = vmatprep.subr.bf16.mxu0 %v1930
        %4389 = vmatpush1.bf16.msra.mxu0 %v1929
        %4390 = vmatprep.subr.bf16.mxu0 %v1934
        %4391 = vmatpush1.bf16.msra.mxu0 %v1933
        %4392 = vmatprep.subr.bf16.mxu0 %v1938
        %4393 = vmatpush1.bf16.msra.mxu0 %v1937
        %4394 = vmatprep.subr.bf16.mxu0 %v1942
        %4395 = vmatpush1.bf16.msra.mxu0 %v1941
        %4396 = vmatprep.subr.bf16.mxu0 %v1946
        %4397 = vmatpush1.bf16.msra.mxu0 %v1945
        %4398 = vmatprep.subr.bf16.mxu0 %v1950
        %4399 = vmatpush1.bf16.msra.mxu0 %v1949
        %4400 = vmatprep.subr.bf16.mxu0 %v1954
        %4401 = vmatpush1.bf16.msra.mxu0 %v1953
        %4402 = vmatprep.mubr.bf16.mxu0 %v738
        %4403 = vmatmul.mubr.bf16.gmra.mrb[0].mxu0 %v737
        %v4404 = vpop.f32.mrb[0].mxu0
        %v4405 = vadd.f32 %v4052, %v4404
        %v4406 = vpop.f32.mrb[0].mxu0
        %v4407 = vadd.f32 %v4054, %v4406
        %v4408 = vpop.f32.mrb[0].mxu0
        %v4409 = vadd.f32 %v4056, %v4408
        %v4410 = vpop.f32.mrb[0].mxu0
        %v4411 = vadd.f32 %v4058, %v4410
        %4412 = vmatprep.mubr.bf16.mxu0 %v745
        %4413 = vmatmul.mubr.bf16.gmra.mrb[0].mxu0 %v744
        %v4414 = vpop.f32.mrb[0].mxu0
        %v4415 = vadd.f32 %v4062, %v4414
        %v4416 = vpop.f32.mrb[0].mxu0
        %v4417 = vadd.f32 %v4064, %v4416
        %v4418 = vpop.f32.mrb[0].mxu0
        %v4419 = vadd.f32 %v4066, %v4418
        %v4420 = vpop.f32.mrb[0].mxu0
        %v4421 = vadd.f32 %v4068, %v4420
        %4422 = vmatprep.mubr.bf16.mxu0 %v752
        %4423 = vmatmul.mubr.bf16.gmra.mrb[0].mxu0 %v751
        %v4424 = vpop.f32.mrb[0].mxu0
        %v4425 = vadd.f32 %v4072, %v4424
        %v4426 = vpop.f32.mrb[0].mxu0
        %v4427 = vadd.f32 %v4074, %v4426
        %v4428 = vpop.f32.mrb[0].mxu0
        %v4429 = vadd.f32 %v4076, %v4428
        %v4430 = vpop.f32.mrb[0].mxu0
        %v4431 = vadd.f32 %v4078, %v4430
        %4432 = vmatprep.mubr.bf16.mxu0 %v759
        %4433 = vmatmul.mubr.bf16.gmra.mrb[0].mxu0 %v758
        %v4434 = vpop.f32.mrb[0].mxu0
        %v4435 = vadd.f32 %v4082, %v4434
        %v4436 = vpop.f32.mrb[0].mxu0
        %v4437 = vadd.f32 %v4084, %v4436
        %v4438 = vpop.f32.mrb[0].mxu0
        %v4439 = vadd.f32 %v4086, %v4438
        %v4440 = vpop.f32.mrb[0].mxu0
        %v4441 = vadd.f32 %v4088, %v4440
        %4442 = vmatprep.mubr.bf16.mxu0 %v766
        %4443 = vmatmul.mubr.bf16.gmra.mrb[0].mxu0 %v765
        %v4444 = vpop.f32.mrb[0].mxu0
        %v4445 = vadd.f32 %v4092, %v4444
        %v4446 = vpop.f32.mrb[0].mxu0
        %v4447 = vadd.f32 %v4094, %v4446
        %v4448 = vpop.f32.mrb[0].mxu0
        %v4449 = vadd.f32 %v4096, %v4448
        %v4450 = vpop.f32.mrb[0].mxu0
        %v4451 = vadd.f32 %v4098, %v4450
        %4452 = vmatprep.mubr.bf16.mxu0 %v773
        %4453 = vmatmul.mubr.bf16.gmra.mrb[0].mxu0 %v772
        %v4454 = vpop.f32.mrb[0].mxu0
        %v4455 = vadd.f32 %v4102, %v4454
        %v4456 = vpop.f32.mrb[0].mxu0
        %v4457 = vadd.f32 %v4104, %v4456
        %v4458 = vpop.f32.mrb[0].mxu0
        %v4459 = vadd.f32 %v4106, %v4458
        %v4460 = vpop.f32.mrb[0].mxu0
        %v4461 = vadd.f32 %v4108, %v4460
        %4462 = vmatprep.mubr.bf16.mxu0 %v780
        %4463 = vmatmul.mubr.bf16.gmra.mrb[0].mxu0 %v779
        %v4464 = vpop.f32.mrb[0].mxu0
        %v4465 = vadd.f32 %v4112, %v4464
        %v4466 = vpop.f32.mrb[0].mxu0
        %v4467 = vadd.f32 %v4114, %v4466
        %v4468 = vpop.f32.mrb[0].mxu0
        %v4469 = vadd.f32 %v4116, %v4468
        %v4470 = vpop.f32.mrb[0].mxu0
        %v4471 = vadd.f32 %v4118, %v4470
        %4472 = vmatprep.mubr.bf16.mxu0 %v787
        %4473 = vmatmul.mubr.bf16.gmra.mrb[0].mxu0 %v786
        %v4474 = vpop.f32.mrb[0].mxu0
        %v4475 = vadd.f32 %v4122, %v4474
        %v4476 = vpop.f32.mrb[0].mxu0
        %v4477 = vadd.f32 %v4124, %v4476
        %v4478 = vpop.f32.mrb[0].mxu0
        %v4479 = vadd.f32 %v4126, %v4478
        %v4480 = vpop.f32.mrb[0].mxu0
        %v4481 = vadd.f32 %v4128, %v4480
        %4482 = vmatprep.mubr.bf16.mxu0 %v794
        %4483 = vmatmul.mubr.bf16.gmra.mrb[0].mxu0 %v793
        %v4484 = vpop.f32.mrb[0].mxu0
        %v4485 = vadd.f32 %v4132, %v4484
        %v4486 = vpop.f32.mrb[0].mxu0
        %v4487 = vadd.f32 %v4134, %v4486
        %v4488 = vpop.f32.mrb[0].mxu0
        %v4489 = vadd.f32 %v4136, %v4488
        %v4490 = vpop.f32.mrb[0].mxu0
        %v4491 = vadd.f32 %v4138, %v4490
        %4492 = vmatprep.mubr.bf16.mxu0 %v801
        %4493 = vmatmul.mubr.bf16.gmra.mrb[0].mxu0 %v800
        %v4494 = vpop.f32.mrb[0].mxu0
        %v4495 = vadd.f32 %v4142, %v4494
        %v4496 = vpop.f32.mrb[0].mxu0
        %v4497 = vadd.f32 %v4144, %v4496
        %v4498 = vpop.f32.mrb[0].mxu0
        %v4499 = vadd.f32 %v4146, %v4498
        %v4500 = vpop.f32.mrb[0].mxu0
        %v4501 = vadd.f32 %v4148, %v4500
        %4502 = vmatprep.mubr.bf16.mxu0 %v808
        %4503 = vmatmul.mubr.bf16.gmra.mrb[0].mxu0 %v807
        %v4504 = vpop.f32.mrb[0].mxu0
        %v4505 = vadd.f32 %v4152, %v4504
        %v4506 = vpop.f32.mrb[0].mxu0
        %v4507 = vadd.f32 %v4154, %v4506
        %v4508 = vpop.f32.mrb[0].mxu0
        %v4509 = vadd.f32 %v4156, %v4508
        %v4510 = vpop.f32.mrb[0].mxu0
        %v4511 = vadd.f32 %v4158, %v4510
        %4512 = vmatprep.mubr.bf16.mxu0 %v815
        %4513 = vmatmul.mubr.bf16.gmra.mrb[0].mxu0 %v814
        %v4514 = vpop.f32.mrb[0].mxu0
        %v4515 = vadd.f32 %v4162, %v4514
        %v4516 = vpop.f32.mrb[0].mxu0
        %v4517 = vadd.f32 %v4164, %v4516
        %v4518 = vpop.f32.mrb[0].mxu0
        %v4519 = vadd.f32 %v4166, %v4518
        %v4520 = vpop.f32.mrb[0].mxu0
        %v4521 = vadd.f32 %v4168, %v4520
        %4522 = vmatprep.mubr.bf16.mxu0 %v822
        %4523 = vmatmul.mubr.bf16.gmra.mrb[0].mxu0 %v821
        %v4524 = vpop.f32.mrb[0].mxu0
        %v4525 = vadd.f32 %v4172, %v4524
        %v4526 = vpop.f32.mrb[0].mxu0
        %v4527 = vadd.f32 %v4174, %v4526
        %v4528 = vpop.f32.mrb[0].mxu0
        %v4529 = vadd.f32 %v4176, %v4528
        %v4530 = vpop.f32.mrb[0].mxu0
        %v4531 = vadd.f32 %v4178, %v4530
        %4532 = vmatprep.mubr.bf16.mxu0 %v829
        %4533 = vmatmul.mubr.bf16.gmra.mrb[0].mxu0 %v828
        %v4534 = vpop.f32.mrb[0].mxu0
        %v4535 = vadd.f32 %v4182, %v4534
        %v4536 = vpop.f32.mrb[0].mxu0
        %v4537 = vadd.f32 %v4184, %v4536
        %v4538 = vpop.f32.mrb[0].mxu0
        %v4539 = vadd.f32 %v4186, %v4538
        %v4540 = vpop.f32.mrb[0].mxu0
        %v4541 = vadd.f32 %v4188, %v4540
        %4542 = vmatprep.mubr.bf16.mxu0 %v836
        %4543 = vmatmul.mubr.bf16.gmra.mrb[0].mxu0 %v835
        %v4544 = vpop.f32.mrb[0].mxu0
        %v4545 = vadd.f32 %v4192, %v4544
        %v4546 = vpop.f32.mrb[0].mxu0
        %v4547 = vadd.f32 %v4194, %v4546
        %v4548 = vpop.f32.mrb[0].mxu0
        %v4549 = vadd.f32 %v4196, %v4548
        %v4550 = vpop.f32.mrb[0].mxu0
        %v4551 = vadd.f32 %v4198, %v4550
        %4552 = vmatprep.mubr.bf16.mxu0 %v843
        %4553 = vmatmul.mubr.bf16.gmra.mrb[0].mxu0 %v842
        %v4554 = vpop.f32.mrb[0].mxu0
        %v4555 = vadd.f32 %v4202, %v4554
        %v4556 = vpop.f32.mrb[0].mxu0
        %v4557 = vadd.f32 %v4204, %v4556
        %v4558 = vpop.f32.mrb[0].mxu0
        %v4559 = vadd.f32 %v4206, %v4558
        %v4560 = vpop.f32.mrb[0].mxu0
        %v4561 = vadd.f32 %v4208, %v4560
        %4562 = vmatprep.mubr.bf16.mxu0 %v850
        %4563 = vmatmul.mubr.bf16.gmra.mrb[0].mxu0 %v849
        %v4564 = vpop.f32.mrb[0].mxu0
        %v4565 = vadd.f32 %v4212, %v4564
        %v4566 = vpop.f32.mrb[0].mxu0
        %v4567 = vadd.f32 %v4214, %v4566
        %v4568 = vpop.f32.mrb[0].mxu0
        %v4569 = vadd.f32 %v4216, %v4568
        %v4570 = vpop.f32.mrb[0].mxu0
        %v4571 = vadd.f32 %v4218, %v4570
        %4572 = vmatprep.mubr.bf16.mxu0 %v857
        %4573 = vmatmul.mubr.bf16.gmra.mrb[0].mxu0 %v856
        %v4574 = vpop.f32.mrb[0].mxu0
        %v4575 = vadd.f32 %v4222, %v4574
        %v4576 = vpop.f32.mrb[0].mxu0
        %v4577 = vadd.f32 %v4224, %v4576
        %v4578 = vpop.f32.mrb[0].mxu0
        %v4579 = vadd.f32 %v4226, %v4578
        %v4580 = vpop.f32.mrb[0].mxu0
        %v4581 = vadd.f32 %v4228, %v4580
        %4582 = vmatprep.mubr.bf16.mxu0 %v864
        %4583 = vmatmul.mubr.bf16.gmra.mrb[0].mxu0 %v863
        %v4584 = vpop.f32.mrb[0].mxu0
        %v4585 = vadd.f32 %v4232, %v4584
        %v4586 = vpop.f32.mrb[0].mxu0
        %v4587 = vadd.f32 %v4234, %v4586
        %v4588 = vpop.f32.mrb[0].mxu0
        %v4589 = vadd.f32 %v4236, %v4588
        %v4590 = vpop.f32.mrb[0].mxu0
        %v4591 = vadd.f32 %v4238, %v4590
        %4592 = vmatprep.mubr.bf16.mxu0 %v871
        %4593 = vmatmul.mubr.bf16.gmra.mrb[0].mxu0 %v870
        %v4594 = vpop.f32.mrb[0].mxu0
        %v4595 = vadd.f32 %v4242, %v4594
        %v4596 = vpop.f32.mrb[0].mxu0
        %v4597 = vadd.f32 %v4244, %v4596
        %v4598 = vpop.f32.mrb[0].mxu0
        %v4599 = vadd.f32 %v4246, %v4598
        %v4600 = vpop.f32.mrb[0].mxu0
        %v4601 = vadd.f32 %v4248, %v4600
        %4602 = vmatprep.mubr.bf16.mxu0 %v878
        %4603 = vmatmul.mubr.bf16.gmra.mrb[0].mxu0 %v877
        %v4604 = vpop.f32.mrb[0].mxu0
        %v4605 = vadd.f32 %v4252, %v4604
        %v4606 = vpop.f32.mrb[0].mxu0
        %v4607 = vadd.f32 %v4254, %v4606
        %v4608 = vpop.f32.mrb[0].mxu0
        %v4609 = vadd.f32 %v4256, %v4608
        %v4610 = vpop.f32.mrb[0].mxu0
        %v4611 = vadd.f32 %v4258, %v4610
        %4612 = vmatprep.mubr.bf16.mxu0 %v885
        %4613 = vmatmul.mubr.bf16.gmra.mrb[0].mxu0 %v884
        %v4614 = vpop.f32.mrb[0].mxu0
        %v4615 = vadd.f32 %v4262, %v4614
        %v4616 = vpop.f32.mrb[0].mxu0
        %v4617 = vadd.f32 %v4264, %v4616
        %v4618 = vpop.f32.mrb[0].mxu0
        %v4619 = vadd.f32 %v4266, %v4618
        %v4620 = vpop.f32.mrb[0].mxu0
        %v4621 = vadd.f32 %v4268, %v4620
        %4622 = vmatprep.mubr.bf16.mxu0 %v892
        %4623 = vmatmul.mubr.bf16.gmra.mrb[0].mxu0 %v891
        %v4624 = vpop.f32.mrb[0].mxu0
        %v4625 = vadd.f32 %v4272, %v4624
        %v4626 = vpop.f32.mrb[0].mxu0
        %v4627 = vadd.f32 %v4274, %v4626
        %v4628 = vpop.f32.mrb[0].mxu0
        %v4629 = vadd.f32 %v4276, %v4628
        %v4630 = vpop.f32.mrb[0].mxu0
        %v4631 = vadd.f32 %v4278, %v4630
        %4632 = vmatprep.mubr.bf16.mxu0 %v899
        %4633 = vmatmul.mubr.bf16.gmra.mrb[0].mxu0 %v898
        %v4634 = vpop.f32.mrb[0].mxu0
        %v4635 = vadd.f32 %v4282, %v4634
        %v4636 = vpop.f32.mrb[0].mxu0
        %v4637 = vadd.f32 %v4284, %v4636
        %v4638 = vpop.f32.mrb[0].mxu0
        %v4639 = vadd.f32 %v4286, %v4638
        %v4640 = vpop.f32.mrb[0].mxu0
        %v4641 = vadd.f32 %v4288, %v4640
        %4642 = vmatprep.mubr.bf16.mxu0 %v906
        %4643 = vmatmul.mubr.bf16.gmra.mrb[0].mxu0 %v905
        %v4644 = vpop.f32.mrb[0].mxu0
        %v4645 = vadd.f32 %v4292, %v4644
        %v4646 = vpop.f32.mrb[0].mxu0
        %v4647 = vadd.f32 %v4294, %v4646
        %v4648 = vpop.f32.mrb[0].mxu0
        %v4649 = vadd.f32 %v4296, %v4648
        %v4650 = vpop.f32.mrb[0].mxu0
        %v4651 = vadd.f32 %v4298, %v4650
        %4652 = vmatprep.mubr.bf16.mxu0 %v913
        %4653 = vmatmul.mubr.bf16.gmra.mrb[0].mxu0 %v912
        %v4654 = vpop.f32.mrb[0].mxu0
        %v4655 = vadd.f32 %v4302, %v4654
        %v4656 = vpop.f32.mrb[0].mxu0
        %v4657 = vadd.f32 %v4304, %v4656
        %v4658 = vpop.f32.mrb[0].mxu0
        %v4659 = vadd.f32 %v4306, %v4658
        %v4660 = vpop.f32.mrb[0].mxu0
        %v4661 = vadd.f32 %v4308, %v4660
        %4662 = vmatprep.mubr.bf16.mxu0 %v920
        %4663 = vmatmul.mubr.bf16.gmra.mrb[0].mxu0 %v919
        %v4664 = vpop.f32.mrb[0].mxu0
        %v4665 = vadd.f32 %v4312, %v4664
        %v4666 = vpop.f32.mrb[0].mxu0
        %v4667 = vadd.f32 %v4314, %v4666
        %v4668 = vpop.f32.mrb[0].mxu0
        %v4669 = vadd.f32 %v4316, %v4668
        %v4670 = vpop.f32.mrb[0].mxu0
        %v4671 = vadd.f32 %v4318, %v4670
        %4672 = vmatprep.mubr.bf16.mxu0 %v927
        %4673 = vmatmul.mubr.bf16.gmra.mrb[0].mxu0 %v926
        %v4674 = vpop.f32.mrb[0].mxu0
        %v4675 = vadd.f32 %v4322, %v4674
        %v4676 = vpop.f32.mrb[0].mxu0
        %v4677 = vadd.f32 %v4324, %v4676
        %v4678 = vpop.f32.mrb[0].mxu0
        %v4679 = vadd.f32 %v4326, %v4678
        %v4680 = vpop.f32.mrb[0].mxu0
        %v4681 = vadd.f32 %v4328, %v4680
        %4682 = vmatprep.mubr.bf16.mxu0 %v934
        %4683 = vmatmul.mubr.bf16.gmra.mrb[0].mxu0 %v933
        %v4684 = vpop.f32.mrb[0].mxu0
        %v4685 = vadd.f32 %v4332, %v4684
        %v4686 = vpop.f32.mrb[0].mxu0
        %v4687 = vadd.f32 %v4334, %v4686
        %v4688 = vpop.f32.mrb[0].mxu0
        %v4689 = vadd.f32 %v4336, %v4688
        %v4690 = vpop.f32.mrb[0].mxu0
        %v4691 = vadd.f32 %v4338, %v4690
        %4692 = vmatprep.mubr.bf16.mxu0 %v941
        %4693 = vmatmul.mubr.bf16.gmra.mrb[0].mxu0 %v940
        %v4694 = vpop.f32.mrb[0].mxu0
        %v4695 = vadd.f32 %v4342, %v4694
        %v4696 = vpop.f32.mrb[0].mxu0
        %v4697 = vadd.f32 %v4344, %v4696
        %v4698 = vpop.f32.mrb[0].mxu0
        %v4699 = vadd.f32 %v4346, %v4698
        %v4700 = vpop.f32.mrb[0].mxu0
        %v4701 = vadd.f32 %v4348, %v4700
        %4702 = vmatprep.mubr.bf16.mxu0 %v948
        %4703 = vmatmul.mubr.bf16.gmra.mrb[0].mxu0 %v947
        %v4704 = vpop.f32.mrb[0].mxu0
        %v4705 = vadd.f32 %v4352, %v4704
        %v4706 = vpop.f32.mrb[0].mxu0
        %v4707 = vadd.f32 %v4354, %v4706
        %v4708 = vpop.f32.mrb[0].mxu0
        %v4709 = vadd.f32 %v4356, %v4708
        %v4710 = vpop.f32.mrb[0].mxu0
        %v4711 = vadd.f32 %v4358, %v4710
        %4712 = vmatprep.mubr.bf16.mxu0 %v955
        %4713 = vmatmul.mubr.bf16.gmra.mrb[0].mxu0 %v954
        %v4714 = vpop.f32.mrb[0].mxu0
        %v4715 = vadd.f32 %v4362, %v4714
        %v4716 = vpop.f32.mrb[0].mxu0
        %v4717 = vadd.f32 %v4364, %v4716
        %v4718 = vpop.f32.mrb[0].mxu0
        %v4719 = vadd.f32 %v4366, %v4718
        %v4720 = vpop.f32.mrb[0].mxu0
        %v4721 = vadd.f32 %v4368, %v4720
        %4722 = vdwg.mxu0
        %4723 = vmatprep.subr.bf16.mxu0 %v1958
        %4724 = vmatpush1.bf16.msra.mxu0 %v1957
        %4725 = vmatprep.subr.bf16.mxu0 0
        %4726 = vmatpush1.bf16.msra.mxu0 0
        %4727 = vmatprep.subr.bf16.mxu0 0
        %4728 = vmatpush1.bf16.msra.mxu0 0
        %4729 = vmatprep.subr.bf16.mxu0 0
        %4730 = vmatpush1.bf16.msra.mxu0 0
        %4731 = vmatprep.subr.bf16.mxu0 0
        %4732 = vmatpush1.bf16.msra.mxu0 0
        %4733 = vmatprep.subr.bf16.mxu0 0
        %4734 = vmatpush1.bf16.msra.mxu0 0
        %4735 = vmatprep.subr.bf16.mxu0 0
        %4736 = vmatpush1.bf16.msra.mxu0 0
        %4737 = vmatprep.subr.bf16.mxu0 0
        %4738 = vmatpush1.bf16.msra.mxu0 0
        %4739 = vmatprep.subr.bf16.mxu0 0
        %4740 = vmatpush1.bf16.msra.mxu0 0
        %4741 = vmatprep.subr.bf16.mxu0 0
        %4742 = vmatpush1.bf16.msra.mxu0 0
        %4743 = vmatprep.subr.bf16.mxu0 0
        %4744 = vmatpush1.bf16.msra.mxu0 0
        %4745 = vmatprep.subr.bf16.mxu0 0
        %4746 = vmatpush1.bf16.msra.mxu0 0
        %4747 = vmatprep.subr.bf16.mxu0 0
        %4748 = vmatpush1.bf16.msra.mxu0 0
        %4749 = vmatprep.subr.bf16.mxu0 0
        %4750 = vmatpush1.bf16.msra.mxu0 0
        %4751 = vmatprep.subr.bf16.mxu0 0
        %4752 = vmatpush1.bf16.msra.mxu0 0
        %4753 = vmatprep.subr.bf16.mxu0 0
        %4754 = vmatpush1.bf16.msra.mxu0 0
        %4755 = vmatprep.mubr.bf16.mxu0 0
        %4756 = vmatmul.mubr.bf16.gmra.mrb[0].mxu0 %v2157
        %v4757 = vpop.f32.mrb[0].mxu0
        %v4758 = vadd.f32 %v4405, %v4757
        %v4759 = vpop.f32.mrb[0].mxu0
        %v4760 = vadd.f32 %v4407, %v4759
        %v4761 = vpop.f32.mrb[0].mxu0
        %v4762 = vadd.f32 %v4409, %v4761
        %v4763 = vpop.f32.mrb[0].mxu0
        %v4764 = vadd.f32 %v4411, %v4763
        %4765 = vmatprep.mubr.bf16.mxu0 0
        %4766 = vmatmul.mubr.bf16.gmra.mrb[0].mxu0 %v2160
        %v4767 = vpop.f32.mrb[0].mxu0
        %v4768 = vadd.f32 %v4415, %v4767
        %v4769 = vpop.f32.mrb[0].mxu0
        %v4770 = vadd.f32 %v4417, %v4769
        %v4771 = vpop.f32.mrb[0].mxu0
        %v4772 = vadd.f32 %v4419, %v4771
        %v4773 = vpop.f32.mrb[0].mxu0
        %v4774 = vadd.f32 %v4421, %v4773
        %4775 = vmatprep.mubr.bf16.mxu0 0
        %4776 = vmatmul.mubr.bf16.gmra.mrb[0].mxu0 %v2163
        %v4777 = vpop.f32.mrb[0].mxu0
        %v4778 = vadd.f32 %v4425, %v4777
        %v4779 = vpop.f32.mrb[0].mxu0
        %v4780 = vadd.f32 %v4427, %v4779
        %v4781 = vpop.f32.mrb[0].mxu0
        %v4782 = vadd.f32 %v4429, %v4781
        %v4783 = vpop.f32.mrb[0].mxu0
        %v4784 = vadd.f32 %v4431, %v4783
        %4785 = vmatprep.mubr.bf16.mxu0 0
        %4786 = vmatmul.mubr.bf16.gmra.mrb[0].mxu0 %v2166
        %v4787 = vpop.f32.mrb[0].mxu0
        %v4788 = vadd.f32 %v4435, %v4787
        %v4789 = vpop.f32.mrb[0].mxu0
        %v4790 = vadd.f32 %v4437, %v4789
        %v4791 = vpop.f32.mrb[0].mxu0
        %v4792 = vadd.f32 %v4439, %v4791
        %v4793 = vpop.f32.mrb[0].mxu0
        %v4794 = vadd.f32 %v4441, %v4793
        %4795 = vmatprep.mubr.bf16.mxu0 0
        %4796 = vmatmul.mubr.bf16.gmra.mrb[0].mxu0 %v2169
        %v4797 = vpop.f32.mrb[0].mxu0
        %v4798 = vadd.f32 %v4445, %v4797
        %v4799 = vpop.f32.mrb[0].mxu0
        %v4800 = vadd.f32 %v4447, %v4799
        %v4801 = vpop.f32.mrb[0].mxu0
        %v4802 = vadd.f32 %v4449, %v4801
        %v4803 = vpop.f32.mrb[0].mxu0
        %v4804 = vadd.f32 %v4451, %v4803
        %4805 = vmatprep.mubr.bf16.mxu0 0
        %4806 = vmatmul.mubr.bf16.gmra.mrb[0].mxu0 %v2172
        %v4807 = vpop.f32.mrb[0].mxu0
        %v4808 = vadd.f32 %v4455, %v4807
        %v4809 = vpop.f32.mrb[0].mxu0
        %v4810 = vadd.f32 %v4457, %v4809
        %v4811 = vpop.f32.mrb[0].mxu0
        %v4812 = vadd.f32 %v4459, %v4811
        %v4813 = vpop.f32.mrb[0].mxu0
        %v4814 = vadd.f32 %v4461, %v4813
        %4815 = vmatprep.mubr.bf16.mxu0 0
        %4816 = vmatmul.mubr.bf16.gmra.mrb[0].mxu0 %v2175
        %v4817 = vpop.f32.mrb[0].mxu0
        %v4818 = vadd.f32 %v4465, %v4817
        %v4819 = vpop.f32.mrb[0].mxu0
        %v4820 = vadd.f32 %v4467, %v4819
        %v4821 = vpop.f32.mrb[0].mxu0
        %v4822 = vadd.f32 %v4469, %v4821
        %v4823 = vpop.f32.mrb[0].mxu0
        %v4824 = vadd.f32 %v4471, %v4823
        %4825 = vmatprep.mubr.bf16.mxu0 0
        %4826 = vmatmul.mubr.bf16.gmra.mrb[0].mxu0 %v2178
        %v4827 = vpop.f32.mrb[0].mxu0
        %v4828 = vadd.f32 %v4475, %v4827
        %v4829 = vpop.f32.mrb[0].mxu0
        %v4830 = vadd.f32 %v4477, %v4829
        %v4831 = vpop.f32.mrb[0].mxu0
        %v4832 = vadd.f32 %v4479, %v4831
        %v4833 = vpop.f32.mrb[0].mxu0
        %v4834 = vadd.f32 %v4481, %v4833
        %4835 = vmatprep.mubr.bf16.mxu0 0
        %4836 = vmatmul.mubr.bf16.gmra.mrb[0].mxu0 %v2181
        %v4837 = vpop.f32.mrb[0].mxu0
        %v4838 = vadd.f32 %v4485, %v4837
        %v4839 = vpop.f32.mrb[0].mxu0
        %v4840 = vadd.f32 %v4487, %v4839
        %v4841 = vpop.f32.mrb[0].mxu0
        %v4842 = vadd.f32 %v4489, %v4841
        %v4843 = vpop.f32.mrb[0].mxu0
        %v4844 = vadd.f32 %v4491, %v4843
        %4845 = vmatprep.mubr.bf16.mxu0 0
        %4846 = vmatmul.mubr.bf16.gmra.mrb[0].mxu0 %v2184
        %v4847 = vpop.f32.mrb[0].mxu0
        %v4848 = vadd.f32 %v4495, %v4847
        %v4849 = vpop.f32.mrb[0].mxu0
        %v4850 = vadd.f32 %v4497, %v4849
        %v4851 = vpop.f32.mrb[0].mxu0
        %v4852 = vadd.f32 %v4499, %v4851
        %v4853 = vpop.f32.mrb[0].mxu0
        %v4854 = vadd.f32 %v4501, %v4853
        %4855 = vmatprep.mubr.bf16.mxu0 0
        %4856 = vmatmul.mubr.bf16.gmra.mrb[0].mxu0 %v2187
        %v4857 = vpop.f32.mrb[0].mxu0
        %v4858 = vadd.f32 %v4505, %v4857
        %v4859 = vpop.f32.mrb[0].mxu0
        %v4860 = vadd.f32 %v4507, %v4859
        %v4861 = vpop.f32.mrb[0].mxu0
        %v4862 = vadd.f32 %v4509, %v4861
        %v4863 = vpop.f32.mrb[0].mxu0
        %v4864 = vadd.f32 %v4511, %v4863
        %4865 = vmatprep.mubr.bf16.mxu0 0
        %4866 = vmatmul.mubr.bf16.gmra.mrb[0].mxu0 %v2190
        %v4867 = vpop.f32.mrb[0].mxu0
        %v4868 = vadd.f32 %v4515, %v4867
        %v4869 = vpop.f32.mrb[0].mxu0
        %v4870 = vadd.f32 %v4517, %v4869
        %v4871 = vpop.f32.mrb[0].mxu0
        %v4872 = vadd.f32 %v4519, %v4871
        %v4873 = vpop.f32.mrb[0].mxu0
        %v4874 = vadd.f32 %v4521, %v4873
        %4875 = vmatprep.mubr.bf16.mxu0 0
        %4876 = vmatmul.mubr.bf16.gmra.mrb[0].mxu0 %v2193
        %v4877 = vpop.f32.mrb[0].mxu0
        %v4878 = vadd.f32 %v4525, %v4877
        %v4879 = vpop.f32.mrb[0].mxu0
        %v4880 = vadd.f32 %v4527, %v4879
        %v4881 = vpop.f32.mrb[0].mxu0
        %v4882 = vadd.f32 %v4529, %v4881
        %v4883 = vpop.f32.mrb[0].mxu0
        %v4884 = vadd.f32 %v4531, %v4883
        %4885 = vmatprep.mubr.bf16.mxu0 0
        %4886 = vmatmul.mubr.bf16.gmra.mrb[0].mxu0 %v2196
        %v4887 = vpop.f32.mrb[0].mxu0
        %v4888 = vadd.f32 %v4535, %v4887
        %v4889 = vpop.f32.mrb[0].mxu0
        %v4890 = vadd.f32 %v4537, %v4889
        %v4891 = vpop.f32.mrb[0].mxu0
        %v4892 = vadd.f32 %v4539, %v4891
        %v4893 = vpop.f32.mrb[0].mxu0
        %v4894 = vadd.f32 %v4541, %v4893
        %4895 = vmatprep.mubr.bf16.mxu0 0
        %4896 = vmatmul.mubr.bf16.gmra.mrb[0].mxu0 %v2199
        %v4897 = vpop.f32.mrb[0].mxu0
        %v4898 = vadd.f32 %v4545, %v4897
        %v4899 = vpop.f32.mrb[0].mxu0
        %v4900 = vadd.f32 %v4547, %v4899
        %v4901 = vpop.f32.mrb[0].mxu0
        %v4902 = vadd.f32 %v4549, %v4901
        %v4903 = vpop.f32.mrb[0].mxu0
        %v4904 = vadd.f32 %v4551, %v4903
        %4905 = vmatprep.mubr.bf16.mxu0 0
        %4906 = vmatmul.mubr.bf16.gmra.mrb[0].mxu0 %v2202
        %v4907 = vpop.f32.mrb[0].mxu0
        %v4908 = vadd.f32 %v4555, %v4907
        %v4909 = vpop.f32.mrb[0].mxu0
        %v4910 = vadd.f32 %v4557, %v4909
        %v4911 = vpop.f32.mrb[0].mxu0
        %v4912 = vadd.f32 %v4559, %v4911
        %v4913 = vpop.f32.mrb[0].mxu0
        %v4914 = vadd.f32 %v4561, %v4913
        %4915 = vmatprep.mubr.bf16.mxu0 0
        %4916 = vmatmul.mubr.bf16.gmra.mrb[0].mxu0 %v2205
        %v4917 = vpop.f32.mrb[0].mxu0
        %v4918 = vadd.f32 %v4565, %v4917
        %v4919 = vpop.f32.mrb[0].mxu0
        %v4920 = vadd.f32 %v4567, %v4919
        %v4921 = vpop.f32.mrb[0].mxu0
        %v4922 = vadd.f32 %v4569, %v4921
        %v4923 = vpop.f32.mrb[0].mxu0
        %v4924 = vadd.f32 %v4571, %v4923
        %4925 = vmatprep.mubr.bf16.mxu0 0
        %4926 = vmatmul.mubr.bf16.gmra.mrb[0].mxu0 %v2208
        %v4927 = vpop.f32.mrb[0].mxu0
        %v4928 = vadd.f32 %v4575, %v4927
        %v4929 = vpop.f32.mrb[0].mxu0
        %v4930 = vadd.f32 %v4577, %v4929
        %v4931 = vpop.f32.mrb[0].mxu0
        %v4932 = vadd.f32 %v4579, %v4931
        %v4933 = vpop.f32.mrb[0].mxu0
        %v4934 = vadd.f32 %v4581, %v4933
        %4935 = vmatprep.mubr.bf16.mxu0 0
        %4936 = vmatmul.mubr.bf16.gmra.mrb[0].mxu0 %v2211
        %v4937 = vpop.f32.mrb[0].mxu0
        %v4938 = vadd.f32 %v4585, %v4937
        %v4939 = vpop.f32.mrb[0].mxu0
        %v4940 = vadd.f32 %v4587, %v4939
        %v4941 = vpop.f32.mrb[0].mxu0
        %v4942 = vadd.f32 %v4589, %v4941
        %v4943 = vpop.f32.mrb[0].mxu0
        %v4944 = vadd.f32 %v4591, %v4943
        %4945 = vmatprep.mubr.bf16.mxu0 0
        %4946 = vmatmul.mubr.bf16.gmra.mrb[0].mxu0 %v2214
        %v4947 = vpop.f32.mrb[0].mxu0
        %v4948 = vadd.f32 %v4595, %v4947
        %v4949 = vpop.f32.mrb[0].mxu0
        %v4950 = vadd.f32 %v4597, %v4949
        %v4951 = vpop.f32.mrb[0].mxu0
        %v4952 = vadd.f32 %v4599, %v4951
        %v4953 = vpop.f32.mrb[0].mxu0
        %v4954 = vadd.f32 %v4601, %v4953
        %4955 = vmatprep.mubr.bf16.mxu0 0
        %4956 = vmatmul.mubr.bf16.gmra.mrb[0].mxu0 %v2217
        %v4957 = vpop.f32.mrb[0].mxu0
        %v4958 = vadd.f32 %v4605, %v4957
        %v4959 = vpop.f32.mrb[0].mxu0
        %v4960 = vadd.f32 %v4607, %v4959
        %v4961 = vpop.f32.mrb[0].mxu0
        %v4962 = vadd.f32 %v4609, %v4961
        %v4963 = vpop.f32.mrb[0].mxu0
        %v4964 = vadd.f32 %v4611, %v4963
        %4965 = vmatprep.mubr.bf16.mxu0 0
        %4966 = vmatmul.mubr.bf16.gmra.mrb[0].mxu0 %v2220
        %v4967 = vpop.f32.mrb[0].mxu0
        %v4968 = vadd.f32 %v4615, %v4967
        %v4969 = vpop.f32.mrb[0].mxu0
        %v4970 = vadd.f32 %v4617, %v4969
        %v4971 = vpop.f32.mrb[0].mxu0
        %v4972 = vadd.f32 %v4619, %v4971
        %v4973 = vpop.f32.mrb[0].mxu0
        %v4974 = vadd.f32 %v4621, %v4973
        %4975 = vmatprep.mubr.bf16.mxu0 0
        %4976 = vmatmul.mubr.bf16.gmra.mrb[0].mxu0 %v2223
        %v4977 = vpop.f32.mrb[0].mxu0
        %v4978 = vadd.f32 %v4625, %v4977
        %v4979 = vpop.f32.mrb[0].mxu0
        %v4980 = vadd.f32 %v4627, %v4979
        %v4981 = vpop.f32.mrb[0].mxu0
        %v4982 = vadd.f32 %v4629, %v4981
        %v4983 = vpop.f32.mrb[0].mxu0
        %v4984 = vadd.f32 %v4631, %v4983
        %4985 = vmatprep.mubr.bf16.mxu0 0
        %4986 = vmatmul.mubr.bf16.gmra.mrb[0].mxu0 %v2226
        %v4987 = vpop.f32.mrb[0].mxu0
        %v4988 = vadd.f32 %v4635, %v4987
        %v4989 = vpop.f32.mrb[0].mxu0
        %v4990 = vadd.f32 %v4637, %v4989
        %v4991 = vpop.f32.mrb[0].mxu0
        %v4992 = vadd.f32 %v4639, %v4991
        %v4993 = vpop.f32.mrb[0].mxu0
        %v4994 = vadd.f32 %v4641, %v4993
        %4995 = vmatprep.mubr.bf16.mxu0 0
        %4996 = vmatmul.mubr.bf16.gmra.mrb[0].mxu0 %v2229
        %v4997 = vpop.f32.mrb[0].mxu0
        %v4998 = vadd.f32 %v4645, %v4997
        %v4999 = vpop.f32.mrb[0].mxu0
        %v5000 = vadd.f32 %v4647, %v4999
        %v5001 = vpop.f32.mrb[0].mxu0
        %v5002 = vadd.f32 %v4649, %v5001
        %v5003 = vpop.f32.mrb[0].mxu0
        %v5004 = vadd.f32 %v4651, %v5003
        %5005 = vmatprep.mubr.bf16.mxu0 0
        %5006 = vmatmul.mubr.bf16.gmra.mrb[0].mxu0 %v2232
        %v5007 = vpop.f32.mrb[0].mxu0
        %v5008 = vadd.f32 %v4655, %v5007
        %v5009 = vpop.f32.mrb[0].mxu0
        %v5010 = vadd.f32 %v4657, %v5009
        %v5011 = vpop.f32.mrb[0].mxu0
        %v5012 = vadd.f32 %v4659, %v5011
        %v5013 = vpop.f32.mrb[0].mxu0
        %v5014 = vadd.f32 %v4661, %v5013
        %5015 = vmatprep.mubr.bf16.mxu0 0
        %5016 = vmatmul.mubr.bf16.gmra.mrb[0].mxu0 %v2235
        %v5017 = vpop.f32.mrb[0].mxu0
        %v5018 = vadd.f32 %v4665, %v5017
        %v5019 = vpop.f32.mrb[0].mxu0
        %v5020 = vadd.f32 %v4667, %v5019
        %v5021 = vpop.f32.mrb[0].mxu0
        %v5022 = vadd.f32 %v4669, %v5021
        %v5023 = vpop.f32.mrb[0].mxu0
        %v5024 = vadd.f32 %v4671, %v5023
        %5025 = vmatprep.mubr.bf16.mxu0 0
        %5026 = vmatmul.mubr.bf16.gmra.mrb[0].mxu0 %v2238
        %v5027 = vpop.f32.mrb[0].mxu0
        %v5028 = vadd.f32 %v4675, %v5027
        %v5029 = vpop.f32.mrb[0].mxu0
        %v5030 = vadd.f32 %v4677, %v5029
        %v5031 = vpop.f32.mrb[0].mxu0
        %v5032 = vadd.f32 %v4679, %v5031
        %v5033 = vpop.f32.mrb[0].mxu0
        %v5034 = vadd.f32 %v4681, %v5033
        %5035 = vmatprep.mubr.bf16.mxu0 0
        %5036 = vmatmul.mubr.bf16.gmra.mrb[0].mxu0 %v2241
        %v5037 = vpop.f32.mrb[0].mxu0
        %v5038 = vadd.f32 %v4685, %v5037
        %v5039 = vpop.f32.mrb[0].mxu0
        %v5040 = vadd.f32 %v4687, %v5039
        %v5041 = vpop.f32.mrb[0].mxu0
        %v5042 = vadd.f32 %v4689, %v5041
        %v5043 = vpop.f32.mrb[0].mxu0
        %v5044 = vadd.f32 %v4691, %v5043
        %5045 = vmatprep.mubr.bf16.mxu0 0
        %5046 = vmatmul.mubr.bf16.gmra.mrb[0].mxu0 %v2244
        %v5047 = vpop.f32.mrb[0].mxu0
        %v5048 = vadd.f32 %v4695, %v5047
        %v5049 = vpop.f32.mrb[0].mxu0
        %v5050 = vadd.f32 %v4697, %v5049
        %v5051 = vpop.f32.mrb[0].mxu0
        %v5052 = vadd.f32 %v4699, %v5051
        %v5053 = vpop.f32.mrb[0].mxu0
        %v5054 = vadd.f32 %v4701, %v5053
        %5055 = vmatprep.mubr.bf16.mxu0 0
        %5056 = vmatmul.mubr.bf16.gmra.mrb[0].mxu0 %v2247
        %v5057 = vpop.f32.mrb[0].mxu0
        %v5058 = vadd.f32 %v4705, %v5057
        %v5059 = vpop.f32.mrb[0].mxu0
        %v5060 = vadd.f32 %v4707, %v5059
        %v5061 = vpop.f32.mrb[0].mxu0
        %v5062 = vadd.f32 %v4709, %v5061
        %v5063 = vpop.f32.mrb[0].mxu0
        %v5064 = vadd.f32 %v4711, %v5063
        %5065 = vmatprep.mubr.bf16.mxu0 0
        %5066 = vmatmul.mubr.bf16.gmra.mrb[0].mxu0 %v2250
        %v5067 = vpop.f32.mrb[0].mxu0
        %v5068 = vadd.f32 %v4715, %v5067
        %v5069 = vpop.f32.mrb[0].mxu0
        %v5070 = vadd.f32 %v4717, %v5069
        %v5071 = vpop.f32.mrb[0].mxu0
        %v5072 = vadd.f32 %v4719, %v5071
        %v5073 = vpop.f32.mrb[0].mxu0
        %v5074 = vadd.f32 %v4721, %v5073
        %5075 = vdwg.mxu0
        %v5076 = vmul.f32 %v3346, 0.01
        %v5077 = vmul.f32 %v3348, 0.01
        %v5078 = vmul.f32 %v4758, 0.01
        %v5079 = vmul.f32 %v4760, 0.01
        %v5080 = vmul.f32 %v3350, 0.01
        %v5081 = vmul.f32 %v3352, 0.01
        %v5082 = vmul.f32 %v4762, 0.01
        %v5083 = vmul.f32 %v4764, 0.01
        %v5084 = vmul.f32 %v3356, 0.01
        %v5085 = vmul.f32 %v3358, 0.01
        %v5086 = vmul.f32 %v4768, 0.01
        %v5087 = vmul.f32 %v4770, 0.01
        %v5088 = vmul.f32 %v3360, 0.01
        %v5089 = vmul.f32 %v3362, 0.01
        %v5090 = vmul.f32 %v4772, 0.01
        %v5091 = vmul.f32 %v4774, 0.01
        %v5092 = vmul.f32 %v3366, 0.01
        %v5093 = vmul.f32 %v3368, 0.01
        %v5094 = vmul.f32 %v4778, 0.01
        %v5095 = vmul.f32 %v4780, 0.01
        %v5096 = vmul.f32 %v3370, 0.01
        %v5097 = vmul.f32 %v3372, 0.01
        %v5098 = vmul.f32 %v4782, 0.01
        %v5099 = vmul.f32 %v4784, 0.01
        %v5100 = vmul.f32 %v3376, 0.01
        %v5101 = vmul.f32 %v3378, 0.01
        %v5102 = vmul.f32 %v4788, 0.01
        %v5103 = vmul.f32 %v4790, 0.01
        %v5104 = vmul.f32 %v3380, 0.01
        %v5105 = vmul.f32 %v3382, 0.01
        %v5106 = vmul.f32 %v4792, 0.01
        %v5107 = vmul.f32 %v4794, 0.01
        %v5108 = vmul.f32 %v3386, 0.01
        %v5109 = vmul.f32 %v3388, 0.01
        %v5110 = vmul.f32 %v4798, 0.01
        %v5111 = vmul.f32 %v4800, 0.01
        %v5112 = vmul.f32 %v3390, 0.01
        %v5113 = vmul.f32 %v3392, 0.01
        %v5114 = vmul.f32 %v4802, 0.01
        %v5115 = vmul.f32 %v4804, 0.01
        %v5116 = vmul.f32 %v3396, 0.01
        %v5117 = vmul.f32 %v3398, 0.01
        %v5118 = vmul.f32 %v4808, 0.01
        %v5119 = vmul.f32 %v4810, 0.01
        %v5120 = vmul.f32 %v3400, 0.01
        %v5121 = vmul.f32 %v3402, 0.01
        %v5122 = vmul.f32 %v4812, 0.01
        %v5123 = vmul.f32 %v4814, 0.01
        %v5124 = vmul.f32 %v3406, 0.01
        %v5125 = vmul.f32 %v3408, 0.01
        %v5126 = vmul.f32 %v4818, 0.01
        %v5127 = vmul.f32 %v4820, 0.01
        %v5128 = vmul.f32 %v3410, 0.01
        %v5129 = vmul.f32 %v3412, 0.01
        %v5130 = vmul.f32 %v4822, 0.01
        %v5131 = vmul.f32 %v4824, 0.01
        %v5132 = vmul.f32 %v3416, 0.01
        %v5133 = vmul.f32 %v3418, 0.01
        %v5134 = vmul.f32 %v4828, 0.01
        %v5135 = vmul.f32 %v4830, 0.01
        %v5136 = vmul.f32 %v3420, 0.01
        %v5137 = vmul.f32 %v3422, 0.01
        %v5138 = vmul.f32 %v4832, 0.01
        %v5139 = vmul.f32 %v4834, 0.01
        %v5140 = vmul.f32 %v3426, 0.01
        %v5141 = vmul.f32 %v3428, 0.01
        %v5142 = vmul.f32 %v4838, 0.01
        %v5143 = vmul.f32 %v4840, 0.01
        %v5144 = vmul.f32 %v3430, 0.01
        %v5145 = vmul.f32 %v3432, 0.01
        %v5146 = vmul.f32 %v4842, 0.01
        %v5147 = vmul.f32 %v4844, 0.01
        %v5148 = vmul.f32 %v3436, 0.01
        %v5149 = vmul.f32 %v3438, 0.01
        %v5150 = vmul.f32 %v4848, 0.01
        %v5151 = vmul.f32 %v4850, 0.01
        %v5152 = vmul.f32 %v3440, 0.01
        %v5153 = vmul.f32 %v3442, 0.01
        %v5154 = vmul.f32 %v4852, 0.01
        %v5155 = vmul.f32 %v4854, 0.01
        %v5156 = vmul.f32 %v3446, 0.01
        %v5157 = vmul.f32 %v3448, 0.01
        %v5158 = vmul.f32 %v4858, 0.01
        %v5159 = vmul.f32 %v4860, 0.01
        %v5160 = vmul.f32 %v3450, 0.01
        %v5161 = vmul.f32 %v3452, 0.01
        %v5162 = vmul.f32 %v4862, 0.01
        %v5163 = vmul.f32 %v4864, 0.01
        %v5164 = vmul.f32 %v3456, 0.01
        %v5165 = vmul.f32 %v3458, 0.01
        %v5166 = vmul.f32 %v4868, 0.01
        %v5167 = vmul.f32 %v4870, 0.01
        %v5168 = vmul.f32 %v3460, 0.01
        %v5169 = vmul.f32 %v3462, 0.01
        %v5170 = vmul.f32 %v4872, 0.01
        %v5171 = vmul.f32 %v4874, 0.01
        %v5172 = vmul.f32 %v3466, 0.01
        %v5173 = vmul.f32 %v3468, 0.01
        %v5174 = vmul.f32 %v4878, 0.01
        %v5175 = vmul.f32 %v4880, 0.01
        %v5176 = vmul.f32 %v3470, 0.01
        %v5177 = vmul.f32 %v3472, 0.01
        %v5178 = vmul.f32 %v4882, 0.01
        %v5179 = vmul.f32 %v4884, 0.01
        %v5180 = vmul.f32 %v3476, 0.01
        %v5181 = vmul.f32 %v3478, 0.01
        %v5182 = vmul.f32 %v4888, 0.01
        %v5183 = vmul.f32 %v4890, 0.01
        %v5184 = vmul.f32 %v3480, 0.01
        %v5185 = vmul.f32 %v3482, 0.01
        %v5186 = vmul.f32 %v4892, 0.01
        %v5187 = vmul.f32 %v4894, 0.01
        %v5188 = vmul.f32 %v3486, 0.01
        %v5189 = vmul.f32 %v3488, 0.01
        %v5190 = vmul.f32 %v4898, 0.01
        %v5191 = vmul.f32 %v4900, 0.01
        %v5192 = vmul.f32 %v3490, 0.01
        %v5193 = vmul.f32 %v3492, 0.01
        %v5194 = vmul.f32 %v4902, 0.01
        %v5195 = vmul.f32 %v4904, 0.01
        %v5196 = vmul.f32 %v3496, 0.01
        %v5197 = vmul.f32 %v3498, 0.01
        %v5198 = vmul.f32 %v4908, 0.01
        %v5199 = vmul.f32 %v4910, 0.01
        %v5200 = vmul.f32 %v3500, 0.01
        %v5201 = vmul.f32 %v3502, 0.01
        %v5202 = vmul.f32 %v4912, 0.01
        %v5203 = vmul.f32 %v4914, 0.01
        %v5204 = vmul.f32 %v3506, 0.01
        %v5205 = vmul.f32 %v3508, 0.01
        %v5206 = vmul.f32 %v4918, 0.01
        %v5207 = vmul.f32 %v4920, 0.01
        %v5208 = vmul.f32 %v3510, 0.01
        %v5209 = vmul.f32 %v3512, 0.01
        %v5210 = vmul.f32 %v4922, 0.01
        %v5211 = vmul.f32 %v4924, 0.01
        %v5212 = vmul.f32 %v3516, 0.01
        %v5213 = vmul.f32 %v3518, 0.01
        %v5214 = vmul.f32 %v4928, 0.01
        %v5215 = vmul.f32 %v4930, 0.01
        %v5216 = vmul.f32 %v3520, 0.01
        %v5217 = vmul.f32 %v3522, 0.01
        %v5218 = vmul.f32 %v4932, 0.01
        %v5219 = vmul.f32 %v4934, 0.01
        %v5220 = vmul.f32 %v3526, 0.01
        %v5221 = vmul.f32 %v3528, 0.01
        %v5222 = vmul.f32 %v4938, 0.01
        %v5223 = vmul.f32 %v4940, 0.01
        %v5224 = vmul.f32 %v3530, 0.01
        %v5225 = vmul.f32 %v3532, 0.01
        %v5226 = vmul.f32 %v4942, 0.01
        %v5227 = vmul.f32 %v4944, 0.01
        %v5228 = vmul.f32 %v3536, 0.01
        %v5229 = vmul.f32 %v3538, 0.01
        %v5230 = vmul.f32 %v4948, 0.01
        %v5231 = vmul.f32 %v4950, 0.01
        %v5232 = vmul.f32 %v3540, 0.01
        %v5233 = vmul.f32 %v3542, 0.01
        %v5234 = vmul.f32 %v4952, 0.01
        %v5235 = vmul.f32 %v4954, 0.01
        %v5236 = vmul.f32 %v3546, 0.01
        %v5237 = vmul.f32 %v3548, 0.01
        %v5238 = vmul.f32 %v4958, 0.01
        %v5239 = vmul.f32 %v4960, 0.01
        %v5240 = vmul.f32 %v3550, 0.01
        %v5241 = vmul.f32 %v3552, 0.01
        %v5242 = vmul.f32 %v4962, 0.01
        %v5243 = vmul.f32 %v4964, 0.01
        %v5244 = vmul.f32 %v3556, 0.01
        %v5245 = vmul.f32 %v3558, 0.01
        %v5246 = vmul.f32 %v4968, 0.01
        %v5247 = vmul.f32 %v4970, 0.01
        %v5248 = vmul.f32 %v3560, 0.01
        %v5249 = vmul.f32 %v3562, 0.01
        %v5250 = vmul.f32 %v4972, 0.01
        %v5251 = vmul.f32 %v4974, 0.01
        %v5252 = vmul.f32 %v3566, 0.01
        %v5253 = vmul.f32 %v3568, 0.01
        %v5254 = vmul.f32 %v4978, 0.01
        %v5255 = vmul.f32 %v4980, 0.01
        %v5256 = vmul.f32 %v3570, 0.01
        %v5257 = vmul.f32 %v3572, 0.01
        %v5258 = vmul.f32 %v4982, 0.01
        %v5259 = vmul.f32 %v4984, 0.01
        %v5260 = vmul.f32 %v3576, 0.01
        %v5261 = vmul.f32 %v3578, 0.01
        %v5262 = vmul.f32 %v4988, 0.01
        %v5263 = vmul.f32 %v4990, 0.01
        %v5264 = vmul.f32 %v3580, 0.01
        %v5265 = vmul.f32 %v3582, 0.01
        %v5266 = vmul.f32 %v4992, 0.01
        %v5267 = vmul.f32 %v4994, 0.01
        %v5268 = vmul.f32 %v3586, 0.01
        %v5269 = vmul.f32 %v3588, 0.01
        %v5270 = vmul.f32 %v4998, 0.01
        %v5271 = vmul.f32 %v5000, 0.01
        %v5272 = vmul.f32 %v3590, 0.01
        %v5273 = vmul.f32 %v3592, 0.01
        %v5274 = vmul.f32 %v5002, 0.01
        %v5275 = vmul.f32 %v5004, 0.01
        %v5276 = vmul.f32 %v3596, 0.01
        %v5277 = vmul.f32 %v3598, 0.01
        %v5278 = vmul.f32 %v5008, 0.01
        %v5279 = vmul.f32 %v5010, 0.01
        %v5280 = vmul.f32 %v3600, 0.01
        %v5281 = vmul.f32 %v3602, 0.01
        %v5282 = vmul.f32 %v5012, 0.01
        %v5283 = vmul.f32 %v5014, 0.01
        %v5284 = vmul.f32 %v3606, 0.01
        %v5285 = vmul.f32 %v3608, 0.01
        %v5286 = vmul.f32 %v5018, 0.01
        %v5287 = vmul.f32 %v5020, 0.01
        %v5288 = vmul.f32 %v3610, 0.01
        %v5289 = vmul.f32 %v3612, 0.01
        %v5290 = vmul.f32 %v5022, 0.01
        %v5291 = vmul.f32 %v5024, 0.01
        %v5292 = vmul.f32 %v3616, 0.01
        %v5293 = vmul.f32 %v3618, 0.01
        %v5294 = vmul.f32 %v5028, 0.01
        %v5295 = vmul.f32 %v5030, 0.01
        %v5296 = vmul.f32 %v3620, 0.01
        %v5297 = vmul.f32 %v3622, 0.01
        %v5298 = vmul.f32 %v5032, 0.01
        %v5299 = vmul.f32 %v5034, 0.01
        %v5300 = vmul.f32 %v3626, 0.01
        %v5301 = vmul.f32 %v3628, 0.01
        %v5302 = vmul.f32 %v5038, 0.01
        %v5303 = vmul.f32 %v5040, 0.01
        %v5304 = vmul.f32 %v3630, 0.01
        %v5305 = vmul.f32 %v3632, 0.01
        %v5306 = vmul.f32 %v5042, 0.01
        %v5307 = vmul.f32 %v5044, 0.01
        %v5308 = vmul.f32 %v3636, 0.01
        %v5309 = vmul.f32 %v3638, 0.01
        %v5310 = vmul.f32 %v5048, 0.01
        %v5311 = vmul.f32 %v5050, 0.01
        %v5312 = vmul.f32 %v3640, 0.01
        %v5313 = vmul.f32 %v3642, 0.01
        %v5314 = vmul.f32 %v5052, 0.01
        %v5315 = vmul.f32 %v5054, 0.01
        %v5316 = vmul.f32 %v3646, 0.01
        %v5317 = vmul.f32 %v3648, 0.01
        %v5318 = vmul.f32 %v5058, 0.01
        %v5319 = vmul.f32 %v5060, 0.01
        %v5320 = vmul.f32 %v3650, 0.01
        %v5321 = vmul.f32 %v3652, 0.01
        %v5322 = vmul.f32 %v5062, 0.01
        %v5323 = vmul.f32 %v5064, 0.01
        %v5324 = vmul.f32 %v3656, 0.01
        %v5325 = vmul.f32 %v3658, 0.01
        %v5326 = vmul.f32 %v5068, 0.01
        %v5327 = vmul.f32 %v5070, 0.01
        %v5328 = vmul.f32 %v3660, 0.01
        %v5329 = vmul.f32 %v3662, 0.01
        %v5330 = vmul.f32 %v5072, 0.01
        %v5331 = vmul.f32 %v5074, 0.01
        %v5332 = vmax.f32 %v3346, %v5076
        %v5333 = vmax.f32 %v3348, %v5077
        %v5334 = vmax.f32 %v4758, %v5078
        %v5335 = vmax.f32 %v4760, %v5079
        %v5336 = vmax.f32 %v3350, %v5080
        %v5337 = vmax.f32 %v3352, %v5081
        %v5338 = vmax.f32 %v4762, %v5082
        %v5339 = vmax.f32 %v4764, %v5083
        %v5340 = vmax.f32 %v3356, %v5084
        %v5341 = vmax.f32 %v3358, %v5085
        %v5342 = vmax.f32 %v4768, %v5086
        %v5343 = vmax.f32 %v4770, %v5087
        %v5344 = vmax.f32 %v3360, %v5088
        %v5345 = vmax.f32 %v3362, %v5089
        %v5346 = vmax.f32 %v4772, %v5090
        %v5347 = vmax.f32 %v4774, %v5091
        %v5348 = vmax.f32 %v3366, %v5092
        %v5349 = vmax.f32 %v3368, %v5093
        %v5350 = vmax.f32 %v4778, %v5094
        %v5351 = vmax.f32 %v4780, %v5095
        %v5352 = vmax.f32 %v3370, %v5096
        %v5353 = vmax.f32 %v3372, %v5097
        %v5354 = vmax.f32 %v4782, %v5098
        %v5355 = vmax.f32 %v4784, %v5099
        %v5356 = vmax.f32 %v3376, %v5100
        %v5357 = vmax.f32 %v3378, %v5101
        %v5358 = vmax.f32 %v4788, %v5102
        %v5359 = vmax.f32 %v4790, %v5103
        %v5360 = vmax.f32 %v3380, %v5104
        %v5361 = vmax.f32 %v3382, %v5105
        %v5362 = vmax.f32 %v4792, %v5106
        %v5363 = vmax.f32 %v4794, %v5107
        %v5364 = vmax.f32 %v3386, %v5108
        %v5365 = vmax.f32 %v3388, %v5109
        %v5366 = vmax.f32 %v4798, %v5110
        %v5367 = vmax.f32 %v4800, %v5111
        %v5368 = vmax.f32 %v3390, %v5112
        %v5369 = vmax.f32 %v3392, %v5113
        %v5370 = vmax.f32 %v4802, %v5114
        %v5371 = vmax.f32 %v4804, %v5115
        %v5372 = vmax.f32 %v3396, %v5116
        %v5373 = vmax.f32 %v3398, %v5117
        %v5374 = vmax.f32 %v4808, %v5118
        %v5375 = vmax.f32 %v4810, %v5119
        %v5376 = vmax.f32 %v3400, %v5120
        %v5377 = vmax.f32 %v3402, %v5121
        %v5378 = vmax.f32 %v4812, %v5122
        %v5379 = vmax.f32 %v4814, %v5123
        %v5380 = vmax.f32 %v3406, %v5124
        %v5381 = vmax.f32 %v3408, %v5125
        %v5382 = vmax.f32 %v4818, %v5126
        %v5383 = vmax.f32 %v4820, %v5127
        %v5384 = vmax.f32 %v3410, %v5128
        %v5385 = vmax.f32 %v3412, %v5129
        %v5386 = vmax.f32 %v4822, %v5130
        %v5387 = vmax.f32 %v4824, %v5131
        %v5388 = vmax.f32 %v3416, %v5132
        %v5389 = vmax.f32 %v3418, %v5133
        %v5390 = vmax.f32 %v4828, %v5134
        %v5391 = vmax.f32 %v4830, %v5135
        %v5392 = vmax.f32 %v3420, %v5136
        %v5393 = vmax.f32 %v3422, %v5137
        %v5394 = vmax.f32 %v4832, %v5138
        %v5395 = vmax.f32 %v4834, %v5139
        %v5396 = vmax.f32 %v3426, %v5140
        %v5397 = vmax.f32 %v3428, %v5141
        %v5398 = vmax.f32 %v4838, %v5142
        %v5399 = vmax.f32 %v4840, %v5143
        %v5400 = vmax.f32 %v3430, %v5144
        %v5401 = vmax.f32 %v3432, %v5145
        %v5402 = vmax.f32 %v4842, %v5146
        %v5403 = vmax.f32 %v4844, %v5147
        %v5404 = vmax.f32 %v3436, %v5148
        %v5405 = vmax.f32 %v3438, %v5149
        %v5406 = vmax.f32 %v4848, %v5150
        %v5407 = vmax.f32 %v4850, %v5151
        %v5408 = vmax.f32 %v3440, %v5152
        %v5409 = vmax.f32 %v3442, %v5153
        %v5410 = vmax.f32 %v4852, %v5154
        %v5411 = vmax.f32 %v4854, %v5155
        %v5412 = vmax.f32 %v3446, %v5156
        %v5413 = vmax.f32 %v3448, %v5157
        %v5414 = vmax.f32 %v4858, %v5158
        %v5415 = vmax.f32 %v4860, %v5159
        %v5416 = vmax.f32 %v3450, %v5160
        %v5417 = vmax.f32 %v3452, %v5161
        %v5418 = vmax.f32 %v4862, %v5162
        %v5419 = vmax.f32 %v4864, %v5163
        %v5420 = vmax.f32 %v3456, %v5164
        %v5421 = vmax.f32 %v3458, %v5165
        %v5422 = vmax.f32 %v4868, %v5166
        %v5423 = vmax.f32 %v4870, %v5167
        %v5424 = vmax.f32 %v3460, %v5168
        %v5425 = vmax.f32 %v3462, %v5169
        %v5426 = vmax.f32 %v4872, %v5170
        %v5427 = vmax.f32 %v4874, %v5171
        %v5428 = vmax.f32 %v3466, %v5172
        %v5429 = vmax.f32 %v3468, %v5173
        %v5430 = vmax.f32 %v4878, %v5174
        %v5431 = vmax.f32 %v4880, %v5175
        %v5432 = vmax.f32 %v3470, %v5176
        %v5433 = vmax.f32 %v3472, %v5177
        %v5434 = vmax.f32 %v4882, %v5178
        %v5435 = vmax.f32 %v4884, %v5179
        %v5436 = vmax.f32 %v3476, %v5180
        %v5437 = vmax.f32 %v3478, %v5181
        %v5438 = vmax.f32 %v4888, %v5182
        %v5439 = vmax.f32 %v4890, %v5183
        %v5440 = vmax.f32 %v3480, %v5184
        %v5441 = vmax.f32 %v3482, %v5185
        %v5442 = vmax.f32 %v4892, %v5186
        %v5443 = vmax.f32 %v4894, %v5187
        %v5444 = vmax.f32 %v3486, %v5188
        %v5445 = vmax.f32 %v3488, %v5189
        %v5446 = vmax.f32 %v4898, %v5190
        %v5447 = vmax.f32 %v4900, %v5191
        %v5448 = vmax.f32 %v3490, %v5192
        %v5449 = vmax.f32 %v3492, %v5193
        %v5450 = vmax.f32 %v4902, %v5194
        %v5451 = vmax.f32 %v4904, %v5195
        %v5452 = vmax.f32 %v3496, %v5196
        %v5453 = vmax.f32 %v3498, %v5197
        %v5454 = vmax.f32 %v4908, %v5198
        %v5455 = vmax.f32 %v4910, %v5199
        %v5456 = vmax.f32 %v3500, %v5200
        %v5457 = vmax.f32 %v3502, %v5201
        %v5458 = vmax.f32 %v4912, %v5202
        %v5459 = vmax.f32 %v4914, %v5203
        %v5460 = vmax.f32 %v3506, %v5204
        %v5461 = vmax.f32 %v3508, %v5205
        %v5462 = vmax.f32 %v4918, %v5206
        %v5463 = vmax.f32 %v4920, %v5207
        %v5464 = vmax.f32 %v3510, %v5208
        %v5465 = vmax.f32 %v3512, %v5209
        %v5466 = vmax.f32 %v4922, %v5210
        %v5467 = vmax.f32 %v4924, %v5211
        %v5468 = vmax.f32 %v3516, %v5212
        %v5469 = vmax.f32 %v3518, %v5213
        %v5470 = vmax.f32 %v4928, %v5214
        %v5471 = vmax.f32 %v4930, %v5215
        %v5472 = vmax.f32 %v3520, %v5216
        %v5473 = vmax.f32 %v3522, %v5217
        %v5474 = vmax.f32 %v4932, %v5218
        %v5475 = vmax.f32 %v4934, %v5219
        %v5476 = vmax.f32 %v3526, %v5220
        %v5477 = vmax.f32 %v3528, %v5221
        %v5478 = vmax.f32 %v4938, %v5222
        %v5479 = vmax.f32 %v4940, %v5223
        %v5480 = vmax.f32 %v3530, %v5224
        %v5481 = vmax.f32 %v3532, %v5225
        %v5482 = vmax.f32 %v4942, %v5226
        %v5483 = vmax.f32 %v4944, %v5227
        %v5484 = vmax.f32 %v3536, %v5228
        %v5485 = vmax.f32 %v3538, %v5229
        %v5486 = vmax.f32 %v4948, %v5230
        %v5487 = vmax.f32 %v4950, %v5231
        %v5488 = vmax.f32 %v3540, %v5232
        %v5489 = vmax.f32 %v3542, %v5233
        %v5490 = vmax.f32 %v4952, %v5234
        %v5491 = vmax.f32 %v4954, %v5235
        %v5492 = vmax.f32 %v3546, %v5236
        %v5493 = vmax.f32 %v3548, %v5237
        %v5494 = vmax.f32 %v4958, %v5238
        %v5495 = vmax.f32 %v4960, %v5239
        %v5496 = vmax.f32 %v3550, %v5240
        %v5497 = vmax.f32 %v3552, %v5241
        %v5498 = vmax.f32 %v4962, %v5242
        %v5499 = vmax.f32 %v4964, %v5243
        %v5500 = vmax.f32 %v3556, %v5244
        %v5501 = vmax.f32 %v3558, %v5245
        %v5502 = vmax.f32 %v4968, %v5246
        %v5503 = vmax.f32 %v4970, %v5247
        %v5504 = vmax.f32 %v3560, %v5248
        %v5505 = vmax.f32 %v3562, %v5249
        %v5506 = vmax.f32 %v4972, %v5250
        %v5507 = vmax.f32 %v4974, %v5251
        %v5508 = vmax.f32 %v3566, %v5252
        %v5509 = vmax.f32 %v3568, %v5253
        %v5510 = vmax.f32 %v4978, %v5254
        %v5511 = vmax.f32 %v4980, %v5255
        %v5512 = vmax.f32 %v3570, %v5256
        %v5513 = vmax.f32 %v3572, %v5257
        %v5514 = vmax.f32 %v4982, %v5258
        %v5515 = vmax.f32 %v4984, %v5259
        %v5516 = vmax.f32 %v3576, %v5260
        %v5517 = vmax.f32 %v3578, %v5261
        %v5518 = vmax.f32 %v4988, %v5262
        %v5519 = vmax.f32 %v4990, %v5263
        %v5520 = vmax.f32 %v3580, %v5264
        %v5521 = vmax.f32 %v3582, %v5265
        %v5522 = vmax.f32 %v4992, %v5266
        %v5523 = vmax.f32 %v4994, %v5267
        %v5524 = vmax.f32 %v3586, %v5268
        %v5525 = vmax.f32 %v3588, %v5269
        %v5526 = vmax.f32 %v4998, %v5270
        %v5527 = vmax.f32 %v5000, %v5271
        %v5528 = vmax.f32 %v3590, %v5272
        %v5529 = vmax.f32 %v3592, %v5273
        %v5530 = vmax.f32 %v5002, %v5274
        %v5531 = vmax.f32 %v5004, %v5275
        %v5532 = vmax.f32 %v3596, %v5276
        %v5533 = vmax.f32 %v3598, %v5277
        %v5534 = vmax.f32 %v5008, %v5278
        %v5535 = vmax.f32 %v5010, %v5279
        %v5536 = vmax.f32 %v3600, %v5280
        %v5537 = vmax.f32 %v3602, %v5281
        %v5538 = vmax.f32 %v5012, %v5282
        %v5539 = vmax.f32 %v5014, %v5283
        %v5540 = vmax.f32 %v3606, %v5284
        %v5541 = vmax.f32 %v3608, %v5285
        %v5542 = vmax.f32 %v5018, %v5286
        %v5543 = vmax.f32 %v5020, %v5287
        %v5544 = vmax.f32 %v3610, %v5288
        %v5545 = vmax.f32 %v3612, %v5289
        %v5546 = vmax.f32 %v5022, %v5290
        %v5547 = vmax.f32 %v5024, %v5291
        %v5548 = vmax.f32 %v3616, %v5292
        %v5549 = vmax.f32 %v3618, %v5293
        %v5550 = vmax.f32 %v5028, %v5294
        %v5551 = vmax.f32 %v5030, %v5295
        %v5552 = vmax.f32 %v3620, %v5296
        %v5553 = vmax.f32 %v3622, %v5297
        %v5554 = vmax.f32 %v5032, %v5298
        %v5555 = vmax.f32 %v5034, %v5299
        %v5556 = vmax.f32 %v3626, %v5300
        %v5557 = vmax.f32 %v3628, %v5301
        %v5558 = vmax.f32 %v5038, %v5302
        %v5559 = vmax.f32 %v5040, %v5303
        %v5560 = vmax.f32 %v3630, %v5304
        %v5561 = vmax.f32 %v3632, %v5305
        %v5562 = vmax.f32 %v5042, %v5306
        %v5563 = vmax.f32 %v5044, %v5307
        %v5564 = vmax.f32 %v3636, %v5308
        %v5565 = vmax.f32 %v3638, %v5309
        %v5566 = vmax.f32 %v5048, %v5310
        %v5567 = vmax.f32 %v5050, %v5311
        %v5568 = vmax.f32 %v3640, %v5312
        %v5569 = vmax.f32 %v3642, %v5313
        %v5570 = vmax.f32 %v5052, %v5314
        %v5571 = vmax.f32 %v5054, %v5315
        %v5572 = vmax.f32 %v3646, %v5316
        %v5573 = vmax.f32 %v3648, %v5317
        %v5574 = vmax.f32 %v5058, %v5318
        %v5575 = vmax.f32 %v5060, %v5319
        %v5576 = vmax.f32 %v3650, %v5320
        %v5577 = vmax.f32 %v3652, %v5321
        %v5578 = vmax.f32 %v5062, %v5322
        %v5579 = vmax.f32 %v5064, %v5323
        %v5580 = vmax.f32 %v3656, %v5324
        %v5581 = vmax.f32 %v3658, %v5325
        %v5582 = vmax.f32 %v5068, %v5326
        %v5583 = vmax.f32 %v5070, %v5327
        %v5584 = vmax.f32 %v3660, %v5328
        %v5585 = vmax.f32 %v3662, %v5329
        %v5586 = vmax.f32 %v5072, %v5330
        %v5587 = vmax.f32 %v5074, %v5331
        %v5588 = vpack.c.bf16 %v5336, %v5332
        %v5589 = vpack.c.bf16 %v5337, %v5333
        %v5590 = vpack.c.bf16 %v5338, %v5334
        %v5591 = vpack.c.bf16 %v5339, %v5335
        %v5592 = vpack.c.bf16 %v5344, %v5340
        %v5593 = vpack.c.bf16 %v5345, %v5341
        %v5594 = vpack.c.bf16 %v5346, %v5342
        %v5595 = vpack.c.bf16 %v5347, %v5343
        %v5596 = vpack.c.bf16 %v5352, %v5348
        %v5597 = vpack.c.bf16 %v5353, %v5349
        %v5598 = vpack.c.bf16 %v5354, %v5350
        %v5599 = vpack.c.bf16 %v5355, %v5351
        %v5600 = vpack.c.bf16 %v5360, %v5356
        %v5601 = vpack.c.bf16 %v5361, %v5357
        %v5602 = vpack.c.bf16 %v5362, %v5358
        %v5603 = vpack.c.bf16 %v5363, %v5359
        %v5604 = vpack.c.bf16 %v5368, %v5364
        %v5605 = vpack.c.bf16 %v5369, %v5365
        %v5606 = vpack.c.bf16 %v5370, %v5366
        %v5607 = vpack.c.bf16 %v5371, %v5367
        %v5608 = vpack.c.bf16 %v5376, %v5372
        %v5609 = vpack.c.bf16 %v5377, %v5373
        %v5610 = vpack.c.bf16 %v5378, %v5374
        %v5611 = vpack.c.bf16 %v5379, %v5375
        %v5612 = vpack.c.bf16 %v5384, %v5380
        %v5613 = vpack.c.bf16 %v5385, %v5381
        %v5614 = vpack.c.bf16 %v5386, %v5382
        %v5615 = vpack.c.bf16 %v5387, %v5383
        %v5616 = vpack.c.bf16 %v5392, %v5388
        %v5617 = vpack.c.bf16 %v5393, %v5389
        %v5618 = vpack.c.bf16 %v5394, %v5390
        %v5619 = vpack.c.bf16 %v5395, %v5391
        %v5620 = vpack.c.bf16 %v5400, %v5396
        %v5621 = vpack.c.bf16 %v5401, %v5397
        %v5622 = vpack.c.bf16 %v5402, %v5398
        %v5623 = vpack.c.bf16 %v5403, %v5399
        %v5624 = vpack.c.bf16 %v5408, %v5404
        %v5625 = vpack.c.bf16 %v5409, %v5405
        %v5626 = vpack.c.bf16 %v5410, %v5406
        %v5627 = vpack.c.bf16 %v5411, %v5407
        %v5628 = vpack.c.bf16 %v5416, %v5412
        %v5629 = vpack.c.bf16 %v5417, %v5413
        %v5630 = vpack.c.bf16 %v5418, %v5414
        %v5631 = vpack.c.bf16 %v5419, %v5415
        %v5632 = vpack.c.bf16 %v5424, %v5420
        %v5633 = vpack.c.bf16 %v5425, %v5421
        %v5634 = vpack.c.bf16 %v5426, %v5422
        %v5635 = vpack.c.bf16 %v5427, %v5423
        %v5636 = vpack.c.bf16 %v5432, %v5428
        %v5637 = vpack.c.bf16 %v5433, %v5429
        %v5638 = vpack.c.bf16 %v5434, %v5430
        %v5639 = vpack.c.bf16 %v5435, %v5431
        %v5640 = vpack.c.bf16 %v5440, %v5436
        %v5641 = vpack.c.bf16 %v5441, %v5437
        %v5642 = vpack.c.bf16 %v5442, %v5438
        %v5643 = vpack.c.bf16 %v5443, %v5439
        %v5644 = vpack.c.bf16 %v5448, %v5444
        %v5645 = vpack.c.bf16 %v5449, %v5445
        %v5646 = vpack.c.bf16 %v5450, %v5446
        %v5647 = vpack.c.bf16 %v5451, %v5447
        %v5648 = vpack.c.bf16 %v5456, %v5452
        %v5649 = vpack.c.bf16 %v5457, %v5453
        %v5650 = vpack.c.bf16 %v5458, %v5454
        %v5651 = vpack.c.bf16 %v5459, %v5455
        %v5652 = vpack.c.bf16 %v5464, %v5460
        %v5653 = vpack.c.bf16 %v5465, %v5461
        %v5654 = vpack.c.bf16 %v5466, %v5462
        %v5655 = vpack.c.bf16 %v5467, %v5463
        %v5656 = vpack.c.bf16 %v5472, %v5468
        %v5657 = vpack.c.bf16 %v5473, %v5469
        %v5658 = vpack.c.bf16 %v5474, %v5470
        %v5659 = vpack.c.bf16 %v5475, %v5471
        %v5660 = vpack.c.bf16 %v5480, %v5476
        %v5661 = vpack.c.bf16 %v5481, %v5477
        %v5662 = vpack.c.bf16 %v5482, %v5478
        %v5663 = vpack.c.bf16 %v5483, %v5479
        %v5664 = vpack.c.bf16 %v5488, %v5484
        %v5665 = vpack.c.bf16 %v5489, %v5485
        %v5666 = vpack.c.bf16 %v5490, %v5486
        %v5667 = vpack.c.bf16 %v5491, %v5487
        %v5668 = vpack.c.bf16 %v5496, %v5492
        %v5669 = vpack.c.bf16 %v5497, %v5493
        %v5670 = vpack.c.bf16 %v5498, %v5494
        %v5671 = vpack.c.bf16 %v5499, %v5495
        %v5672 = vpack.c.bf16 %v5504, %v5500
        %v5673 = vpack.c.bf16 %v5505, %v5501
        %v5674 = vpack.c.bf16 %v5506, %v5502
        %v5675 = vpack.c.bf16 %v5507, %v5503
        %v5676 = vpack.c.bf16 %v5512, %v5508
        %v5677 = vpack.c.bf16 %v5513, %v5509
        %v5678 = vpack.c.bf16 %v5514, %v5510
        %v5679 = vpack.c.bf16 %v5515, %v5511
        %v5680 = vpack.c.bf16 %v5520, %v5516
        %v5681 = vpack.c.bf16 %v5521, %v5517
        %v5682 = vpack.c.bf16 %v5522, %v5518
        %v5683 = vpack.c.bf16 %v5523, %v5519
        %v5684 = vpack.c.bf16 %v5528, %v5524
        %v5685 = vpack.c.bf16 %v5529, %v5525
        %v5686 = vpack.c.bf16 %v5530, %v5526
        %v5687 = vpack.c.bf16 %v5531, %v5527
        %v5688 = vpack.c.bf16 %v5536, %v5532
        %v5689 = vpack.c.bf16 %v5537, %v5533
        %v5690 = vpack.c.bf16 %v5538, %v5534
        %v5691 = vpack.c.bf16 %v5539, %v5535
        %v5692 = vpack.c.bf16 %v5544, %v5540
        %v5693 = vpack.c.bf16 %v5545, %v5541
        %v5694 = vpack.c.bf16 %v5546, %v5542
        %v5695 = vpack.c.bf16 %v5547, %v5543
        %v5696 = vpack.c.bf16 %v5552, %v5548
        %v5697 = vpack.c.bf16 %v5553, %v5549
        %v5698 = vpack.c.bf16 %v5554, %v5550
        %v5699 = vpack.c.bf16 %v5555, %v5551
        %v5700 = vpack.c.bf16 %v5560, %v5556
        %v5701 = vpack.c.bf16 %v5561, %v5557
        %v5702 = vpack.c.bf16 %v5562, %v5558
        %v5703 = vpack.c.bf16 %v5563, %v5559
        %v5704 = vpack.c.bf16 %v5568, %v5564
        %v5705 = vpack.c.bf16 %v5569, %v5565
        %v5706 = vpack.c.bf16 %v5570, %v5566
        %v5707 = vpack.c.bf16 %v5571, %v5567
        %v5708 = vpack.c.bf16 %v5576, %v5572
        %v5709 = vpack.c.bf16 %v5577, %v5573
        %v5710 = vpack.c.bf16 %v5578, %v5574
        %v5711 = vpack.c.bf16 %v5579, %v5575
        %v5712 = vpack.c.bf16 %v5584, %v5580
        %v5713 = vpack.c.bf16 %v5585, %v5581
        %v5714 = vpack.c.bf16 %v5586, %v5582
        %v5715 = vpack.c.bf16 %v5587, %v5583
        %v5716 = vld [vmem:[%s3] sm:$0xff]
        %v5717 = vld [vmem:[%s3 + $0x8] sm:$0xff]
        %v5718 = vld [vmem:[%s3 + $0x10] sm:$0xff]
        %v5719 = vld [vmem:[%s3 + $0x18] sm:$0xff]
        %v5720 = vld [vmem:[%s3 + $0x20] sm:$0xff]
        %v5721 = vld [vmem:[%s3 + $0x28] sm:$0xff]
        %v5722 = vld [vmem:[%s3 + $0x30] sm:$0xff]
        %v5723 = vld [vmem:[%s3 + $0x38] sm:$0xff]
        %v5724 = vld [vmem:[%s3 + $0x40] sm:$0xff]
        %v5725 = vld [vmem:[%s3 + $0x48] sm:$0xff]
        %v5726 = vld [vmem:[%s3 + $0x50] sm:$0xff]
        %v5727 = vld [vmem:[%s3 + $0x58] sm:$0xff]
        %v5728 = vld [vmem:[%s3 + $0x60] sm:$0xff]
        %v5729 = vld [vmem:[%s3 + $0x68] sm:$0xff]
        %v5730 = vld [vmem:[%s3 + $0x70] sm:$0xff]
        %v5731 = vld [vmem:[%s3 + $0x78] sm:$0xff]
        %v5732 = vld [vmem:[%s3 + $0x80] sm:$0xff]
        %v5733 = vld [vmem:[%s3 + $0x88] sm:$0xff]
        %v5734 = vld [vmem:[%s3 + $0x90] sm:$0xff]
        %v5735 = vld [vmem:[%s3 + $0x98] sm:$0xff]
        %v5736 = vld [vmem:[%s3 + $0xa0] sm:$0xff]
        %v5737 = vld [vmem:[%s3 + $0xa8] sm:$0xff]
        %v5738 = vld [vmem:[%s3 + $0xb0] sm:$0xff]
        %v5739 = vld [vmem:[%s3 + $0xb8] sm:$0xff]
        %v5740 = vld [vmem:[%s3 + $0xc0] sm:$0xff]
        %v5741 = vld [vmem:[%s3 + $0xc8] sm:$0xff]
        %v5742 = vld [vmem:[%s3 + $0xd0] sm:$0xff]
        %v5743 = vld [vmem:[%s3 + $0xd8] sm:$0xff]
        %v5744 = vld [vmem:[%s3 + $0xe0] sm:$0xff]
        %v5745 = vld [vmem:[%s3 + $0xe8] sm:$0xff]
        %v5746 = vld [vmem:[%s3 + $0xf0] sm:$0xff]
        %v5747 = vld [vmem:[%s3 + $0xf8] sm:$0xff]
        %v5748 = vld [vmem:[%s3 + $0x100] sm:$0xff]
        %v5749 = vld [vmem:[%s3 + $0x108] sm:$0xff]
        %v5750 = vld [vmem:[%s3 + $0x110] sm:$0xff]
        %v5751 = vld [vmem:[%s3 + $0x118] sm:$0xff]
        %v5752 = vld [vmem:[%s3 + $0x120] sm:$0xff]
        %v5753 = vld [vmem:[%s3 + $0x128] sm:$0xff]
        %v5754 = vld [vmem:[%s3 + $0x130] sm:$0xff]
        %v5755 = vld [vmem:[%s3 + $0x138] sm:$0xff]
        %v5756 = vld [vmem:[%s3 + $0x140] sm:$0xff]
        %v5757 = vld [vmem:[%s3 + $0x148] sm:$0xff]
        %v5758 = vld [vmem:[%s3 + $0x150] sm:$0xff]
        %v5759 = vld [vmem:[%s3 + $0x158] sm:$0xff]
        %v5760 = vld [vmem:[%s3 + $0x160] sm:$0xff]
        %v5761 = vld [vmem:[%s3 + $0x168] sm:$0xff]
        %v5762 = vld [vmem:[%s3 + $0x170] sm:$0xff]
        %v5763 = vld [vmem:[%s3 + $0x178] sm:$0xff]
        %v5764 = vld [vmem:[%s3 + $0x180] sm:$0xff]
        %v5765 = vld [vmem:[%s3 + $0x188] sm:$0xff]
        %v5766 = vld [vmem:[%s3 + $0x190] sm:$0xff]
        %v5767 = vld [vmem:[%s3 + $0x198] sm:$0xff]
        %v5768 = vld [vmem:[%s3 + $0x1a0] sm:$0xff]
        %v5769 = vld [vmem:[%s3 + $0x1a8] sm:$0xff]
        %v5770 = vld [vmem:[%s3 + $0x1b0] sm:$0xff]
        %v5771 = vld [vmem:[%s3 + $0x1b8] sm:$0xff]
        %v5772 = vld [vmem:[%s3 + $0x1c0] sm:$0xff]
        %v5773 = vld [vmem:[%s3 + $0x1c8] sm:$0xff]
        %v5774 = vld [vmem:[%s3 + $0x1d0] sm:$0xff]
        %v5775 = vld [vmem:[%s3 + $0x1d8] sm:$0xff]
        %v5776 = vld [vmem:[%s3 + $0x1e0] sm:$0xff]
        %v5777 = vld [vmem:[%s3 + $0x1e8] sm:$0xff]
        %v5778 = vld [vmem:[%s3 + $0x1f0] sm:$0xff]
        %v5779 = vld [vmem:[%s3 + $0x1f8] sm:$0xff]
        %v5780 = vld [vmem:[%s4] sm:$0x3]
        %v5782 = vlaneseq
        %v5783 = vshrl.u32 %v5782, 7
        %v5784 = vsub.s32 0, %v5783
        %v5785 = vrot.slane %v5780, %v5784
        %v5786 = vlaneseq
        %v5787 = vshrl.u32 %v5786, 7
        %v5788 = vsub.s32 1, %v5787
        %v5789 = vrot.slane %v5780, %v5788
        %v5856 = vunpack.c.l.b16 %v5716
        %v5857 = vunpack.c.h.b16 %v5716
        %v5858 = vunpack.c.l.b16 %v5717
        %v5859 = vunpack.c.h.b16 %v5717
        %v5860 = vunpack.c.l.b16 %v5718
        %v5861 = vunpack.c.h.b16 %v5718
        %v5862 = vunpack.c.l.b16 %v5719
        %v5863 = vunpack.c.h.b16 %v5719
        %v5864 = vunpack.c.l.b16 %v5720
        %v5865 = vunpack.c.h.b16 %v5720
        %v5866 = vunpack.c.l.b16 %v5721
        %v5867 = vunpack.c.h.b16 %v5721
        %v5868 = vunpack.c.l.b16 %v5722
        %v5869 = vunpack.c.h.b16 %v5722
        %v5870 = vunpack.c.l.b16 %v5723
        %v5871 = vunpack.c.h.b16 %v5723
        %v5872 = vunpack.c.l.b16 %v5724
        %v5873 = vunpack.c.h.b16 %v5724
        %v5874 = vunpack.c.l.b16 %v5725
        %v5875 = vunpack.c.h.b16 %v5725
        %v5876 = vunpack.c.l.b16 %v5726
        %v5877 = vunpack.c.h.b16 %v5726
        %v5878 = vunpack.c.l.b16 %v5727
        %v5879 = vunpack.c.h.b16 %v5727
        %v5880 = vunpack.c.l.b16 %v5728
        %v5881 = vunpack.c.h.b16 %v5728
        %v5882 = vunpack.c.l.b16 %v5729
        %v5883 = vunpack.c.h.b16 %v5729
        %v5884 = vunpack.c.l.b16 %v5730
        %v5885 = vunpack.c.h.b16 %v5730
        %v5886 = vunpack.c.l.b16 %v5731
        %v5887 = vunpack.c.h.b16 %v5731
        %v5888 = vunpack.c.l.b16 %v5732
        %v5889 = vunpack.c.h.b16 %v5732
        %v5890 = vunpack.c.l.b16 %v5733
        %v5891 = vunpack.c.h.b16 %v5733
        %v5892 = vunpack.c.l.b16 %v5734
        %v5893 = vunpack.c.h.b16 %v5734
        %v5894 = vunpack.c.l.b16 %v5735
        %v5895 = vunpack.c.h.b16 %v5735
        %v5896 = vunpack.c.l.b16 %v5736
        %v5897 = vunpack.c.h.b16 %v5736
        %v5898 = vunpack.c.l.b16 %v5737
        %v5899 = vunpack.c.h.b16 %v5737
        %v5900 = vunpack.c.l.b16 %v5738
        %v5901 = vunpack.c.h.b16 %v5738
        %v5902 = vunpack.c.l.b16 %v5739
        %v5903 = vunpack.c.h.b16 %v5739
        %v5904 = vunpack.c.l.b16 %v5740
        %v5905 = vunpack.c.h.b16 %v5740
        %v5906 = vunpack.c.l.b16 %v5741
        %v5907 = vunpack.c.h.b16 %v5741
        %v5908 = vunpack.c.l.b16 %v5742
        %v5909 = vunpack.c.h.b16 %v5742
        %v5910 = vunpack.c.l.b16 %v5743
        %v5911 = vunpack.c.h.b16 %v5743
        %v5912 = vunpack.c.l.b16 %v5744
        %v5913 = vunpack.c.h.b16 %v5744
        %v5914 = vunpack.c.l.b16 %v5745
        %v5915 = vunpack.c.h.b16 %v5745
        %v5916 = vunpack.c.l.b16 %v5746
        %v5917 = vunpack.c.h.b16 %v5746
        %v5918 = vunpack.c.l.b16 %v5747
        %v5919 = vunpack.c.h.b16 %v5747
        %v5920 = vunpack.c.l.b16 %v5748
        %v5921 = vunpack.c.h.b16 %v5748
        %v5922 = vunpack.c.l.b16 %v5749
        %v5923 = vunpack.c.h.b16 %v5749
        %v5924 = vunpack.c.l.b16 %v5750
        %v5925 = vunpack.c.h.b16 %v5750
        %v5926 = vunpack.c.l.b16 %v5751
        %v5927 = vunpack.c.h.b16 %v5751
        %v5928 = vunpack.c.l.b16 %v5752
        %v5929 = vunpack.c.h.b16 %v5752
        %v5930 = vunpack.c.l.b16 %v5753
        %v5931 = vunpack.c.h.b16 %v5753
        %v5932 = vunpack.c.l.b16 %v5754
        %v5933 = vunpack.c.h.b16 %v5754
        %v5934 = vunpack.c.l.b16 %v5755
        %v5935 = vunpack.c.h.b16 %v5755
        %v5936 = vunpack.c.l.b16 %v5756
        %v5937 = vunpack.c.h.b16 %v5756
        %v5938 = vunpack.c.l.b16 %v5757
        %v5939 = vunpack.c.h.b16 %v5757
        %v5940 = vunpack.c.l.b16 %v5758
        %v5941 = vunpack.c.h.b16 %v5758
        %v5942 = vunpack.c.l.b16 %v5759
        %v5943 = vunpack.c.h.b16 %v5759
        %v5944 = vunpack.c.l.b16 %v5760
        %v5945 = vunpack.c.h.b16 %v5760
        %v5946 = vunpack.c.l.b16 %v5761
        %v5947 = vunpack.c.h.b16 %v5761
        %v5948 = vunpack.c.l.b16 %v5762
        %v5949 = vunpack.c.h.b16 %v5762
        %v5950 = vunpack.c.l.b16 %v5763
        %v5951 = vunpack.c.h.b16 %v5763
        %v5952 = vunpack.c.l.b16 %v5764
        %v5953 = vunpack.c.h.b16 %v5764
        %v5954 = vunpack.c.l.b16 %v5765
        %v5955 = vunpack.c.h.b16 %v5765
        %v5956 = vunpack.c.l.b16 %v5766
        %v5957 = vunpack.c.h.b16 %v5766
        %v5958 = vunpack.c.l.b16 %v5767
        %v5959 = vunpack.c.h.b16 %v5767
        %v5960 = vunpack.c.l.b16 %v5768
        %v5961 = vunpack.c.h.b16 %v5768
        %v5962 = vunpack.c.l.b16 %v5769
        %v5963 = vunpack.c.h.b16 %v5769
        %v5964 = vunpack.c.l.b16 %v5770
        %v5965 = vunpack.c.h.b16 %v5770
        %v5966 = vunpack.c.l.b16 %v5771
        %v5967 = vunpack.c.h.b16 %v5771
        %v5968 = vunpack.c.l.b16 %v5772
        %v5969 = vunpack.c.h.b16 %v5772
        %v5970 = vunpack.c.l.b16 %v5773
        %v5971 = vunpack.c.h.b16 %v5773
        %v5972 = vunpack.c.l.b16 %v5774
        %v5973 = vunpack.c.h.b16 %v5774
        %v5974 = vunpack.c.l.b16 %v5775
        %v5975 = vunpack.c.h.b16 %v5775
        %v5976 = vunpack.c.l.b16 %v5776
        %v5977 = vunpack.c.h.b16 %v5776
        %v5978 = vunpack.c.l.b16 %v5777
        %v5979 = vunpack.c.h.b16 %v5777
        %v5980 = vunpack.c.l.b16 %v5778
        %v5981 = vunpack.c.h.b16 %v5778
        %v5982 = vunpack.c.l.b16 %v5779
        %v5983 = vunpack.c.h.b16 %v5779
        %v5984 = vpack.c.b16 %v5858, %v5856
        %v5985 = vpack.c.b16 %v5859, %v5857
        %v5986 = vpack.c.b16 %v5862, %v5860
        %v5987 = vpack.c.b16 %v5863, %v5861
        %v5988 = vpack.c.b16 %v5866, %v5864
        %v5989 = vpack.c.b16 %v5867, %v5865
        %v5990 = vpack.c.b16 %v5870, %v5868
        %v5991 = vpack.c.b16 %v5871, %v5869
        %v5992 = vpack.c.b16 %v5874, %v5872
        %v5993 = vpack.c.b16 %v5875, %v5873
        %v5994 = vpack.c.b16 %v5878, %v5876
        %v5995 = vpack.c.b16 %v5879, %v5877
        %v5996 = vpack.c.b16 %v5882, %v5880
        %v5997 = vpack.c.b16 %v5883, %v5881
        %v5998 = vpack.c.b16 %v5886, %v5884
        %v5999 = vpack.c.b16 %v5887, %v5885
        %v6000 = vpack.c.b16 %v5890, %v5888
        %v6001 = vpack.c.b16 %v5891, %v5889
        %v6002 = vpack.c.b16 %v5894, %v5892
        %v6003 = vpack.c.b16 %v5895, %v5893
        %v6004 = vpack.c.b16 %v5898, %v5896
        %v6005 = vpack.c.b16 %v5899, %v5897
        %v6006 = vpack.c.b16 %v5902, %v5900
        %v6007 = vpack.c.b16 %v5903, %v5901
        %v6008 = vpack.c.b16 %v5906, %v5904
        %v6009 = vpack.c.b16 %v5907, %v5905
        %v6010 = vpack.c.b16 %v5910, %v5908
        %v6011 = vpack.c.b16 %v5911, %v5909
        %v6012 = vpack.c.b16 %v5914, %v5912
        %v6013 = vpack.c.b16 %v5915, %v5913
        %v6014 = vpack.c.b16 %v5918, %v5916
        %v6015 = vpack.c.b16 %v5919, %v5917
        %v6016 = vpack.c.b16 %v5922, %v5920
        %v6017 = vpack.c.b16 %v5923, %v5921
        %v6018 = vpack.c.b16 %v5926, %v5924
        %v6019 = vpack.c.b16 %v5927, %v5925
        %v6020 = vpack.c.b16 %v5930, %v5928
        %v6021 = vpack.c.b16 %v5931, %v5929
        %v6022 = vpack.c.b16 %v5934, %v5932
        %v6023 = vpack.c.b16 %v5935, %v5933
        %v6024 = vpack.c.b16 %v5938, %v5936
        %v6025 = vpack.c.b16 %v5939, %v5937
        %v6026 = vpack.c.b16 %v5942, %v5940
        %v6027 = vpack.c.b16 %v5943, %v5941
        %v6028 = vpack.c.b16 %v5946, %v5944
        %v6029 = vpack.c.b16 %v5947, %v5945
        %v6030 = vpack.c.b16 %v5950, %v5948
        %v6031 = vpack.c.b16 %v5951, %v5949
        %v6032 = vpack.c.b16 %v5954, %v5952
        %v6033 = vpack.c.b16 %v5955, %v5953
        %v6034 = vpack.c.b16 %v5958, %v5956
        %v6035 = vpack.c.b16 %v5959, %v5957
        %v6036 = vpack.c.b16 %v5962, %v5960
        %v6037 = vpack.c.b16 %v5963, %v5961
        %v6038 = vpack.c.b16 %v5966, %v5964
        %v6039 = vpack.c.b16 %v5967, %v5965
        %v6040 = vpack.c.b16 %v5970, %v5968
        %v6041 = vpack.c.b16 %v5971, %v5969
        %v6042 = vpack.c.b16 %v5974, %v5972
        %v6043 = vpack.c.b16 %v5975, %v5973
        %v6044 = vpack.c.b16 %v5978, %v5976
        %v6045 = vpack.c.b16 %v5979, %v5977
        %v6046 = vpack.c.b16 %v5982, %v5980
        %v6047 = vpack.c.b16 %v5983, %v5981
        %6112 = vmatprep.subr.bf16.mxu0 %v5985
        %6113 = vmatpush1.bf16.msra.mxu0 %v5984
        %6114 = vmatprep.subr.bf16.mxu0 %v5987
        %6115 = vmatpush1.bf16.msra.mxu0 %v5986
        %6116 = vmatprep.subr.bf16.mxu0 %v5989
        %6117 = vmatpush1.bf16.msra.mxu0 %v5988
        %6118 = vmatprep.subr.bf16.mxu0 %v5991
        %6119 = vmatpush1.bf16.msra.mxu0 %v5990
        %6120 = vmatprep.subr.bf16.mxu0 %v5993
        %6121 = vmatpush1.bf16.msra.mxu0 %v5992
        %6122 = vmatprep.subr.bf16.mxu0 %v5995
        %6123 = vmatpush1.bf16.msra.mxu0 %v5994
        %6124 = vmatprep.subr.bf16.mxu0 %v5997
        %6125 = vmatpush1.bf16.msra.mxu0 %v5996
        %6126 = vmatprep.subr.bf16.mxu0 %v5999
        %6127 = vmatpush1.bf16.msra.mxu0 %v5998
        %6128 = vmatprep.subr.bf16.mxu0 %v6001
        %6129 = vmatpush1.bf16.msra.mxu0 %v6000
        %6130 = vmatprep.subr.bf16.mxu0 %v6003
        %6131 = vmatpush1.bf16.msra.mxu0 %v6002
        %6132 = vmatprep.subr.bf16.mxu0 %v6005
        %6133 = vmatpush1.bf16.msra.mxu0 %v6004
        %6134 = vmatprep.subr.bf16.mxu0 %v6007
        %6135 = vmatpush1.bf16.msra.mxu0 %v6006
        %6136 = vmatprep.subr.bf16.mxu0 %v6009
        %6137 = vmatpush1.bf16.msra.mxu0 %v6008
        %6138 = vmatprep.subr.bf16.mxu0 %v6011
        %6139 = vmatpush1.bf16.msra.mxu0 %v6010
        %6140 = vmatprep.subr.bf16.mxu0 %v6013
        %6141 = vmatpush1.bf16.msra.mxu0 %v6012
        %6142 = vmatprep.subr.bf16.mxu0 %v6015
        %6143 = vmatpush1.bf16.msra.mxu0 %v6014
        %6144 = vmatprep.mubr.bf16.mxu0 %v5589
        %6145 = vmatmul.mubr.bf16.gmra.mrb[0].mxu0 %v5588
        %v6146 = vpop.f32.mrb[0].mxu0
        %v6147 = vadd.f32 %v5785, %v6146
        %v6148 = vpop.f32.mrb[0].mxu0
        %v6149 = vadd.f32 %v5789, %v6148
        %v6150 = vpop.f32.mrb[0].mxu0
        %v6151 = vadd.f32 %v5785, %v6150
        %v6152 = vpop.f32.mrb[0].mxu0
        %v6153 = vadd.f32 %v5789, %v6152
        %6154 = vmatprep.mubr.bf16.mxu0 %v5593
        %6155 = vmatmul.mubr.bf16.gmra.mrb[0].mxu0 %v5592
        %v6156 = vpop.f32.mrb[0].mxu0
        %v6157 = vadd.f32 %v5785, %v6156
        %v6158 = vpop.f32.mrb[0].mxu0
        %v6159 = vadd.f32 %v5789, %v6158
        %v6160 = vpop.f32.mrb[0].mxu0
        %v6161 = vadd.f32 %v5785, %v6160
        %v6162 = vpop.f32.mrb[0].mxu0
        %v6163 = vadd.f32 %v5789, %v6162
        %6164 = vmatprep.mubr.bf16.mxu0 %v5597
        %6165 = vmatmul.mubr.bf16.gmra.mrb[0].mxu0 %v5596
        %v6166 = vpop.f32.mrb[0].mxu0
        %v6167 = vadd.f32 %v5785, %v6166
        %v6168 = vpop.f32.mrb[0].mxu0
        %v6169 = vadd.f32 %v5789, %v6168
        %v6170 = vpop.f32.mrb[0].mxu0
        %v6171 = vadd.f32 %v5785, %v6170
        %v6172 = vpop.f32.mrb[0].mxu0
        %v6173 = vadd.f32 %v5789, %v6172
        %6174 = vmatprep.mubr.bf16.mxu0 %v5601
        %6175 = vmatmul.mubr.bf16.gmra.mrb[0].mxu0 %v5600
        %v6176 = vpop.f32.mrb[0].mxu0
        %v6177 = vadd.f32 %v5785, %v6176
        %v6178 = vpop.f32.mrb[0].mxu0
        %v6179 = vadd.f32 %v5789, %v6178
        %v6180 = vpop.f32.mrb[0].mxu0
        %v6181 = vadd.f32 %v5785, %v6180
        %v6182 = vpop.f32.mrb[0].mxu0
        %v6183 = vadd.f32 %v5789, %v6182
        %6184 = vmatprep.mubr.bf16.mxu0 %v5605
        %6185 = vmatmul.mubr.bf16.gmra.mrb[0].mxu0 %v5604
        %v6186 = vpop.f32.mrb[0].mxu0
        %v6187 = vadd.f32 %v5785, %v6186
        %v6188 = vpop.f32.mrb[0].mxu0
        %v6189 = vadd.f32 %v5789, %v6188
        %v6190 = vpop.f32.mrb[0].mxu0
        %v6191 = vadd.f32 %v5785, %v6190
        %v6192 = vpop.f32.mrb[0].mxu0
        %v6193 = vadd.f32 %v5789, %v6192
        %6194 = vmatprep.mubr.bf16.mxu0 %v5609
        %6195 = vmatmul.mubr.bf16.gmra.mrb[0].mxu0 %v5608
        %v6196 = vpop.f32.mrb[0].mxu0
        %v6197 = vadd.f32 %v5785, %v6196
        %v6198 = vpop.f32.mrb[0].mxu0
        %v6199 = vadd.f32 %v5789, %v6198
        %v6200 = vpop.f32.mrb[0].mxu0
        %v6201 = vadd.f32 %v5785, %v6200
        %v6202 = vpop.f32.mrb[0].mxu0
        %v6203 = vadd.f32 %v5789, %v6202
        %6204 = vmatprep.mubr.bf16.mxu0 %v5613
        %6205 = vmatmul.mubr.bf16.gmra.mrb[0].mxu0 %v5612
        %v6206 = vpop.f32.mrb[0].mxu0
        %v6207 = vadd.f32 %v5785, %v6206
        %v6208 = vpop.f32.mrb[0].mxu0
        %v6209 = vadd.f32 %v5789, %v6208
        %v6210 = vpop.f32.mrb[0].mxu0
        %v6211 = vadd.f32 %v5785, %v6210
        %v6212 = vpop.f32.mrb[0].mxu0
        %v6213 = vadd.f32 %v5789, %v6212
        %6214 = vmatprep.mubr.bf16.mxu0 %v5617
        %6215 = vmatmul.mubr.bf16.gmra.mrb[0].mxu0 %v5616
        %v6216 = vpop.f32.mrb[0].mxu0
        %v6217 = vadd.f32 %v5785, %v6216
        %v6218 = vpop.f32.mrb[0].mxu0
        %v6219 = vadd.f32 %v5789, %v6218
        %v6220 = vpop.f32.mrb[0].mxu0
        %v6221 = vadd.f32 %v5785, %v6220
        %v6222 = vpop.f32.mrb[0].mxu0
        %v6223 = vadd.f32 %v5789, %v6222
        %6224 = vmatprep.mubr.bf16.mxu0 %v5621
        %6225 = vmatmul.mubr.bf16.gmra.mrb[0].mxu0 %v5620
        %v6226 = vpop.f32.mrb[0].mxu0
        %v6227 = vadd.f32 %v5785, %v6226
        %v6228 = vpop.f32.mrb[0].mxu0
        %v6229 = vadd.f32 %v5789, %v6228
        %v6230 = vpop.f32.mrb[0].mxu0
        %v6231 = vadd.f32 %v5785, %v6230
        %v6232 = vpop.f32.mrb[0].mxu0
        %v6233 = vadd.f32 %v5789, %v6232
        %6234 = vmatprep.mubr.bf16.mxu0 %v5625
        %6235 = vmatmul.mubr.bf16.gmra.mrb[0].mxu0 %v5624
        %v6236 = vpop.f32.mrb[0].mxu0
        %v6237 = vadd.f32 %v5785, %v6236
        %v6238 = vpop.f32.mrb[0].mxu0
        %v6239 = vadd.f32 %v5789, %v6238
        %v6240 = vpop.f32.mrb[0].mxu0
        %v6241 = vadd.f32 %v5785, %v6240
        %v6242 = vpop.f32.mrb[0].mxu0
        %v6243 = vadd.f32 %v5789, %v6242
        %6244 = vmatprep.mubr.bf16.mxu0 %v5629
        %6245 = vmatmul.mubr.bf16.gmra.mrb[0].mxu0 %v5628
        %v6246 = vpop.f32.mrb[0].mxu0
        %v6247 = vadd.f32 %v5785, %v6246
        %v6248 = vpop.f32.mrb[0].mxu0
        %v6249 = vadd.f32 %v5789, %v6248
        %v6250 = vpop.f32.mrb[0].mxu0
        %v6251 = vadd.f32 %v5785, %v6250
        %v6252 = vpop.f32.mrb[0].mxu0
        %v6253 = vadd.f32 %v5789, %v6252
        %6254 = vmatprep.mubr.bf16.mxu0 %v5633
        %6255 = vmatmul.mubr.bf16.gmra.mrb[0].mxu0 %v5632
        %v6256 = vpop.f32.mrb[0].mxu0
        %v6257 = vadd.f32 %v5785, %v6256
        %v6258 = vpop.f32.mrb[0].mxu0
        %v6259 = vadd.f32 %v5789, %v6258
        %v6260 = vpop.f32.mrb[0].mxu0
        %v6261 = vadd.f32 %v5785, %v6260
        %v6262 = vpop.f32.mrb[0].mxu0
        %v6263 = vadd.f32 %v5789, %v6262
        %6264 = vmatprep.mubr.bf16.mxu0 %v5637
        %6265 = vmatmul.mubr.bf16.gmra.mrb[0].mxu0 %v5636
        %v6266 = vpop.f32.mrb[0].mxu0
        %v6267 = vadd.f32 %v5785, %v6266
        %v6268 = vpop.f32.mrb[0].mxu0
        %v6269 = vadd.f32 %v5789, %v6268
        %v6270 = vpop.f32.mrb[0].mxu0
        %v6271 = vadd.f32 %v5785, %v6270
        %v6272 = vpop.f32.mrb[0].mxu0
        %v6273 = vadd.f32 %v5789, %v6272
        %6274 = vmatprep.mubr.bf16.mxu0 %v5641
        %6275 = vmatmul.mubr.bf16.gmra.mrb[0].mxu0 %v5640
        %v6276 = vpop.f32.mrb[0].mxu0
        %v6277 = vadd.f32 %v5785, %v6276
        %v6278 = vpop.f32.mrb[0].mxu0
        %v6279 = vadd.f32 %v5789, %v6278
        %v6280 = vpop.f32.mrb[0].mxu0
        %v6281 = vadd.f32 %v5785, %v6280
        %v6282 = vpop.f32.mrb[0].mxu0
        %v6283 = vadd.f32 %v5789, %v6282
        %6284 = vmatprep.mubr.bf16.mxu0 %v5645
        %6285 = vmatmul.mubr.bf16.gmra.mrb[0].mxu0 %v5644
        %v6286 = vpop.f32.mrb[0].mxu0
        %v6287 = vadd.f32 %v5785, %v6286
        %v6288 = vpop.f32.mrb[0].mxu0
        %v6289 = vadd.f32 %v5789, %v6288
        %v6290 = vpop.f32.mrb[0].mxu0
        %v6291 = vadd.f32 %v5785, %v6290
        %v6292 = vpop.f32.mrb[0].mxu0
        %v6293 = vadd.f32 %v5789, %v6292
        %6294 = vmatprep.mubr.bf16.mxu0 %v5649
        %6295 = vmatmul.mubr.bf16.gmra.mrb[0].mxu0 %v5648
        %v6296 = vpop.f32.mrb[0].mxu0
        %v6297 = vadd.f32 %v5785, %v6296
        %v6298 = vpop.f32.mrb[0].mxu0
        %v6299 = vadd.f32 %v5789, %v6298
        %v6300 = vpop.f32.mrb[0].mxu0
        %v6301 = vadd.f32 %v5785, %v6300
        %v6302 = vpop.f32.mrb[0].mxu0
        %v6303 = vadd.f32 %v5789, %v6302
        %6304 = vmatprep.mubr.bf16.mxu0 %v5653
        %6305 = vmatmul.mubr.bf16.gmra.mrb[0].mxu0 %v5652
        %v6306 = vpop.f32.mrb[0].mxu0
        %v6307 = vadd.f32 %v5785, %v6306
        %v6308 = vpop.f32.mrb[0].mxu0
        %v6309 = vadd.f32 %v5789, %v6308
        %v6310 = vpop.f32.mrb[0].mxu0
        %v6311 = vadd.f32 %v5785, %v6310
        %v6312 = vpop.f32.mrb[0].mxu0
        %v6313 = vadd.f32 %v5789, %v6312
        %6314 = vmatprep.mubr.bf16.mxu0 %v5657
        %6315 = vmatmul.mubr.bf16.gmra.mrb[0].mxu0 %v5656
        %v6316 = vpop.f32.mrb[0].mxu0
        %v6317 = vadd.f32 %v5785, %v6316
        %v6318 = vpop.f32.mrb[0].mxu0
        %v6319 = vadd.f32 %v5789, %v6318
        %v6320 = vpop.f32.mrb[0].mxu0
        %v6321 = vadd.f32 %v5785, %v6320
        %v6322 = vpop.f32.mrb[0].mxu0
        %v6323 = vadd.f32 %v5789, %v6322
        %6324 = vmatprep.mubr.bf16.mxu0 %v5661
        %6325 = vmatmul.mubr.bf16.gmra.mrb[0].mxu0 %v5660
        %v6326 = vpop.f32.mrb[0].mxu0
        %v6327 = vadd.f32 %v5785, %v6326
        %v6328 = vpop.f32.mrb[0].mxu0
        %v6329 = vadd.f32 %v5789, %v6328
        %v6330 = vpop.f32.mrb[0].mxu0
        %v6331 = vadd.f32 %v5785, %v6330
        %v6332 = vpop.f32.mrb[0].mxu0
        %v6333 = vadd.f32 %v5789, %v6332
        %6334 = vmatprep.mubr.bf16.mxu0 %v5665
        %6335 = vmatmul.mubr.bf16.gmra.mrb[0].mxu0 %v5664
        %v6336 = vpop.f32.mrb[0].mxu0
        %v6337 = vadd.f32 %v5785, %v6336
        %v6338 = vpop.f32.mrb[0].mxu0
        %v6339 = vadd.f32 %v5789, %v6338
        %v6340 = vpop.f32.mrb[0].mxu0
        %v6341 = vadd.f32 %v5785, %v6340
        %v6342 = vpop.f32.mrb[0].mxu0
        %v6343 = vadd.f32 %v5789, %v6342
        %6344 = vmatprep.mubr.bf16.mxu0 %v5669
        %6345 = vmatmul.mubr.bf16.gmra.mrb[0].mxu0 %v5668
        %v6346 = vpop.f32.mrb[0].mxu0
        %v6347 = vadd.f32 %v5785, %v6346
        %v6348 = vpop.f32.mrb[0].mxu0
        %v6349 = vadd.f32 %v5789, %v6348
        %v6350 = vpop.f32.mrb[0].mxu0
        %v6351 = vadd.f32 %v5785, %v6350
        %v6352 = vpop.f32.mrb[0].mxu0
        %v6353 = vadd.f32 %v5789, %v6352
        %6354 = vmatprep.mubr.bf16.mxu0 %v5673
        %6355 = vmatmul.mubr.bf16.gmra.mrb[0].mxu0 %v5672
        %v6356 = vpop.f32.mrb[0].mxu0
        %v6357 = vadd.f32 %v5785, %v6356
        %v6358 = vpop.f32.mrb[0].mxu0
        %v6359 = vadd.f32 %v5789, %v6358
        %v6360 = vpop.f32.mrb[0].mxu0
        %v6361 = vadd.f32 %v5785, %v6360
        %v6362 = vpop.f32.mrb[0].mxu0
        %v6363 = vadd.f32 %v5789, %v6362
        %6364 = vmatprep.mubr.bf16.mxu0 %v5677
        %6365 = vmatmul.mubr.bf16.gmra.mrb[0].mxu0 %v5676
        %v6366 = vpop.f32.mrb[0].mxu0
        %v6367 = vadd.f32 %v5785, %v6366
        %v6368 = vpop.f32.mrb[0].mxu0
        %v6369 = vadd.f32 %v5789, %v6368
        %v6370 = vpop.f32.mrb[0].mxu0
        %v6371 = vadd.f32 %v5785, %v6370
        %v6372 = vpop.f32.mrb[0].mxu0
        %v6373 = vadd.f32 %v5789, %v6372
        %6374 = vmatprep.mubr.bf16.mxu0 %v5681
        %6375 = vmatmul.mubr.bf16.gmra.mrb[0].mxu0 %v5680
        %v6376 = vpop.f32.mrb[0].mxu0
        %v6377 = vadd.f32 %v5785, %v6376
        %v6378 = vpop.f32.mrb[0].mxu0
        %v6379 = vadd.f32 %v5789, %v6378
        %v6380 = vpop.f32.mrb[0].mxu0
        %v6381 = vadd.f32 %v5785, %v6380
        %v6382 = vpop.f32.mrb[0].mxu0
        %v6383 = vadd.f32 %v5789, %v6382
        %6384 = vmatprep.mubr.bf16.mxu0 %v5685
        %6385 = vmatmul.mubr.bf16.gmra.mrb[0].mxu0 %v5684
        %v6386 = vpop.f32.mrb[0].mxu0
        %v6387 = vadd.f32 %v5785, %v6386
        %v6388 = vpop.f32.mrb[0].mxu0
        %v6389 = vadd.f32 %v5789, %v6388
        %v6390 = vpop.f32.mrb[0].mxu0
        %v6391 = vadd.f32 %v5785, %v6390
        %v6392 = vpop.f32.mrb[0].mxu0
        %v6393 = vadd.f32 %v5789, %v6392
        %6394 = vmatprep.mubr.bf16.mxu0 %v5689
        %6395 = vmatmul.mubr.bf16.gmra.mrb[0].mxu0 %v5688
        %v6396 = vpop.f32.mrb[0].mxu0
        %v6397 = vadd.f32 %v5785, %v6396
        %v6398 = vpop.f32.mrb[0].mxu0
        %v6399 = vadd.f32 %v5789, %v6398
        %v6400 = vpop.f32.mrb[0].mxu0
        %v6401 = vadd.f32 %v5785, %v6400
        %v6402 = vpop.f32.mrb[0].mxu0
        %v6403 = vadd.f32 %v5789, %v6402
        %6404 = vmatprep.mubr.bf16.mxu0 %v5693
        %6405 = vmatmul.mubr.bf16.gmra.mrb[0].mxu0 %v5692
        %v6406 = vpop.f32.mrb[0].mxu0
        %v6407 = vadd.f32 %v5785, %v6406
        %v6408 = vpop.f32.mrb[0].mxu0
        %v6409 = vadd.f32 %v5789, %v6408
        %v6410 = vpop.f32.mrb[0].mxu0
        %v6411 = vadd.f32 %v5785, %v6410
        %v6412 = vpop.f32.mrb[0].mxu0
        %v6413 = vadd.f32 %v5789, %v6412
        %6414 = vmatprep.mubr.bf16.mxu0 %v5697
        %6415 = vmatmul.mubr.bf16.gmra.mrb[0].mxu0 %v5696
        %v6416 = vpop.f32.mrb[0].mxu0
        %v6417 = vadd.f32 %v5785, %v6416
        %v6418 = vpop.f32.mrb[0].mxu0
        %v6419 = vadd.f32 %v5789, %v6418
        %v6420 = vpop.f32.mrb[0].mxu0
        %v6421 = vadd.f32 %v5785, %v6420
        %v6422 = vpop.f32.mrb[0].mxu0
        %v6423 = vadd.f32 %v5789, %v6422
        %6424 = vmatprep.mubr.bf16.mxu0 %v5701
        %6425 = vmatmul.mubr.bf16.gmra.mrb[0].mxu0 %v5700
        %v6426 = vpop.f32.mrb[0].mxu0
        %v6427 = vadd.f32 %v5785, %v6426
        %v6428 = vpop.f32.mrb[0].mxu0
        %v6429 = vadd.f32 %v5789, %v6428
        %v6430 = vpop.f32.mrb[0].mxu0
        %v6431 = vadd.f32 %v5785, %v6430
        %v6432 = vpop.f32.mrb[0].mxu0
        %v6433 = vadd.f32 %v5789, %v6432
        %6434 = vmatprep.mubr.bf16.mxu0 %v5705
        %6435 = vmatmul.mubr.bf16.gmra.mrb[0].mxu0 %v5704
        %v6436 = vpop.f32.mrb[0].mxu0
        %v6437 = vadd.f32 %v5785, %v6436
        %v6438 = vpop.f32.mrb[0].mxu0
        %v6439 = vadd.f32 %v5789, %v6438
        %v6440 = vpop.f32.mrb[0].mxu0
        %v6441 = vadd.f32 %v5785, %v6440
        %v6442 = vpop.f32.mrb[0].mxu0
        %v6443 = vadd.f32 %v5789, %v6442
        %6444 = vmatprep.mubr.bf16.mxu0 %v5709
        %6445 = vmatmul.mubr.bf16.gmra.mrb[0].mxu0 %v5708
        %v6446 = vpop.f32.mrb[0].mxu0
        %v6447 = vadd.f32 %v5785, %v6446
        %v6448 = vpop.f32.mrb[0].mxu0
        %v6449 = vadd.f32 %v5789, %v6448
        %v6450 = vpop.f32.mrb[0].mxu0
        %v6451 = vadd.f32 %v5785, %v6450
        %v6452 = vpop.f32.mrb[0].mxu0
        %v6453 = vadd.f32 %v5789, %v6452
        %6454 = vmatprep.mubr.bf16.mxu0 %v5713
        %6455 = vmatmul.mubr.bf16.gmra.mrb[0].mxu0 %v5712
        %v6456 = vpop.f32.mrb[0].mxu0
        %v6457 = vadd.f32 %v5785, %v6456
        %v6458 = vpop.f32.mrb[0].mxu0
        %v6459 = vadd.f32 %v5789, %v6458
        %v6460 = vpop.f32.mrb[0].mxu0
        %v6461 = vadd.f32 %v5785, %v6460
        %v6462 = vpop.f32.mrb[0].mxu0
        %v6463 = vadd.f32 %v5789, %v6462
        %6464 = vdwg.mxu0
        %6465 = vmatprep.subr.bf16.mxu0 %v6017
        %6466 = vmatpush1.bf16.msra.mxu0 %v6016
        %6467 = vmatprep.subr.bf16.mxu0 %v6019
        %6468 = vmatpush1.bf16.msra.mxu0 %v6018
        %6469 = vmatprep.subr.bf16.mxu0 %v6021
        %6470 = vmatpush1.bf16.msra.mxu0 %v6020
        %6471 = vmatprep.subr.bf16.mxu0 %v6023
        %6472 = vmatpush1.bf16.msra.mxu0 %v6022
        %6473 = vmatprep.subr.bf16.mxu0 %v6025
        %6474 = vmatpush1.bf16.msra.mxu0 %v6024
        %6475 = vmatprep.subr.bf16.mxu0 %v6027
        %6476 = vmatpush1.bf16.msra.mxu0 %v6026
        %6477 = vmatprep.subr.bf16.mxu0 %v6029
        %6478 = vmatpush1.bf16.msra.mxu0 %v6028
        %6479 = vmatprep.subr.bf16.mxu0 %v6031
        %6480 = vmatpush1.bf16.msra.mxu0 %v6030
        %6481 = vmatprep.subr.bf16.mxu0 %v6033
        %6482 = vmatpush1.bf16.msra.mxu0 %v6032
        %6483 = vmatprep.subr.bf16.mxu0 %v6035
        %6484 = vmatpush1.bf16.msra.mxu0 %v6034
        %6485 = vmatprep.subr.bf16.mxu0 %v6037
        %6486 = vmatpush1.bf16.msra.mxu0 %v6036
        %6487 = vmatprep.subr.bf16.mxu0 %v6039
        %6488 = vmatpush1.bf16.msra.mxu0 %v6038
        %6489 = vmatprep.subr.bf16.mxu0 %v6041
        %6490 = vmatpush1.bf16.msra.mxu0 %v6040
        %6491 = vmatprep.subr.bf16.mxu0 %v6043
        %6492 = vmatpush1.bf16.msra.mxu0 %v6042
        %6493 = vmatprep.subr.bf16.mxu0 %v6045
        %6494 = vmatpush1.bf16.msra.mxu0 %v6044
        %6495 = vmatprep.subr.bf16.mxu0 %v6047
        %6496 = vmatpush1.bf16.msra.mxu0 %v6046
        %6497 = vmatprep.mubr.bf16.mxu0 %v5591
        %6498 = vmatmul.mubr.bf16.gmra.mrb[0].mxu0 %v5590
        %v6499 = vpop.f32.mrb[0].mxu0
        %v6500 = vadd.f32 %v6147, %v6499
        %v6501 = vpop.f32.mrb[0].mxu0
        %v6502 = vadd.f32 %v6149, %v6501
        %v6503 = vpop.f32.mrb[0].mxu0
        %v6504 = vadd.f32 %v6151, %v6503
        %v6505 = vpop.f32.mrb[0].mxu0
        %v6506 = vadd.f32 %v6153, %v6505
        %6507 = vmatprep.mubr.bf16.mxu0 %v5595
        %6508 = vmatmul.mubr.bf16.gmra.mrb[0].mxu0 %v5594
        %v6509 = vpop.f32.mrb[0].mxu0
        %v6510 = vadd.f32 %v6157, %v6509
        %v6511 = vpop.f32.mrb[0].mxu0
        %v6512 = vadd.f32 %v6159, %v6511
        %v6513 = vpop.f32.mrb[0].mxu0
        %v6514 = vadd.f32 %v6161, %v6513
        %v6515 = vpop.f32.mrb[0].mxu0
        %v6516 = vadd.f32 %v6163, %v6515
        %6517 = vmatprep.mubr.bf16.mxu0 %v5599
        %6518 = vmatmul.mubr.bf16.gmra.mrb[0].mxu0 %v5598
        %v6519 = vpop.f32.mrb[0].mxu0
        %v6520 = vadd.f32 %v6167, %v6519
        %v6521 = vpop.f32.mrb[0].mxu0
        %v6522 = vadd.f32 %v6169, %v6521
        %v6523 = vpop.f32.mrb[0].mxu0
        %v6524 = vadd.f32 %v6171, %v6523
        %v6525 = vpop.f32.mrb[0].mxu0
        %v6526 = vadd.f32 %v6173, %v6525
        %6527 = vmatprep.mubr.bf16.mxu0 %v5603
        %6528 = vmatmul.mubr.bf16.gmra.mrb[0].mxu0 %v5602
        %v6529 = vpop.f32.mrb[0].mxu0
        %v6530 = vadd.f32 %v6177, %v6529
        %v6531 = vpop.f32.mrb[0].mxu0
        %v6532 = vadd.f32 %v6179, %v6531
        %v6533 = vpop.f32.mrb[0].mxu0
        %v6534 = vadd.f32 %v6181, %v6533
        %v6535 = vpop.f32.mrb[0].mxu0
        %v6536 = vadd.f32 %v6183, %v6535
        %6537 = vmatprep.mubr.bf16.mxu0 %v5607
        %6538 = vmatmul.mubr.bf16.gmra.mrb[0].mxu0 %v5606
        %v6539 = vpop.f32.mrb[0].mxu0
        %v6540 = vadd.f32 %v6187, %v6539
        %v6541 = vpop.f32.mrb[0].mxu0
        %v6542 = vadd.f32 %v6189, %v6541
        %v6543 = vpop.f32.mrb[0].mxu0
        %v6544 = vadd.f32 %v6191, %v6543
        %v6545 = vpop.f32.mrb[0].mxu0
        %v6546 = vadd.f32 %v6193, %v6545
        %6547 = vmatprep.mubr.bf16.mxu0 %v5611
        %6548 = vmatmul.mubr.bf16.gmra.mrb[0].mxu0 %v5610
        %v6549 = vpop.f32.mrb[0].mxu0
        %v6550 = vadd.f32 %v6197, %v6549
        %v6551 = vpop.f32.mrb[0].mxu0
        %v6552 = vadd.f32 %v6199, %v6551
        %v6553 = vpop.f32.mrb[0].mxu0
        %v6554 = vadd.f32 %v6201, %v6553
        %v6555 = vpop.f32.mrb[0].mxu0
        %v6556 = vadd.f32 %v6203, %v6555
        %6557 = vmatprep.mubr.bf16.mxu0 %v5615
        %6558 = vmatmul.mubr.bf16.gmra.mrb[0].mxu0 %v5614
        %v6559 = vpop.f32.mrb[0].mxu0
        %v6560 = vadd.f32 %v6207, %v6559
        %v6561 = vpop.f32.mrb[0].mxu0
        %v6562 = vadd.f32 %v6209, %v6561
        %v6563 = vpop.f32.mrb[0].mxu0
        %v6564 = vadd.f32 %v6211, %v6563
        %v6565 = vpop.f32.mrb[0].mxu0
        %v6566 = vadd.f32 %v6213, %v6565
        %6567 = vmatprep.mubr.bf16.mxu0 %v5619
        %6568 = vmatmul.mubr.bf16.gmra.mrb[0].mxu0 %v5618
        %v6569 = vpop.f32.mrb[0].mxu0
        %v6570 = vadd.f32 %v6217, %v6569
        %v6571 = vpop.f32.mrb[0].mxu0
        %v6572 = vadd.f32 %v6219, %v6571
        %v6573 = vpop.f32.mrb[0].mxu0
        %v6574 = vadd.f32 %v6221, %v6573
        %v6575 = vpop.f32.mrb[0].mxu0
        %v6576 = vadd.f32 %v6223, %v6575
        %6577 = vmatprep.mubr.bf16.mxu0 %v5623
        %6578 = vmatmul.mubr.bf16.gmra.mrb[0].mxu0 %v5622
        %v6579 = vpop.f32.mrb[0].mxu0
        %v6580 = vadd.f32 %v6227, %v6579
        %v6581 = vpop.f32.mrb[0].mxu0
        %v6582 = vadd.f32 %v6229, %v6581
        %v6583 = vpop.f32.mrb[0].mxu0
        %v6584 = vadd.f32 %v6231, %v6583
        %v6585 = vpop.f32.mrb[0].mxu0
        %v6586 = vadd.f32 %v6233, %v6585
        %6587 = vmatprep.mubr.bf16.mxu0 %v5627
        %6588 = vmatmul.mubr.bf16.gmra.mrb[0].mxu0 %v5626
        %v6589 = vpop.f32.mrb[0].mxu0
        %v6590 = vadd.f32 %v6237, %v6589
        %v6591 = vpop.f32.mrb[0].mxu0
        %v6592 = vadd.f32 %v6239, %v6591
        %v6593 = vpop.f32.mrb[0].mxu0
        %v6594 = vadd.f32 %v6241, %v6593
        %v6595 = vpop.f32.mrb[0].mxu0
        %v6596 = vadd.f32 %v6243, %v6595
        %6597 = vmatprep.mubr.bf16.mxu0 %v5631
        %6598 = vmatmul.mubr.bf16.gmra.mrb[0].mxu0 %v5630
        %v6599 = vpop.f32.mrb[0].mxu0
        %v6600 = vadd.f32 %v6247, %v6599
        %v6601 = vpop.f32.mrb[0].mxu0
        %v6602 = vadd.f32 %v6249, %v6601
        %v6603 = vpop.f32.mrb[0].mxu0
        %v6604 = vadd.f32 %v6251, %v6603
        %v6605 = vpop.f32.mrb[0].mxu0
        %v6606 = vadd.f32 %v6253, %v6605
        %6607 = vmatprep.mubr.bf16.mxu0 %v5635
        %6608 = vmatmul.mubr.bf16.gmra.mrb[0].mxu0 %v5634
        %v6609 = vpop.f32.mrb[0].mxu0
        %v6610 = vadd.f32 %v6257, %v6609
        %v6611 = vpop.f32.mrb[0].mxu0
        %v6612 = vadd.f32 %v6259, %v6611
        %v6613 = vpop.f32.mrb[0].mxu0
        %v6614 = vadd.f32 %v6261, %v6613
        %v6615 = vpop.f32.mrb[0].mxu0
        %v6616 = vadd.f32 %v6263, %v6615
        %6617 = vmatprep.mubr.bf16.mxu0 %v5639
        %6618 = vmatmul.mubr.bf16.gmra.mrb[0].mxu0 %v5638
        %v6619 = vpop.f32.mrb[0].mxu0
        %v6620 = vadd.f32 %v6267, %v6619
        %v6621 = vpop.f32.mrb[0].mxu0
        %v6622 = vadd.f32 %v6269, %v6621
        %v6623 = vpop.f32.mrb[0].mxu0
        %v6624 = vadd.f32 %v6271, %v6623
        %v6625 = vpop.f32.mrb[0].mxu0
        %v6626 = vadd.f32 %v6273, %v6625
        %6627 = vmatprep.mubr.bf16.mxu0 %v5643
        %6628 = vmatmul.mubr.bf16.gmra.mrb[0].mxu0 %v5642
        %v6629 = vpop.f32.mrb[0].mxu0
        %v6630 = vadd.f32 %v6277, %v6629
        %v6631 = vpop.f32.mrb[0].mxu0
        %v6632 = vadd.f32 %v6279, %v6631
        %v6633 = vpop.f32.mrb[0].mxu0
        %v6634 = vadd.f32 %v6281, %v6633
        %v6635 = vpop.f32.mrb[0].mxu0
        %v6636 = vadd.f32 %v6283, %v6635
        %6637 = vmatprep.mubr.bf16.mxu0 %v5647
        %6638 = vmatmul.mubr.bf16.gmra.mrb[0].mxu0 %v5646
        %v6639 = vpop.f32.mrb[0].mxu0
        %v6640 = vadd.f32 %v6287, %v6639
        %v6641 = vpop.f32.mrb[0].mxu0
        %v6642 = vadd.f32 %v6289, %v6641
        %v6643 = vpop.f32.mrb[0].mxu0
        %v6644 = vadd.f32 %v6291, %v6643
        %v6645 = vpop.f32.mrb[0].mxu0
        %v6646 = vadd.f32 %v6293, %v6645
        %6647 = vmatprep.mubr.bf16.mxu0 %v5651
        %6648 = vmatmul.mubr.bf16.gmra.mrb[0].mxu0 %v5650
        %v6649 = vpop.f32.mrb[0].mxu0
        %v6650 = vadd.f32 %v6297, %v6649
        %v6651 = vpop.f32.mrb[0].mxu0
        %v6652 = vadd.f32 %v6299, %v6651
        %v6653 = vpop.f32.mrb[0].mxu0
        %v6654 = vadd.f32 %v6301, %v6653
        %v6655 = vpop.f32.mrb[0].mxu0
        %v6656 = vadd.f32 %v6303, %v6655
        %6657 = vmatprep.mubr.bf16.mxu0 %v5655
        %6658 = vmatmul.mubr.bf16.gmra.mrb[0].mxu0 %v5654
        %v6659 = vpop.f32.mrb[0].mxu0
        %v6660 = vadd.f32 %v6307, %v6659
        %v6661 = vpop.f32.mrb[0].mxu0
        %v6662 = vadd.f32 %v6309, %v6661
        %v6663 = vpop.f32.mrb[0].mxu0
        %v6664 = vadd.f32 %v6311, %v6663
        %v6665 = vpop.f32.mrb[0].mxu0
        %v6666 = vadd.f32 %v6313, %v6665
        %6667 = vmatprep.mubr.bf16.mxu0 %v5659
        %6668 = vmatmul.mubr.bf16.gmra.mrb[0].mxu0 %v5658
        %v6669 = vpop.f32.mrb[0].mxu0
        %v6670 = vadd.f32 %v6317, %v6669
        %v6671 = vpop.f32.mrb[0].mxu0
        %v6672 = vadd.f32 %v6319, %v6671
        %v6673 = vpop.f32.mrb[0].mxu0
        %v6674 = vadd.f32 %v6321, %v6673
        %v6675 = vpop.f32.mrb[0].mxu0
        %v6676 = vadd.f32 %v6323, %v6675
        %6677 = vmatprep.mubr.bf16.mxu0 %v5663
        %6678 = vmatmul.mubr.bf16.gmra.mrb[0].mxu0 %v5662
        %v6679 = vpop.f32.mrb[0].mxu0
        %v6680 = vadd.f32 %v6327, %v6679
        %v6681 = vpop.f32.mrb[0].mxu0
        %v6682 = vadd.f32 %v6329, %v6681
        %v6683 = vpop.f32.mrb[0].mxu0
        %v6684 = vadd.f32 %v6331, %v6683
        %v6685 = vpop.f32.mrb[0].mxu0
        %v6686 = vadd.f32 %v6333, %v6685
        %6687 = vmatprep.mubr.bf16.mxu0 %v5667
        %6688 = vmatmul.mubr.bf16.gmra.mrb[0].mxu0 %v5666
        %v6689 = vpop.f32.mrb[0].mxu0
        %v6690 = vadd.f32 %v6337, %v6689
        %v6691 = vpop.f32.mrb[0].mxu0
        %v6692 = vadd.f32 %v6339, %v6691
        %v6693 = vpop.f32.mrb[0].mxu0
        %v6694 = vadd.f32 %v6341, %v6693
        %v6695 = vpop.f32.mrb[0].mxu0
        %v6696 = vadd.f32 %v6343, %v6695
        %6697 = vmatprep.mubr.bf16.mxu0 %v5671
        %6698 = vmatmul.mubr.bf16.gmra.mrb[0].mxu0 %v5670
        %v6699 = vpop.f32.mrb[0].mxu0
        %v6700 = vadd.f32 %v6347, %v6699
        %v6701 = vpop.f32.mrb[0].mxu0
        %v6702 = vadd.f32 %v6349, %v6701
        %v6703 = vpop.f32.mrb[0].mxu0
        %v6704 = vadd.f32 %v6351, %v6703
        %v6705 = vpop.f32.mrb[0].mxu0
        %v6706 = vadd.f32 %v6353, %v6705
        %6707 = vmatprep.mubr.bf16.mxu0 %v5675
        %6708 = vmatmul.mubr.bf16.gmra.mrb[0].mxu0 %v5674
        %v6709 = vpop.f32.mrb[0].mxu0
        %v6710 = vadd.f32 %v6357, %v6709
        %v6711 = vpop.f32.mrb[0].mxu0
        %v6712 = vadd.f32 %v6359, %v6711
        %v6713 = vpop.f32.mrb[0].mxu0
        %v6714 = vadd.f32 %v6361, %v6713
        %v6715 = vpop.f32.mrb[0].mxu0
        %v6716 = vadd.f32 %v6363, %v6715
        %6717 = vmatprep.mubr.bf16.mxu0 %v5679
        %6718 = vmatmul.mubr.bf16.gmra.mrb[0].mxu0 %v5678
        %v6719 = vpop.f32.mrb[0].mxu0
        %v6720 = vadd.f32 %v6367, %v6719
        %v6721 = vpop.f32.mrb[0].mxu0
        %v6722 = vadd.f32 %v6369, %v6721
        %v6723 = vpop.f32.mrb[0].mxu0
        %v6724 = vadd.f32 %v6371, %v6723
        %v6725 = vpop.f32.mrb[0].mxu0
        %v6726 = vadd.f32 %v6373, %v6725
        %6727 = vmatprep.mubr.bf16.mxu0 %v5683
        %6728 = vmatmul.mubr.bf16.gmra.mrb[0].mxu0 %v5682
        %v6729 = vpop.f32.mrb[0].mxu0
        %v6730 = vadd.f32 %v6377, %v6729
        %v6731 = vpop.f32.mrb[0].mxu0
        %v6732 = vadd.f32 %v6379, %v6731
        %v6733 = vpop.f32.mrb[0].mxu0
        %v6734 = vadd.f32 %v6381, %v6733
        %v6735 = vpop.f32.mrb[0].mxu0
        %v6736 = vadd.f32 %v6383, %v6735
        %6737 = vmatprep.mubr.bf16.mxu0 %v5687
        %6738 = vmatmul.mubr.bf16.gmra.mrb[0].mxu0 %v5686
        %v6739 = vpop.f32.mrb[0].mxu0
        %v6740 = vadd.f32 %v6387, %v6739
        %v6741 = vpop.f32.mrb[0].mxu0
        %v6742 = vadd.f32 %v6389, %v6741
        %v6743 = vpop.f32.mrb[0].mxu0
        %v6744 = vadd.f32 %v6391, %v6743
        %v6745 = vpop.f32.mrb[0].mxu0
        %v6746 = vadd.f32 %v6393, %v6745
        %6747 = vmatprep.mubr.bf16.mxu0 %v5691
        %6748 = vmatmul.mubr.bf16.gmra.mrb[0].mxu0 %v5690
        %v6749 = vpop.f32.mrb[0].mxu0
        %v6750 = vadd.f32 %v6397, %v6749
        %v6751 = vpop.f32.mrb[0].mxu0
        %v6752 = vadd.f32 %v6399, %v6751
        %v6753 = vpop.f32.mrb[0].mxu0
        %v6754 = vadd.f32 %v6401, %v6753
        %v6755 = vpop.f32.mrb[0].mxu0
        %v6756 = vadd.f32 %v6403, %v6755
        %6757 = vmatprep.mubr.bf16.mxu0 %v5695
        %6758 = vmatmul.mubr.bf16.gmra.mrb[0].mxu0 %v5694
        %v6759 = vpop.f32.mrb[0].mxu0
        %v6760 = vadd.f32 %v6407, %v6759
        %v6761 = vpop.f32.mrb[0].mxu0
        %v6762 = vadd.f32 %v6409, %v6761
        %v6763 = vpop.f32.mrb[0].mxu0
        %v6764 = vadd.f32 %v6411, %v6763
        %v6765 = vpop.f32.mrb[0].mxu0
        %v6766 = vadd.f32 %v6413, %v6765
        %6767 = vmatprep.mubr.bf16.mxu0 %v5699
        %6768 = vmatmul.mubr.bf16.gmra.mrb[0].mxu0 %v5698
        %v6769 = vpop.f32.mrb[0].mxu0
        %v6770 = vadd.f32 %v6417, %v6769
        %v6771 = vpop.f32.mrb[0].mxu0
        %v6772 = vadd.f32 %v6419, %v6771
        %v6773 = vpop.f32.mrb[0].mxu0
        %v6774 = vadd.f32 %v6421, %v6773
        %v6775 = vpop.f32.mrb[0].mxu0
        %v6776 = vadd.f32 %v6423, %v6775
        %6777 = vmatprep.mubr.bf16.mxu0 %v5703
        %6778 = vmatmul.mubr.bf16.gmra.mrb[0].mxu0 %v5702
        %v6779 = vpop.f32.mrb[0].mxu0
        %v6780 = vadd.f32 %v6427, %v6779
        %v6781 = vpop.f32.mrb[0].mxu0
        %v6782 = vadd.f32 %v6429, %v6781
        %v6783 = vpop.f32.mrb[0].mxu0
        %v6784 = vadd.f32 %v6431, %v6783
        %v6785 = vpop.f32.mrb[0].mxu0
        %v6786 = vadd.f32 %v6433, %v6785
        %6787 = vmatprep.mubr.bf16.mxu0 %v5707
        %6788 = vmatmul.mubr.bf16.gmra.mrb[0].mxu0 %v5706
        %v6789 = vpop.f32.mrb[0].mxu0
        %v6790 = vadd.f32 %v6437, %v6789
        %v6791 = vpop.f32.mrb[0].mxu0
        %v6792 = vadd.f32 %v6439, %v6791
        %v6793 = vpop.f32.mrb[0].mxu0
        %v6794 = vadd.f32 %v6441, %v6793
        %v6795 = vpop.f32.mrb[0].mxu0
        %v6796 = vadd.f32 %v6443, %v6795
        %6797 = vmatprep.mubr.bf16.mxu0 %v5711
        %6798 = vmatmul.mubr.bf16.gmra.mrb[0].mxu0 %v5710
        %v6799 = vpop.f32.mrb[0].mxu0
        %v6800 = vadd.f32 %v6447, %v6799
        %v6801 = vpop.f32.mrb[0].mxu0
        %v6802 = vadd.f32 %v6449, %v6801
        %v6803 = vpop.f32.mrb[0].mxu0
        %v6804 = vadd.f32 %v6451, %v6803
        %v6805 = vpop.f32.mrb[0].mxu0
        %v6806 = vadd.f32 %v6453, %v6805
        %6807 = vmatprep.mubr.bf16.mxu0 %v5715
        %6808 = vmatmul.mubr.bf16.gmra.mrb[0].mxu0 %v5714
        %v6809 = vpop.f32.mrb[0].mxu0
        %v6810 = vadd.f32 %v6457, %v6809
        %v6811 = vpop.f32.mrb[0].mxu0
        %v6812 = vadd.f32 %v6459, %v6811
        %v6813 = vpop.f32.mrb[0].mxu0
        %v6814 = vadd.f32 %v6461, %v6813
        %v6815 = vpop.f32.mrb[0].mxu0
        %v6816 = vadd.f32 %v6463, %v6815
        %6817 = vdwg.mxu0
        %v6818 = vmul.f32 %v6500, 0.01
        %v6819 = vmul.f32 %v6502, 0.01
        %v6820 = vmul.f32 %v6504, 0.01
        %v6821 = vmul.f32 %v6506, 0.01
        %v6822 = vmul.f32 %v6510, 0.01
        %v6823 = vmul.f32 %v6512, 0.01
        %v6824 = vmul.f32 %v6514, 0.01
        %v6825 = vmul.f32 %v6516, 0.01
        %v6826 = vmul.f32 %v6520, 0.01
        %v6827 = vmul.f32 %v6522, 0.01
        %v6828 = vmul.f32 %v6524, 0.01
        %v6829 = vmul.f32 %v6526, 0.01
        %v6830 = vmul.f32 %v6530, 0.01
        %v6831 = vmul.f32 %v6532, 0.01
        %v6832 = vmul.f32 %v6534, 0.01
        %v6833 = vmul.f32 %v6536, 0.01
        %v6834 = vmul.f32 %v6540, 0.01
        %v6835 = vmul.f32 %v6542, 0.01
        %v6836 = vmul.f32 %v6544, 0.01
        %v6837 = vmul.f32 %v6546, 0.01
        %v6838 = vmul.f32 %v6550, 0.01
        %v6839 = vmul.f32 %v6552, 0.01
        %v6840 = vmul.f32 %v6554, 0.01
        %v6841 = vmul.f32 %v6556, 0.01
        %v6842 = vmul.f32 %v6560, 0.01
        %v6843 = vmul.f32 %v6562, 0.01
        %v6844 = vmul.f32 %v6564, 0.01
        %v6845 = vmul.f32 %v6566, 0.01
        %v6846 = vmul.f32 %v6570, 0.01
        %v6847 = vmul.f32 %v6572, 0.01
        %v6848 = vmul.f32 %v6574, 0.01
        %v6849 = vmul.f32 %v6576, 0.01
        %v6850 = vmul.f32 %v6580, 0.01
        %v6851 = vmul.f32 %v6582, 0.01
        %v6852 = vmul.f32 %v6584, 0.01
        %v6853 = vmul.f32 %v6586, 0.01
        %v6854 = vmul.f32 %v6590, 0.01
        %v6855 = vmul.f32 %v6592, 0.01
        %v6856 = vmul.f32 %v6594, 0.01
        %v6857 = vmul.f32 %v6596, 0.01
        %v6858 = vmul.f32 %v6600, 0.01
        %v6859 = vmul.f32 %v6602, 0.01
        %v6860 = vmul.f32 %v6604, 0.01
        %v6861 = vmul.f32 %v6606, 0.01
        %v6862 = vmul.f32 %v6610, 0.01
        %v6863 = vmul.f32 %v6612, 0.01
        %v6864 = vmul.f32 %v6614, 0.01
        %v6865 = vmul.f32 %v6616, 0.01
        %v6866 = vmul.f32 %v6620, 0.01
        %v6867 = vmul.f32 %v6622, 0.01
        %v6868 = vmul.f32 %v6624, 0.01
        %v6869 = vmul.f32 %v6626, 0.01
        %v6870 = vmul.f32 %v6630, 0.01
        %v6871 = vmul.f32 %v6632, 0.01
        %v6872 = vmul.f32 %v6634, 0.01
        %v6873 = vmul.f32 %v6636, 0.01
        %v6874 = vmul.f32 %v6640, 0.01
        %v6875 = vmul.f32 %v6642, 0.01
        %v6876 = vmul.f32 %v6644, 0.01
        %v6877 = vmul.f32 %v6646, 0.01
        %v6878 = vmul.f32 %v6650, 0.01
        %v6879 = vmul.f32 %v6652, 0.01
        %v6880 = vmul.f32 %v6654, 0.01
        %v6881 = vmul.f32 %v6656, 0.01
        %v6882 = vmul.f32 %v6660, 0.01
        %v6883 = vmul.f32 %v6662, 0.01
        %v6884 = vmul.f32 %v6664, 0.01
        %v6885 = vmul.f32 %v6666, 0.01
        %v6886 = vmul.f32 %v6670, 0.01
        %v6887 = vmul.f32 %v6672, 0.01
        %v6888 = vmul.f32 %v6674, 0.01
        %v6889 = vmul.f32 %v6676, 0.01
        %v6890 = vmul.f32 %v6680, 0.01
        %v6891 = vmul.f32 %v6682, 0.01
        %v6892 = vmul.f32 %v6684, 0.01
        %v6893 = vmul.f32 %v6686, 0.01
        %v6894 = vmul.f32 %v6690, 0.01
        %v6895 = vmul.f32 %v6692, 0.01
        %v6896 = vmul.f32 %v6694, 0.01
        %v6897 = vmul.f32 %v6696, 0.01
        %v6898 = vmul.f32 %v6700, 0.01
        %v6899 = vmul.f32 %v6702, 0.01
        %v6900 = vmul.f32 %v6704, 0.01
        %v6901 = vmul.f32 %v6706, 0.01
        %v6902 = vmul.f32 %v6710, 0.01
        %v6903 = vmul.f32 %v6712, 0.01
        %v6904 = vmul.f32 %v6714, 0.01
        %v6905 = vmul.f32 %v6716, 0.01
        %v6906 = vmul.f32 %v6720, 0.01
        %v6907 = vmul.f32 %v6722, 0.01
        %v6908 = vmul.f32 %v6724, 0.01
        %v6909 = vmul.f32 %v6726, 0.01
        %v6910 = vmul.f32 %v6730, 0.01
        %v6911 = vmul.f32 %v6732, 0.01
        %v6912 = vmul.f32 %v6734, 0.01
        %v6913 = vmul.f32 %v6736, 0.01
        %v6914 = vmul.f32 %v6740, 0.01
        %v6915 = vmul.f32 %v6742, 0.01
        %v6916 = vmul.f32 %v6744, 0.01
        %v6917 = vmul.f32 %v6746, 0.01
        %v6918 = vmul.f32 %v6750, 0.01
        %v6919 = vmul.f32 %v6752, 0.01
        %v6920 = vmul.f32 %v6754, 0.01
        %v6921 = vmul.f32 %v6756, 0.01
        %v6922 = vmul.f32 %v6760, 0.01
        %v6923 = vmul.f32 %v6762, 0.01
        %v6924 = vmul.f32 %v6764, 0.01
        %v6925 = vmul.f32 %v6766, 0.01
        %v6926 = vmul.f32 %v6770, 0.01
        %v6927 = vmul.f32 %v6772, 0.01
        %v6928 = vmul.f32 %v6774, 0.01
        %v6929 = vmul.f32 %v6776, 0.01
        %v6930 = vmul.f32 %v6780, 0.01
        %v6931 = vmul.f32 %v6782, 0.01
        %v6932 = vmul.f32 %v6784, 0.01
        %v6933 = vmul.f32 %v6786, 0.01
        %v6934 = vmul.f32 %v6790, 0.01
        %v6935 = vmul.f32 %v6792, 0.01
        %v6936 = vmul.f32 %v6794, 0.01
        %v6937 = vmul.f32 %v6796, 0.01
        %v6938 = vmul.f32 %v6800, 0.01
        %v6939 = vmul.f32 %v6802, 0.01
        %v6940 = vmul.f32 %v6804, 0.01
        %v6941 = vmul.f32 %v6806, 0.01
        %v6942 = vmul.f32 %v6810, 0.01
        %v6943 = vmul.f32 %v6812, 0.01
        %v6944 = vmul.f32 %v6814, 0.01
        %v6945 = vmul.f32 %v6816, 0.01
        %v6946 = vmax.f32 %v6500, %v6818
        %v6947 = vmax.f32 %v6502, %v6819
        %v6948 = vmax.f32 %v6504, %v6820
        %v6949 = vmax.f32 %v6506, %v6821
        %v6950 = vmax.f32 %v6510, %v6822
        %v6951 = vmax.f32 %v6512, %v6823
        %v6952 = vmax.f32 %v6514, %v6824
        %v6953 = vmax.f32 %v6516, %v6825
        %v6954 = vmax.f32 %v6520, %v6826
        %v6955 = vmax.f32 %v6522, %v6827
        %v6956 = vmax.f32 %v6524, %v6828
        %v6957 = vmax.f32 %v6526, %v6829
        %v6958 = vmax.f32 %v6530, %v6830
        %v6959 = vmax.f32 %v6532, %v6831
        %v6960 = vmax.f32 %v6534, %v6832
        %v6961 = vmax.f32 %v6536, %v6833
        %v6962 = vmax.f32 %v6540, %v6834
        %v6963 = vmax.f32 %v6542, %v6835
        %v6964 = vmax.f32 %v6544, %v6836
        %v6965 = vmax.f32 %v6546, %v6837
        %v6966 = vmax.f32 %v6550, %v6838
        %v6967 = vmax.f32 %v6552, %v6839
        %v6968 = vmax.f32 %v6554, %v6840
        %v6969 = vmax.f32 %v6556, %v6841
        %v6970 = vmax.f32 %v6560, %v6842
        %v6971 = vmax.f32 %v6562, %v6843
        %v6972 = vmax.f32 %v6564, %v6844
        %v6973 = vmax.f32 %v6566, %v6845
        %v6974 = vmax.f32 %v6570, %v6846
        %v6975 = vmax.f32 %v6572, %v6847
        %v6976 = vmax.f32 %v6574, %v6848
        %v6977 = vmax.f32 %v6576, %v6849
        %v6978 = vmax.f32 %v6580, %v6850
        %v6979 = vmax.f32 %v6582, %v6851
        %v6980 = vmax.f32 %v6584, %v6852
        %v6981 = vmax.f32 %v6586, %v6853
        %v6982 = vmax.f32 %v6590, %v6854
        %v6983 = vmax.f32 %v6592, %v6855
        %v6984 = vmax.f32 %v6594, %v6856
        %v6985 = vmax.f32 %v6596, %v6857
        %v6986 = vmax.f32 %v6600, %v6858
        %v6987 = vmax.f32 %v6602, %v6859
        %v6988 = vmax.f32 %v6604, %v6860
        %v6989 = vmax.f32 %v6606, %v6861
        %v6990 = vmax.f32 %v6610, %v6862
        %v6991 = vmax.f32 %v6612, %v6863
        %v6992 = vmax.f32 %v6614, %v6864
        %v6993 = vmax.f32 %v6616, %v6865
        %v6994 = vmax.f32 %v6620, %v6866
        %v6995 = vmax.f32 %v6622, %v6867
        %v6996 = vmax.f32 %v6624, %v6868
        %v6997 = vmax.f32 %v6626, %v6869
        %v6998 = vmax.f32 %v6630, %v6870
        %v6999 = vmax.f32 %v6632, %v6871
        %v7000 = vmax.f32 %v6634, %v6872
        %v7001 = vmax.f32 %v6636, %v6873
        %v7002 = vmax.f32 %v6640, %v6874
        %v7003 = vmax.f32 %v6642, %v6875
        %v7004 = vmax.f32 %v6644, %v6876
        %v7005 = vmax.f32 %v6646, %v6877
        %v7006 = vmax.f32 %v6650, %v6878
        %v7007 = vmax.f32 %v6652, %v6879
        %v7008 = vmax.f32 %v6654, %v6880
        %v7009 = vmax.f32 %v6656, %v6881
        %v7010 = vmax.f32 %v6660, %v6882
        %v7011 = vmax.f32 %v6662, %v6883
        %v7012 = vmax.f32 %v6664, %v6884
        %v7013 = vmax.f32 %v6666, %v6885
        %v7014 = vmax.f32 %v6670, %v6886
        %v7015 = vmax.f32 %v6672, %v6887
        %v7016 = vmax.f32 %v6674, %v6888
        %v7017 = vmax.f32 %v6676, %v6889
        %v7018 = vmax.f32 %v6680, %v6890
        %v7019 = vmax.f32 %v6682, %v6891
        %v7020 = vmax.f32 %v6684, %v6892
        %v7021 = vmax.f32 %v6686, %v6893
        %v7022 = vmax.f32 %v6690, %v6894
        %v7023 = vmax.f32 %v6692, %v6895
        %v7024 = vmax.f32 %v6694, %v6896
        %v7025 = vmax.f32 %v6696, %v6897
        %v7026 = vmax.f32 %v6700, %v6898
        %v7027 = vmax.f32 %v6702, %v6899
        %v7028 = vmax.f32 %v6704, %v6900
        %v7029 = vmax.f32 %v6706, %v6901
        %v7030 = vmax.f32 %v6710, %v6902
        %v7031 = vmax.f32 %v6712, %v6903
        %v7032 = vmax.f32 %v6714, %v6904
        %v7033 = vmax.f32 %v6716, %v6905
        %v7034 = vmax.f32 %v6720, %v6906
        %v7035 = vmax.f32 %v6722, %v6907
        %v7036 = vmax.f32 %v6724, %v6908
        %v7037 = vmax.f32 %v6726, %v6909
        %v7038 = vmax.f32 %v6730, %v6910
        %v7039 = vmax.f32 %v6732, %v6911
        %v7040 = vmax.f32 %v6734, %v6912
        %v7041 = vmax.f32 %v6736, %v6913
        %v7042 = vmax.f32 %v6740, %v6914
        %v7043 = vmax.f32 %v6742, %v6915
        %v7044 = vmax.f32 %v6744, %v6916
        %v7045 = vmax.f32 %v6746, %v6917
        %v7046 = vmax.f32 %v6750, %v6918
        %v7047 = vmax.f32 %v6752, %v6919
        %v7048 = vmax.f32 %v6754, %v6920
        %v7049 = vmax.f32 %v6756, %v6921
        %v7050 = vmax.f32 %v6760, %v6922
        %v7051 = vmax.f32 %v6762, %v6923
        %v7052 = vmax.f32 %v6764, %v6924
        %v7053 = vmax.f32 %v6766, %v6925
        %v7054 = vmax.f32 %v6770, %v6926
        %v7055 = vmax.f32 %v6772, %v6927
        %v7056 = vmax.f32 %v6774, %v6928
        %v7057 = vmax.f32 %v6776, %v6929
        %v7058 = vmax.f32 %v6780, %v6930
        %v7059 = vmax.f32 %v6782, %v6931
        %v7060 = vmax.f32 %v6784, %v6932
        %v7061 = vmax.f32 %v6786, %v6933
        %v7062 = vmax.f32 %v6790, %v6934
        %v7063 = vmax.f32 %v6792, %v6935
        %v7064 = vmax.f32 %v6794, %v6936
        %v7065 = vmax.f32 %v6796, %v6937
        %v7066 = vmax.f32 %v6800, %v6938
        %v7067 = vmax.f32 %v6802, %v6939
        %v7068 = vmax.f32 %v6804, %v6940
        %v7069 = vmax.f32 %v6806, %v6941
        %v7070 = vmax.f32 %v6810, %v6942
        %v7071 = vmax.f32 %v6812, %v6943
        %v7072 = vmax.f32 %v6814, %v6944
        %v7073 = vmax.f32 %v6816, %v6945
        %v7074 = vpack.c.bf16 %v6948, %v6946
        %v7075 = vpack.c.bf16 %v6949, %v6947
        %v7076 = vpack.c.bf16 %v6952, %v6950
        %v7077 = vpack.c.bf16 %v6953, %v6951
        %v7078 = vpack.c.bf16 %v6956, %v6954
        %v7079 = vpack.c.bf16 %v6957, %v6955
        %v7080 = vpack.c.bf16 %v6960, %v6958
        %v7081 = vpack.c.bf16 %v6961, %v6959
        %v7082 = vpack.c.bf16 %v6964, %v6962
        %v7083 = vpack.c.bf16 %v6965, %v6963
        %v7084 = vpack.c.bf16 %v6968, %v6966
        %v7085 = vpack.c.bf16 %v6969, %v6967
        %v7086 = vpack.c.bf16 %v6972, %v6970
        %v7087 = vpack.c.bf16 %v6973, %v6971
        %v7088 = vpack.c.bf16 %v6976, %v6974
        %v7089 = vpack.c.bf16 %v6977, %v6975
        %v7090 = vpack.c.bf16 %v6980, %v6978
        %v7091 = vpack.c.bf16 %v6981, %v6979
        %v7092 = vpack.c.bf16 %v6984, %v6982
        %v7093 = vpack.c.bf16 %v6985, %v6983
        %v7094 = vpack.c.bf16 %v6988, %v6986
        %v7095 = vpack.c.bf16 %v6989, %v6987
        %v7096 = vpack.c.bf16 %v6992, %v6990
        %v7097 = vpack.c.bf16 %v6993, %v6991
        %v7098 = vpack.c.bf16 %v6996, %v6994
        %v7099 = vpack.c.bf16 %v6997, %v6995
        %v7100 = vpack.c.bf16 %v7000, %v6998
        %v7101 = vpack.c.bf16 %v7001, %v6999
        %v7102 = vpack.c.bf16 %v7004, %v7002
        %v7103 = vpack.c.bf16 %v7005, %v7003
        %v7104 = vpack.c.bf16 %v7008, %v7006
        %v7105 = vpack.c.bf16 %v7009, %v7007
        %v7106 = vpack.c.bf16 %v7012, %v7010
        %v7107 = vpack.c.bf16 %v7013, %v7011
        %v7108 = vpack.c.bf16 %v7016, %v7014
        %v7109 = vpack.c.bf16 %v7017, %v7015
        %v7110 = vpack.c.bf16 %v7020, %v7018
        %v7111 = vpack.c.bf16 %v7021, %v7019
        %v7112 = vpack.c.bf16 %v7024, %v7022
        %v7113 = vpack.c.bf16 %v7025, %v7023
        %v7114 = vpack.c.bf16 %v7028, %v7026
        %v7115 = vpack.c.bf16 %v7029, %v7027
        %v7116 = vpack.c.bf16 %v7032, %v7030
        %v7117 = vpack.c.bf16 %v7033, %v7031
        %v7118 = vpack.c.bf16 %v7036, %v7034
        %v7119 = vpack.c.bf16 %v7037, %v7035
        %v7120 = vpack.c.bf16 %v7040, %v7038
        %v7121 = vpack.c.bf16 %v7041, %v7039
        %v7122 = vpack.c.bf16 %v7044, %v7042
        %v7123 = vpack.c.bf16 %v7045, %v7043
        %v7124 = vpack.c.bf16 %v7048, %v7046
        %v7125 = vpack.c.bf16 %v7049, %v7047
        %v7126 = vpack.c.bf16 %v7052, %v7050
        %v7127 = vpack.c.bf16 %v7053, %v7051
        %v7128 = vpack.c.bf16 %v7056, %v7054
        %v7129 = vpack.c.bf16 %v7057, %v7055
        %v7130 = vpack.c.bf16 %v7060, %v7058
        %v7131 = vpack.c.bf16 %v7061, %v7059
        %v7132 = vpack.c.bf16 %v7064, %v7062
        %v7133 = vpack.c.bf16 %v7065, %v7063
        %v7134 = vpack.c.bf16 %v7068, %v7066
        %v7135 = vpack.c.bf16 %v7069, %v7067
        %v7136 = vpack.c.bf16 %v7072, %v7070
        %v7137 = vpack.c.bf16 %v7073, %v7071
        %v7138 = vld [vmem:[%s5] sm:$0xff]
        %s7139 = sld [smem:[#allocation2]]
        %v7140 = vstv %s7139
        %v7142 = vunpack.c.l.b16 %v7138
        %v7143 = vunpack.c.h.b16 %v7138
        %v7144 = vpack.c.b16 %v7142, %v7142
        %v7145 = vpack.c.b16 %v7143, %v7143
        %7148 = vmatprep.subr.bf16.mxu0 %v7075
        %7149 = vmatpush1.bf16.xpose.msra.mxu0 %v7074
        %7150 = vmatprep.subr.bf16.mxu0 %v7077
        %7151 = vmatpush1.bf16.xpose.msra.mxu0 %v7076
        %7152 = vmatprep.subr.bf16.mxu0 %v7079
        %7153 = vmatpush1.bf16.xpose.msra.mxu0 %v7078
        %7154 = vmatprep.subr.bf16.mxu0 %v7081
        %7155 = vmatpush1.bf16.xpose.msra.mxu0 %v7080
        %7156 = vmatprep.subr.bf16.mxu0 %v7083
        %7157 = vmatpush1.bf16.xpose.msra.mxu0 %v7082
        %7158 = vmatprep.subr.bf16.mxu0 %v7085
        %7159 = vmatpush1.bf16.xpose.msra.mxu0 %v7084
        %7160 = vmatprep.subr.bf16.mxu0 %v7087
        %7161 = vmatpush1.bf16.xpose.msra.mxu0 %v7086
        %7162 = vmatprep.subr.bf16.mxu0 %v7089
        %7163 = vmatpush1.bf16.xpose.msra.mxu0 %v7088
        %7164 = vmatprep.subr.bf16.mxu0 %v7091
        %7165 = vmatpush1.bf16.xpose.msra.mxu0 %v7090
        %7166 = vmatprep.subr.bf16.mxu0 %v7093
        %7167 = vmatpush1.bf16.xpose.msra.mxu0 %v7092
        %7168 = vmatprep.subr.bf16.mxu0 %v7095
        %7169 = vmatpush1.bf16.xpose.msra.mxu0 %v7094
        %7170 = vmatprep.subr.bf16.mxu0 %v7097
        %7171 = vmatpush1.bf16.xpose.msra.mxu0 %v7096
        %7172 = vmatprep.subr.bf16.mxu0 %v7099
        %7173 = vmatpush1.bf16.xpose.msra.mxu0 %v7098
        %7174 = vmatprep.subr.bf16.mxu0 %v7101
        %7175 = vmatpush1.bf16.xpose.msra.mxu0 %v7100
        %7176 = vmatprep.subr.bf16.mxu0 %v7103
        %7177 = vmatpush1.bf16.xpose.msra.mxu0 %v7102
        %7178 = vmatprep.subr.bf16.mxu0 %v7105
        %7179 = vmatpush1.bf16.xpose.msra.mxu0 %v7104
        %7180 = vmatprep.mubr.bf16.mxu0 %v7145
        %7181 = vmatmul.mubr.bf16.gmra.mrb[0].mxu0 %v7144
        %v7182 = vpop.f32.mrb[0].mxu0
        %v7183 = vadd.f32 %v7140, %v7182
        %v7184 = vpop.f32.mrb[0].mxu0
        %v7185 = vadd.f32 %v7140, %v7184
        %v7186 = vpop.f32.mrb[0].mxu0
        %v7187 = vpop.f32.mrb[0].mxu0
        %7188 = vdwg.mxu0
        %7189 = vmatprep.subr.bf16.mxu0 %v7107
        %7190 = vmatpush1.bf16.xpose.msra.mxu0 %v7106
        %7191 = vmatprep.subr.bf16.mxu0 %v7109
        %7192 = vmatpush1.bf16.xpose.msra.mxu0 %v7108
        %7193 = vmatprep.subr.bf16.mxu0 %v7111
        %7194 = vmatpush1.bf16.xpose.msra.mxu0 %v7110
        %7195 = vmatprep.subr.bf16.mxu0 %v7113
        %7196 = vmatpush1.bf16.xpose.msra.mxu0 %v7112
        %7197 = vmatprep.subr.bf16.mxu0 %v7115
        %7198 = vmatpush1.bf16.xpose.msra.mxu0 %v7114
        %7199 = vmatprep.subr.bf16.mxu0 %v7117
        %7200 = vmatpush1.bf16.xpose.msra.mxu0 %v7116
        %7201 = vmatprep.subr.bf16.mxu0 %v7119
        %7202 = vmatpush1.bf16.xpose.msra.mxu0 %v7118
        %7203 = vmatprep.subr.bf16.mxu0 %v7121
        %7204 = vmatpush1.bf16.xpose.msra.mxu0 %v7120
        %7205 = vmatprep.subr.bf16.mxu0 %v7123
        %7206 = vmatpush1.bf16.xpose.msra.mxu0 %v7122
        %7207 = vmatprep.subr.bf16.mxu0 %v7125
        %7208 = vmatpush1.bf16.xpose.msra.mxu0 %v7124
        %7209 = vmatprep.subr.bf16.mxu0 %v7127
        %7210 = vmatpush1.bf16.xpose.msra.mxu0 %v7126
        %7211 = vmatprep.subr.bf16.mxu0 %v7129
        %7212 = vmatpush1.bf16.xpose.msra.mxu0 %v7128
        %7213 = vmatprep.subr.bf16.mxu0 %v7131
        %7214 = vmatpush1.bf16.xpose.msra.mxu0 %v7130
        %7215 = vmatprep.subr.bf16.mxu0 %v7133
        %7216 = vmatpush1.bf16.xpose.msra.mxu0 %v7132
        %7217 = vmatprep.subr.bf16.mxu0 %v7135
        %7218 = vmatpush1.bf16.xpose.msra.mxu0 %v7134
        %7219 = vmatprep.subr.bf16.mxu0 %v7137
        %7220 = vmatpush1.bf16.xpose.msra.mxu0 %v7136
        %7221 = vmatprep.mubr.bf16.mxu0 %v7145
        %7222 = vmatmul.mubr.bf16.gmra.mrb[0].mxu0 %v7144
        %v7223 = vpop.f32.mrb[0].mxu0
        %v7224 = vadd.f32 %v7140, %v7223
        %v7225 = vpop.f32.mrb[0].mxu0
        %v7226 = vadd.f32 %v7140, %v7225
        %v7227 = vpop.f32.mrb[0].mxu0
        %v7228 = vpop.f32.mrb[0].mxu0
        %7229 = vdwg.mxu0
        %v7230 = vsub.f32 0.0, %v7183
        %v7231 = vsub.f32 0.0, %v7185
        %v7232 = vsub.f32 0.0, %v7224
        %v7233 = vsub.f32 0.0, %v7226
        %v7234 = vmul.f32 %v7230, 1.442695
        %v7235 = vpow.pop %v7234
        %v7236 = vmul.f32 %v7231, 1.442695
        %v7237 = vpow.pop %v7236
        %v7238 = vmul.f32 %v7232, 1.442695
        %v7239 = vpow.pop %v7238
        %v7240 = vmul.f32 %v7233, 1.442695
        %v7241 = vpow.pop %v7240
        %v7242 = vadd.f32 %v7235, 1.0
        %v7243 = vadd.f32 %v7237, 1.0
        %v7244 = vadd.f32 %v7239, 1.0
        %v7245 = vadd.f32 %v7241, 1.0
        %v7246 = vrcp.pop %v7242
        %v7247 = vrcp.pop %v7243
        %v7248 = vrcp.pop %v7244
        %v7249 = vrcp.pop %v7245
        %7250 = vst [vmem:[%s275] sm:$0xff] %v7246
        %7251 = vst [vmem:[%s275 + $0x8] sm:$0xff] %v7247
        %7252 = vst [vmem:[%s275 + $0x10] sm:$0xff] %v7248
        %7253 = vst [vmem:[%s275 + $0x18] sm:$0xff] %v7249
        %s7254 = sand.u32 %s182, 1
        %s7255 = scalar_lea.sflag [#allocation4], %s7254
        %s7256 = sand.u32 %s182, 1
        %s7257 = smul.addr %s7256, 32
        %s7258 = scalar_lea.vmem [#allocation3], %s7257
        // Predicated region
        $region49: #{tpu_custom_call.1} parent=47 // pred_check
          %p7259 = pneg %p192
        $region50: #{tpu_custom_call.1} parent=47 // pred_check_branch
          %7261 = sbr.rel (%p7259) target = $region52
        $region51: #{tpu_custom_call.1} parent=47 // pred_region
          %s7262 = smul.u32 4, %s22
          %s7264 = ssub.s32 512, 512
          %7265 = vsyncadd %s7255, %s7264
          %s7266 = smul.addr %s7262, 128
          %s7267 = scalar_lea.hbm %s7, %s7266
          %s7269 = sshll.u32 %s7258, 4
          %s7270 = int_to_ptr.vmem [resolvable:$true] %s7269
          %7272 = dma.vmem_to_hbm [thread:$0]  %s7270, 512, %s7267, %s7255
        $region52: #{tpu_custom_call.1} parent=47 // pred_fallthru
          _
      $region48: #{tpu_custom_call.1} parent=5 // pred_fallthru
        _
      %p7273 = scmp.le.s32.totalorder 2, %s17
      // Predicated region
      $region53: #{tpu_custom_call.1} parent=5 // pred_check
        %p7274 = pneg %p7273
      $region54: #{tpu_custom_call.1} parent=5 // pred_check_branch
        %7276 = sbr.rel (%p7274) target = $region56
      $region55: #{tpu_custom_call.1} parent=5 // pred_region
        %s7277 = ssub.s32 %s17, 2
        // Predicated region
        $region57: #{tpu_custom_call.1} parent=55 // pred_check
          %p7278 = pneg %p198
        $region58: #{tpu_custom_call.1} parent=55 // pred_check_branch
          %7280 = sbr.rel (%p7278) target = $region60
        $region59: #{tpu_custom_call.1} parent=55 // pred_region
          %s7281 = sand.u32 %s183, 1
          %s7282 = scalar_lea.sflag [#allocation4], %s7281
          %s7283 = sand.u32 %s183, 1
          %s7284 = smul.addr %s7283, 32
          %s7285 = scalar_lea.vmem [#allocation3], %s7284
          %7286 = dma.done %s7282, 512
        $region60: #{tpu_custom_call.1} parent=55 // pred_fallthru
          _
      $region56: #{tpu_custom_call.1} parent=5 // pred_fallthru
        _
    $region6: #{tpu_custom_call.1} parent=1 // loop_footer
      %s21 = sadd.s32 1, %s17
    $region7: #{tpu_custom_call.1} parent=1 // loop_footer_branch
      %16 = sbr.rel target = $region3
    $region8: #{tpu_custom_call.1} parent=1 // loop_exit
      _
    %7287 = vsyncpa [#allocation4], 1
    %s7288 = scalar_lea.sflag [#allocation4], 1
    %7289 = vsyncpa %s7288, 1

</llo_original>
